<compile_context>
chip_gen: v6e
topology: v6e:2x2x1
jax: 0.10.0
libtpu: 0.0.40
codegen_flags: <defaults>
</compile_context>

<pallas_src>
import jax
import jax.numpy as jnp
import numpy as np
from jax.experimental import pallas as pl
from jax.experimental.pallas import tpu as pltpu

EPS = 1e-5
CP = 128  # output-channel padding -> lane-dense matmuls everywhere


def _make_block_kernel(BT, H, W, Cin, Cout, has_residual):
    """Fused BasicBlock kernel for BT images per grid step (NHWC staging)."""
    M = H * W
    BM = BT * M

    def zero_halo(scr, C):
        # re-zero only the 1-pixel halo ring; the interior is rewritten below.
        z_row = jnp.zeros((BT, 1, W + 2, C), jnp.float32)
        z_col = jnp.zeros((BT, H + 2, 1, C), jnp.float32)
        scr[:, 0:1, :, :] = z_row
        scr[:, H + 1:H + 2, :, :] = z_row
        scr[:, :, 0:1, :] = z_col
        scr[:, :, W + 1:W + 2, :] = z_col

    def im2col(scr, C):
        cols = []
        for dy in range(3):
            for dx in range(3):
                win = scr[:, dy:dy + H, dx:dx + W, :]
                cols.append(win.reshape(BM, C).astype(jnp.bfloat16))
        return jnp.concatenate(cols, axis=-1)           # (BM, 9*C) bf16

    def kernel(*refs):
        if has_residual:
            (x_ref, w1_ref, s1_ref, w2_ref, s2_ref, wr_ref, sr_ref,
             o_ref, xp_scr, y1_scr) = refs
        else:
            (x_ref, w1_ref, s1_ref, w2_ref, s2_ref,
             o_ref, xp_scr, y1_scr) = refs

        zero_halo(xp_scr, Cin)
        zero_halo(y1_scr, CP)

        # ---- stage the (already NHWC) input tile inside its halo ----------
        xp_scr[:, 1:H + 1, 1:W + 1, :] = x_ref[...]

        # ---- shared im2col for conv1 (and the residual conv) --------------
        p1 = im2col(xp_scr, Cin)                        # (BM, 9*Cin) bf16

        # conv1 + folded(bias, BN) + ReLU   (Dropout = identity in eval mode)
        t1 = jnp.dot(p1, w1_ref[...], preferred_element_type=jnp.float32)
        y1 = jnp.maximum(t1 + s1_ref[...], 0.0)         # (BM, CP) f32

        # ---- stage conv1 output inside its halo for conv2's 3x3 window ----
        y1_scr[:, 1:H + 1, 1:W + 1, :] = y1.reshape(BT, H, W, CP)

        # ---- conv2 as ONE big-K matmul: (BM, 9*CP) @ (9*CP, CP) ------------
        p2 = im2col(y1_scr, CP)                         # (BM, 9*CP) bf16
        out = jnp.dot(p2, w2_ref[...], preferred_element_type=jnp.float32)
        out = jnp.maximum(out + s2_ref[...], 0.0)       # conv2 + BN + ReLU

        if has_residual:
            # residual conv + BN (no ReLU), added after the second ReLU,
            # exactly as the PyTorch forward does when shapes differ.
            r = jnp.dot(p1, wr_ref[...], preferred_element_type=jnp.float32)
            out = out + (r + sr_ref[...])

        # ---- emit the unpadded result directly in NCHW layout --------------
        # one XLU transpose per image; store is (Cout, H*W): lane-dense.
        for b in range(BT):
            img = out[b * M:(b + 1) * M, :]             # (M, CP) f32
            o_ref[b] = jnp.transpose(img)[:Cout, :]     # (Cout, M)

    return kernel


def _fold_bn(w, b, gamma, beta, mean, var):
    """Fold conv bias + eval-mode BatchNorm into the weights and a shift."""
    s = gamma * jax.lax.rsqrt(var + EPS)
    wf = (w * s).astype(jnp.float32)                        # (3,3,Cin,Cout)
    shift = ((b - mean) * s + beta).astype(jnp.float32)     # (Cout,)
    cout = w.shape[-1]
    wf = jnp.pad(wf, ((0, 0), (0, 0), (0, 0), (0, CP - cout)))
    shift = jnp.pad(shift, ((0, CP - cout),)).reshape(1, CP)
    return wf, shift


def basic_block_forward(x_nchw, p, *, batch_tile=None):
    """Forward pass matching BasicBlock.forward (inference semantics)."""
    x_nchw = x_nchw.astype(jnp.float32)
    N, Cin, H, W = x_nchw.shape
    Cout = p["w1"].shape[-1]
    has_residual = (Cin != Cout)   # PyTorch: residual added iff shapes differ
    assert Cin <= CP and Cout <= CP
    M = H * W

    # images per grid step (folded into the matmul M dimension).
    if batch_tile is None:
        batch_tile = min(N, 4)
        while N % batch_tile:
            batch_tile -= 1
    BT = batch_tile

    # TODO(synk): fuse this NCHW->NHWC input transpose into the kernel (XLU)
    #             to drop one extra HBM round trip of the input.
    x = jnp.transpose(x_nchw, (0, 2, 3, 1))                 # (N, H, W, Cin)

    # trace-time folding of bias + BN into weights / shifts; bf16 operands.
    w1f, s1 = _fold_bn(p["w1"], p["b1"], p["g1"], p["be1"], p["m1"], p["v1"])
    w2f, s2 = _fold_bn(p["w2"], p["b2"], p["g2"], p["be2"], p["m2"], p["v2"])
    w1b = w1f.reshape(9 * Cin, CP).astype(jnp.bfloat16)
    # conv2 consumes the CP-padded intermediate: pad its input-channel dim too.
    w2f = jnp.pad(w2f, ((0, 0), (0, 0), (0, CP - Cout), (0, 0)))  # (3,3,CP,CP)
    w2b = w2f.reshape(9 * CP, CP).astype(jnp.bfloat16)

    inputs = [x, w1b, s1, w2b, s2]
    in_specs = [
        pl.BlockSpec((BT, H, W, Cin), lambda n: (n, 0, 0, 0)),
        pl.BlockSpec((9 * Cin, CP), lambda n: (0, 0)),
        pl.BlockSpec((1, CP), lambda n: (0, 0)),
        pl.BlockSpec((9 * CP, CP), lambda n: (0, 0)),
        pl.BlockSpec((1, CP), lambda n: (0, 0)),
    ]
    if has_residual:
        wrf, sr = _fold_bn(p["wr"], p["br"], p["gr"], p["ber"], p["mr"], p["vr"])
        wrb = wrf.reshape(9 * Cin, CP).astype(jnp.bfloat16)
        inputs += [wrb, sr]
        in_specs += [
            pl.BlockSpec((9 * Cin, CP), lambda n: (0, 0)),
            pl.BlockSpec((1, CP), lambda n: (0, 0)),
        ]

    kernel = _make_block_kernel(BT, H, W, Cin, Cout, has_residual)

    n_mm1 = 2 if has_residual else 1
    flops = 2 * N * M * (9 * Cin * CP * n_mm1 + 9 * CP * CP)
    bytes_accessed = (4 * x.size + 4 * N * Cout * M
                      + 2 * (w1b.size + w2b.size)
                      + (2 * w1b.size if has_residual else 0)
                      + 4 * 3 * CP)

    # TODO(synk): for large feature maps add a spatial row-strip grid axis
    #             (1-row halo) + vmem_limit_bytes so staging fits v7x VMEM.
    out = pl.pallas_call(
        kernel,
        out_shape=jax.ShapeDtypeStruct((N, Cout, M), jnp.float32),
        grid=(N // BT,),
        in_specs=in_specs,
        out_specs=pl.BlockSpec((BT, Cout, M), lambda n: (n, 0, 0)),
        scratch_shapes=[
            pltpu.VMEM((BT, H + 2, W + 2, Cin), jnp.float32),  # padded input
            pltpu.VMEM((BT, H + 2, W + 2, CP), jnp.float32),   # padded conv1
        ],
        compiler_params=pltpu.CompilerParams(
            dimension_semantics=("parallel",)),
        cost_estimate=pl.CostEstimate(
            flops=flops, transcendentals=0, bytes_accessed=bytes_accessed),
    )(*inputs)

    return out.reshape(N, Cout, H, W)     # metadata-only reshape, NCHW output


def ref_forward(x_nchw, p):
    """Pure-JAX reference (XLA conv, f32) for correctness checking."""
    x = jnp.transpose(x_nchw, (0, 2, 3, 1))

    def cb(inp, w, b, g, be, m, v, relu):
        y = jax.lax.conv_general_dilated(
            inp, w, (1, 1), "SAME",
            dimension_numbers=("NHWC", "HWIO", "NHWC")) + b
        y = (y - m) * g / jnp.sqrt(v + EPS) + be
        return jnp.maximum(y, 0.0) if relu else y

    o1 = cb(x, p["w1"], p["b1"], p["g1"], p["be1"], p["m1"], p["v1"], True)
    o2 = cb(o1, p["w2"], p["b2"], p["g2"], p["be2"], p["m2"], p["v2"], True)
    if x.shape[-1] != p["w1"].shape[-1]:
        r = cb(x, p["wr"], p["br"], p["gr"], p["ber"], p["mr"], p["vr"], False)
        o2 = o2 + r
    return jnp.transpose(o2, (0, 3, 1, 2))


if __name__ == "__main__":
    N, Cin, H, W = 2, 4, 16, 16
    Cout = 8  # != Cin so the residual branch is exercised

    key = jax.random.PRNGKey(0)
    k_x, k1, k2, k3, kb1, kb2, kb3 = jax.random.split(key, 7)

    def conv_init(k, cin, cout):
        kw, kb = jax.random.split(k)
        bound = 1.0 / np.sqrt(cin * 9)
        w = jax.random.uniform(kw, (3, 3, cin, cout), jnp.float32, -bound, bound)
        b = jax.random.uniform(kb, (cout,), jnp.float32, -bound, bound)
        return w, b

    def bn_init(k, cout):  # non-trivial running stats to exercise the BN fold
        kg, kb, km, kv = jax.random.split(k, 4)
        g = jax.random.uniform(kg, (cout,), jnp.float32, 0.8, 1.2)
        be = 0.1 * jax.random.normal(kb, (cout,), jnp.float32)
        m = 0.1 * jax.random.normal(km, (cout,), jnp.float32)
        v = jax.random.uniform(kv, (cout,), jnp.float32, 0.5, 1.5)
        return g, be, m, v

    w1, b1 = conv_init(k1, Cin, Cout)
    w2, b2 = conv_init(k2, Cout, Cout)
    wr, br = conv_init(k3, Cin, Cout)
    g1, be1, m1, v1 = bn_init(kb1, Cout)
    g2, be2, m2, v2 = bn_init(kb2, Cout)
    gr, ber, mr, vr = bn_init(kb3, Cout)

    params = dict(
        w1=w1, b1=b1, g1=g1, be1=be1, m1=m1, v1=v1,
        w2=w2, b2=b2, g2=g2, be2=be2, m2=m2, v2=v2,
        wr=wr, br=br, gr=gr, ber=ber, mr=mr, vr=vr,
    )

    x = jax.random.normal(k_x, (N, Cin, H, W), jnp.float32)

    out = jax.jit(basic_block_forward)(x, params)
    out = jax.block_until_ready(out)

    ref = ref_forward(x, params)
    # bf16 matmul operands (f32 accumulation) -> loosened tolerance.
    np.testing.assert_allclose(np.asarray(out), np.asarray(ref),
                               rtol=3e-2, atol=3e-2)
    assert out.shape == (N, Cout, H, W)
    print("KERNEL_OK")
</pallas_src>

<mosaic_0001>
module attributes {stable_mosaic.version = 11 : i64} {
  func.func @kernel(%arg0: i32, %arg1: memref<2x16x16x4xf32, #tpu.memory_space<vmem>>, %arg2: memref<36x128xbf16, #tpu.memory_space<vmem>>, %arg3: memref<1x128xf32, #tpu.memory_space<vmem>>, %arg4: memref<1152x128xbf16, #tpu.memory_space<vmem>>, %arg5: memref<1x128xf32, #tpu.memory_space<vmem>>, %arg6: memref<36x128xbf16, #tpu.memory_space<vmem>>, %arg7: memref<1x128xf32, #tpu.memory_space<vmem>>, %arg8: memref<2x8x256xf32, #tpu.memory_space<vmem>>, %arg9: memref<2x18x18x4xf32, #tpu.memory_space<vmem>>, %arg10: memref<2x18x18x128xf32, #tpu.memory_space<vmem>>) attributes {dimension_semantics = [#tpu.dimension_semantics<parallel>], iteration_bounds = array<i64: 1>, scalar_prefetch = 0 : i64, scratch_operands = 2 : i64, tpu.core_type = #tpu.core_type<tc>, window_params = [{transform_indices = @transform_0, window_bounds = array<i64: 2, 16, 16, 4>}, {pipeline_mode = #tpu.pipeline_mode<synchronous>, transform_indices = @transform_1, window_bounds = array<i64: 36, 128>}, {pipeline_mode = #tpu.pipeline_mode<synchronous>, transform_indices = @transform_2, window_bounds = array<i64: 1, 128>}, {pipeline_mode = #tpu.pipeline_mode<synchronous>, transform_indices = @transform_3, window_bounds = array<i64: 1152, 128>}, {pipeline_mode = #tpu.pipeline_mode<synchronous>, transform_indices = @transform_4, window_bounds = array<i64: 1, 128>}, {pipeline_mode = #tpu.pipeline_mode<synchronous>, transform_indices = @transform_5, window_bounds = array<i64: 36, 128>}, {pipeline_mode = #tpu.pipeline_mode<synchronous>, transform_indices = @transform_6, window_bounds = array<i64: 1, 128>}, {transform_indices = @transform_7, window_bounds = array<i64: 2, 8, 256>}]} {
    %cst = arith.constant 0.000000e+00 : f32
    %0 = vector.broadcast %cst : f32 to vector<2x1x18x4xf32>
    %cst_0 = arith.constant 0.000000e+00 : f32
    %1 = vector.broadcast %cst_0 : f32 to vector<2x18x1x4xf32>
    %c0 = arith.constant 0 : index
    %c0_1 = arith.constant 0 : index
    %c0_2 = arith.constant 0 : index
    %c0_3 = arith.constant 0 : index
    %2 = vector.load %arg9[%c0, %c0_1, %c0_2, %c0_3] : memref<2x18x18x4xf32, #tpu.memory_space<vmem>>, vector<2x1x18x4xf32>
    tpu.vector_store %arg9[%c0, %c0_1, %c0_2, %c0_3], %0 {strides = array<i32>} : memref<2x18x18x4xf32, #tpu.memory_space<vmem>>, vector<2x1x18x4xf32>,
    %c0_4 = arith.constant 0 : index
    %c17 = arith.constant 17 : index
    %c0_5 = arith.constant 0 : index
    %c0_6 = arith.constant 0 : index
    %3 = vector.load %arg9[%c0_4, %c17, %c0_5, %c0_6] : memref<2x18x18x4xf32, #tpu.memory_space<vmem>>, vector<2x1x18x4xf32>
    tpu.vector_store %arg9[%c0_4, %c17, %c0_5, %c0_6], %0 {strides = array<i32>} : memref<2x18x18x4xf32, #tpu.memory_space<vmem>>, vector<2x1x18x4xf32>,
    %c0_7 = arith.constant 0 : index
    %c0_8 = arith.constant 0 : index
    %c0_9 = arith.constant 0 : index
    %c0_10 = arith.constant 0 : index
    %4 = vector.load %arg9[%c0_7, %c0_8, %c0_9, %c0_10] : memref<2x18x18x4xf32, #tpu.memory_space<vmem>>, vector<2x18x1x4xf32>
    tpu.vector_store %arg9[%c0_7, %c0_8, %c0_9, %c0_10], %1 {strides = array<i32>} : memref<2x18x18x4xf32, #tpu.memory_space<vmem>>, vector<2x18x1x4xf32>,
    %c0_11 = arith.constant 0 : index
    %c0_12 = arith.constant 0 : index
    %c17_13 = arith.constant 17 : index
    %c0_14 = arith.constant 0 : index
    %5 = vector.load %arg9[%c0_11, %c0_12, %c17_13, %c0_14] : memref<2x18x18x4xf32, #tpu.memory_space<vmem>>, vector<2x18x1x4xf32>
    tpu.vector_store %arg9[%c0_11, %c0_12, %c17_13, %c0_14], %1 {strides = array<i32>} : memref<2x18x18x4xf32, #tpu.memory_space<vmem>>, vector<2x18x1x4xf32>,
    %cst_15 = arith.constant 0.000000e+00 : f32
    %6 = vector.broadcast %cst_15 : f32 to vector<2x1x18x128xf32>
    %cst_16 = arith.constant 0.000000e+00 : f32
    %7 = vector.broadcast %cst_16 : f32 to vector<2x18x1x128xf32>
    %c0_17 = arith.constant 0 : index
    %c0_18 = arith.constant 0 : index
    %c0_19 = arith.constant 0 : index
    %c0_20 = arith.constant 0 : index
    %8 = vector.load %arg10[%c0_17, %c0_18, %c0_19, %c0_20] : memref<2x18x18x128xf32, #tpu.memory_space<vmem>>, vector<2x1x18x128xf32>
    tpu.vector_store %arg10[%c0_17, %c0_18, %c0_19, %c0_20], %6 {strides = array<i32>} : memref<2x18x18x128xf32, #tpu.memory_space<vmem>>, vector<2x1x18x128xf32>,
    %c0_21 = arith.constant 0 : index
    %c17_22 = arith.constant 17 : index
    %c0_23 = arith.constant 0 : index
    %c0_24 = arith.constant 0 : index
    %9 = vector.load %arg10[%c0_21, %c17_22, %c0_23, %c0_24] : memref<2x18x18x128xf32, #tpu.memory_space<vmem>>, vector<2x1x18x128xf32>
    tpu.vector_store %arg10[%c0_21, %c17_22, %c0_23, %c0_24], %6 {strides = array<i32>} : memref<2x18x18x128xf32, #tpu.memory_space<vmem>>, vector<2x1x18x128xf32>,
    %c0_25 = arith.constant 0 : index
    %c0_26 = arith.constant 0 : index
    %c0_27 = arith.constant 0 : index
    %c0_28 = arith.constant 0 : index
    %10 = vector.load %arg10[%c0_25, %c0_26, %c0_27, %c0_28] : memref<2x18x18x128xf32, #tpu.memory_space<vmem>>, vector<2x18x1x128xf32>
    tpu.vector_store %arg10[%c0_25, %c0_26, %c0_27, %c0_28], %7 {strides = array<i32>} : memref<2x18x18x128xf32, #tpu.memory_space<vmem>>, vector<2x18x1x128xf32>,
    %c0_29 = arith.constant 0 : index
    %c0_30 = arith.constant 0 : index
    %c17_31 = arith.constant 17 : index
    %c0_32 = arith.constant 0 : index
    %11 = vector.load %arg10[%c0_29, %c0_30, %c17_31, %c0_32] : memref<2x18x18x128xf32, #tpu.memory_space<vmem>>, vector<2x18x1x128xf32>
    tpu.vector_store %arg10[%c0_29, %c0_30, %c17_31, %c0_32], %7 {strides = array<i32>} : memref<2x18x18x128xf32, #tpu.memory_space<vmem>>, vector<2x18x1x128xf32>,
    %c0_33 = arith.constant 0 : index
    %c0_34 = arith.constant 0 : index
    %c0_35 = arith.constant 0 : index
    %c0_36 = arith.constant 0 : index
    %12 = vector.load %arg1[%c0_33, %c0_34, %c0_35, %c0_36] : memref<2x16x16x4xf32, #tpu.memory_space<vmem>>, vector<2x16x16x4xf32>
    %c0_37 = arith.constant 0 : index
    %c1 = arith.constant 1 : index
    %c1_38 = arith.constant 1 : index
    %c0_39 = arith.constant 0 : index
    %13 = vector.load %arg9[%c0_37, %c1, %c1_38, %c0_39] : memref<2x18x18x4xf32, #tpu.memory_space<vmem>>, vector<2x16x16x4xf32>
    tpu.vector_store %arg9[%c0_37, %c1, %c1_38, %c0_39], %12 {strides = array<i32>} : memref<2x18x18x4xf32, #tpu.memory_space<vmem>>, vector<2x16x16x4xf32>,
    %c0_40 = arith.constant 0 : index
    %c0_41 = arith.constant 0 : index
    %c0_42 = arith.constant 0 : index
    %c0_43 = arith.constant 0 : index
    %14 = vector.load %arg9[%c0_40, %c0_41, %c0_42, %c0_43] : memref<2x18x18x4xf32, #tpu.memory_space<vmem>>, vector<2x16x16x4xf32>
    %15 = vector.shape_cast %14 : vector<2x16x16x4xf32> to vector<512x4xf32>
    %16 = arith.truncf %15 : vector<512x4xf32> to vector<512x4xbf16>
    %c0_44 = arith.constant 0 : index
    %c0_45 = arith.constant 0 : index
    %c1_46 = arith.constant 1 : index
    %c0_47 = arith.constant 0 : index
    %17 = vector.load %arg9[%c0_44, %c0_45, %c1_46, %c0_47] : memref<2x18x18x4xf32, #tpu.memory_space<vmem>>, vector<2x16x16x4xf32>
    %18 = vector.shape_cast %17 : vector<2x16x16x4xf32> to vector<512x4xf32>
    %19 = arith.truncf %18 : vector<512x4xf32> to vector<512x4xbf16>
    %c0_48 = arith.constant 0 : index
    %c0_49 = arith.constant 0 : index
    %c2 = arith.constant 2 : index
    %c0_50 = arith.constant 0 : index
    %20 = vector.load %arg9[%c0_48, %c0_49, %c2, %c0_50] : memref<2x18x18x4xf32, #tpu.memory_space<vmem>>, vector<2x16x16x4xf32>
    %21 = vector.shape_cast %20 : vector<2x16x16x4xf32> to vector<512x4xf32>
    %22 = arith.truncf %21 : vector<512x4xf32> to vector<512x4xbf16>
    %c0_51 = arith.constant 0 : index
    %c1_52 = arith.constant 1 : index
    %c0_53 = arith.constant 0 : index
    %c0_54 = arith.constant 0 : index
    %23 = vector.load %arg9[%c0_51, %c1_52, %c0_53, %c0_54] : memref<2x18x18x4xf32, #tpu.memory_space<vmem>>, vector<2x16x16x4xf32>
    %24 = vector.shape_cast %23 : vector<2x16x16x4xf32> to vector<512x4xf32>
    %25 = arith.truncf %24 : vector<512x4xf32> to vector<512x4xbf16>
    %c0_55 = arith.constant 0 : index
    %c1_56 = arith.constant 1 : index
    %c1_57 = arith.constant 1 : index
    %c0_58 = arith.constant 0 : index
    %26 = vector.load %arg9[%c0_55, %c1_56, %c1_57, %c0_58] : memref<2x18x18x4xf32, #tpu.memory_space<vmem>>, vector<2x16x16x4xf32>
    %27 = vector.shape_cast %26 : vector<2x16x16x4xf32> to vector<512x4xf32>
    %28 = arith.truncf %27 : vector<512x4xf32> to vector<512x4xbf16>
    %c0_59 = arith.constant 0 : index
    %c1_60 = arith.constant 1 : index
    %c2_61 = arith.constant 2 : index
    %c0_62 = arith.constant 0 : index
    %29 = vector.load %arg9[%c0_59, %c1_60, %c2_61, %c0_62] : memref<2x18x18x4xf32, #tpu.memory_space<vmem>>, vector<2x16x16x4xf32>
    %30 = vector.shape_cast %29 : vector<2x16x16x4xf32> to vector<512x4xf32>
    %31 = arith.truncf %30 : vector<512x4xf32> to vector<512x4xbf16>
    %c0_63 = arith.constant 0 : index
    %c2_64 = arith.constant 2 : index
    %c0_65 = arith.constant 0 : index
    %c0_66 = arith.constant 0 : index
    %32 = vector.load %arg9[%c0_63, %c2_64, %c0_65, %c0_66] : memref<2x18x18x4xf32, #tpu.memory_space<vmem>>, vector<2x16x16x4xf32>
    %33 = vector.shape_cast %32 : vector<2x16x16x4xf32> to vector<512x4xf32>
    %34 = arith.truncf %33 : vector<512x4xf32> to vector<512x4xbf16>
    %c0_67 = arith.constant 0 : index
    %c2_68 = arith.constant 2 : index
    %c1_69 = arith.constant 1 : index
    %c0_70 = arith.constant 0 : index
    %35 = vector.load %arg9[%c0_67, %c2_68, %c1_69, %c0_70] : memref<2x18x18x4xf32, #tpu.memory_space<vmem>>, vector<2x16x16x4xf32>
    %36 = vector.shape_cast %35 : vector<2x16x16x4xf32> to vector<512x4xf32>
    %37 = arith.truncf %36 : vector<512x4xf32> to vector<512x4xbf16>
    %c0_71 = arith.constant 0 : index
    %c2_72 = arith.constant 2 : index
    %c2_73 = arith.constant 2 : index
    %c0_74 = arith.constant 0 : index
    %38 = vector.load %arg9[%c0_71, %c2_72, %c2_73, %c0_74] : memref<2x18x18x4xf32, #tpu.memory_space<vmem>>, vector<2x16x16x4xf32>
    %39 = vector.shape_cast %38 : vector<2x16x16x4xf32> to vector<512x4xf32>
    %40 = arith.truncf %39 : vector<512x4xf32> to vector<512x4xbf16>
    %41 = tpu.concatenate %16, %19, %22, %25, %28, %31, %34, %37, %40 in 1 : vector<512x4xbf16>, vector<512x4xbf16>, vector<512x4xbf16>, vector<512x4xbf16>, vector<512x4xbf16>, vector<512x4xbf16>, vector<512x4xbf16>, vector<512x4xbf16>, vector<512x4xbf16> -> vector<512x36xbf16>
    %c0_75 = arith.constant 0 : index
    %c0_76 = arith.constant 0 : index
    %42 = vector.load %arg2[%c0_75, %c0_76] : memref<36x128xbf16, #tpu.memory_space<vmem>>, vector<36x128xbf16>
    %cst_77 = arith.constant dense<0.000000e+00> : vector<512x128xf32>
    %43 = tpu.matmul %41, %42, %cst_77 {dimension_numbers = #tpu.dot_dimension_numbers<[1], [0], [0], [1], [0, 0, 1, 1], [], []>} : vector<512x36xbf16>, vector<36x128xbf16>, vector<512x128xf32> -> vector<512x128xf32>
    %c0_78 = arith.constant 0 : index
    %c0_79 = arith.constant 0 : index
    %44 = vector.load %arg3[%c0_78, %c0_79] : memref<1x128xf32, #tpu.memory_space<vmem>>, vector<1x128xf32>
    %45 = vector.broadcast %44 : vector<1x128xf32> to vector<512x128xf32>
    %46 = arith.addf %43, %45 : vector<512x128xf32>
    %cst_80 = arith.constant 0.000000e+00 : f32
    %47 = vector.broadcast %cst_80 : f32 to vector<512x128xf32>
    %48 = arith.maximumf %46, %47 : vector<512x128xf32>
    %49 = vector.shape_cast %48 : vector<512x128xf32> to vector<2x16x16x128xf32>
    %c0_81 = arith.constant 0 : index
    %c1_82 = arith.constant 1 : index
    %c1_83 = arith.constant 1 : index
    %c0_84 = arith.constant 0 : index
    %50 = vector.load %arg10[%c0_81, %c1_82, %c1_83, %c0_84] : memref<2x18x18x128xf32, #tpu.memory_space<vmem>>, vector<2x16x16x128xf32>
    tpu.vector_store %arg10[%c0_81, %c1_82, %c1_83, %c0_84], %49 {strides = array<i32>} : memref<2x18x18x128xf32, #tpu.memory_space<vmem>>, vector<2x16x16x128xf32>,
    %c0_85 = arith.constant 0 : index
    %c0_86 = arith.constant 0 : index
    %c0_87 = arith.constant 0 : index
    %c0_88 = arith.constant 0 : index
    %51 = vector.load %arg10[%c0_85, %c0_86, %c0_87, %c0_88] : memref<2x18x18x128xf32, #tpu.memory_space<vmem>>, vector<2x16x16x128xf32>
    %52 = vector.shape_cast %51 : vector<2x16x16x128xf32> to vector<512x128xf32>
    %53 = arith.truncf %52 : vector<512x128xf32> to vector<512x128xbf16>
    %c0_89 = arith.constant 0 : index
    %c0_90 = arith.constant 0 : index
    %c1_91 = arith.constant 1 : index
    %c0_92 = arith.constant 0 : index
    %54 = vector.load %arg10[%c0_89, %c0_90, %c1_91, %c0_92] : memref<2x18x18x128xf32, #tpu.memory_space<vmem>>, vector<2x16x16x128xf32>
    %55 = vector.shape_cast %54 : vector<2x16x16x128xf32> to vector<512x128xf32>
    %56 = arith.truncf %55 : vector<512x128xf32> to vector<512x128xbf16>
    %c0_93 = arith.constant 0 : index
    %c0_94 = arith.constant 0 : index
    %c2_95 = arith.constant 2 : index
    %c0_96 = arith.constant 0 : index
    %57 = vector.load %arg10[%c0_93, %c0_94, %c2_95, %c0_96] : memref<2x18x18x128xf32, #tpu.memory_space<vmem>>, vector<2x16x16x128xf32>
    %58 = vector.shape_cast %57 : vector<2x16x16x128xf32> to vector<512x128xf32>
    %59 = arith.truncf %58 : vector<512x128xf32> to vector<512x128xbf16>
    %c0_97 = arith.constant 0 : index
    %c1_98 = arith.constant 1 : index
    %c0_99 = arith.constant 0 : index
    %c0_100 = arith.constant 0 : index
    %60 = vector.load %arg10[%c0_97, %c1_98, %c0_99, %c0_100] : memref<2x18x18x128xf32, #tpu.memory_space<vmem>>, vector<2x16x16x128xf32>
    %61 = vector.shape_cast %60 : vector<2x16x16x128xf32> to vector<512x128xf32>
    %62 = arith.truncf %61 : vector<512x128xf32> to vector<512x128xbf16>
    %c0_101 = arith.constant 0 : index
    %c1_102 = arith.constant 1 : index
    %c1_103 = arith.constant 1 : index
    %c0_104 = arith.constant 0 : index
    %63 = vector.load %arg10[%c0_101, %c1_102, %c1_103, %c0_104] : memref<2x18x18x128xf32, #tpu.memory_space<vmem>>, vector<2x16x16x128xf32>
    %64 = vector.shape_cast %63 : vector<2x16x16x128xf32> to vector<512x128xf32>
    %65 = arith.truncf %64 : vector<512x128xf32> to vector<512x128xbf16>
    %c0_105 = arith.constant 0 : index
    %c1_106 = arith.constant 1 : index
    %c2_107 = arith.constant 2 : index
    %c0_108 = arith.constant 0 : index
    %66 = vector.load %arg10[%c0_105, %c1_106, %c2_107, %c0_108] : memref<2x18x18x128xf32, #tpu.memory_space<vmem>>, vector<2x16x16x128xf32>
    %67 = vector.shape_cast %66 : vector<2x16x16x128xf32> to vector<512x128xf32>
    %68 = arith.truncf %67 : vector<512x128xf32> to vector<512x128xbf16>
    %c0_109 = arith.constant 0 : index
    %c2_110 = arith.constant 2 : index
    %c0_111 = arith.constant 0 : index
    %c0_112 = arith.constant 0 : index
    %69 = vector.load %arg10[%c0_109, %c2_110, %c0_111, %c0_112] : memref<2x18x18x128xf32, #tpu.memory_space<vmem>>, vector<2x16x16x128xf32>
    %70 = vector.shape_cast %69 : vector<2x16x16x128xf32> to vector<512x128xf32>
    %71 = arith.truncf %70 : vector<512x128xf32> to vector<512x128xbf16>
    %c0_113 = arith.constant 0 : index
    %c2_114 = arith.constant 2 : index
    %c1_115 = arith.constant 1 : index
    %c0_116 = arith.constant 0 : index
    %72 = vector.load %arg10[%c0_113, %c2_114, %c1_115, %c0_116] : memref<2x18x18x128xf32, #tpu.memory_space<vmem>>, vector<2x16x16x128xf32>
    %73 = vector.shape_cast %72 : vector<2x16x16x128xf32> to vector<512x128xf32>
    %74 = arith.truncf %73 : vector<512x128xf32> to vector<512x128xbf16>
    %c0_117 = arith.constant 0 : index
    %c2_118 = arith.constant 2 : index
    %c2_119 = arith.constant 2 : index
    %c0_120 = arith.constant 0 : index
    %75 = vector.load %arg10[%c0_117, %c2_118, %c2_119, %c0_120] : memref<2x18x18x128xf32, #tpu.memory_space<vmem>>, vector<2x16x16x128xf32>
    %76 = vector.shape_cast %75 : vector<2x16x16x128xf32> to vector<512x128xf32>
    %77 = arith.truncf %76 : vector<512x128xf32> to vector<512x128xbf16>
    %78 = tpu.concatenate %53, %56, %59, %62, %65, %68, %71, %74, %77 in 1 : vector<512x128xbf16>, vector<512x128xbf16>, vector<512x128xbf16>, vector<512x128xbf16>, vector<512x128xbf16>, vector<512x128xbf16>, vector<512x128xbf16>, vector<512x128xbf16>, vector<512x128xbf16> -> vector<512x1152xbf16>
    %c0_121 = arith.constant 0 : index
    %c0_122 = arith.constant 0 : index
    %79 = vector.load %arg4[%c0_121, %c0_122] : memref<1152x128xbf16, #tpu.memory_space<vmem>>, vector<1152x128xbf16>
    %cst_123 = arith.constant dense<0.000000e+00> : vector<512x128xf32>
    %80 = tpu.matmul %78, %79, %cst_123 {dimension_numbers = #tpu.dot_dimension_numbers<[1], [0], [0], [1], [0, 0, 1, 1], [], []>} : vector<512x1152xbf16>, vector<1152x128xbf16>, vector<512x128xf32> -> vector<512x128xf32>
    %c0_124 = arith.constant 0 : index
    %c0_125 = arith.constant 0 : index
    %81 = vector.load %arg5[%c0_124, %c0_125] : memref<1x128xf32, #tpu.memory_space<vmem>>, vector<1x128xf32>
    %82 = vector.broadcast %81 : vector<1x128xf32> to vector<512x128xf32>
    %83 = arith.addf %80, %82 : vector<512x128xf32>
    %cst_126 = arith.constant 0.000000e+00 : f32
    %84 = vector.broadcast %cst_126 : f32 to vector<512x128xf32>
    %85 = arith.maximumf %83, %84 : vector<512x128xf32>
    %c0_127 = arith.constant 0 : index
    %c0_128 = arith.constant 0 : index
    %86 = vector.load %arg6[%c0_127, %c0_128] : memref<36x128xbf16, #tpu.memory_space<vmem>>, vector<36x128xbf16>
    %cst_129 = arith.constant dense<0.000000e+00> : vector<512x128xf32>
    %87 = tpu.matmul %41, %86, %cst_129 {dimension_numbers = #tpu.dot_dimension_numbers<[1], [0], [0], [1], [0, 0, 1, 1], [], []>} : vector<512x36xbf16>, vector<36x128xbf16>, vector<512x128xf32> -> vector<512x128xf32>
    %c0_130 = arith.constant 0 : index
    %c0_131 = arith.constant 0 : index
    %88 = vector.load %arg7[%c0_130, %c0_131] : memref<1x128xf32, #tpu.memory_space<vmem>>, vector<1x128xf32>
    %89 = vector.broadcast %88 : vector<1x128xf32> to vector<512x128xf32>
    %90 = arith.addf %87, %89 : vector<512x128xf32>
    %91 = arith.addf %85, %90 : vector<512x128xf32>
    %92 = vector.extract_strided_slice %91 {offsets = [0, 0], sizes = [256, 128], strides = [1, 1]} : vector<512x128xf32> to vector<256x128xf32>
    %93 = tpu.transpose %92, [1, 0] : vector<256x128xf32> -> vector<128x256xf32>
    %94 = vector.extract_strided_slice %93 {offsets = [0, 0], sizes = [8, 256], strides = [1, 1]} : vector<128x256xf32> to vector<8x256xf32>
    %c0_132 = arith.constant 0 : index
    %c0_133 = arith.constant 0 : index
    %c0_134 = arith.constant 0 : index
    %95 = vector.load %arg8[%c0_132, %c0_133, %c0_134] : memref<2x8x256xf32, #tpu.memory_space<vmem>>, vector<1x8x256xf32>
    %96 = vector.shape_cast %95 : vector<1x8x256xf32> to vector<8x256xf32>
    %97 = vector.shape_cast %94 : vector<8x256xf32> to vector<1x8x256xf32>
    tpu.vector_store %arg8[%c0_132, %c0_133, %c0_134], %97 {strides = array<i32>} : memref<2x8x256xf32, #tpu.memory_space<vmem>>, vector<1x8x256xf32>,
    %98 = vector.extract_strided_slice %91 {offsets = [256, 0], sizes = [256, 128], strides = [1, 1]} : vector<512x128xf32> to vector<256x128xf32>
    %99 = tpu.transpose %98, [1, 0] : vector<256x128xf32> -> vector<128x256xf32>
    %100 = vector.extract_strided_slice %99 {offsets = [0, 0], sizes = [8, 256], strides = [1, 1]} : vector<128x256xf32> to vector<8x256xf32>
    %c1_135 = arith.constant 1 : index
    %c0_136 = arith.constant 0 : index
    %c0_137 = arith.constant 0 : index
    %101 = vector.load %arg8[%c1_135, %c0_136, %c0_137] : memref<2x8x256xf32, #tpu.memory_space<vmem>>, vector<1x8x256xf32>
    %102 = vector.shape_cast %101 : vector<1x8x256xf32> to vector<8x256xf32>
    %103 = vector.shape_cast %100 : vector<8x256xf32> to vector<1x8x256xf32>
    tpu.vector_store %arg8[%c1_135, %c0_136, %c0_137], %103 {strides = array<i32>} : memref<2x8x256xf32, #tpu.memory_space<vmem>>, vector<1x8x256xf32>,
    return
  }
  func.func @transform_0(%arg0: i32) -> (i32, i32, i32, i32) {
    %c0_i32 = arith.constant 0 : i32
    %c0_i32_0 = arith.constant 0 : i32
    %c0_i32_1 = arith.constant 0 : i32
    %c0_i32_2 = arith.constant 0 : i32
    return %arg0, %c0_i32, %c0_i32_0, %c0_i32_1 : i32, i32, i32, i32
  }
  func.func @transform_1(%arg0: i32) -> (i32, i32) {
    %c0_i32 = arith.constant 0 : i32
    %c0_i32_0 = arith.constant 0 : i32
    %c0_i32_1 = arith.constant 0 : i32
    return %c0_i32, %c0_i32_0 : i32, i32
  }
  func.func @transform_2(%arg0: i32) -> (i32, i32) {
    %c0_i32 = arith.constant 0 : i32
    %c0_i32_0 = arith.constant 0 : i32
    %c0_i32_1 = arith.constant 0 : i32
    return %c0_i32, %c0_i32_0 : i32, i32
  }
  func.func @transform_3(%arg0: i32) -> (i32, i32) {
    %c0_i32 = arith.constant 0 : i32
    %c0_i32_0 = arith.constant 0 : i32
    %c0_i32_1 = arith.constant 0 : i32
    return %c0_i32, %c0_i32_0 : i32, i32
  }
  func.func @transform_4(%arg0: i32) -> (i32, i32) {
    %c0_i32 = arith.constant 0 : i32
    %c0_i32_0 = arith.constant 0 : i32
    %c0_i32_1 = arith.constant 0 : i32
    return %c0_i32, %c0_i32_0 : i32, i32
  }
  func.func @transform_5(%arg0: i32) -> (i32, i32) {
    %c0_i32 = arith.constant 0 : i32
    %c0_i32_0 = arith.constant 0 : i32
    %c0_i32_1 = arith.constant 0 : i32
    return %c0_i32, %c0_i32_0 : i32, i32
  }
  func.func @transform_6(%arg0: i32) -> (i32, i32) {
    %c0_i32 = arith.constant 0 : i32
    %c0_i32_0 = arith.constant 0 : i32
    %c0_i32_1 = arith.constant 0 : i32
    return %c0_i32, %c0_i32_0 : i32, i32
  }
  func.func @transform_7(%arg0: i32) -> (i32, i32, i32) {
    %c0_i32 = arith.constant 0 : i32
    %c0_i32_0 = arith.constant 0 : i32
    %c0_i32_1 = arith.constant 0 : i32
    return %arg0, %c0_i32, %c0_i32_0 : i32, i32, i32
  }
}

</mosaic_0001>

<llo_original>
// kernel: basic_block_forward.1
$region0: #{basic_block_forward.1}
  #allocation0 [shape = 'u32[]', space=smem, size = 0x4, offset = 0x4, fixed_abs, tag = 'smem constant byte address 0x4 - core index']
  #allocation1 [shape = 'u32[144,128]{1,0:T(1,128)}', space=vmem, size = 0x12000, scoped, tag = 'internal scratch']
  #allocation2 [shape = 'f32[2,18,18,4]{3,2,1,0:T(8,128)}', space=vmem, size = 0x6c000, scoped, tag = 'scratch operand']
  #allocation3 [shape = 'f32[2,18,18,128]{3,2,1,0:T(8,128)}', space=vmem, size = 0x6c000, scoped, tag = 'scratch operand']
  %s0 = inlined_call_operand.vmem [shape: f32[2,16,16,4], index: 0, kind: input, shape index: {}]
  %s1 = inlined_call_operand.vmem [shape: bf16[36,128], index: 1, kind: input, shape index: {}]
  %s2 = inlined_call_operand.vmem [shape: f32[1,128], index: 2, kind: input, shape index: {}]
  %s3 = inlined_call_operand.vmem [shape: bf16[1152,128], index: 3, kind: input, shape index: {}]
  %s4 = inlined_call_operand.vmem [shape: f32[1,128], index: 4, kind: input, shape index: {}]
  %s5 = inlined_call_operand.vmem [shape: bf16[36,128], index: 5, kind: input, shape index: {}]
  %s6 = inlined_call_operand.vmem [shape: f32[1,128], index: 6, kind: input, shape index: {}]
  %s7 = inlined_call_operand.vmem [shape: f32[2,8,256], index: 7, kind: output, shape index: {}]
  %s8 = sld [smem:[#allocation0]]
  $region38: #{basic_block_forward.1} parent=0
    _
  %s10 = ssub.s32 1, %s8
  %s11 = scalar_select 0, %s10, %s8
  // Predicated region
  $region2: #{basic_block_forward.1} parent=0 // pred_check
    _
  $region3: #{basic_block_forward.1} parent=0 // pred_check_branch
    %13 = sbr.rel (0) target = $region5
  $region4: #{basic_block_forward.1} parent=0 // pred_region
    _
  $region5: #{basic_block_forward.1} parent=0 // pred_fallthru
    _
  // Predicated region
  $region6: #{basic_block_forward.1} parent=0 // pred_check
    _
  $region7: #{basic_block_forward.1} parent=0 // pred_check_branch
    %15 = sbr.rel (0) target = $region9
  $region8: #{basic_block_forward.1} parent=0 // pred_region
    _
  $region9: #{basic_block_forward.1} parent=0 // pred_fallthru
    _
  // Predicated region
  $region10: #{basic_block_forward.1} parent=0 // pred_check
    _
  $region11: #{basic_block_forward.1} parent=0 // pred_check_branch
    %17 = sbr.rel (0) target = $region13
  $region12: #{basic_block_forward.1} parent=0 // pred_region
    _
  $region13: #{basic_block_forward.1} parent=0 // pred_fallthru
    _
  // Predicated region
  $region14: #{basic_block_forward.1} parent=0 // pred_check
    _
  $region15: #{basic_block_forward.1} parent=0 // pred_check_branch
    %19 = sbr.rel (0) target = $region17
  $region16: #{basic_block_forward.1} parent=0 // pred_region
    _
  $region17: #{basic_block_forward.1} parent=0 // pred_fallthru
    _
  // Predicated region
  $region18: #{basic_block_forward.1} parent=0 // pred_check
    _
  $region19: #{basic_block_forward.1} parent=0 // pred_check_branch
    %21 = sbr.rel (0) target = $region21
  $region20: #{basic_block_forward.1} parent=0 // pred_region
    _
  $region21: #{basic_block_forward.1} parent=0 // pred_fallthru
    _
  // Predicated region
  $region22: #{basic_block_forward.1} parent=0 // pred_check
    _
  $region23: #{basic_block_forward.1} parent=0 // pred_check_branch
    %23 = sbr.rel (0) target = $region25
  $region24: #{basic_block_forward.1} parent=0 // pred_region
    _
  $region25: #{basic_block_forward.1} parent=0 // pred_fallthru
    _
  // Predicated region
  $region26: #{basic_block_forward.1} parent=0 // pred_check
    _
  $region27: #{basic_block_forward.1} parent=0 // pred_check_branch
    %25 = sbr.rel (0) target = $region29
  $region28: #{basic_block_forward.1} parent=0 // pred_region
    _
  $region29: #{basic_block_forward.1} parent=0 // pred_fallthru
    _
  %vm27 = vcmask 31744
  %28 = vst.msk [vmem:[#allocation2] sm:$0xff] %vm27, 0.0
  %29 = vst.msk [vmem:[#allocation2 + $0x8] sm:$0xff] %vm27, 0.0
  %vm30 = vcmask 25600
  %31 = vst.msk [vmem:[#allocation2 + $0x10] sm:$0x3] %vm30, 0.0
  %32 = vst.msk [vmem:[#allocation2 + $0x1b0] sm:$0xff] %vm27, 0.0
  %33 = vst.msk [vmem:[#allocation2 + $0x1b8] sm:$0xff] %vm27, 0.0
  %34 = vst.msk [vmem:[#allocation2 + $0x1c0] sm:$0x3] %vm30, 0.0
  %s35 = scalar_lea.vmem [#allocation2], 408
  %36 = vst.msk [vmem:[%s35] sm:$0xff] %vm27, 0.0
  %37 = vst.msk [vmem:[%s35 + $0x8] sm:$0xff] %vm27, 0.0
  %38 = vst.msk [vmem:[%s35 + $0x10] sm:$0x3] %vm30, 0.0
  %39 = vst.msk [vmem:[%s35 + $0x1b0] sm:$0xff] %vm27, 0.0
  %40 = vst.msk [vmem:[%s35 + $0x1b8] sm:$0xff] %vm27, 0.0
  %41 = vst.msk [vmem:[%s35 + $0x1c0] sm:$0x3] %vm30, 0.0
  %vm42 = vcmask 24576
  %43 = vst.msk [vmem:[#allocation2] sm:$0x1] %vm42, 0.0
  %44 = vst.msk [vmem:[#allocation2 + $0x18] sm:$0x1] %vm42, 0.0
  %45 = vst.msk [vmem:[#allocation2 + $0x30] sm:$0x1] %vm42, 0.0
  %46 = vst.msk [vmem:[#allocation2 + $0x48] sm:$0x1] %vm42, 0.0
  %47 = vst.msk [vmem:[#allocation2 + $0x60] sm:$0x1] %vm42, 0.0
  %48 = vst.msk [vmem:[#allocation2 + $0x78] sm:$0x1] %vm42, 0.0
  %49 = vst.msk [vmem:[#allocation2 + $0x90] sm:$0x1] %vm42, 0.0
  %50 = vst.msk [vmem:[#allocation2 + $0xa8] sm:$0x1] %vm42, 0.0
  %51 = vst.msk [vmem:[#allocation2 + $0xc0] sm:$0x1] %vm42, 0.0
  %52 = vst.msk [vmem:[#allocation2 + $0xd8] sm:$0x1] %vm42, 0.0
  %53 = vst.msk [vmem:[#allocation2 + $0xf0] sm:$0x1] %vm42, 0.0
  %54 = vst.msk [vmem:[#allocation2 + $0x108] sm:$0x1] %vm42, 0.0
  %55 = vst.msk [vmem:[#allocation2 + $0x120] sm:$0x1] %vm42, 0.0
  %56 = vst.msk [vmem:[#allocation2 + $0x138] sm:$0x1] %vm42, 0.0
  %57 = vst.msk [vmem:[#allocation2 + $0x150] sm:$0x1] %vm42, 0.0
  %58 = vst.msk [vmem:[#allocation2 + $0x168] sm:$0x1] %vm42, 0.0
  %59 = vst.msk [vmem:[#allocation2 + $0x180] sm:$0x1] %vm42, 0.0
  %60 = vst.msk [vmem:[#allocation2 + $0x198] sm:$0x1] %vm42, 0.0
  %61 = vst.msk [vmem:[#allocation2 + $0x1b0] sm:$0x1] %vm42, 0.0
  %62 = vst.msk [vmem:[#allocation2 + $0x1c8] sm:$0x1] %vm42, 0.0
  %63 = vst.msk [vmem:[#allocation2 + $0x1e0] sm:$0x1] %vm42, 0.0
  %64 = vst.msk [vmem:[#allocation2 + $0x1f8] sm:$0x1] %vm42, 0.0
  %65 = vst.msk [vmem:[#allocation2 + $0x210] sm:$0x1] %vm42, 0.0
  %66 = vst.msk [vmem:[#allocation2 + $0x228] sm:$0x1] %vm42, 0.0
  %67 = vst.msk [vmem:[#allocation2 + $0x240] sm:$0x1] %vm42, 0.0
  %68 = vst.msk [vmem:[#allocation2 + $0x258] sm:$0x1] %vm42, 0.0
  %69 = vst.msk [vmem:[#allocation2 + $0x270] sm:$0x1] %vm42, 0.0
  %70 = vst.msk [vmem:[#allocation2 + $0x288] sm:$0x1] %vm42, 0.0
  %71 = vst.msk [vmem:[#allocation2 + $0x2a0] sm:$0x1] %vm42, 0.0
  %72 = vst.msk [vmem:[#allocation2 + $0x2b8] sm:$0x1] %vm42, 0.0
  %73 = vst.msk [vmem:[#allocation2 + $0x2d0] sm:$0x1] %vm42, 0.0
  %74 = vst.msk [vmem:[#allocation2 + $0x2e8] sm:$0x1] %vm42, 0.0
  %75 = vst.msk [vmem:[#allocation2 + $0x300] sm:$0x1] %vm42, 0.0
  %76 = vst.msk [vmem:[#allocation2 + $0x318] sm:$0x1] %vm42, 0.0
  %77 = vst.msk [vmem:[#allocation2 + $0x330] sm:$0x1] %vm42, 0.0
  %78 = vst.msk [vmem:[#allocation2 + $0x348] sm:$0x1] %vm42, 0.0
  %79 = vst.msk [vmem:[#allocation2 + $0x11] sm:$0x1] %vm42, 0.0
  %80 = vst.msk [vmem:[#allocation2 + $0x29] sm:$0x1] %vm42, 0.0
  %81 = vst.msk [vmem:[#allocation2 + $0x41] sm:$0x1] %vm42, 0.0
  %82 = vst.msk [vmem:[#allocation2 + $0x59] sm:$0x1] %vm42, 0.0
  %83 = vst.msk [vmem:[#allocation2 + $0x71] sm:$0x1] %vm42, 0.0
  %84 = vst.msk [vmem:[#allocation2 + $0x89] sm:$0x1] %vm42, 0.0
  %85 = vst.msk [vmem:[#allocation2 + $0xa1] sm:$0x1] %vm42, 0.0
  %86 = vst.msk [vmem:[#allocation2 + $0xb9] sm:$0x1] %vm42, 0.0
  %87 = vst.msk [vmem:[#allocation2 + $0xd1] sm:$0x1] %vm42, 0.0
  %88 = vst.msk [vmem:[#allocation2 + $0xe9] sm:$0x1] %vm42, 0.0
  %89 = vst.msk [vmem:[#allocation2 + $0x101] sm:$0x1] %vm42, 0.0
  %90 = vst.msk [vmem:[#allocation2 + $0x119] sm:$0x1] %vm42, 0.0
  %91 = vst.msk [vmem:[#allocation2 + $0x131] sm:$0x1] %vm42, 0.0
  %92 = vst.msk [vmem:[#allocation2 + $0x149] sm:$0x1] %vm42, 0.0
  %93 = vst.msk [vmem:[#allocation2 + $0x161] sm:$0x1] %vm42, 0.0
  %94 = vst.msk [vmem:[#allocation2 + $0x179] sm:$0x1] %vm42, 0.0
  %95 = vst.msk [vmem:[#allocation2 + $0x191] sm:$0x1] %vm42, 0.0
  %96 = vst.msk [vmem:[#allocation2 + $0x1a9] sm:$0x1] %vm42, 0.0
  %97 = vst.msk [vmem:[#allocation2 + $0x1c1] sm:$0x1] %vm42, 0.0
  %98 = vst.msk [vmem:[#allocation2 + $0x1d9] sm:$0x1] %vm42, 0.0
  %99 = vst.msk [vmem:[#allocation2 + $0x1f1] sm:$0x1] %vm42, 0.0
  %100 = vst.msk [vmem:[#allocation2 + $0x209] sm:$0x1] %vm42, 0.0
  %101 = vst.msk [vmem:[#allocation2 + $0x221] sm:$0x1] %vm42, 0.0
  %102 = vst.msk [vmem:[#allocation2 + $0x239] sm:$0x1] %vm42, 0.0
  %103 = vst.msk [vmem:[#allocation2 + $0x251] sm:$0x1] %vm42, 0.0
  %104 = vst.msk [vmem:[#allocation2 + $0x269] sm:$0x1] %vm42, 0.0
  %105 = vst.msk [vmem:[#allocation2 + $0x281] sm:$0x1] %vm42, 0.0
  %106 = vst.msk [vmem:[#allocation2 + $0x299] sm:$0x1] %vm42, 0.0
  %107 = vst.msk [vmem:[#allocation2 + $0x2b1] sm:$0x1] %vm42, 0.0
  %108 = vst.msk [vmem:[#allocation2 + $0x2c9] sm:$0x1] %vm42, 0.0
  %109 = vst.msk [vmem:[#allocation2 + $0x2e1] sm:$0x1] %vm42, 0.0
  %110 = vst.msk [vmem:[#allocation2 + $0x2f9] sm:$0x1] %vm42, 0.0
  %111 = vst.msk [vmem:[#allocation2 + $0x311] sm:$0x1] %vm42, 0.0
  %112 = vst.msk [vmem:[#allocation2 + $0x329] sm:$0x1] %vm42, 0.0
  %113 = vst.msk [vmem:[#allocation2 + $0x341] sm:$0x1] %vm42, 0.0
  %114 = vst.msk [vmem:[#allocation2 + $0x359] sm:$0x1] %vm42, 0.0
  %115 = vst [vmem:[#allocation3] sm:$0xff] 0.0
  %116 = vst [vmem:[#allocation3 + $0x8] sm:$0xff] 0.0
  %117 = vst [vmem:[#allocation3 + $0x10] sm:$0x3] 0.0
  %118 = vst [vmem:[#allocation3 + $0x1b0] sm:$0xff] 0.0
  %119 = vst [vmem:[#allocation3 + $0x1b8] sm:$0xff] 0.0
  %120 = vst [vmem:[#allocation3 + $0x1c0] sm:$0x3] 0.0
  %s121 = scalar_lea.vmem [#allocation3], 408
  %122 = vst [vmem:[%s121] sm:$0xff] 0.0
  %123 = vst [vmem:[%s121 + $0x8] sm:$0xff] 0.0
  %124 = vst [vmem:[%s121 + $0x10] sm:$0x3] 0.0
  %125 = vst [vmem:[%s121 + $0x1b0] sm:$0xff] 0.0
  %126 = vst [vmem:[%s121 + $0x1b8] sm:$0xff] 0.0
  %127 = vst [vmem:[%s121 + $0x1c0] sm:$0x3] 0.0
  %128 = vst [vmem:[#allocation3] sm:$0x1] 0.0
  %129 = vst [vmem:[#allocation3 + $0x18] sm:$0x1] 0.0
  %130 = vst [vmem:[#allocation3 + $0x30] sm:$0x1] 0.0
  %131 = vst [vmem:[#allocation3 + $0x48] sm:$0x1] 0.0
  %132 = vst [vmem:[#allocation3 + $0x60] sm:$0x1] 0.0
  %133 = vst [vmem:[#allocation3 + $0x78] sm:$0x1] 0.0
  %134 = vst [vmem:[#allocation3 + $0x90] sm:$0x1] 0.0
  %135 = vst [vmem:[#allocation3 + $0xa8] sm:$0x1] 0.0
  %136 = vst [vmem:[#allocation3 + $0xc0] sm:$0x1] 0.0
  %137 = vst [vmem:[#allocation3 + $0xd8] sm:$0x1] 0.0
  %138 = vst [vmem:[#allocation3 + $0xf0] sm:$0x1] 0.0
  %139 = vst [vmem:[#allocation3 + $0x108] sm:$0x1] 0.0
  %140 = vst [vmem:[#allocation3 + $0x120] sm:$0x1] 0.0
  %141 = vst [vmem:[#allocation3 + $0x138] sm:$0x1] 0.0
  %142 = vst [vmem:[#allocation3 + $0x150] sm:$0x1] 0.0
  %143 = vst [vmem:[#allocation3 + $0x168] sm:$0x1] 0.0
  %144 = vst [vmem:[#allocation3 + $0x180] sm:$0x1] 0.0
  %145 = vst [vmem:[#allocation3 + $0x198] sm:$0x1] 0.0
  %146 = vst [vmem:[#allocation3 + $0x1b0] sm:$0x1] 0.0
  %147 = vst [vmem:[#allocation3 + $0x1c8] sm:$0x1] 0.0
  %148 = vst [vmem:[#allocation3 + $0x1e0] sm:$0x1] 0.0
  %149 = vst [vmem:[#allocation3 + $0x1f8] sm:$0x1] 0.0
  %150 = vst [vmem:[#allocation3 + $0x210] sm:$0x1] 0.0
  %151 = vst [vmem:[#allocation3 + $0x228] sm:$0x1] 0.0
  %152 = vst [vmem:[#allocation3 + $0x240] sm:$0x1] 0.0
  %153 = vst [vmem:[#allocation3 + $0x258] sm:$0x1] 0.0
  %154 = vst [vmem:[#allocation3 + $0x270] sm:$0x1] 0.0
  %155 = vst [vmem:[#allocation3 + $0x288] sm:$0x1] 0.0
  %156 = vst [vmem:[#allocation3 + $0x2a0] sm:$0x1] 0.0
  %157 = vst [vmem:[#allocation3 + $0x2b8] sm:$0x1] 0.0
  %158 = vst [vmem:[#allocation3 + $0x2d0] sm:$0x1] 0.0
  %159 = vst [vmem:[#allocation3 + $0x2e8] sm:$0x1] 0.0
  %160 = vst [vmem:[#allocation3 + $0x300] sm:$0x1] 0.0
  %161 = vst [vmem:[#allocation3 + $0x318] sm:$0x1] 0.0
  %162 = vst [vmem:[#allocation3 + $0x330] sm:$0x1] 0.0
  %163 = vst [vmem:[#allocation3 + $0x348] sm:$0x1] 0.0
  %164 = vst [vmem:[#allocation3 + $0x11] sm:$0x1] 0.0
  %165 = vst [vmem:[#allocation3 + $0x29] sm:$0x1] 0.0
  %166 = vst [vmem:[#allocation3 + $0x41] sm:$0x1] 0.0
  %167 = vst [vmem:[#allocation3 + $0x59] sm:$0x1] 0.0
  %168 = vst [vmem:[#allocation3 + $0x71] sm:$0x1] 0.0
  %169 = vst [vmem:[#allocation3 + $0x89] sm:$0x1] 0.0
  %170 = vst [vmem:[#allocation3 + $0xa1] sm:$0x1] 0.0
  %171 = vst [vmem:[#allocation3 + $0xb9] sm:$0x1] 0.0
  %172 = vst [vmem:[#allocation3 + $0xd1] sm:$0x1] 0.0
  %173 = vst [vmem:[#allocation3 + $0xe9] sm:$0x1] 0.0
  %174 = vst [vmem:[#allocation3 + $0x101] sm:$0x1] 0.0
  %175 = vst [vmem:[#allocation3 + $0x119] sm:$0x1] 0.0
  %176 = vst [vmem:[#allocation3 + $0x131] sm:$0x1] 0.0
  %177 = vst [vmem:[#allocation3 + $0x149] sm:$0x1] 0.0
  %178 = vst [vmem:[#allocation3 + $0x161] sm:$0x1] 0.0
  %179 = vst [vmem:[#allocation3 + $0x179] sm:$0x1] 0.0
  %180 = vst [vmem:[#allocation3 + $0x191] sm:$0x1] 0.0
  %181 = vst [vmem:[#allocation3 + $0x1a9] sm:$0x1] 0.0
  %182 = vst [vmem:[#allocation3 + $0x1c1] sm:$0x1] 0.0
  %183 = vst [vmem:[#allocation3 + $0x1d9] sm:$0x1] 0.0
  %184 = vst [vmem:[#allocation3 + $0x1f1] sm:$0x1] 0.0
  %185 = vst [vmem:[#allocation3 + $0x209] sm:$0x1] 0.0
  %186 = vst [vmem:[#allocation3 + $0x221] sm:$0x1] 0.0
  %187 = vst [vmem:[#allocation3 + $0x239] sm:$0x1] 0.0
  %188 = vst [vmem:[#allocation3 + $0x251] sm:$0x1] 0.0
  %189 = vst [vmem:[#allocation3 + $0x269] sm:$0x1] 0.0
  %190 = vst [vmem:[#allocation3 + $0x281] sm:$0x1] 0.0
  %191 = vst [vmem:[#allocation3 + $0x299] sm:$0x1] 0.0
  %192 = vst [vmem:[#allocation3 + $0x2b1] sm:$0x1] 0.0
  %193 = vst [vmem:[#allocation3 + $0x2c9] sm:$0x1] 0.0
  %194 = vst [vmem:[#allocation3 + $0x2e1] sm:$0x1] 0.0
  %195 = vst [vmem:[#allocation3 + $0x2f9] sm:$0x1] 0.0
  %196 = vst [vmem:[#allocation3 + $0x311] sm:$0x1] 0.0
  %197 = vst [vmem:[#allocation3 + $0x329] sm:$0x1] 0.0
  %198 = vst [vmem:[#allocation3 + $0x341] sm:$0x1] 0.0
  %199 = vst [vmem:[#allocation3 + $0x359] sm:$0x1] 0.0
  %v200 = vld [vmem:[%s0] sm:$0xff]
  %v201 = vld [vmem:[%s0 + $0x8] sm:$0xff]
  %v202 = vld [vmem:[%s0 + $0x10] sm:$0xff]
  %v203 = vld [vmem:[%s0 + $0x18] sm:$0xff]
  %v204 = vld [vmem:[%s0 + $0x20] sm:$0xff]
  %v205 = vld [vmem:[%s0 + $0x28] sm:$0xff]
  %v206 = vld [vmem:[%s0 + $0x30] sm:$0xff]
  %v207 = vld [vmem:[%s0 + $0x38] sm:$0xff]
  %v208 = vld [vmem:[%s0 + $0x40] sm:$0xff]
  %v209 = vld [vmem:[%s0 + $0x48] sm:$0xff]
  %v210 = vld [vmem:[%s0 + $0x50] sm:$0xff]
  %v211 = vld [vmem:[%s0 + $0x58] sm:$0xff]
  %v212 = vld [vmem:[%s0 + $0x60] sm:$0xff]
  %v213 = vld [vmem:[%s0 + $0x68] sm:$0xff]
  %v214 = vld [vmem:[%s0 + $0x70] sm:$0xff]
  %v215 = vld [vmem:[%s0 + $0x78] sm:$0xff]
  %v216 = vld [vmem:[%s0 + $0x80] sm:$0xff]
  %v217 = vld [vmem:[%s0 + $0x88] sm:$0xff]
  %v218 = vld [vmem:[%s0 + $0x90] sm:$0xff]
  %v219 = vld [vmem:[%s0 + $0x98] sm:$0xff]
  %v220 = vld [vmem:[%s0 + $0xa0] sm:$0xff]
  %v221 = vld [vmem:[%s0 + $0xa8] sm:$0xff]
  %v222 = vld [vmem:[%s0 + $0xb0] sm:$0xff]
  %v223 = vld [vmem:[%s0 + $0xb8] sm:$0xff]
  %v224 = vld [vmem:[%s0 + $0xc0] sm:$0xff]
  %v225 = vld [vmem:[%s0 + $0xc8] sm:$0xff]
  %v226 = vld [vmem:[%s0 + $0xd0] sm:$0xff]
  %v227 = vld [vmem:[%s0 + $0xd8] sm:$0xff]
  %v228 = vld [vmem:[%s0 + $0xe0] sm:$0xff]
  %v229 = vld [vmem:[%s0 + $0xe8] sm:$0xff]
  %v230 = vld [vmem:[%s0 + $0xf0] sm:$0xff]
  %v231 = vld [vmem:[%s0 + $0xf8] sm:$0xff]
  %v232 = vld [vmem:[%s0 + $0x100] sm:$0xff]
  %v233 = vld [vmem:[%s0 + $0x108] sm:$0xff]
  %v234 = vld [vmem:[%s0 + $0x110] sm:$0xff]
  %v235 = vld [vmem:[%s0 + $0x118] sm:$0xff]
  %v236 = vld [vmem:[%s0 + $0x120] sm:$0xff]
  %v237 = vld [vmem:[%s0 + $0x128] sm:$0xff]
  %v238 = vld [vmem:[%s0 + $0x130] sm:$0xff]
  %v239 = vld [vmem:[%s0 + $0x138] sm:$0xff]
  %v240 = vld [vmem:[%s0 + $0x140] sm:$0xff]
  %v241 = vld [vmem:[%s0 + $0x148] sm:$0xff]
  %v242 = vld [vmem:[%s0 + $0x150] sm:$0xff]
  %v243 = vld [vmem:[%s0 + $0x158] sm:$0xff]
  %v244 = vld [vmem:[%s0 + $0x160] sm:$0xff]
  %v245 = vld [vmem:[%s0 + $0x168] sm:$0xff]
  %v246 = vld [vmem:[%s0 + $0x170] sm:$0xff]
  %v247 = vld [vmem:[%s0 + $0x178] sm:$0xff]
  %v248 = vld [vmem:[%s0 + $0x180] sm:$0xff]
  %v249 = vld [vmem:[%s0 + $0x188] sm:$0xff]
  %v250 = vld [vmem:[%s0 + $0x190] sm:$0xff]
  %v251 = vld [vmem:[%s0 + $0x198] sm:$0xff]
  %v252 = vld [vmem:[%s0 + $0x1a0] sm:$0xff]
  %v253 = vld [vmem:[%s0 + $0x1a8] sm:$0xff]
  %v254 = vld [vmem:[%s0 + $0x1b0] sm:$0xff]
  %v255 = vld [vmem:[%s0 + $0x1b8] sm:$0xff]
  %v256 = vld [vmem:[%s0 + $0x1c0] sm:$0xff]
  %v257 = vld [vmem:[%s0 + $0x1c8] sm:$0xff]
  %v258 = vld [vmem:[%s0 + $0x1d0] sm:$0xff]
  %v259 = vld [vmem:[%s0 + $0x1d8] sm:$0xff]
  %v260 = vld [vmem:[%s0 + $0x1e0] sm:$0xff]
  %v261 = vld [vmem:[%s0 + $0x1e8] sm:$0xff]
  %v262 = vld [vmem:[%s0 + $0x1f0] sm:$0xff]
  %v263 = vld [vmem:[%s0 + $0x1f8] sm:$0xff]
  %s264 = scalar_lea.vmem [#allocation2], 24
  %265 = vst.msk [vmem:[%s264 + $0x1] sm:$0xff] %vm27, %v200
  %266 = vst.msk [vmem:[%s264 + $0x9] sm:$0xff] %vm27, %v201
  %267 = vst.msk [vmem:[%s264 + $0x19] sm:$0xff] %vm27, %v202
  %268 = vst.msk [vmem:[%s264 + $0x21] sm:$0xff] %vm27, %v203
  %269 = vst.msk [vmem:[%s264 + $0x31] sm:$0xff] %vm27, %v204
  %270 = vst.msk [vmem:[%s264 + $0x39] sm:$0xff] %vm27, %v205
  %271 = vst.msk [vmem:[%s264 + $0x49] sm:$0xff] %vm27, %v206
  %272 = vst.msk [vmem:[%s264 + $0x51] sm:$0xff] %vm27, %v207
  %273 = vst.msk [vmem:[%s264 + $0x61] sm:$0xff] %vm27, %v208
  %274 = vst.msk [vmem:[%s264 + $0x69] sm:$0xff] %vm27, %v209
  %275 = vst.msk [vmem:[%s264 + $0x79] sm:$0xff] %vm27, %v210
  %276 = vst.msk [vmem:[%s264 + $0x81] sm:$0xff] %vm27, %v211
  %277 = vst.msk [vmem:[%s264 + $0x91] sm:$0xff] %vm27, %v212
  %278 = vst.msk [vmem:[%s264 + $0x99] sm:$0xff] %vm27, %v213
  %279 = vst.msk [vmem:[%s264 + $0xa9] sm:$0xff] %vm27, %v214
  %280 = vst.msk [vmem:[%s264 + $0xb1] sm:$0xff] %vm27, %v215
  %281 = vst.msk [vmem:[%s264 + $0xc1] sm:$0xff] %vm27, %v216
  %282 = vst.msk [vmem:[%s264 + $0xc9] sm:$0xff] %vm27, %v217
  %283 = vst.msk [vmem:[%s264 + $0xd9] sm:$0xff] %vm27, %v218
  %284 = vst.msk [vmem:[%s264 + $0xe1] sm:$0xff] %vm27, %v219
  %285 = vst.msk [vmem:[%s264 + $0xf1] sm:$0xff] %vm27, %v220
  %286 = vst.msk [vmem:[%s264 + $0xf9] sm:$0xff] %vm27, %v221
  %287 = vst.msk [vmem:[%s264 + $0x109] sm:$0xff] %vm27, %v222
  %288 = vst.msk [vmem:[%s264 + $0x111] sm:$0xff] %vm27, %v223
  %289 = vst.msk [vmem:[%s264 + $0x121] sm:$0xff] %vm27, %v224
  %290 = vst.msk [vmem:[%s264 + $0x129] sm:$0xff] %vm27, %v225
  %291 = vst.msk [vmem:[%s264 + $0x139] sm:$0xff] %vm27, %v226
  %292 = vst.msk [vmem:[%s264 + $0x141] sm:$0xff] %vm27, %v227
  %293 = vst.msk [vmem:[%s264 + $0x151] sm:$0xff] %vm27, %v228
  %294 = vst.msk [vmem:[%s264 + $0x159] sm:$0xff] %vm27, %v229
  %295 = vst.msk [vmem:[%s264 + $0x169] sm:$0xff] %vm27, %v230
  %296 = vst.msk [vmem:[%s264 + $0x171] sm:$0xff] %vm27, %v231
  %297 = vst.msk [vmem:[%s264 + $0x1b1] sm:$0xff] %vm27, %v232
  %298 = vst.msk [vmem:[%s264 + $0x1b9] sm:$0xff] %vm27, %v233
  %299 = vst.msk [vmem:[%s264 + $0x1c9] sm:$0xff] %vm27, %v234
  %300 = vst.msk [vmem:[%s264 + $0x1d1] sm:$0xff] %vm27, %v235
  %301 = vst.msk [vmem:[%s264 + $0x1e1] sm:$0xff] %vm27, %v236
  %302 = vst.msk [vmem:[%s264 + $0x1e9] sm:$0xff] %vm27, %v237
  %303 = vst.msk [vmem:[%s264 + $0x1f9] sm:$0xff] %vm27, %v238
  %304 = vst.msk [vmem:[%s264 + $0x201] sm:$0xff] %vm27, %v239
  %305 = vst.msk [vmem:[%s264 + $0x211] sm:$0xff] %vm27, %v240
  %306 = vst.msk [vmem:[%s264 + $0x219] sm:$0xff] %vm27, %v241
  %307 = vst.msk [vmem:[%s264 + $0x229] sm:$0xff] %vm27, %v242
  %308 = vst.msk [vmem:[%s264 + $0x231] sm:$0xff] %vm27, %v243
  %309 = vst.msk [vmem:[%s264 + $0x241] sm:$0xff] %vm27, %v244
  %310 = vst.msk [vmem:[%s264 + $0x249] sm:$0xff] %vm27, %v245
  %311 = vst.msk [vmem:[%s264 + $0x259] sm:$0xff] %vm27, %v246
  %312 = vst.msk [vmem:[%s264 + $0x261] sm:$0xff] %vm27, %v247
  %313 = vst.msk [vmem:[%s264 + $0x271] sm:$0xff] %vm27, %v248
  %314 = vst.msk [vmem:[%s264 + $0x279] sm:$0xff] %vm27, %v249
  %315 = vst.msk [vmem:[%s264 + $0x289] sm:$0xff] %vm27, %v250
  %316 = vst.msk [vmem:[%s264 + $0x291] sm:$0xff] %vm27, %v251
  %317 = vst.msk [vmem:[%s264 + $0x2a1] sm:$0xff] %vm27, %v252
  %318 = vst.msk [vmem:[%s264 + $0x2a9] sm:$0xff] %vm27, %v253
  %319 = vst.msk [vmem:[%s264 + $0x2b9] sm:$0xff] %vm27, %v254
  %320 = vst.msk [vmem:[%s264 + $0x2c1] sm:$0xff] %vm27, %v255
  %321 = vst.msk [vmem:[%s264 + $0x2d1] sm:$0xff] %vm27, %v256
  %322 = vst.msk [vmem:[%s264 + $0x2d9] sm:$0xff] %vm27, %v257
  %323 = vst.msk [vmem:[%s264 + $0x2e9] sm:$0xff] %vm27, %v258
  %324 = vst.msk [vmem:[%s264 + $0x2f1] sm:$0xff] %vm27, %v259
  %325 = vst.msk [vmem:[%s264 + $0x301] sm:$0xff] %vm27, %v260
  %326 = vst.msk [vmem:[%s264 + $0x309] sm:$0xff] %vm27, %v261
  %327 = vst.msk [vmem:[%s264 + $0x319] sm:$0xff] %vm27, %v262
  %328 = vst.msk [vmem:[%s264 + $0x321] sm:$0xff] %vm27, %v263
  %v329 = vld [vmem:[#allocation2] sm:$0xff]
  %v330 = vld [vmem:[#allocation2 + $0x8] sm:$0xff]
  %v331 = vld [vmem:[#allocation2 + $0x18] sm:$0xff]
  %v332 = vld [vmem:[#allocation2 + $0x20] sm:$0xff]
  %v333 = vld [vmem:[#allocation2 + $0x30] sm:$0xff]
  %v334 = vld [vmem:[#allocation2 + $0x38] sm:$0xff]
  %v335 = vld [vmem:[#allocation2 + $0x48] sm:$0xff]
  %v336 = vld [vmem:[#allocation2 + $0x50] sm:$0xff]
  %v337 = vld [vmem:[#allocation2 + $0x60] sm:$0xff]
  %v338 = vld [vmem:[#allocation2 + $0x68] sm:$0xff]
  %v339 = vld [vmem:[#allocation2 + $0x78] sm:$0xff]
  %v340 = vld [vmem:[#allocation2 + $0x80] sm:$0xff]
  %v341 = vld [vmem:[#allocation2 + $0x90] sm:$0xff]
  %v342 = vld [vmem:[#allocation2 + $0x98] sm:$0xff]
  %v343 = vld [vmem:[#allocation2 + $0xa8] sm:$0xff]
  %v344 = vld [vmem:[#allocation2 + $0xb0] sm:$0xff]
  %v345 = vld [vmem:[#allocation2 + $0xc0] sm:$0xff]
  %v346 = vld [vmem:[#allocation2 + $0xc8] sm:$0xff]
  %v347 = vld [vmem:[#allocation2 + $0xd8] sm:$0xff]
  %v348 = vld [vmem:[#allocation2 + $0xe0] sm:$0xff]
  %v349 = vld [vmem:[#allocation2 + $0xf0] sm:$0xff]
  %v350 = vld [vmem:[#allocation2 + $0xf8] sm:$0xff]
  %v351 = vld [vmem:[#allocation2 + $0x108] sm:$0xff]
  %v352 = vld [vmem:[#allocation2 + $0x110] sm:$0xff]
  %v353 = vld [vmem:[#allocation2 + $0x120] sm:$0xff]
  %v354 = vld [vmem:[#allocation2 + $0x128] sm:$0xff]
  %v355 = vld [vmem:[#allocation2 + $0x138] sm:$0xff]
  %v356 = vld [vmem:[#allocation2 + $0x140] sm:$0xff]
  %v357 = vld [vmem:[#allocation2 + $0x150] sm:$0xff]
  %v358 = vld [vmem:[#allocation2 + $0x158] sm:$0xff]
  %v359 = vld [vmem:[#allocation2 + $0x168] sm:$0xff]
  %v360 = vld [vmem:[#allocation2 + $0x170] sm:$0xff]
  %v361 = vld [vmem:[#allocation2 + $0x1b0] sm:$0xff]
  %v362 = vld [vmem:[#allocation2 + $0x1b8] sm:$0xff]
  %v363 = vld [vmem:[#allocation2 + $0x1c8] sm:$0xff]
  %v364 = vld [vmem:[#allocation2 + $0x1d0] sm:$0xff]
  %v365 = vld [vmem:[#allocation2 + $0x1e0] sm:$0xff]
  %v366 = vld [vmem:[#allocation2 + $0x1e8] sm:$0xff]
  %v367 = vld [vmem:[#allocation2 + $0x1f8] sm:$0xff]
  %v368 = vld [vmem:[#allocation2 + $0x200] sm:$0xff]
  %v369 = vld [vmem:[#allocation2 + $0x210] sm:$0xff]
  %v370 = vld [vmem:[#allocation2 + $0x218] sm:$0xff]
  %v371 = vld [vmem:[#allocation2 + $0x228] sm:$0xff]
  %v372 = vld [vmem:[#allocation2 + $0x230] sm:$0xff]
  %v373 = vld [vmem:[#allocation2 + $0x240] sm:$0xff]
  %v374 = vld [vmem:[#allocation2 + $0x248] sm:$0xff]
  %v375 = vld [vmem:[#allocation2 + $0x258] sm:$0xff]
  %v376 = vld [vmem:[#allocation2 + $0x260] sm:$0xff]
  %v377 = vld [vmem:[#allocation2 + $0x270] sm:$0xff]
  %v378 = vld [vmem:[#allocation2 + $0x278] sm:$0xff]
  %v379 = vld [vmem:[#allocation2 + $0x288] sm:$0xff]
  %v380 = vld [vmem:[#allocation2 + $0x290] sm:$0xff]
  %v381 = vld [vmem:[#allocation2 + $0x2a0] sm:$0xff]
  %v382 = vld [vmem:[#allocation2 + $0x2a8] sm:$0xff]
  %v383 = vld [vmem:[#allocation2 + $0x2b8] sm:$0xff]
  %v384 = vld [vmem:[#allocation2 + $0x2c0] sm:$0xff]
  %v385 = vld [vmem:[#allocation2 + $0x2d0] sm:$0xff]
  %v386 = vld [vmem:[#allocation2 + $0x2d8] sm:$0xff]
  %v387 = vld [vmem:[#allocation2 + $0x2e8] sm:$0xff]
  %v388 = vld [vmem:[#allocation2 + $0x2f0] sm:$0xff]
  %v389 = vld [vmem:[#allocation2 + $0x300] sm:$0xff]
  %v390 = vld [vmem:[#allocation2 + $0x308] sm:$0xff]
  %v391 = vld [vmem:[#allocation2 + $0x318] sm:$0xff]
  %v392 = vld [vmem:[#allocation2 + $0x320] sm:$0xff]
  %v393 = vpack.c.bf16 %v330, %v329
  %v394 = vpack.c.bf16 %v332, %v331
  %v395 = vpack.c.bf16 %v334, %v333
  %v396 = vpack.c.bf16 %v336, %v335
  %v397 = vpack.c.bf16 %v338, %v337
  %v398 = vpack.c.bf16 %v340, %v339
  %v399 = vpack.c.bf16 %v342, %v341
  %v400 = vpack.c.bf16 %v344, %v343
  %v401 = vpack.c.bf16 %v346, %v345
  %v402 = vpack.c.bf16 %v348, %v347
  %v403 = vpack.c.bf16 %v350, %v349
  %v404 = vpack.c.bf16 %v352, %v351
  %v405 = vpack.c.bf16 %v354, %v353
  %v406 = vpack.c.bf16 %v356, %v355
  %v407 = vpack.c.bf16 %v358, %v357
  %v408 = vpack.c.bf16 %v360, %v359
  %v409 = vpack.c.bf16 %v362, %v361
  %v410 = vpack.c.bf16 %v364, %v363
  %v411 = vpack.c.bf16 %v366, %v365
  %v412 = vpack.c.bf16 %v368, %v367
  %v413 = vpack.c.bf16 %v370, %v369
  %v414 = vpack.c.bf16 %v372, %v371
  %v415 = vpack.c.bf16 %v374, %v373
  %v416 = vpack.c.bf16 %v376, %v375
  %v417 = vpack.c.bf16 %v378, %v377
  %v418 = vpack.c.bf16 %v380, %v379
  %v419 = vpack.c.bf16 %v382, %v381
  %v420 = vpack.c.bf16 %v384, %v383
  %v421 = vpack.c.bf16 %v386, %v385
  %v422 = vpack.c.bf16 %v388, %v387
  %v423 = vpack.c.bf16 %v390, %v389
  %v424 = vpack.c.bf16 %v392, %v391
  %v425 = vld [vmem:[#allocation2 + $0x1] sm:$0xff]
  %v426 = vld [vmem:[#allocation2 + $0x9] sm:$0xff]
  %v427 = vld [vmem:[#allocation2 + $0x19] sm:$0xff]
  %v428 = vld [vmem:[#allocation2 + $0x21] sm:$0xff]
  %v429 = vld [vmem:[#allocation2 + $0x31] sm:$0xff]
  %v430 = vld [vmem:[#allocation2 + $0x39] sm:$0xff]
  %v431 = vld [vmem:[#allocation2 + $0x49] sm:$0xff]
  %v432 = vld [vmem:[#allocation2 + $0x51] sm:$0xff]
  %v433 = vld [vmem:[#allocation2 + $0x61] sm:$0xff]
  %v434 = vld [vmem:[#allocation2 + $0x69] sm:$0xff]
  %v435 = vld [vmem:[#allocation2 + $0x79] sm:$0xff]
  %v436 = vld [vmem:[#allocation2 + $0x81] sm:$0xff]
  %v437 = vld [vmem:[#allocation2 + $0x91] sm:$0xff]
  %v438 = vld [vmem:[#allocation2 + $0x99] sm:$0xff]
  %v439 = vld [vmem:[#allocation2 + $0xa9] sm:$0xff]
  %v440 = vld [vmem:[#allocation2 + $0xb1] sm:$0xff]
  %v441 = vld [vmem:[#allocation2 + $0xc1] sm:$0xff]
  %v442 = vld [vmem:[#allocation2 + $0xc9] sm:$0xff]
  %v443 = vld [vmem:[#allocation2 + $0xd9] sm:$0xff]
  %v444 = vld [vmem:[#allocation2 + $0xe1] sm:$0xff]
  %v445 = vld [vmem:[#allocation2 + $0xf1] sm:$0xff]
  %v446 = vld [vmem:[#allocation2 + $0xf9] sm:$0xff]
  %v447 = vld [vmem:[#allocation2 + $0x109] sm:$0xff]
  %v448 = vld [vmem:[#allocation2 + $0x111] sm:$0xff]
  %v449 = vld [vmem:[#allocation2 + $0x121] sm:$0xff]
  %v450 = vld [vmem:[#allocation2 + $0x129] sm:$0xff]
  %v451 = vld [vmem:[#allocation2 + $0x139] sm:$0xff]
  %v452 = vld [vmem:[#allocation2 + $0x141] sm:$0xff]
  %v453 = vld [vmem:[#allocation2 + $0x151] sm:$0xff]
  %v454 = vld [vmem:[#allocation2 + $0x159] sm:$0xff]
  %v455 = vld [vmem:[#allocation2 + $0x169] sm:$0xff]
  %v456 = vld [vmem:[#allocation2 + $0x171] sm:$0xff]
  %v457 = vld [vmem:[#allocation2 + $0x1b1] sm:$0xff]
  %v458 = vld [vmem:[#allocation2 + $0x1b9] sm:$0xff]
  %v459 = vld [vmem:[#allocation2 + $0x1c9] sm:$0xff]
  %v460 = vld [vmem:[#allocation2 + $0x1d1] sm:$0xff]
  %v461 = vld [vmem:[#allocation2 + $0x1e1] sm:$0xff]
  %v462 = vld [vmem:[#allocation2 + $0x1e9] sm:$0xff]
  %v463 = vld [vmem:[#allocation2 + $0x1f9] sm:$0xff]
  %v464 = vld [vmem:[#allocation2 + $0x201] sm:$0xff]
  %v465 = vld [vmem:[#allocation2 + $0x211] sm:$0xff]
  %v466 = vld [vmem:[#allocation2 + $0x219] sm:$0xff]
  %v467 = vld [vmem:[#allocation2 + $0x229] sm:$0xff]
  %v468 = vld [vmem:[#allocation2 + $0x231] sm:$0xff]
  %v469 = vld [vmem:[#allocation2 + $0x241] sm:$0xff]
  %v470 = vld [vmem:[#allocation2 + $0x249] sm:$0xff]
  %v471 = vld [vmem:[#allocation2 + $0x259] sm:$0xff]
  %v472 = vld [vmem:[#allocation2 + $0x261] sm:$0xff]
  %v473 = vld [vmem:[#allocation2 + $0x271] sm:$0xff]
  %v474 = vld [vmem:[#allocation2 + $0x279] sm:$0xff]
  %v475 = vld [vmem:[#allocation2 + $0x289] sm:$0xff]
  %v476 = vld [vmem:[#allocation2 + $0x291] sm:$0xff]
  %v477 = vld [vmem:[#allocation2 + $0x2a1] sm:$0xff]
  %v478 = vld [vmem:[#allocation2 + $0x2a9] sm:$0xff]
  %v479 = vld [vmem:[#allocation2 + $0x2b9] sm:$0xff]
  %v480 = vld [vmem:[#allocation2 + $0x2c1] sm:$0xff]
  %v481 = vld [vmem:[#allocation2 + $0x2d1] sm:$0xff]
  %v482 = vld [vmem:[#allocation2 + $0x2d9] sm:$0xff]
  %v483 = vld [vmem:[#allocation2 + $0x2e9] sm:$0xff]
  %v484 = vld [vmem:[#allocation2 + $0x2f1] sm:$0xff]
  %v485 = vld [vmem:[#allocation2 + $0x301] sm:$0xff]
  %v486 = vld [vmem:[#allocation2 + $0x309] sm:$0xff]
  %v487 = vld [vmem:[#allocation2 + $0x319] sm:$0xff]
  %v488 = vld [vmem:[#allocation2 + $0x321] sm:$0xff]
  %v489 = vpack.c.bf16 %v426, %v425
  %v490 = vpack.c.bf16 %v428, %v427
  %v491 = vpack.c.bf16 %v430, %v429
  %v492 = vpack.c.bf16 %v432, %v431
  %v493 = vpack.c.bf16 %v434, %v433
  %v494 = vpack.c.bf16 %v436, %v435
  %v495 = vpack.c.bf16 %v438, %v437
  %v496 = vpack.c.bf16 %v440, %v439
  %v497 = vpack.c.bf16 %v442, %v441
  %v498 = vpack.c.bf16 %v444, %v443
  %v499 = vpack.c.bf16 %v446, %v445
  %v500 = vpack.c.bf16 %v448, %v447
  %v501 = vpack.c.bf16 %v450, %v449
  %v502 = vpack.c.bf16 %v452, %v451
  %v503 = vpack.c.bf16 %v454, %v453
  %v504 = vpack.c.bf16 %v456, %v455
  %v505 = vpack.c.bf16 %v458, %v457
  %v506 = vpack.c.bf16 %v460, %v459
  %v507 = vpack.c.bf16 %v462, %v461
  %v508 = vpack.c.bf16 %v464, %v463
  %v509 = vpack.c.bf16 %v466, %v465
  %v510 = vpack.c.bf16 %v468, %v467
  %v511 = vpack.c.bf16 %v470, %v469
  %v512 = vpack.c.bf16 %v472, %v471
  %v513 = vpack.c.bf16 %v474, %v473
  %v514 = vpack.c.bf16 %v476, %v475
  %v515 = vpack.c.bf16 %v478, %v477
  %v516 = vpack.c.bf16 %v480, %v479
  %v517 = vpack.c.bf16 %v482, %v481
  %v518 = vpack.c.bf16 %v484, %v483
  %v519 = vpack.c.bf16 %v486, %v485
  %v520 = vpack.c.bf16 %v488, %v487
  %v521 = vld [vmem:[#allocation2 + $0x2] sm:$0xff]
  %v522 = vld [vmem:[#allocation2 + $0xa] sm:$0xff]
  %v523 = vld [vmem:[#allocation2 + $0x1a] sm:$0xff]
  %v524 = vld [vmem:[#allocation2 + $0x22] sm:$0xff]
  %v525 = vld [vmem:[#allocation2 + $0x32] sm:$0xff]
  %v526 = vld [vmem:[#allocation2 + $0x3a] sm:$0xff]
  %v527 = vld [vmem:[#allocation2 + $0x4a] sm:$0xff]
  %v528 = vld [vmem:[#allocation2 + $0x52] sm:$0xff]
  %v529 = vld [vmem:[#allocation2 + $0x62] sm:$0xff]
  %v530 = vld [vmem:[#allocation2 + $0x6a] sm:$0xff]
  %v531 = vld [vmem:[#allocation2 + $0x7a] sm:$0xff]
  %v532 = vld [vmem:[#allocation2 + $0x82] sm:$0xff]
  %v533 = vld [vmem:[#allocation2 + $0x92] sm:$0xff]
  %v534 = vld [vmem:[#allocation2 + $0x9a] sm:$0xff]
  %v535 = vld [vmem:[#allocation2 + $0xaa] sm:$0xff]
  %v536 = vld [vmem:[#allocation2 + $0xb2] sm:$0xff]
  %v537 = vld [vmem:[#allocation2 + $0xc2] sm:$0xff]
  %v538 = vld [vmem:[#allocation2 + $0xca] sm:$0xff]
  %v539 = vld [vmem:[#allocation2 + $0xda] sm:$0xff]
  %v540 = vld [vmem:[#allocation2 + $0xe2] sm:$0xff]
  %v541 = vld [vmem:[#allocation2 + $0xf2] sm:$0xff]
  %v542 = vld [vmem:[#allocation2 + $0xfa] sm:$0xff]
  %v543 = vld [vmem:[#allocation2 + $0x10a] sm:$0xff]
  %v544 = vld [vmem:[#allocation2 + $0x112] sm:$0xff]
  %v545 = vld [vmem:[#allocation2 + $0x122] sm:$0xff]
  %v546 = vld [vmem:[#allocation2 + $0x12a] sm:$0xff]
  %v547 = vld [vmem:[#allocation2 + $0x13a] sm:$0xff]
  %v548 = vld [vmem:[#allocation2 + $0x142] sm:$0xff]
  %v549 = vld [vmem:[#allocation2 + $0x152] sm:$0xff]
  %v550 = vld [vmem:[#allocation2 + $0x15a] sm:$0xff]
  %v551 = vld [vmem:[#allocation2 + $0x16a] sm:$0xff]
  %v552 = vld [vmem:[#allocation2 + $0x172] sm:$0xff]
  %v553 = vld [vmem:[#allocation2 + $0x1b2] sm:$0xff]
  %v554 = vld [vmem:[#allocation2 + $0x1ba] sm:$0xff]
  %v555 = vld [vmem:[#allocation2 + $0x1ca] sm:$0xff]
  %v556 = vld [vmem:[#allocation2 + $0x1d2] sm:$0xff]
  %v557 = vld [vmem:[#allocation2 + $0x1e2] sm:$0xff]
  %v558 = vld [vmem:[#allocation2 + $0x1ea] sm:$0xff]
  %v559 = vld [vmem:[#allocation2 + $0x1fa] sm:$0xff]
  %v560 = vld [vmem:[#allocation2 + $0x202] sm:$0xff]
  %v561 = vld [vmem:[#allocation2 + $0x212] sm:$0xff]
  %v562 = vld [vmem:[#allocation2 + $0x21a] sm:$0xff]
  %v563 = vld [vmem:[#allocation2 + $0x22a] sm:$0xff]
  %v564 = vld [vmem:[#allocation2 + $0x232] sm:$0xff]
  %v565 = vld [vmem:[#allocation2 + $0x242] sm:$0xff]
  %v566 = vld [vmem:[#allocation2 + $0x24a] sm:$0xff]
  %v567 = vld [vmem:[#allocation2 + $0x25a] sm:$0xff]
  %v568 = vld [vmem:[#allocation2 + $0x262] sm:$0xff]
  %v569 = vld [vmem:[#allocation2 + $0x272] sm:$0xff]
  %v570 = vld [vmem:[#allocation2 + $0x27a] sm:$0xff]
  %v571 = vld [vmem:[#allocation2 + $0x28a] sm:$0xff]
  %v572 = vld [vmem:[#allocation2 + $0x292] sm:$0xff]
  %v573 = vld [vmem:[#allocation2 + $0x2a2] sm:$0xff]
  %v574 = vld [vmem:[#allocation2 + $0x2aa] sm:$0xff]
  %v575 = vld [vmem:[#allocation2 + $0x2ba] sm:$0xff]
  %v576 = vld [vmem:[#allocation2 + $0x2c2] sm:$0xff]
  %v577 = vld [vmem:[#allocation2 + $0x2d2] sm:$0xff]
  %v578 = vld [vmem:[#allocation2 + $0x2da] sm:$0xff]
  %v579 = vld [vmem:[#allocation2 + $0x2ea] sm:$0xff]
  %v580 = vld [vmem:[#allocation2 + $0x2f2] sm:$0xff]
  %v581 = vld [vmem:[#allocation2 + $0x302] sm:$0xff]
  %v582 = vld [vmem:[#allocation2 + $0x30a] sm:$0xff]
  %v583 = vld [vmem:[#allocation2 + $0x31a] sm:$0xff]
  %v584 = vld [vmem:[#allocation2 + $0x322] sm:$0xff]
  %v585 = vpack.c.bf16 %v522, %v521
  %v586 = vpack.c.bf16 %v524, %v523
  %v587 = vpack.c.bf16 %v526, %v525
  %v588 = vpack.c.bf16 %v528, %v527
  %v589 = vpack.c.bf16 %v530, %v529
  %v590 = vpack.c.bf16 %v532, %v531
  %v591 = vpack.c.bf16 %v534, %v533
  %v592 = vpack.c.bf16 %v536, %v535
  %v593 = vpack.c.bf16 %v538, %v537
  %v594 = vpack.c.bf16 %v540, %v539
  %v595 = vpack.c.bf16 %v542, %v541
  %v596 = vpack.c.bf16 %v544, %v543
  %v597 = vpack.c.bf16 %v546, %v545
  %v598 = vpack.c.bf16 %v548, %v547
  %v599 = vpack.c.bf16 %v550, %v549
  %v600 = vpack.c.bf16 %v552, %v551
  %v601 = vpack.c.bf16 %v554, %v553
  %v602 = vpack.c.bf16 %v556, %v555
  %v603 = vpack.c.bf16 %v558, %v557
  %v604 = vpack.c.bf16 %v560, %v559
  %v605 = vpack.c.bf16 %v562, %v561
  %v606 = vpack.c.bf16 %v564, %v563
  %v607 = vpack.c.bf16 %v566, %v565
  %v608 = vpack.c.bf16 %v568, %v567
  %v609 = vpack.c.bf16 %v570, %v569
  %v610 = vpack.c.bf16 %v572, %v571
  %v611 = vpack.c.bf16 %v574, %v573
  %v612 = vpack.c.bf16 %v576, %v575
  %v613 = vpack.c.bf16 %v578, %v577
  %v614 = vpack.c.bf16 %v580, %v579
  %v615 = vpack.c.bf16 %v582, %v581
  %v616 = vpack.c.bf16 %v584, %v583
  %v617 = vld [vmem:[%s264] sm:$0xff]
  %v618 = vld [vmem:[%s264 + $0x8] sm:$0xff]
  %v619 = vld [vmem:[%s264 + $0x18] sm:$0xff]
  %v620 = vld [vmem:[%s264 + $0x20] sm:$0xff]
  %v621 = vld [vmem:[%s264 + $0x30] sm:$0xff]
  %v622 = vld [vmem:[%s264 + $0x38] sm:$0xff]
  %v623 = vld [vmem:[%s264 + $0x48] sm:$0xff]
  %v624 = vld [vmem:[%s264 + $0x50] sm:$0xff]
  %v625 = vld [vmem:[%s264 + $0x60] sm:$0xff]
  %v626 = vld [vmem:[%s264 + $0x68] sm:$0xff]
  %v627 = vld [vmem:[%s264 + $0x78] sm:$0xff]
  %v628 = vld [vmem:[%s264 + $0x80] sm:$0xff]
  %v629 = vld [vmem:[%s264 + $0x90] sm:$0xff]
  %v630 = vld [vmem:[%s264 + $0x98] sm:$0xff]
  %v631 = vld [vmem:[%s264 + $0xa8] sm:$0xff]
  %v632 = vld [vmem:[%s264 + $0xb0] sm:$0xff]
  %v633 = vld [vmem:[%s264 + $0xc0] sm:$0xff]
  %v634 = vld [vmem:[%s264 + $0xc8] sm:$0xff]
  %v635 = vld [vmem:[%s264 + $0xd8] sm:$0xff]
  %v636 = vld [vmem:[%s264 + $0xe0] sm:$0xff]
  %v637 = vld [vmem:[%s264 + $0xf0] sm:$0xff]
  %v638 = vld [vmem:[%s264 + $0xf8] sm:$0xff]
  %v639 = vld [vmem:[%s264 + $0x108] sm:$0xff]
  %v640 = vld [vmem:[%s264 + $0x110] sm:$0xff]
  %v641 = vld [vmem:[%s264 + $0x120] sm:$0xff]
  %v642 = vld [vmem:[%s264 + $0x128] sm:$0xff]
  %v643 = vld [vmem:[%s264 + $0x138] sm:$0xff]
  %v644 = vld [vmem:[%s264 + $0x140] sm:$0xff]
  %v645 = vld [vmem:[%s264 + $0x150] sm:$0xff]
  %v646 = vld [vmem:[%s264 + $0x158] sm:$0xff]
  %v647 = vld [vmem:[%s264 + $0x168] sm:$0xff]
  %v648 = vld [vmem:[%s264 + $0x170] sm:$0xff]
  %v649 = vld [vmem:[%s264 + $0x1b0] sm:$0xff]
  %v650 = vld [vmem:[%s264 + $0x1b8] sm:$0xff]
  %v651 = vld [vmem:[%s264 + $0x1c8] sm:$0xff]
  %v652 = vld [vmem:[%s264 + $0x1d0] sm:$0xff]
  %v653 = vld [vmem:[%s264 + $0x1e0] sm:$0xff]
  %v654 = vld [vmem:[%s264 + $0x1e8] sm:$0xff]
  %v655 = vld [vmem:[%s264 + $0x1f8] sm:$0xff]
  %v656 = vld [vmem:[%s264 + $0x200] sm:$0xff]
  %v657 = vld [vmem:[%s264 + $0x210] sm:$0xff]
  %v658 = vld [vmem:[%s264 + $0x218] sm:$0xff]
  %v659 = vld [vmem:[%s264 + $0x228] sm:$0xff]
  %v660 = vld [vmem:[%s264 + $0x230] sm:$0xff]
  %v661 = vld [vmem:[%s264 + $0x240] sm:$0xff]
  %v662 = vld [vmem:[%s264 + $0x248] sm:$0xff]
  %v663 = vld [vmem:[%s264 + $0x258] sm:$0xff]
  %v664 = vld [vmem:[%s264 + $0x260] sm:$0xff]
  %v665 = vld [vmem:[%s264 + $0x270] sm:$0xff]
  %v666 = vld [vmem:[%s264 + $0x278] sm:$0xff]
  %v667 = vld [vmem:[%s264 + $0x288] sm:$0xff]
  %v668 = vld [vmem:[%s264 + $0x290] sm:$0xff]
  %v669 = vld [vmem:[%s264 + $0x2a0] sm:$0xff]
  %v670 = vld [vmem:[%s264 + $0x2a8] sm:$0xff]
  %v671 = vld [vmem:[%s264 + $0x2b8] sm:$0xff]
  %v672 = vld [vmem:[%s264 + $0x2c0] sm:$0xff]
  %v673 = vld [vmem:[%s264 + $0x2d0] sm:$0xff]
  %v674 = vld [vmem:[%s264 + $0x2d8] sm:$0xff]
  %v675 = vld [vmem:[%s264 + $0x2e8] sm:$0xff]
  %v676 = vld [vmem:[%s264 + $0x2f0] sm:$0xff]
  %v677 = vld [vmem:[%s264 + $0x300] sm:$0xff]
  %v678 = vld [vmem:[%s264 + $0x308] sm:$0xff]
  %v679 = vld [vmem:[%s264 + $0x318] sm:$0xff]
  %v680 = vld [vmem:[%s264 + $0x320] sm:$0xff]
  %v681 = vpack.c.bf16 %v618, %v617
  %v682 = vpack.c.bf16 %v620, %v619
  %v683 = vpack.c.bf16 %v622, %v621
  %v684 = vpack.c.bf16 %v624, %v623
  %v685 = vpack.c.bf16 %v626, %v625
  %v686 = vpack.c.bf16 %v628, %v627
  %v687 = vpack.c.bf16 %v630, %v629
  %v688 = vpack.c.bf16 %v632, %v631
  %v689 = vpack.c.bf16 %v634, %v633
  %v690 = vpack.c.bf16 %v636, %v635
  %v691 = vpack.c.bf16 %v638, %v637
  %v692 = vpack.c.bf16 %v640, %v639
  %v693 = vpack.c.bf16 %v642, %v641
  %v694 = vpack.c.bf16 %v644, %v643
  %v695 = vpack.c.bf16 %v646, %v645
  %v696 = vpack.c.bf16 %v648, %v647
  %v697 = vpack.c.bf16 %v650, %v649
  %v698 = vpack.c.bf16 %v652, %v651
  %v699 = vpack.c.bf16 %v654, %v653
  %v700 = vpack.c.bf16 %v656, %v655
  %v701 = vpack.c.bf16 %v658, %v657
  %v702 = vpack.c.bf16 %v660, %v659
  %v703 = vpack.c.bf16 %v662, %v661
  %v704 = vpack.c.bf16 %v664, %v663
  %v705 = vpack.c.bf16 %v666, %v665
  %v706 = vpack.c.bf16 %v668, %v667
  %v707 = vpack.c.bf16 %v670, %v669
  %v708 = vpack.c.bf16 %v672, %v671
  %v709 = vpack.c.bf16 %v674, %v673
  %v710 = vpack.c.bf16 %v676, %v675
  %v711 = vpack.c.bf16 %v678, %v677
  %v712 = vpack.c.bf16 %v680, %v679
  %v713 = vld [vmem:[%s264 + $0x1] sm:$0xff]
  %v714 = vld [vmem:[%s264 + $0x9] sm:$0xff]
  %v715 = vld [vmem:[%s264 + $0x19] sm:$0xff]
  %v716 = vld [vmem:[%s264 + $0x21] sm:$0xff]
  %v717 = vld [vmem:[%s264 + $0x31] sm:$0xff]
  %v718 = vld [vmem:[%s264 + $0x39] sm:$0xff]
  %v719 = vld [vmem:[%s264 + $0x49] sm:$0xff]
  %v720 = vld [vmem:[%s264 + $0x51] sm:$0xff]
  %v721 = vld [vmem:[%s264 + $0x61] sm:$0xff]
  %v722 = vld [vmem:[%s264 + $0x69] sm:$0xff]
  %v723 = vld [vmem:[%s264 + $0x79] sm:$0xff]
  %v724 = vld [vmem:[%s264 + $0x81] sm:$0xff]
  %v725 = vld [vmem:[%s264 + $0x91] sm:$0xff]
  %v726 = vld [vmem:[%s264 + $0x99] sm:$0xff]
  %v727 = vld [vmem:[%s264 + $0xa9] sm:$0xff]
  %v728 = vld [vmem:[%s264 + $0xb1] sm:$0xff]
  %v729 = vld [vmem:[%s264 + $0xc1] sm:$0xff]
  %v730 = vld [vmem:[%s264 + $0xc9] sm:$0xff]
  %v731 = vld [vmem:[%s264 + $0xd9] sm:$0xff]
  %v732 = vld [vmem:[%s264 + $0xe1] sm:$0xff]
  %v733 = vld [vmem:[%s264 + $0xf1] sm:$0xff]
  %v734 = vld [vmem:[%s264 + $0xf9] sm:$0xff]
  %v735 = vld [vmem:[%s264 + $0x109] sm:$0xff]
  %v736 = vld [vmem:[%s264 + $0x111] sm:$0xff]
  %v737 = vld [vmem:[%s264 + $0x121] sm:$0xff]
  %v738 = vld [vmem:[%s264 + $0x129] sm:$0xff]
  %v739 = vld [vmem:[%s264 + $0x139] sm:$0xff]
  %v740 = vld [vmem:[%s264 + $0x141] sm:$0xff]
  %v741 = vld [vmem:[%s264 + $0x151] sm:$0xff]
  %v742 = vld [vmem:[%s264 + $0x159] sm:$0xff]
  %v743 = vld [vmem:[%s264 + $0x169] sm:$0xff]
  %v744 = vld [vmem:[%s264 + $0x171] sm:$0xff]
  %v745 = vld [vmem:[%s264 + $0x1b1] sm:$0xff]
  %v746 = vld [vmem:[%s264 + $0x1b9] sm:$0xff]
  %v747 = vld [vmem:[%s264 + $0x1c9] sm:$0xff]
  %v748 = vld [vmem:[%s264 + $0x1d1] sm:$0xff]
  %v749 = vld [vmem:[%s264 + $0x1e1] sm:$0xff]
  %v750 = vld [vmem:[%s264 + $0x1e9] sm:$0xff]
  %v751 = vld [vmem:[%s264 + $0x1f9] sm:$0xff]
  %v752 = vld [vmem:[%s264 + $0x201] sm:$0xff]
  %v753 = vld [vmem:[%s264 + $0x211] sm:$0xff]
  %v754 = vld [vmem:[%s264 + $0x219] sm:$0xff]
  %v755 = vld [vmem:[%s264 + $0x229] sm:$0xff]
  %v756 = vld [vmem:[%s264 + $0x231] sm:$0xff]
  %v757 = vld [vmem:[%s264 + $0x241] sm:$0xff]
  %v758 = vld [vmem:[%s264 + $0x249] sm:$0xff]
  %v759 = vld [vmem:[%s264 + $0x259] sm:$0xff]
  %v760 = vld [vmem:[%s264 + $0x261] sm:$0xff]
  %v761 = vld [vmem:[%s264 + $0x271] sm:$0xff]
  %v762 = vld [vmem:[%s264 + $0x279] sm:$0xff]
  %v763 = vld [vmem:[%s264 + $0x289] sm:$0xff]
  %v764 = vld [vmem:[%s264 + $0x291] sm:$0xff]
  %v765 = vld [vmem:[%s264 + $0x2a1] sm:$0xff]
  %v766 = vld [vmem:[%s264 + $0x2a9] sm:$0xff]
  %v767 = vld [vmem:[%s264 + $0x2b9] sm:$0xff]
  %v768 = vld [vmem:[%s264 + $0x2c1] sm:$0xff]
  %v769 = vld [vmem:[%s264 + $0x2d1] sm:$0xff]
  %v770 = vld [vmem:[%s264 + $0x2d9] sm:$0xff]
  %v771 = vld [vmem:[%s264 + $0x2e9] sm:$0xff]
  %v772 = vld [vmem:[%s264 + $0x2f1] sm:$0xff]
  %v773 = vld [vmem:[%s264 + $0x301] sm:$0xff]
  %v774 = vld [vmem:[%s264 + $0x309] sm:$0xff]
  %v775 = vld [vmem:[%s264 + $0x319] sm:$0xff]
  %v776 = vld [vmem:[%s264 + $0x321] sm:$0xff]
  %v777 = vpack.c.bf16 %v714, %v713
  %v778 = vpack.c.bf16 %v716, %v715
  %v779 = vpack.c.bf16 %v718, %v717
  %v780 = vpack.c.bf16 %v720, %v719
  %v781 = vpack.c.bf16 %v722, %v721
  %v782 = vpack.c.bf16 %v724, %v723
  %v783 = vpack.c.bf16 %v726, %v725
  %v784 = vpack.c.bf16 %v728, %v727
  %v785 = vpack.c.bf16 %v730, %v729
  %v786 = vpack.c.bf16 %v732, %v731
  %v787 = vpack.c.bf16 %v734, %v733
  %v788 = vpack.c.bf16 %v736, %v735
  %v789 = vpack.c.bf16 %v738, %v737
  %v790 = vpack.c.bf16 %v740, %v739
  %v791 = vpack.c.bf16 %v742, %v741
  %v792 = vpack.c.bf16 %v744, %v743
  %v793 = vpack.c.bf16 %v746, %v745
  %v794 = vpack.c.bf16 %v748, %v747
  %v795 = vpack.c.bf16 %v750, %v749
  %v796 = vpack.c.bf16 %v752, %v751
  %v797 = vpack.c.bf16 %v754, %v753
  %v798 = vpack.c.bf16 %v756, %v755
  %v799 = vpack.c.bf16 %v758, %v757
  %v800 = vpack.c.bf16 %v760, %v759
  %v801 = vpack.c.bf16 %v762, %v761
  %v802 = vpack.c.bf16 %v764, %v763
  %v803 = vpack.c.bf16 %v766, %v765
  %v804 = vpack.c.bf16 %v768, %v767
  %v805 = vpack.c.bf16 %v770, %v769
  %v806 = vpack.c.bf16 %v772, %v771
  %v807 = vpack.c.bf16 %v774, %v773
  %v808 = vpack.c.bf16 %v776, %v775
  %v809 = vld [vmem:[%s264 + $0x2] sm:$0xff]
  %v810 = vld [vmem:[%s264 + $0xa] sm:$0xff]
  %v811 = vld [vmem:[%s264 + $0x1a] sm:$0xff]
  %v812 = vld [vmem:[%s264 + $0x22] sm:$0xff]
  %v813 = vld [vmem:[%s264 + $0x32] sm:$0xff]
  %v814 = vld [vmem:[%s264 + $0x3a] sm:$0xff]
  %v815 = vld [vmem:[%s264 + $0x4a] sm:$0xff]
  %v816 = vld [vmem:[%s264 + $0x52] sm:$0xff]
  %v817 = vld [vmem:[%s264 + $0x62] sm:$0xff]
  %v818 = vld [vmem:[%s264 + $0x6a] sm:$0xff]
  %v819 = vld [vmem:[%s264 + $0x7a] sm:$0xff]
  %v820 = vld [vmem:[%s264 + $0x82] sm:$0xff]
  %v821 = vld [vmem:[%s264 + $0x92] sm:$0xff]
  %v822 = vld [vmem:[%s264 + $0x9a] sm:$0xff]
  %v823 = vld [vmem:[%s264 + $0xaa] sm:$0xff]
  %v824 = vld [vmem:[%s264 + $0xb2] sm:$0xff]
  %v825 = vld [vmem:[%s264 + $0xc2] sm:$0xff]
  %v826 = vld [vmem:[%s264 + $0xca] sm:$0xff]
  %v827 = vld [vmem:[%s264 + $0xda] sm:$0xff]
  %v828 = vld [vmem:[%s264 + $0xe2] sm:$0xff]
  %v829 = vld [vmem:[%s264 + $0xf2] sm:$0xff]
  %v830 = vld [vmem:[%s264 + $0xfa] sm:$0xff]
  %v831 = vld [vmem:[%s264 + $0x10a] sm:$0xff]
  %v832 = vld [vmem:[%s264 + $0x112] sm:$0xff]
  %v833 = vld [vmem:[%s264 + $0x122] sm:$0xff]
  %v834 = vld [vmem:[%s264 + $0x12a] sm:$0xff]
  %v835 = vld [vmem:[%s264 + $0x13a] sm:$0xff]
  %v836 = vld [vmem:[%s264 + $0x142] sm:$0xff]
  %v837 = vld [vmem:[%s264 + $0x152] sm:$0xff]
  %v838 = vld [vmem:[%s264 + $0x15a] sm:$0xff]
  %v839 = vld [vmem:[%s264 + $0x16a] sm:$0xff]
  %v840 = vld [vmem:[%s264 + $0x172] sm:$0xff]
  %v841 = vld [vmem:[%s264 + $0x1b2] sm:$0xff]
  %v842 = vld [vmem:[%s264 + $0x1ba] sm:$0xff]
  %v843 = vld [vmem:[%s264 + $0x1ca] sm:$0xff]
  %v844 = vld [vmem:[%s264 + $0x1d2] sm:$0xff]
  %v845 = vld [vmem:[%s264 + $0x1e2] sm:$0xff]
  %v846 = vld [vmem:[%s264 + $0x1ea] sm:$0xff]
  %v847 = vld [vmem:[%s264 + $0x1fa] sm:$0xff]
  %v848 = vld [vmem:[%s264 + $0x202] sm:$0xff]
  %v849 = vld [vmem:[%s264 + $0x212] sm:$0xff]
  %v850 = vld [vmem:[%s264 + $0x21a] sm:$0xff]
  %v851 = vld [vmem:[%s264 + $0x22a] sm:$0xff]
  %v852 = vld [vmem:[%s264 + $0x232] sm:$0xff]
  %v853 = vld [vmem:[%s264 + $0x242] sm:$0xff]
  %v854 = vld [vmem:[%s264 + $0x24a] sm:$0xff]
  %v855 = vld [vmem:[%s264 + $0x25a] sm:$0xff]
  %v856 = vld [vmem:[%s264 + $0x262] sm:$0xff]
  %v857 = vld [vmem:[%s264 + $0x272] sm:$0xff]
  %v858 = vld [vmem:[%s264 + $0x27a] sm:$0xff]
  %v859 = vld [vmem:[%s264 + $0x28a] sm:$0xff]
  %v860 = vld [vmem:[%s264 + $0x292] sm:$0xff]
  %v861 = vld [vmem:[%s264 + $0x2a2] sm:$0xff]
  %v862 = vld [vmem:[%s264 + $0x2aa] sm:$0xff]
  %v863 = vld [vmem:[%s264 + $0x2ba] sm:$0xff]
  %v864 = vld [vmem:[%s264 + $0x2c2] sm:$0xff]
  %v865 = vld [vmem:[%s264 + $0x2d2] sm:$0xff]
  %v866 = vld [vmem:[%s264 + $0x2da] sm:$0xff]
  %v867 = vld [vmem:[%s264 + $0x2ea] sm:$0xff]
  %v868 = vld [vmem:[%s264 + $0x2f2] sm:$0xff]
  %v869 = vld [vmem:[%s264 + $0x302] sm:$0xff]
  %v870 = vld [vmem:[%s264 + $0x30a] sm:$0xff]
  %v871 = vld [vmem:[%s264 + $0x31a] sm:$0xff]
  %v872 = vld [vmem:[%s264 + $0x322] sm:$0xff]
  %v873 = vpack.c.bf16 %v810, %v809
  %v874 = vpack.c.bf16 %v812, %v811
  %v875 = vpack.c.bf16 %v814, %v813
  %v876 = vpack.c.bf16 %v816, %v815
  %v877 = vpack.c.bf16 %v818, %v817
  %v878 = vpack.c.bf16 %v820, %v819
  %v879 = vpack.c.bf16 %v822, %v821
  %v880 = vpack.c.bf16 %v824, %v823
  %v881 = vpack.c.bf16 %v826, %v825
  %v882 = vpack.c.bf16 %v828, %v827
  %v883 = vpack.c.bf16 %v830, %v829
  %v884 = vpack.c.bf16 %v832, %v831
  %v885 = vpack.c.bf16 %v834, %v833
  %v886 = vpack.c.bf16 %v836, %v835
  %v887 = vpack.c.bf16 %v838, %v837
  %v888 = vpack.c.bf16 %v840, %v839
  %v889 = vpack.c.bf16 %v842, %v841
  %v890 = vpack.c.bf16 %v844, %v843
  %v891 = vpack.c.bf16 %v846, %v845
  %v892 = vpack.c.bf16 %v848, %v847
  %v893 = vpack.c.bf16 %v850, %v849
  %v894 = vpack.c.bf16 %v852, %v851
  %v895 = vpack.c.bf16 %v854, %v853
  %v896 = vpack.c.bf16 %v856, %v855
  %v897 = vpack.c.bf16 %v858, %v857
  %v898 = vpack.c.bf16 %v860, %v859
  %v899 = vpack.c.bf16 %v862, %v861
  %v900 = vpack.c.bf16 %v864, %v863
  %v901 = vpack.c.bf16 %v866, %v865
  %v902 = vpack.c.bf16 %v868, %v867
  %v903 = vpack.c.bf16 %v870, %v869
  %v904 = vpack.c.bf16 %v872, %v871
  %s905 = scalar_lea.vmem [#allocation2], 48
  %v906 = vld [vmem:[%s905] sm:$0xff]
  %v907 = vld [vmem:[%s905 + $0x8] sm:$0xff]
  %v908 = vld [vmem:[%s905 + $0x18] sm:$0xff]
  %v909 = vld [vmem:[%s905 + $0x20] sm:$0xff]
  %v910 = vld [vmem:[%s905 + $0x30] sm:$0xff]
  %v911 = vld [vmem:[%s905 + $0x38] sm:$0xff]
  %v912 = vld [vmem:[%s905 + $0x48] sm:$0xff]
  %v913 = vld [vmem:[%s905 + $0x50] sm:$0xff]
  %v914 = vld [vmem:[%s905 + $0x60] sm:$0xff]
  %v915 = vld [vmem:[%s905 + $0x68] sm:$0xff]
  %v916 = vld [vmem:[%s905 + $0x78] sm:$0xff]
  %v917 = vld [vmem:[%s905 + $0x80] sm:$0xff]
  %v918 = vld [vmem:[%s905 + $0x90] sm:$0xff]
  %v919 = vld [vmem:[%s905 + $0x98] sm:$0xff]
  %v920 = vld [vmem:[%s905 + $0xa8] sm:$0xff]
  %v921 = vld [vmem:[%s905 + $0xb0] sm:$0xff]
  %v922 = vld [vmem:[%s905 + $0xc0] sm:$0xff]
  %v923 = vld [vmem:[%s905 + $0xc8] sm:$0xff]
  %v924 = vld [vmem:[%s905 + $0xd8] sm:$0xff]
  %v925 = vld [vmem:[%s905 + $0xe0] sm:$0xff]
  %v926 = vld [vmem:[%s905 + $0xf0] sm:$0xff]
  %v927 = vld [vmem:[%s905 + $0xf8] sm:$0xff]
  %v928 = vld [vmem:[%s905 + $0x108] sm:$0xff]
  %v929 = vld [vmem:[%s905 + $0x110] sm:$0xff]
  %v930 = vld [vmem:[%s905 + $0x120] sm:$0xff]
  %v931 = vld [vmem:[%s905 + $0x128] sm:$0xff]
  %v932 = vld [vmem:[%s905 + $0x138] sm:$0xff]
  %v933 = vld [vmem:[%s905 + $0x140] sm:$0xff]
  %v934 = vld [vmem:[%s905 + $0x150] sm:$0xff]
  %v935 = vld [vmem:[%s905 + $0x158] sm:$0xff]
  %v936 = vld [vmem:[%s905 + $0x168] sm:$0xff]
  %v937 = vld [vmem:[%s905 + $0x170] sm:$0xff]
  %v938 = vld [vmem:[%s905 + $0x1b0] sm:$0xff]
  %v939 = vld [vmem:[%s905 + $0x1b8] sm:$0xff]
  %v940 = vld [vmem:[%s905 + $0x1c8] sm:$0xff]
  %v941 = vld [vmem:[%s905 + $0x1d0] sm:$0xff]
  %v942 = vld [vmem:[%s905 + $0x1e0] sm:$0xff]
  %v943 = vld [vmem:[%s905 + $0x1e8] sm:$0xff]
  %v944 = vld [vmem:[%s905 + $0x1f8] sm:$0xff]
  %v945 = vld [vmem:[%s905 + $0x200] sm:$0xff]
  %v946 = vld [vmem:[%s905 + $0x210] sm:$0xff]
  %v947 = vld [vmem:[%s905 + $0x218] sm:$0xff]
  %v948 = vld [vmem:[%s905 + $0x228] sm:$0xff]
  %v949 = vld [vmem:[%s905 + $0x230] sm:$0xff]
  %v950 = vld [vmem:[%s905 + $0x240] sm:$0xff]
  %v951 = vld [vmem:[%s905 + $0x248] sm:$0xff]
  %v952 = vld [vmem:[%s905 + $0x258] sm:$0xff]
  %v953 = vld [vmem:[%s905 + $0x260] sm:$0xff]
  %v954 = vld [vmem:[%s905 + $0x270] sm:$0xff]
  %v955 = vld [vmem:[%s905 + $0x278] sm:$0xff]
  %v956 = vld [vmem:[%s905 + $0x288] sm:$0xff]
  %v957 = vld [vmem:[%s905 + $0x290] sm:$0xff]
  %v958 = vld [vmem:[%s905 + $0x2a0] sm:$0xff]
  %v959 = vld [vmem:[%s905 + $0x2a8] sm:$0xff]
  %v960 = vld [vmem:[%s905 + $0x2b8] sm:$0xff]
  %v961 = vld [vmem:[%s905 + $0x2c0] sm:$0xff]
  %v962 = vld [vmem:[%s905 + $0x2d0] sm:$0xff]
  %v963 = vld [vmem:[%s905 + $0x2d8] sm:$0xff]
  %v964 = vld [vmem:[%s905 + $0x2e8] sm:$0xff]
  %v965 = vld [vmem:[%s905 + $0x2f0] sm:$0xff]
  %v966 = vld [vmem:[%s905 + $0x300] sm:$0xff]
  %v967 = vld [vmem:[%s905 + $0x308] sm:$0xff]
  %v968 = vld [vmem:[%s905 + $0x318] sm:$0xff]
  %v969 = vld [vmem:[%s905 + $0x320] sm:$0xff]
  %v970 = vpack.c.bf16 %v907, %v906
  %v971 = vpack.c.bf16 %v909, %v908
  %v972 = vpack.c.bf16 %v911, %v910
  %v973 = vpack.c.bf16 %v913, %v912
  %v974 = vpack.c.bf16 %v915, %v914
  %v975 = vpack.c.bf16 %v917, %v916
  %v976 = vpack.c.bf16 %v919, %v918
  %v977 = vpack.c.bf16 %v921, %v920
  %v978 = vpack.c.bf16 %v923, %v922
  %v979 = vpack.c.bf16 %v925, %v924
  %v980 = vpack.c.bf16 %v927, %v926
  %v981 = vpack.c.bf16 %v929, %v928
  %v982 = vpack.c.bf16 %v931, %v930
  %v983 = vpack.c.bf16 %v933, %v932
  %v984 = vpack.c.bf16 %v935, %v934
  %v985 = vpack.c.bf16 %v937, %v936
  %v986 = vpack.c.bf16 %v939, %v938
  %v987 = vpack.c.bf16 %v941, %v940
  %v988 = vpack.c.bf16 %v943, %v942
  %v989 = vpack.c.bf16 %v945, %v944
  %v990 = vpack.c.bf16 %v947, %v946
  %v991 = vpack.c.bf16 %v949, %v948
  %v992 = vpack.c.bf16 %v951, %v950
  %v993 = vpack.c.bf16 %v953, %v952
  %v994 = vpack.c.bf16 %v955, %v954
  %v995 = vpack.c.bf16 %v957, %v956
  %v996 = vpack.c.bf16 %v959, %v958
  %v997 = vpack.c.bf16 %v961, %v960
  %v998 = vpack.c.bf16 %v963, %v962
  %v999 = vpack.c.bf16 %v965, %v964
  %v1000 = vpack.c.bf16 %v967, %v966
  %v1001 = vpack.c.bf16 %v969, %v968
  %v1002 = vld [vmem:[%s905 + $0x1] sm:$0xff]
  %v1003 = vld [vmem:[%s905 + $0x9] sm:$0xff]
  %v1004 = vld [vmem:[%s905 + $0x19] sm:$0xff]
  %v1005 = vld [vmem:[%s905 + $0x21] sm:$0xff]
  %v1006 = vld [vmem:[%s905 + $0x31] sm:$0xff]
  %v1007 = vld [vmem:[%s905 + $0x39] sm:$0xff]
  %v1008 = vld [vmem:[%s905 + $0x49] sm:$0xff]
  %v1009 = vld [vmem:[%s905 + $0x51] sm:$0xff]
  %v1010 = vld [vmem:[%s905 + $0x61] sm:$0xff]
  %v1011 = vld [vmem:[%s905 + $0x69] sm:$0xff]
  %v1012 = vld [vmem:[%s905 + $0x79] sm:$0xff]
  %v1013 = vld [vmem:[%s905 + $0x81] sm:$0xff]
  %v1014 = vld [vmem:[%s905 + $0x91] sm:$0xff]
  %v1015 = vld [vmem:[%s905 + $0x99] sm:$0xff]
  %v1016 = vld [vmem:[%s905 + $0xa9] sm:$0xff]
  %v1017 = vld [vmem:[%s905 + $0xb1] sm:$0xff]
  %v1018 = vld [vmem:[%s905 + $0xc1] sm:$0xff]
  %v1019 = vld [vmem:[%s905 + $0xc9] sm:$0xff]
  %v1020 = vld [vmem:[%s905 + $0xd9] sm:$0xff]
  %v1021 = vld [vmem:[%s905 + $0xe1] sm:$0xff]
  %v1022 = vld [vmem:[%s905 + $0xf1] sm:$0xff]
  %v1023 = vld [vmem:[%s905 + $0xf9] sm:$0xff]
  %v1024 = vld [vmem:[%s905 + $0x109] sm:$0xff]
  %v1025 = vld [vmem:[%s905 + $0x111] sm:$0xff]
  %v1026 = vld [vmem:[%s905 + $0x121] sm:$0xff]
  %v1027 = vld [vmem:[%s905 + $0x129] sm:$0xff]
  %v1028 = vld [vmem:[%s905 + $0x139] sm:$0xff]
  %v1029 = vld [vmem:[%s905 + $0x141] sm:$0xff]
  %v1030 = vld [vmem:[%s905 + $0x151] sm:$0xff]
  %v1031 = vld [vmem:[%s905 + $0x159] sm:$0xff]
  %v1032 = vld [vmem:[%s905 + $0x169] sm:$0xff]
  %v1033 = vld [vmem:[%s905 + $0x171] sm:$0xff]
  %v1034 = vld [vmem:[%s905 + $0x1b1] sm:$0xff]
  %v1035 = vld [vmem:[%s905 + $0x1b9] sm:$0xff]
  %v1036 = vld [vmem:[%s905 + $0x1c9] sm:$0xff]
  %v1037 = vld [vmem:[%s905 + $0x1d1] sm:$0xff]
  %v1038 = vld [vmem:[%s905 + $0x1e1] sm:$0xff]
  %v1039 = vld [vmem:[%s905 + $0x1e9] sm:$0xff]
  %v1040 = vld [vmem:[%s905 + $0x1f9] sm:$0xff]
  %v1041 = vld [vmem:[%s905 + $0x201] sm:$0xff]
  %v1042 = vld [vmem:[%s905 + $0x211] sm:$0xff]
  %v1043 = vld [vmem:[%s905 + $0x219] sm:$0xff]
  %v1044 = vld [vmem:[%s905 + $0x229] sm:$0xff]
  %v1045 = vld [vmem:[%s905 + $0x231] sm:$0xff]
  %v1046 = vld [vmem:[%s905 + $0x241] sm:$0xff]
  %v1047 = vld [vmem:[%s905 + $0x249] sm:$0xff]
  %v1048 = vld [vmem:[%s905 + $0x259] sm:$0xff]
  %v1049 = vld [vmem:[%s905 + $0x261] sm:$0xff]
  %v1050 = vld [vmem:[%s905 + $0x271] sm:$0xff]
  %v1051 = vld [vmem:[%s905 + $0x279] sm:$0xff]
  %v1052 = vld [vmem:[%s905 + $0x289] sm:$0xff]
  %v1053 = vld [vmem:[%s905 + $0x291] sm:$0xff]
  %v1054 = vld [vmem:[%s905 + $0x2a1] sm:$0xff]
  %v1055 = vld [vmem:[%s905 + $0x2a9] sm:$0xff]
  %v1056 = vld [vmem:[%s905 + $0x2b9] sm:$0xff]
  %v1057 = vld [vmem:[%s905 + $0x2c1] sm:$0xff]
  %v1058 = vld [vmem:[%s905 + $0x2d1] sm:$0xff]
  %v1059 = vld [vmem:[%s905 + $0x2d9] sm:$0xff]
  %v1060 = vld [vmem:[%s905 + $0x2e9] sm:$0xff]
  %v1061 = vld [vmem:[%s905 + $0x2f1] sm:$0xff]
  %v1062 = vld [vmem:[%s905 + $0x301] sm:$0xff]
  %v1063 = vld [vmem:[%s905 + $0x309] sm:$0xff]
  %v1064 = vld [vmem:[%s905 + $0x319] sm:$0xff]
  %v1065 = vld [vmem:[%s905 + $0x321] sm:$0xff]
  %v1066 = vpack.c.bf16 %v1003, %v1002
  %v1067 = vpack.c.bf16 %v1005, %v1004
  %v1068 = vpack.c.bf16 %v1007, %v1006
  %v1069 = vpack.c.bf16 %v1009, %v1008
  %v1070 = vpack.c.bf16 %v1011, %v1010
  %v1071 = vpack.c.bf16 %v1013, %v1012
  %v1072 = vpack.c.bf16 %v1015, %v1014
  %v1073 = vpack.c.bf16 %v1017, %v1016
  %v1074 = vpack.c.bf16 %v1019, %v1018
  %v1075 = vpack.c.bf16 %v1021, %v1020
  %v1076 = vpack.c.bf16 %v1023, %v1022
  %v1077 = vpack.c.bf16 %v1025, %v1024
  %v1078 = vpack.c.bf16 %v1027, %v1026
  %v1079 = vpack.c.bf16 %v1029, %v1028
  %v1080 = vpack.c.bf16 %v1031, %v1030
  %v1081 = vpack.c.bf16 %v1033, %v1032
  %v1082 = vpack.c.bf16 %v1035, %v1034
  %v1083 = vpack.c.bf16 %v1037, %v1036
  %v1084 = vpack.c.bf16 %v1039, %v1038
  %v1085 = vpack.c.bf16 %v1041, %v1040
  %v1086 = vpack.c.bf16 %v1043, %v1042
  %v1087 = vpack.c.bf16 %v1045, %v1044
  %v1088 = vpack.c.bf16 %v1047, %v1046
  %v1089 = vpack.c.bf16 %v1049, %v1048
  %v1090 = vpack.c.bf16 %v1051, %v1050
  %v1091 = vpack.c.bf16 %v1053, %v1052
  %v1092 = vpack.c.bf16 %v1055, %v1054
  %v1093 = vpack.c.bf16 %v1057, %v1056
  %v1094 = vpack.c.bf16 %v1059, %v1058
  %v1095 = vpack.c.bf16 %v1061, %v1060
  %v1096 = vpack.c.bf16 %v1063, %v1062
  %v1097 = vpack.c.bf16 %v1065, %v1064
  %v1098 = vld [vmem:[%s905 + $0x2] sm:$0xff]
  %v1099 = vld [vmem:[%s905 + $0xa] sm:$0xff]
  %v1100 = vld [vmem:[%s905 + $0x1a] sm:$0xff]
  %v1101 = vld [vmem:[%s905 + $0x22] sm:$0xff]
  %v1102 = vld [vmem:[%s905 + $0x32] sm:$0xff]
  %v1103 = vld [vmem:[%s905 + $0x3a] sm:$0xff]
  %v1104 = vld [vmem:[%s905 + $0x4a] sm:$0xff]
  %v1105 = vld [vmem:[%s905 + $0x52] sm:$0xff]
  %v1106 = vld [vmem:[%s905 + $0x62] sm:$0xff]
  %v1107 = vld [vmem:[%s905 + $0x6a] sm:$0xff]
  %v1108 = vld [vmem:[%s905 + $0x7a] sm:$0xff]
  %v1109 = vld [vmem:[%s905 + $0x82] sm:$0xff]
  %v1110 = vld [vmem:[%s905 + $0x92] sm:$0xff]
  %v1111 = vld [vmem:[%s905 + $0x9a] sm:$0xff]
  %v1112 = vld [vmem:[%s905 + $0xaa] sm:$0xff]
  %v1113 = vld [vmem:[%s905 + $0xb2] sm:$0xff]
  %v1114 = vld [vmem:[%s905 + $0xc2] sm:$0xff]
  %v1115 = vld [vmem:[%s905 + $0xca] sm:$0xff]
  %v1116 = vld [vmem:[%s905 + $0xda] sm:$0xff]
  %v1117 = vld [vmem:[%s905 + $0xe2] sm:$0xff]
  %v1118 = vld [vmem:[%s905 + $0xf2] sm:$0xff]
  %v1119 = vld [vmem:[%s905 + $0xfa] sm:$0xff]
  %v1120 = vld [vmem:[%s905 + $0x10a] sm:$0xff]
  %v1121 = vld [vmem:[%s905 + $0x112] sm:$0xff]
  %v1122 = vld [vmem:[%s905 + $0x122] sm:$0xff]
  %v1123 = vld [vmem:[%s905 + $0x12a] sm:$0xff]
  %v1124 = vld [vmem:[%s905 + $0x13a] sm:$0xff]
  %v1125 = vld [vmem:[%s905 + $0x142] sm:$0xff]
  %v1126 = vld [vmem:[%s905 + $0x152] sm:$0xff]
  %v1127 = vld [vmem:[%s905 + $0x15a] sm:$0xff]
  %v1128 = vld [vmem:[%s905 + $0x16a] sm:$0xff]
  %v1129 = vld [vmem:[%s905 + $0x172] sm:$0xff]
  %v1130 = vld [vmem:[%s905 + $0x1b2] sm:$0xff]
  %v1131 = vld [vmem:[%s905 + $0x1ba] sm:$0xff]
  %v1132 = vld [vmem:[%s905 + $0x1ca] sm:$0xff]
  %v1133 = vld [vmem:[%s905 + $0x1d2] sm:$0xff]
  %v1134 = vld [vmem:[%s905 + $0x1e2] sm:$0xff]
  %v1135 = vld [vmem:[%s905 + $0x1ea] sm:$0xff]
  %v1136 = vld [vmem:[%s905 + $0x1fa] sm:$0xff]
  %v1137 = vld [vmem:[%s905 + $0x202] sm:$0xff]
  %v1138 = vld [vmem:[%s905 + $0x212] sm:$0xff]
  %v1139 = vld [vmem:[%s905 + $0x21a] sm:$0xff]
  %v1140 = vld [vmem:[%s905 + $0x22a] sm:$0xff]
  %v1141 = vld [vmem:[%s905 + $0x232] sm:$0xff]
  %v1142 = vld [vmem:[%s905 + $0x242] sm:$0xff]
  %v1143 = vld [vmem:[%s905 + $0x24a] sm:$0xff]
  %v1144 = vld [vmem:[%s905 + $0x25a] sm:$0xff]
  %v1145 = vld [vmem:[%s905 + $0x262] sm:$0xff]
  %v1146 = vld [vmem:[%s905 + $0x272] sm:$0xff]
  %v1147 = vld [vmem:[%s905 + $0x27a] sm:$0xff]
  %v1148 = vld [vmem:[%s905 + $0x28a] sm:$0xff]
  %v1149 = vld [vmem:[%s905 + $0x292] sm:$0xff]
  %v1150 = vld [vmem:[%s905 + $0x2a2] sm:$0xff]
  %v1151 = vld [vmem:[%s905 + $0x2aa] sm:$0xff]
  %v1152 = vld [vmem:[%s905 + $0x2ba] sm:$0xff]
  %v1153 = vld [vmem:[%s905 + $0x2c2] sm:$0xff]
  %v1154 = vld [vmem:[%s905 + $0x2d2] sm:$0xff]
  %v1155 = vld [vmem:[%s905 + $0x2da] sm:$0xff]
  %v1156 = vld [vmem:[%s905 + $0x2ea] sm:$0xff]
  %v1157 = vld [vmem:[%s905 + $0x2f2] sm:$0xff]
  %v1158 = vld [vmem:[%s905 + $0x302] sm:$0xff]
  %v1159 = vld [vmem:[%s905 + $0x30a] sm:$0xff]
  %v1160 = vld [vmem:[%s905 + $0x31a] sm:$0xff]
  %v1161 = vld [vmem:[%s905 + $0x322] sm:$0xff]
  %v1162 = vpack.c.bf16 %v1099, %v1098
  %v1163 = vpack.c.bf16 %v1101, %v1100
  %v1164 = vpack.c.bf16 %v1103, %v1102
  %v1165 = vpack.c.bf16 %v1105, %v1104
  %v1166 = vpack.c.bf16 %v1107, %v1106
  %v1167 = vpack.c.bf16 %v1109, %v1108
  %v1168 = vpack.c.bf16 %v1111, %v1110
  %v1169 = vpack.c.bf16 %v1113, %v1112
  %v1170 = vpack.c.bf16 %v1115, %v1114
  %v1171 = vpack.c.bf16 %v1117, %v1116
  %v1172 = vpack.c.bf16 %v1119, %v1118
  %v1173 = vpack.c.bf16 %v1121, %v1120
  %v1174 = vpack.c.bf16 %v1123, %v1122
  %v1175 = vpack.c.bf16 %v1125, %v1124
  %v1176 = vpack.c.bf16 %v1127, %v1126
  %v1177 = vpack.c.bf16 %v1129, %v1128
  %v1178 = vpack.c.bf16 %v1131, %v1130
  %v1179 = vpack.c.bf16 %v1133, %v1132
  %v1180 = vpack.c.bf16 %v1135, %v1134
  %v1181 = vpack.c.bf16 %v1137, %v1136
  %v1182 = vpack.c.bf16 %v1139, %v1138
  %v1183 = vpack.c.bf16 %v1141, %v1140
  %v1184 = vpack.c.bf16 %v1143, %v1142
  %v1185 = vpack.c.bf16 %v1145, %v1144
  %v1186 = vpack.c.bf16 %v1147, %v1146
  %v1187 = vpack.c.bf16 %v1149, %v1148
  %v1188 = vpack.c.bf16 %v1151, %v1150
  %v1189 = vpack.c.bf16 %v1153, %v1152
  %v1190 = vpack.c.bf16 %v1155, %v1154
  %v1191 = vpack.c.bf16 %v1157, %v1156
  %v1192 = vpack.c.bf16 %v1159, %v1158
  %v1193 = vpack.c.bf16 %v1161, %v1160
  %1226 = vrot.lane.b32.xlu0 %v489, 4
  %v1227 = vpop.permute.xlu0 %1226
  %1228 = vrot.lane.b32.xlu0 %v490, 4
  %v1229 = vpop.permute.xlu0 %1228
  %1230 = vrot.lane.b32.xlu0 %v491, 4
  %v1231 = vpop.permute.xlu0 %1230
  %1232 = vrot.lane.b32.xlu0 %v492, 4
  %v1233 = vpop.permute.xlu0 %1232
  %1234 = vrot.lane.b32.xlu0 %v493, 4
  %v1235 = vpop.permute.xlu0 %1234
  %1236 = vrot.lane.b32.xlu0 %v494, 4
  %v1237 = vpop.permute.xlu0 %1236
  %1238 = vrot.lane.b32.xlu0 %v495, 4
  %v1239 = vpop.permute.xlu0 %1238
  %1240 = vrot.lane.b32.xlu0 %v496, 4
  %v1241 = vpop.permute.xlu0 %1240
  %1242 = vrot.lane.b32.xlu0 %v497, 4
  %v1243 = vpop.permute.xlu0 %1242
  %1244 = vrot.lane.b32.xlu0 %v498, 4
  %v1245 = vpop.permute.xlu0 %1244
  %1246 = vrot.lane.b32.xlu0 %v499, 4
  %v1247 = vpop.permute.xlu0 %1246
  %1248 = vrot.lane.b32.xlu0 %v500, 4
  %v1249 = vpop.permute.xlu0 %1248
  %1250 = vrot.lane.b32.xlu0 %v501, 4
  %v1251 = vpop.permute.xlu0 %1250
  %1252 = vrot.lane.b32.xlu0 %v502, 4
  %v1253 = vpop.permute.xlu0 %1252
  %1254 = vrot.lane.b32.xlu0 %v503, 4
  %v1255 = vpop.permute.xlu0 %1254
  %1256 = vrot.lane.b32.xlu0 %v504, 4
  %v1257 = vpop.permute.xlu0 %1256
  %1258 = vrot.lane.b32.xlu0 %v505, 4
  %v1259 = vpop.permute.xlu0 %1258
  %1260 = vrot.lane.b32.xlu0 %v506, 4
  %v1261 = vpop.permute.xlu0 %1260
  %1262 = vrot.lane.b32.xlu0 %v507, 4
  %v1263 = vpop.permute.xlu0 %1262
  %1264 = vrot.lane.b32.xlu0 %v508, 4
  %v1265 = vpop.permute.xlu0 %1264
  %1266 = vrot.lane.b32.xlu0 %v509, 4
  %v1267 = vpop.permute.xlu0 %1266
  %1268 = vrot.lane.b32.xlu0 %v510, 4
  %v1269 = vpop.permute.xlu0 %1268
  %1270 = vrot.lane.b32.xlu0 %v511, 4
  %v1271 = vpop.permute.xlu0 %1270
  %1272 = vrot.lane.b32.xlu0 %v512, 4
  %v1273 = vpop.permute.xlu0 %1272
  %1274 = vrot.lane.b32.xlu0 %v513, 4
  %v1275 = vpop.permute.xlu0 %1274
  %1276 = vrot.lane.b32.xlu0 %v514, 4
  %v1277 = vpop.permute.xlu0 %1276
  %1278 = vrot.lane.b32.xlu0 %v515, 4
  %v1279 = vpop.permute.xlu0 %1278
  %1280 = vrot.lane.b32.xlu0 %v516, 4
  %v1281 = vpop.permute.xlu0 %1280
  %1282 = vrot.lane.b32.xlu0 %v517, 4
  %v1283 = vpop.permute.xlu0 %1282
  %1284 = vrot.lane.b32.xlu0 %v518, 4
  %v1285 = vpop.permute.xlu0 %1284
  %1286 = vrot.lane.b32.xlu0 %v519, 4
  %v1287 = vpop.permute.xlu0 %1286
  %1288 = vrot.lane.b32.xlu0 %v520, 4
  %v1289 = vpop.permute.xlu0 %1288
  %1322 = vrot.lane.b32.xlu0 %v585, 8
  %v1323 = vpop.permute.xlu0 %1322
  %1324 = vrot.lane.b32.xlu0 %v586, 8
  %v1325 = vpop.permute.xlu0 %1324
  %1326 = vrot.lane.b32.xlu0 %v587, 8
  %v1327 = vpop.permute.xlu0 %1326
  %1328 = vrot.lane.b32.xlu0 %v588, 8
  %v1329 = vpop.permute.xlu0 %1328
  %1330 = vrot.lane.b32.xlu0 %v589, 8
  %v1331 = vpop.permute.xlu0 %1330
  %1332 = vrot.lane.b32.xlu0 %v590, 8
  %v1333 = vpop.permute.xlu0 %1332
  %1334 = vrot.lane.b32.xlu0 %v591, 8
  %v1335 = vpop.permute.xlu0 %1334
  %1336 = vrot.lane.b32.xlu0 %v592, 8
  %v1337 = vpop.permute.xlu0 %1336
  %1338 = vrot.lane.b32.xlu0 %v593, 8
  %v1339 = vpop.permute.xlu0 %1338
  %1340 = vrot.lane.b32.xlu0 %v594, 8
  %v1341 = vpop.permute.xlu0 %1340
  %1342 = vrot.lane.b32.xlu0 %v595, 8
  %v1343 = vpop.permute.xlu0 %1342
  %1344 = vrot.lane.b32.xlu0 %v596, 8
  %v1345 = vpop.permute.xlu0 %1344
  %1346 = vrot.lane.b32.xlu0 %v597, 8
  %v1347 = vpop.permute.xlu0 %1346
  %1348 = vrot.lane.b32.xlu0 %v598, 8
  %v1349 = vpop.permute.xlu0 %1348
  %1350 = vrot.lane.b32.xlu0 %v599, 8
  %v1351 = vpop.permute.xlu0 %1350
  %1352 = vrot.lane.b32.xlu0 %v600, 8
  %v1353 = vpop.permute.xlu0 %1352
  %1354 = vrot.lane.b32.xlu0 %v601, 8
  %v1355 = vpop.permute.xlu0 %1354
  %1356 = vrot.lane.b32.xlu0 %v602, 8
  %v1357 = vpop.permute.xlu0 %1356
  %1358 = vrot.lane.b32.xlu0 %v603, 8
  %v1359 = vpop.permute.xlu0 %1358
  %1360 = vrot.lane.b32.xlu0 %v604, 8
  %v1361 = vpop.permute.xlu0 %1360
  %1362 = vrot.lane.b32.xlu0 %v605, 8
  %v1363 = vpop.permute.xlu0 %1362
  %1364 = vrot.lane.b32.xlu0 %v606, 8
  %v1365 = vpop.permute.xlu0 %1364
  %1366 = vrot.lane.b32.xlu0 %v607, 8
  %v1367 = vpop.permute.xlu0 %1366
  %1368 = vrot.lane.b32.xlu0 %v608, 8
  %v1369 = vpop.permute.xlu0 %1368
  %1370 = vrot.lane.b32.xlu0 %v609, 8
  %v1371 = vpop.permute.xlu0 %1370
  %1372 = vrot.lane.b32.xlu0 %v610, 8
  %v1373 = vpop.permute.xlu0 %1372
  %1374 = vrot.lane.b32.xlu0 %v611, 8
  %v1375 = vpop.permute.xlu0 %1374
  %1376 = vrot.lane.b32.xlu0 %v612, 8
  %v1377 = vpop.permute.xlu0 %1376
  %1378 = vrot.lane.b32.xlu0 %v613, 8
  %v1379 = vpop.permute.xlu0 %1378
  %1380 = vrot.lane.b32.xlu0 %v614, 8
  %v1381 = vpop.permute.xlu0 %1380
  %1382 = vrot.lane.b32.xlu0 %v615, 8
  %v1383 = vpop.permute.xlu0 %1382
  %1384 = vrot.lane.b32.xlu0 %v616, 8
  %v1385 = vpop.permute.xlu0 %1384
  %1418 = vrot.lane.b32.xlu0 %v681, 12
  %v1419 = vpop.permute.xlu0 %1418
  %1420 = vrot.lane.b32.xlu0 %v682, 12
  %v1421 = vpop.permute.xlu0 %1420
  %1422 = vrot.lane.b32.xlu0 %v683, 12
  %v1423 = vpop.permute.xlu0 %1422
  %1424 = vrot.lane.b32.xlu0 %v684, 12
  %v1425 = vpop.permute.xlu0 %1424
  %1426 = vrot.lane.b32.xlu0 %v685, 12
  %v1427 = vpop.permute.xlu0 %1426
  %1428 = vrot.lane.b32.xlu0 %v686, 12
  %v1429 = vpop.permute.xlu0 %1428
  %1430 = vrot.lane.b32.xlu0 %v687, 12
  %v1431 = vpop.permute.xlu0 %1430
  %1432 = vrot.lane.b32.xlu0 %v688, 12
  %v1433 = vpop.permute.xlu0 %1432
  %1434 = vrot.lane.b32.xlu0 %v689, 12
  %v1435 = vpop.permute.xlu0 %1434
  %1436 = vrot.lane.b32.xlu0 %v690, 12
  %v1437 = vpop.permute.xlu0 %1436
  %1438 = vrot.lane.b32.xlu0 %v691, 12
  %v1439 = vpop.permute.xlu0 %1438
  %1440 = vrot.lane.b32.xlu0 %v692, 12
  %v1441 = vpop.permute.xlu0 %1440
  %1442 = vrot.lane.b32.xlu0 %v693, 12
  %v1443 = vpop.permute.xlu0 %1442
  %1444 = vrot.lane.b32.xlu0 %v694, 12
  %v1445 = vpop.permute.xlu0 %1444
  %1446 = vrot.lane.b32.xlu0 %v695, 12
  %v1447 = vpop.permute.xlu0 %1446
  %1448 = vrot.lane.b32.xlu0 %v696, 12
  %v1449 = vpop.permute.xlu0 %1448
  %1450 = vrot.lane.b32.xlu0 %v697, 12
  %v1451 = vpop.permute.xlu0 %1450
  %1452 = vrot.lane.b32.xlu0 %v698, 12
  %v1453 = vpop.permute.xlu0 %1452
  %1454 = vrot.lane.b32.xlu0 %v699, 12
  %v1455 = vpop.permute.xlu0 %1454
  %1456 = vrot.lane.b32.xlu0 %v700, 12
  %v1457 = vpop.permute.xlu0 %1456
  %1458 = vrot.lane.b32.xlu0 %v701, 12
  %v1459 = vpop.permute.xlu0 %1458
  %1460 = vrot.lane.b32.xlu0 %v702, 12
  %v1461 = vpop.permute.xlu0 %1460
  %1462 = vrot.lane.b32.xlu0 %v703, 12
  %v1463 = vpop.permute.xlu0 %1462
  %1464 = vrot.lane.b32.xlu0 %v704, 12
  %v1465 = vpop.permute.xlu0 %1464
  %1466 = vrot.lane.b32.xlu0 %v705, 12
  %v1467 = vpop.permute.xlu0 %1466
  %1468 = vrot.lane.b32.xlu0 %v706, 12
  %v1469 = vpop.permute.xlu0 %1468
  %1470 = vrot.lane.b32.xlu0 %v707, 12
  %v1471 = vpop.permute.xlu0 %1470
  %1472 = vrot.lane.b32.xlu0 %v708, 12
  %v1473 = vpop.permute.xlu0 %1472
  %1474 = vrot.lane.b32.xlu0 %v709, 12
  %v1475 = vpop.permute.xlu0 %1474
  %1476 = vrot.lane.b32.xlu0 %v710, 12
  %v1477 = vpop.permute.xlu0 %1476
  %1478 = vrot.lane.b32.xlu0 %v711, 12
  %v1479 = vpop.permute.xlu0 %1478
  %1480 = vrot.lane.b32.xlu0 %v712, 12
  %v1481 = vpop.permute.xlu0 %1480
  %1514 = vrot.lane.b32.xlu0 %v777, 16
  %v1515 = vpop.permute.xlu0 %1514
  %1516 = vrot.lane.b32.xlu0 %v778, 16
  %v1517 = vpop.permute.xlu0 %1516
  %1518 = vrot.lane.b32.xlu0 %v779, 16
  %v1519 = vpop.permute.xlu0 %1518
  %1520 = vrot.lane.b32.xlu0 %v780, 16
  %v1521 = vpop.permute.xlu0 %1520
  %1522 = vrot.lane.b32.xlu0 %v781, 16
  %v1523 = vpop.permute.xlu0 %1522
  %1524 = vrot.lane.b32.xlu0 %v782, 16
  %v1525 = vpop.permute.xlu0 %1524
  %1526 = vrot.lane.b32.xlu0 %v783, 16
  %v1527 = vpop.permute.xlu0 %1526
  %1528 = vrot.lane.b32.xlu0 %v784, 16
  %v1529 = vpop.permute.xlu0 %1528
  %1530 = vrot.lane.b32.xlu0 %v785, 16
  %v1531 = vpop.permute.xlu0 %1530
  %1532 = vrot.lane.b32.xlu0 %v786, 16
  %v1533 = vpop.permute.xlu0 %1532
  %1534 = vrot.lane.b32.xlu0 %v787, 16
  %v1535 = vpop.permute.xlu0 %1534
  %1536 = vrot.lane.b32.xlu0 %v788, 16
  %v1537 = vpop.permute.xlu0 %1536
  %1538 = vrot.lane.b32.xlu0 %v789, 16
  %v1539 = vpop.permute.xlu0 %1538
  %1540 = vrot.lane.b32.xlu0 %v790, 16
  %v1541 = vpop.permute.xlu0 %1540
  %1542 = vrot.lane.b32.xlu0 %v791, 16
  %v1543 = vpop.permute.xlu0 %1542
  %1544 = vrot.lane.b32.xlu0 %v792, 16
  %v1545 = vpop.permute.xlu0 %1544
  %1546 = vrot.lane.b32.xlu0 %v793, 16
  %v1547 = vpop.permute.xlu0 %1546
  %1548 = vrot.lane.b32.xlu0 %v794, 16
  %v1549 = vpop.permute.xlu0 %1548
  %1550 = vrot.lane.b32.xlu0 %v795, 16
  %v1551 = vpop.permute.xlu0 %1550
  %1552 = vrot.lane.b32.xlu0 %v796, 16
  %v1553 = vpop.permute.xlu0 %1552
  %1554 = vrot.lane.b32.xlu0 %v797, 16
  %v1555 = vpop.permute.xlu0 %1554
  %1556 = vrot.lane.b32.xlu0 %v798, 16
  %v1557 = vpop.permute.xlu0 %1556
  %1558 = vrot.lane.b32.xlu0 %v799, 16
  %v1559 = vpop.permute.xlu0 %1558
  %1560 = vrot.lane.b32.xlu0 %v800, 16
  %v1561 = vpop.permute.xlu0 %1560
  %1562 = vrot.lane.b32.xlu0 %v801, 16
  %v1563 = vpop.permute.xlu0 %1562
  %1564 = vrot.lane.b32.xlu0 %v802, 16
  %v1565 = vpop.permute.xlu0 %1564
  %1566 = vrot.lane.b32.xlu0 %v803, 16
  %v1567 = vpop.permute.xlu0 %1566
  %1568 = vrot.lane.b32.xlu0 %v804, 16
  %v1569 = vpop.permute.xlu0 %1568
  %1570 = vrot.lane.b32.xlu0 %v805, 16
  %v1571 = vpop.permute.xlu0 %1570
  %1572 = vrot.lane.b32.xlu0 %v806, 16
  %v1573 = vpop.permute.xlu0 %1572
  %1574 = vrot.lane.b32.xlu0 %v807, 16
  %v1575 = vpop.permute.xlu0 %1574
  %1576 = vrot.lane.b32.xlu0 %v808, 16
  %v1577 = vpop.permute.xlu0 %1576
  %1610 = vrot.lane.b32.xlu0 %v873, 20
  %v1611 = vpop.permute.xlu0 %1610
  %1612 = vrot.lane.b32.xlu0 %v874, 20
  %v1613 = vpop.permute.xlu0 %1612
  %1614 = vrot.lane.b32.xlu0 %v875, 20
  %v1615 = vpop.permute.xlu0 %1614
  %1616 = vrot.lane.b32.xlu0 %v876, 20
  %v1617 = vpop.permute.xlu0 %1616
  %1618 = vrot.lane.b32.xlu0 %v877, 20
  %v1619 = vpop.permute.xlu0 %1618
  %1620 = vrot.lane.b32.xlu0 %v878, 20
  %v1621 = vpop.permute.xlu0 %1620
  %1622 = vrot.lane.b32.xlu0 %v879, 20
  %v1623 = vpop.permute.xlu0 %1622
  %1624 = vrot.lane.b32.xlu0 %v880, 20
  %v1625 = vpop.permute.xlu0 %1624
  %1626 = vrot.lane.b32.xlu0 %v881, 20
  %v1627 = vpop.permute.xlu0 %1626
  %1628 = vrot.lane.b32.xlu0 %v882, 20
  %v1629 = vpop.permute.xlu0 %1628
  %1630 = vrot.lane.b32.xlu0 %v883, 20
  %v1631 = vpop.permute.xlu0 %1630
  %1632 = vrot.lane.b32.xlu0 %v884, 20
  %v1633 = vpop.permute.xlu0 %1632
  %1634 = vrot.lane.b32.xlu0 %v885, 20
  %v1635 = vpop.permute.xlu0 %1634
  %1636 = vrot.lane.b32.xlu0 %v886, 20
  %v1637 = vpop.permute.xlu0 %1636
  %1638 = vrot.lane.b32.xlu0 %v887, 20
  %v1639 = vpop.permute.xlu0 %1638
  %1640 = vrot.lane.b32.xlu0 %v888, 20
  %v1641 = vpop.permute.xlu0 %1640
  %1642 = vrot.lane.b32.xlu0 %v889, 20
  %v1643 = vpop.permute.xlu0 %1642
  %1644 = vrot.lane.b32.xlu0 %v890, 20
  %v1645 = vpop.permute.xlu0 %1644
  %1646 = vrot.lane.b32.xlu0 %v891, 20
  %v1647 = vpop.permute.xlu0 %1646
  %1648 = vrot.lane.b32.xlu0 %v892, 20
  %v1649 = vpop.permute.xlu0 %1648
  %1650 = vrot.lane.b32.xlu0 %v893, 20
  %v1651 = vpop.permute.xlu0 %1650
  %1652 = vrot.lane.b32.xlu0 %v894, 20
  %v1653 = vpop.permute.xlu0 %1652
  %1654 = vrot.lane.b32.xlu0 %v895, 20
  %v1655 = vpop.permute.xlu0 %1654
  %1656 = vrot.lane.b32.xlu0 %v896, 20
  %v1657 = vpop.permute.xlu0 %1656
  %1658 = vrot.lane.b32.xlu0 %v897, 20
  %v1659 = vpop.permute.xlu0 %1658
  %1660 = vrot.lane.b32.xlu0 %v898, 20
  %v1661 = vpop.permute.xlu0 %1660
  %1662 = vrot.lane.b32.xlu0 %v899, 20
  %v1663 = vpop.permute.xlu0 %1662
  %1664 = vrot.lane.b32.xlu0 %v900, 20
  %v1665 = vpop.permute.xlu0 %1664
  %1666 = vrot.lane.b32.xlu0 %v901, 20
  %v1667 = vpop.permute.xlu0 %1666
  %1668 = vrot.lane.b32.xlu0 %v902, 20
  %v1669 = vpop.permute.xlu0 %1668
  %1670 = vrot.lane.b32.xlu0 %v903, 20
  %v1671 = vpop.permute.xlu0 %1670
  %1672 = vrot.lane.b32.xlu0 %v904, 20
  %v1673 = vpop.permute.xlu0 %1672
  %1706 = vrot.lane.b32.xlu0 %v970, 24
  %v1707 = vpop.permute.xlu0 %1706
  %1708 = vrot.lane.b32.xlu0 %v971, 24
  %v1709 = vpop.permute.xlu0 %1708
  %1710 = vrot.lane.b32.xlu0 %v972, 24
  %v1711 = vpop.permute.xlu0 %1710
  %1712 = vrot.lane.b32.xlu0 %v973, 24
  %v1713 = vpop.permute.xlu0 %1712
  %1714 = vrot.lane.b32.xlu0 %v974, 24
  %v1715 = vpop.permute.xlu0 %1714
  %1716 = vrot.lane.b32.xlu0 %v975, 24
  %v1717 = vpop.permute.xlu0 %1716
  %1718 = vrot.lane.b32.xlu0 %v976, 24
  %v1719 = vpop.permute.xlu0 %1718
  %1720 = vrot.lane.b32.xlu0 %v977, 24
  %v1721 = vpop.permute.xlu0 %1720
  %1722 = vrot.lane.b32.xlu0 %v978, 24
  %v1723 = vpop.permute.xlu0 %1722
  %1724 = vrot.lane.b32.xlu0 %v979, 24
  %v1725 = vpop.permute.xlu0 %1724
  %1726 = vrot.lane.b32.xlu0 %v980, 24
  %v1727 = vpop.permute.xlu0 %1726
  %1728 = vrot.lane.b32.xlu0 %v981, 24
  %v1729 = vpop.permute.xlu0 %1728
  %1730 = vrot.lane.b32.xlu0 %v982, 24
  %v1731 = vpop.permute.xlu0 %1730
  %1732 = vrot.lane.b32.xlu0 %v983, 24
  %v1733 = vpop.permute.xlu0 %1732
  %1734 = vrot.lane.b32.xlu0 %v984, 24
  %v1735 = vpop.permute.xlu0 %1734
  %1736 = vrot.lane.b32.xlu0 %v985, 24
  %v1737 = vpop.permute.xlu0 %1736
  %1738 = vrot.lane.b32.xlu0 %v986, 24
  %v1739 = vpop.permute.xlu0 %1738
  %1740 = vrot.lane.b32.xlu0 %v987, 24
  %v1741 = vpop.permute.xlu0 %1740
  %1742 = vrot.lane.b32.xlu0 %v988, 24
  %v1743 = vpop.permute.xlu0 %1742
  %1744 = vrot.lane.b32.xlu0 %v989, 24
  %v1745 = vpop.permute.xlu0 %1744
  %1746 = vrot.lane.b32.xlu0 %v990, 24
  %v1747 = vpop.permute.xlu0 %1746
  %1748 = vrot.lane.b32.xlu0 %v991, 24
  %v1749 = vpop.permute.xlu0 %1748
  %1750 = vrot.lane.b32.xlu0 %v992, 24
  %v1751 = vpop.permute.xlu0 %1750
  %1752 = vrot.lane.b32.xlu0 %v993, 24
  %v1753 = vpop.permute.xlu0 %1752
  %1754 = vrot.lane.b32.xlu0 %v994, 24
  %v1755 = vpop.permute.xlu0 %1754
  %1756 = vrot.lane.b32.xlu0 %v995, 24
  %v1757 = vpop.permute.xlu0 %1756
  %1758 = vrot.lane.b32.xlu0 %v996, 24
  %v1759 = vpop.permute.xlu0 %1758
  %1760 = vrot.lane.b32.xlu0 %v997, 24
  %v1761 = vpop.permute.xlu0 %1760
  %1762 = vrot.lane.b32.xlu0 %v998, 24
  %v1763 = vpop.permute.xlu0 %1762
  %1764 = vrot.lane.b32.xlu0 %v999, 24
  %v1765 = vpop.permute.xlu0 %1764
  %1766 = vrot.lane.b32.xlu0 %v1000, 24
  %v1767 = vpop.permute.xlu0 %1766
  %1768 = vrot.lane.b32.xlu0 %v1001, 24
  %v1769 = vpop.permute.xlu0 %1768
  %1802 = vrot.lane.b32.xlu0 %v1066, 28
  %v1803 = vpop.permute.xlu0 %1802
  %1804 = vrot.lane.b32.xlu0 %v1067, 28
  %v1805 = vpop.permute.xlu0 %1804
  %1806 = vrot.lane.b32.xlu0 %v1068, 28
  %v1807 = vpop.permute.xlu0 %1806
  %1808 = vrot.lane.b32.xlu0 %v1069, 28
  %v1809 = vpop.permute.xlu0 %1808
  %1810 = vrot.lane.b32.xlu0 %v1070, 28
  %v1811 = vpop.permute.xlu0 %1810
  %1812 = vrot.lane.b32.xlu0 %v1071, 28
  %v1813 = vpop.permute.xlu0 %1812
  %1814 = vrot.lane.b32.xlu0 %v1072, 28
  %v1815 = vpop.permute.xlu0 %1814
  %1816 = vrot.lane.b32.xlu0 %v1073, 28
  %v1817 = vpop.permute.xlu0 %1816
  %1818 = vrot.lane.b32.xlu0 %v1074, 28
  %v1819 = vpop.permute.xlu0 %1818
  %1820 = vrot.lane.b32.xlu0 %v1075, 28
  %v1821 = vpop.permute.xlu0 %1820
  %1822 = vrot.lane.b32.xlu0 %v1076, 28
  %v1823 = vpop.permute.xlu0 %1822
  %1824 = vrot.lane.b32.xlu0 %v1077, 28
  %v1825 = vpop.permute.xlu0 %1824
  %1826 = vrot.lane.b32.xlu0 %v1078, 28
  %v1827 = vpop.permute.xlu0 %1826
  %1828 = vrot.lane.b32.xlu0 %v1079, 28
  %v1829 = vpop.permute.xlu0 %1828
  %1830 = vrot.lane.b32.xlu0 %v1080, 28
  %v1831 = vpop.permute.xlu0 %1830
  %1832 = vrot.lane.b32.xlu0 %v1081, 28
  %v1833 = vpop.permute.xlu0 %1832
  %1834 = vrot.lane.b32.xlu0 %v1082, 28
  %v1835 = vpop.permute.xlu0 %1834
  %1836 = vrot.lane.b32.xlu0 %v1083, 28
  %v1837 = vpop.permute.xlu0 %1836
  %1838 = vrot.lane.b32.xlu0 %v1084, 28
  %v1839 = vpop.permute.xlu0 %1838
  %1840 = vrot.lane.b32.xlu0 %v1085, 28
  %v1841 = vpop.permute.xlu0 %1840
  %1842 = vrot.lane.b32.xlu0 %v1086, 28
  %v1843 = vpop.permute.xlu0 %1842
  %1844 = vrot.lane.b32.xlu0 %v1087, 28
  %v1845 = vpop.permute.xlu0 %1844
  %1846 = vrot.lane.b32.xlu0 %v1088, 28
  %v1847 = vpop.permute.xlu0 %1846
  %1848 = vrot.lane.b32.xlu0 %v1089, 28
  %v1849 = vpop.permute.xlu0 %1848
  %1850 = vrot.lane.b32.xlu0 %v1090, 28
  %v1851 = vpop.permute.xlu0 %1850
  %1852 = vrot.lane.b32.xlu0 %v1091, 28
  %v1853 = vpop.permute.xlu0 %1852
  %1854 = vrot.lane.b32.xlu0 %v1092, 28
  %v1855 = vpop.permute.xlu0 %1854
  %1856 = vrot.lane.b32.xlu0 %v1093, 28
  %v1857 = vpop.permute.xlu0 %1856
  %1858 = vrot.lane.b32.xlu0 %v1094, 28
  %v1859 = vpop.permute.xlu0 %1858
  %1860 = vrot.lane.b32.xlu0 %v1095, 28
  %v1861 = vpop.permute.xlu0 %1860
  %1862 = vrot.lane.b32.xlu0 %v1096, 28
  %v1863 = vpop.permute.xlu0 %1862
  %1864 = vrot.lane.b32.xlu0 %v1097, 28
  %v1865 = vpop.permute.xlu0 %1864
  %1898 = vrot.lane.b32.xlu0 %v1162, 32
  %v1899 = vpop.permute.xlu0 %1898
  %1900 = vrot.lane.b32.xlu0 %v1163, 32
  %v1901 = vpop.permute.xlu0 %1900
  %1902 = vrot.lane.b32.xlu0 %v1164, 32
  %v1903 = vpop.permute.xlu0 %1902
  %1904 = vrot.lane.b32.xlu0 %v1165, 32
  %v1905 = vpop.permute.xlu0 %1904
  %1906 = vrot.lane.b32.xlu0 %v1166, 32
  %v1907 = vpop.permute.xlu0 %1906
  %1908 = vrot.lane.b32.xlu0 %v1167, 32
  %v1909 = vpop.permute.xlu0 %1908
  %1910 = vrot.lane.b32.xlu0 %v1168, 32
  %v1911 = vpop.permute.xlu0 %1910
  %1912 = vrot.lane.b32.xlu0 %v1169, 32
  %v1913 = vpop.permute.xlu0 %1912
  %1914 = vrot.lane.b32.xlu0 %v1170, 32
  %v1915 = vpop.permute.xlu0 %1914
  %1916 = vrot.lane.b32.xlu0 %v1171, 32
  %v1917 = vpop.permute.xlu0 %1916
  %1918 = vrot.lane.b32.xlu0 %v1172, 32
  %v1919 = vpop.permute.xlu0 %1918
  %1920 = vrot.lane.b32.xlu0 %v1173, 32
  %v1921 = vpop.permute.xlu0 %1920
  %1922 = vrot.lane.b32.xlu0 %v1174, 32
  %v1923 = vpop.permute.xlu0 %1922
  %1924 = vrot.lane.b32.xlu0 %v1175, 32
  %v1925 = vpop.permute.xlu0 %1924
  %1926 = vrot.lane.b32.xlu0 %v1176, 32
  %v1927 = vpop.permute.xlu0 %1926
  %1928 = vrot.lane.b32.xlu0 %v1177, 32
  %v1929 = vpop.permute.xlu0 %1928
  %1930 = vrot.lane.b32.xlu0 %v1178, 32
  %v1931 = vpop.permute.xlu0 %1930
  %1932 = vrot.lane.b32.xlu0 %v1179, 32
  %v1933 = vpop.permute.xlu0 %1932
  %1934 = vrot.lane.b32.xlu0 %v1180, 32
  %v1935 = vpop.permute.xlu0 %1934
  %1936 = vrot.lane.b32.xlu0 %v1181, 32
  %v1937 = vpop.permute.xlu0 %1936
  %1938 = vrot.lane.b32.xlu0 %v1182, 32
  %v1939 = vpop.permute.xlu0 %1938
  %1940 = vrot.lane.b32.xlu0 %v1183, 32
  %v1941 = vpop.permute.xlu0 %1940
  %1942 = vrot.lane.b32.xlu0 %v1184, 32
  %v1943 = vpop.permute.xlu0 %1942
  %1944 = vrot.lane.b32.xlu0 %v1185, 32
  %v1945 = vpop.permute.xlu0 %1944
  %1946 = vrot.lane.b32.xlu0 %v1186, 32
  %v1947 = vpop.permute.xlu0 %1946
  %1948 = vrot.lane.b32.xlu0 %v1187, 32
  %v1949 = vpop.permute.xlu0 %1948
  %1950 = vrot.lane.b32.xlu0 %v1188, 32
  %v1951 = vpop.permute.xlu0 %1950
  %1952 = vrot.lane.b32.xlu0 %v1189, 32
  %v1953 = vpop.permute.xlu0 %1952
  %1954 = vrot.lane.b32.xlu0 %v1190, 32
  %v1955 = vpop.permute.xlu0 %1954
  %1956 = vrot.lane.b32.xlu0 %v1191, 32
  %v1957 = vpop.permute.xlu0 %1956
  %1958 = vrot.lane.b32.xlu0 %v1192, 32
  %v1959 = vpop.permute.xlu0 %1958
  %1960 = vrot.lane.b32.xlu0 %v1193, 32
  %v1961 = vpop.permute.xlu0 %1960
  %v1964 = vsel %vm27, %v393, %v1227
  %v1967 = vsel %vm27, %v394, %v1229
  %v1970 = vsel %vm27, %v395, %v1231
  %v1973 = vsel %vm27, %v396, %v1233
  %v1976 = vsel %vm27, %v397, %v1235
  %v1979 = vsel %vm27, %v398, %v1237
  %v1982 = vsel %vm27, %v399, %v1239
  %v1985 = vsel %vm27, %v400, %v1241
  %v1988 = vsel %vm27, %v401, %v1243
  %v1991 = vsel %vm27, %v402, %v1245
  %v1994 = vsel %vm27, %v403, %v1247
  %v1997 = vsel %vm27, %v404, %v1249
  %v2000 = vsel %vm27, %v405, %v1251
  %v2003 = vsel %vm27, %v406, %v1253
  %v2006 = vsel %vm27, %v407, %v1255
  %v2009 = vsel %vm27, %v408, %v1257
  %v2012 = vsel %vm27, %v409, %v1259
  %v2015 = vsel %vm27, %v410, %v1261
  %v2018 = vsel %vm27, %v411, %v1263
  %v2021 = vsel %vm27, %v412, %v1265
  %v2024 = vsel %vm27, %v413, %v1267
  %v2027 = vsel %vm27, %v414, %v1269
  %v2030 = vsel %vm27, %v415, %v1271
  %v2033 = vsel %vm27, %v416, %v1273
  %v2036 = vsel %vm27, %v417, %v1275
  %v2039 = vsel %vm27, %v418, %v1277
  %v2042 = vsel %vm27, %v419, %v1279
  %v2045 = vsel %vm27, %v420, %v1281
  %v2048 = vsel %vm27, %v421, %v1283
  %v2051 = vsel %vm27, %v422, %v1285
  %v2054 = vsel %vm27, %v423, %v1287
  %v2057 = vsel %vm27, %v424, %v1289
  %vm2058 = vcmask 64512
  %v2060 = vsel %vm2058, %v1964, %v1323
  %v2062 = vsel %vm2058, %v1967, %v1325
  %v2064 = vsel %vm2058, %v1970, %v1327
  %v2066 = vsel %vm2058, %v1973, %v1329
  %v2068 = vsel %vm2058, %v1976, %v1331
  %v2070 = vsel %vm2058, %v1979, %v1333
  %v2072 = vsel %vm2058, %v1982, %v1335
  %v2074 = vsel %vm2058, %v1985, %v1337
  %v2076 = vsel %vm2058, %v1988, %v1339
  %v2078 = vsel %vm2058, %v1991, %v1341
  %v2080 = vsel %vm2058, %v1994, %v1343
  %v2082 = vsel %vm2058, %v1997, %v1345
  %v2084 = vsel %vm2058, %v2000, %v1347
  %v2086 = vsel %vm2058, %v2003, %v1349
  %v2088 = vsel %vm2058, %v2006, %v1351
  %v2090 = vsel %vm2058, %v2009, %v1353
  %v2092 = vsel %vm2058, %v2012, %v1355
  %v2094 = vsel %vm2058, %v2015, %v1357
  %v2096 = vsel %vm2058, %v2018, %v1359
  %v2098 = vsel %vm2058, %v2021, %v1361
  %v2100 = vsel %vm2058, %v2024, %v1363
  %v2102 = vsel %vm2058, %v2027, %v1365
  %v2104 = vsel %vm2058, %v2030, %v1367
  %v2106 = vsel %vm2058, %v2033, %v1369
  %v2108 = vsel %vm2058, %v2036, %v1371
  %v2110 = vsel %vm2058, %v2039, %v1373
  %v2112 = vsel %vm2058, %v2042, %v1375
  %v2114 = vsel %vm2058, %v2045, %v1377
  %v2116 = vsel %vm2058, %v2048, %v1379
  %v2118 = vsel %vm2058, %v2051, %v1381
  %v2120 = vsel %vm2058, %v2054, %v1383
  %v2122 = vsel %vm2058, %v2057, %v1385
  %vm2123 = vcmask 97280
  %v2125 = vsel %vm2123, %v2060, %v1419
  %v2127 = vsel %vm2123, %v2062, %v1421
  %v2129 = vsel %vm2123, %v2064, %v1423
  %v2131 = vsel %vm2123, %v2066, %v1425
  %v2133 = vsel %vm2123, %v2068, %v1427
  %v2135 = vsel %vm2123, %v2070, %v1429
  %v2137 = vsel %vm2123, %v2072, %v1431
  %v2139 = vsel %vm2123, %v2074, %v1433
  %v2141 = vsel %vm2123, %v2076, %v1435
  %v2143 = vsel %vm2123, %v2078, %v1437
  %v2145 = vsel %vm2123, %v2080, %v1439
  %v2147 = vsel %vm2123, %v2082, %v1441
  %v2149 = vsel %vm2123, %v2084, %v1443
  %v2151 = vsel %vm2123, %v2086, %v1445
  %v2153 = vsel %vm2123, %v2088, %v1447
  %v2155 = vsel %vm2123, %v2090, %v1449
  %v2157 = vsel %vm2123, %v2092, %v1451
  %v2159 = vsel %vm2123, %v2094, %v1453
  %v2161 = vsel %vm2123, %v2096, %v1455
  %v2163 = vsel %vm2123, %v2098, %v1457
  %v2165 = vsel %vm2123, %v2100, %v1459
  %v2167 = vsel %vm2123, %v2102, %v1461
  %v2169 = vsel %vm2123, %v2104, %v1463
  %v2171 = vsel %vm2123, %v2106, %v1465
  %v2173 = vsel %vm2123, %v2108, %v1467
  %v2175 = vsel %vm2123, %v2110, %v1469
  %v2177 = vsel %vm2123, %v2112, %v1471
  %v2179 = vsel %vm2123, %v2114, %v1473
  %v2181 = vsel %vm2123, %v2116, %v1475
  %v2183 = vsel %vm2123, %v2118, %v1477
  %v2185 = vsel %vm2123, %v2120, %v1479
  %v2187 = vsel %vm2123, %v2122, %v1481
  %vm2188 = vcmask 130048
  %v2190 = vsel %vm2188, %v2125, %v1515
  %v2192 = vsel %vm2188, %v2127, %v1517
  %v2194 = vsel %vm2188, %v2129, %v1519
  %v2196 = vsel %vm2188, %v2131, %v1521
  %v2198 = vsel %vm2188, %v2133, %v1523
  %v2200 = vsel %vm2188, %v2135, %v1525
  %v2202 = vsel %vm2188, %v2137, %v1527
  %v2204 = vsel %vm2188, %v2139, %v1529
  %v2206 = vsel %vm2188, %v2141, %v1531
  %v2208 = vsel %vm2188, %v2143, %v1533
  %v2210 = vsel %vm2188, %v2145, %v1535
  %v2212 = vsel %vm2188, %v2147, %v1537
  %v2214 = vsel %vm2188, %v2149, %v1539
  %v2216 = vsel %vm2188, %v2151, %v1541
  %v2218 = vsel %vm2188, %v2153, %v1543
  %v2220 = vsel %vm2188, %v2155, %v1545
  %v2222 = vsel %vm2188, %v2157, %v1547
  %v2224 = vsel %vm2188, %v2159, %v1549
  %v2226 = vsel %vm2188, %v2161, %v1551
  %v2228 = vsel %vm2188, %v2163, %v1553
  %v2230 = vsel %vm2188, %v2165, %v1555
  %v2232 = vsel %vm2188, %v2167, %v1557
  %v2234 = vsel %vm2188, %v2169, %v1559
  %v2236 = vsel %vm2188, %v2171, %v1561
  %v2238 = vsel %vm2188, %v2173, %v1563
  %v2240 = vsel %vm2188, %v2175, %v1565
  %v2242 = vsel %vm2188, %v2177, %v1567
  %v2244 = vsel %vm2188, %v2179, %v1569
  %v2246 = vsel %vm2188, %v2181, %v1571
  %v2248 = vsel %vm2188, %v2183, %v1573
  %v2250 = vsel %vm2188, %v2185, %v1575
  %v2252 = vsel %vm2188, %v2187, %v1577
  %vm2253 = vcmask 162816
  %v2255 = vsel %vm2253, %v2190, %v1611
  %v2257 = vsel %vm2253, %v2192, %v1613
  %v2259 = vsel %vm2253, %v2194, %v1615
  %v2261 = vsel %vm2253, %v2196, %v1617
  %v2263 = vsel %vm2253, %v2198, %v1619
  %v2265 = vsel %vm2253, %v2200, %v1621
  %v2267 = vsel %vm2253, %v2202, %v1623
  %v2269 = vsel %vm2253, %v2204, %v1625
  %v2271 = vsel %vm2253, %v2206, %v1627
  %v2273 = vsel %vm2253, %v2208, %v1629
  %v2275 = vsel %vm2253, %v2210, %v1631
  %v2277 = vsel %vm2253, %v2212, %v1633
  %v2279 = vsel %vm2253, %v2214, %v1635
  %v2281 = vsel %vm2253, %v2216, %v1637
  %v2283 = vsel %vm2253, %v2218, %v1639
  %v2285 = vsel %vm2253, %v2220, %v1641
  %v2287 = vsel %vm2253, %v2222, %v1643
  %v2289 = vsel %vm2253, %v2224, %v1645
  %v2291 = vsel %vm2253, %v2226, %v1647
  %v2293 = vsel %vm2253, %v2228, %v1649
  %v2295 = vsel %vm2253, %v2230, %v1651
  %v2297 = vsel %vm2253, %v2232, %v1653
  %v2299 = vsel %vm2253, %v2234, %v1655
  %v2301 = vsel %vm2253, %v2236, %v1657
  %v2303 = vsel %vm2253, %v2238, %v1659
  %v2305 = vsel %vm2253, %v2240, %v1661
  %v2307 = vsel %vm2253, %v2242, %v1663
  %v2309 = vsel %vm2253, %v2244, %v1665
  %v2311 = vsel %vm2253, %v2246, %v1667
  %v2313 = vsel %vm2253, %v2248, %v1669
  %v2315 = vsel %vm2253, %v2250, %v1671
  %v2317 = vsel %vm2253, %v2252, %v1673
  %vm2318 = vcmask 195584
  %v2320 = vsel %vm2318, %v2255, %v1707
  %v2322 = vsel %vm2318, %v2257, %v1709
  %v2324 = vsel %vm2318, %v2259, %v1711
  %v2326 = vsel %vm2318, %v2261, %v1713
  %v2328 = vsel %vm2318, %v2263, %v1715
  %v2330 = vsel %vm2318, %v2265, %v1717
  %v2332 = vsel %vm2318, %v2267, %v1719
  %v2334 = vsel %vm2318, %v2269, %v1721
  %v2336 = vsel %vm2318, %v2271, %v1723
  %v2338 = vsel %vm2318, %v2273, %v1725
  %v2340 = vsel %vm2318, %v2275, %v1727
  %v2342 = vsel %vm2318, %v2277, %v1729
  %v2344 = vsel %vm2318, %v2279, %v1731
  %v2346 = vsel %vm2318, %v2281, %v1733
  %v2348 = vsel %vm2318, %v2283, %v1735
  %v2350 = vsel %vm2318, %v2285, %v1737
  %v2352 = vsel %vm2318, %v2287, %v1739
  %v2354 = vsel %vm2318, %v2289, %v1741
  %v2356 = vsel %vm2318, %v2291, %v1743
  %v2358 = vsel %vm2318, %v2293, %v1745
  %v2360 = vsel %vm2318, %v2295, %v1747
  %v2362 = vsel %vm2318, %v2297, %v1749
  %v2364 = vsel %vm2318, %v2299, %v1751
  %v2366 = vsel %vm2318, %v2301, %v1753
  %v2368 = vsel %vm2318, %v2303, %v1755
  %v2370 = vsel %vm2318, %v2305, %v1757
  %v2372 = vsel %vm2318, %v2307, %v1759
  %v2374 = vsel %vm2318, %v2309, %v1761
  %v2376 = vsel %vm2318, %v2311, %v1763
  %v2378 = vsel %vm2318, %v2313, %v1765
  %v2380 = vsel %vm2318, %v2315, %v1767
  %v2382 = vsel %vm2318, %v2317, %v1769
  %vm2383 = vcmask 228352
  %v2385 = vsel %vm2383, %v2320, %v1803
  %v2387 = vsel %vm2383, %v2322, %v1805
  %v2389 = vsel %vm2383, %v2324, %v1807
  %v2391 = vsel %vm2383, %v2326, %v1809
  %v2393 = vsel %vm2383, %v2328, %v1811
  %v2395 = vsel %vm2383, %v2330, %v1813
  %v2397 = vsel %vm2383, %v2332, %v1815
  %v2399 = vsel %vm2383, %v2334, %v1817
  %v2401 = vsel %vm2383, %v2336, %v1819
  %v2403 = vsel %vm2383, %v2338, %v1821
  %v2405 = vsel %vm2383, %v2340, %v1823
  %v2407 = vsel %vm2383, %v2342, %v1825
  %v2409 = vsel %vm2383, %v2344, %v1827
  %v2411 = vsel %vm2383, %v2346, %v1829
  %v2413 = vsel %vm2383, %v2348, %v1831
  %v2415 = vsel %vm2383, %v2350, %v1833
  %v2417 = vsel %vm2383, %v2352, %v1835
  %v2419 = vsel %vm2383, %v2354, %v1837
  %v2421 = vsel %vm2383, %v2356, %v1839
  %v2423 = vsel %vm2383, %v2358, %v1841
  %v2425 = vsel %vm2383, %v2360, %v1843
  %v2427 = vsel %vm2383, %v2362, %v1845
  %v2429 = vsel %vm2383, %v2364, %v1847
  %v2431 = vsel %vm2383, %v2366, %v1849
  %v2433 = vsel %vm2383, %v2368, %v1851
  %v2435 = vsel %vm2383, %v2370, %v1853
  %v2437 = vsel %vm2383, %v2372, %v1855
  %v2439 = vsel %vm2383, %v2374, %v1857
  %v2441 = vsel %vm2383, %v2376, %v1859
  %v2443 = vsel %vm2383, %v2378, %v1861
  %v2445 = vsel %vm2383, %v2380, %v1863
  %v2447 = vsel %vm2383, %v2382, %v1865
  %vm2448 = vcmask 261120
  %v2450 = vsel %vm2448, %v2385, %v1899
  %v2452 = vsel %vm2448, %v2387, %v1901
  %v2454 = vsel %vm2448, %v2389, %v1903
  %v2456 = vsel %vm2448, %v2391, %v1905
  %v2458 = vsel %vm2448, %v2393, %v1907
  %v2460 = vsel %vm2448, %v2395, %v1909
  %v2462 = vsel %vm2448, %v2397, %v1911
  %v2464 = vsel %vm2448, %v2399, %v1913
  %v2466 = vsel %vm2448, %v2401, %v1915
  %v2468 = vsel %vm2448, %v2403, %v1917
  %v2470 = vsel %vm2448, %v2405, %v1919
  %v2472 = vsel %vm2448, %v2407, %v1921
  %v2474 = vsel %vm2448, %v2409, %v1923
  %v2476 = vsel %vm2448, %v2411, %v1925
  %v2478 = vsel %vm2448, %v2413, %v1927
  %v2480 = vsel %vm2448, %v2415, %v1929
  %v2482 = vsel %vm2448, %v2417, %v1931
  %v2484 = vsel %vm2448, %v2419, %v1933
  %v2486 = vsel %vm2448, %v2421, %v1935
  %v2488 = vsel %vm2448, %v2423, %v1937
  %v2490 = vsel %vm2448, %v2425, %v1939
  %v2492 = vsel %vm2448, %v2427, %v1941
  %v2494 = vsel %vm2448, %v2429, %v1943
  %v2496 = vsel %vm2448, %v2431, %v1945
  %v2498 = vsel %vm2448, %v2433, %v1947
  %v2500 = vsel %vm2448, %v2435, %v1949
  %v2502 = vsel %vm2448, %v2437, %v1951
  %v2504 = vsel %vm2448, %v2439, %v1953
  %v2506 = vsel %vm2448, %v2441, %v1955
  %v2508 = vsel %vm2448, %v2443, %v1957
  %v2510 = vsel %vm2448, %v2445, %v1959
  %v2512 = vsel %vm2448, %v2447, %v1961
  %v2513 = vld [vmem:[%s1] sm:$0xf]
  %v2514 = vld [vmem:[%s1 + $0x4] sm:$0xf]
  %v2515 = vld [vmem:[%s1 + $0x8] sm:$0xf]
  %v2516 = vld [vmem:[%s1 + $0xc] sm:$0xf]
  %v2517 = vld [vmem:[%s1 + $0x10] sm:$0x3]
  %v2518 = vld [vmem:[%s2] sm:$0x1]
  %v2520 = vlaneseq
  %v2521 = vshrl.u32 %v2520, 7
  %v2522 = vsub.s32 0, %v2521
  %v2523 = vrot.slane %v2518, %v2522
  %v2530 = vunpack.c.l.b16 %v2513
  %v2531 = vunpack.c.l.b16 %v2514
  %v2532 = vunpack.c.l.b16 %v2515
  %v2533 = vunpack.c.l.b16 %v2516
  %v2534 = vunpack.c.l.b16 %v2517
  %v2535 = vpack.c.b16 %v2531, %v2530
  %v2536 = vpack.c.b16 %v2533, %v2532
  %v2537 = vpack.c.b16 %v2534, %v2534
  %vm2540 = vcmask 293888
  %v2541 = vsel %vm2540, %v2450, 0
  %v2543 = vsel %vm2540, %v2452, 0
  %v2545 = vsel %vm2540, %v2454, 0
  %v2547 = vsel %vm2540, %v2456, 0
  %v2549 = vsel %vm2540, %v2458, 0
  %v2551 = vsel %vm2540, %v2460, 0
  %v2553 = vsel %vm2540, %v2462, 0
  %v2555 = vsel %vm2540, %v2464, 0
  %v2557 = vsel %vm2540, %v2466, 0
  %v2559 = vsel %vm2540, %v2468, 0
  %v2561 = vsel %vm2540, %v2470, 0
  %v2563 = vsel %vm2540, %v2472, 0
  %v2565 = vsel %vm2540, %v2474, 0
  %v2567 = vsel %vm2540, %v2476, 0
  %v2569 = vsel %vm2540, %v2478, 0
  %v2571 = vsel %vm2540, %v2480, 0
  %v2573 = vsel %vm2540, %v2482, 0
  %v2575 = vsel %vm2540, %v2484, 0
  %v2577 = vsel %vm2540, %v2486, 0
  %v2579 = vsel %vm2540, %v2488, 0
  %v2581 = vsel %vm2540, %v2490, 0
  %v2583 = vsel %vm2540, %v2492, 0
  %v2585 = vsel %vm2540, %v2494, 0
  %v2587 = vsel %vm2540, %v2496, 0
  %v2589 = vsel %vm2540, %v2498, 0
  %v2591 = vsel %vm2540, %v2500, 0
  %v2593 = vsel %vm2540, %v2502, 0
  %v2595 = vsel %vm2540, %v2504, 0
  %v2597 = vsel %vm2540, %v2506, 0
  %v2599 = vsel %vm2540, %v2508, 0
  %v2601 = vsel %vm2540, %v2510, 0
  %v2603 = vsel %vm2540, %v2512, 0
  %vm2605 = vcmask 1041408
  %v2607 = vsel %vm2605, %v2537, 0
  %2609 = vmatprep.subr.bf16.mxu0 0
  %2610 = vmatpush1.bf16.msra.mxu0 0
  %2611 = vmatprep.subr.bf16.mxu0 0
  %2612 = vmatpush1.bf16.msra.mxu0 0
  %2613 = vmatprep.subr.bf16.mxu0 0
  %2614 = vmatpush1.bf16.msra.mxu0 0
  %2615 = vmatprep.subr.bf16.mxu0 0
  %2616 = vmatpush1.bf16.msra.mxu0 0
  %2617 = vmatprep.subr.bf16.mxu0 0
  %2618 = vmatpush1.bf16.msra.mxu0 0
  %2619 = vmatprep.subr.bf16.mxu0 0
  %2620 = vmatpush1.bf16.msra.mxu0 %v2607
  %2621 = vmatprep.subr.bf16.mxu0 0
  %2622 = vmatpush1.bf16.msra.mxu0 %v2536
  %2623 = vmatprep.subr.bf16.mxu0 0
  %2624 = vmatpush1.bf16.msra.mxu0 %v2535
  %2625 = vmatprep.subr.bf16.mxu0 0
  %2626 = vmatpush2.bf16.msra.mxu0 0
  %2627 = vmatprep.subr.bf16.mxu0 0
  %2628 = vmatpush2.bf16.msra.mxu0 0
  %2629 = vmatprep.subr.bf16.mxu0 0
  %2630 = vmatpush2.bf16.msra.mxu0 0
  %2631 = vmatprep.subr.bf16.mxu0 0
  %2632 = vmatpush2.bf16.msra.mxu0 0
  %2633 = vmatprep.subr.bf16.mxu0 0
  %2634 = vmatpush2.bf16.msra.mxu0 0
  %2635 = vmatprep.subr.bf16.mxu0 0
  %2636 = vmatpush2.bf16.msra.mxu0 0
  %2637 = vmatprep.subr.bf16.mxu0 0
  %2638 = vmatpush2.bf16.msra.mxu0 0
  %2639 = vmatprep.subr.bf16.mxu0 0
  %2640 = vmatpush2.bf16.msra.mxu0 0
  %2641 = vmatprep.mubr.bf16.mxu0 0
  %2642 = vmatmul.mubr.bf16.gmra.mxu0 %v2541
  %v2643 = vpop.f32.mrf.mxu0
  %v2644 = vadd.f32 %v2523, %v2643
  %v2645 = vpop.f32.mrf.mxu0
  %v2646 = vpop.f32.mrf.mxu0
  %v2647 = vadd.f32 %v2523, %v2646
  %v2648 = vpop.f32.mrf.mxu0
  %2649 = vmatprep.mubr.bf16.mxu0 0
  %2650 = vmatmul.mubr.bf16.gmra.mxu0 %v2543
  %v2651 = vpop.f32.mrf.mxu0
  %v2652 = vadd.f32 %v2523, %v2651
  %v2653 = vpop.f32.mrf.mxu0
  %v2654 = vpop.f32.mrf.mxu0
  %v2655 = vadd.f32 %v2523, %v2654
  %v2656 = vpop.f32.mrf.mxu0
  %2657 = vmatprep.mubr.bf16.mxu0 0
  %2658 = vmatmul.mubr.bf16.gmra.mxu0 %v2545
  %v2659 = vpop.f32.mrf.mxu0
  %v2660 = vadd.f32 %v2523, %v2659
  %v2661 = vpop.f32.mrf.mxu0
  %v2662 = vpop.f32.mrf.mxu0
  %v2663 = vadd.f32 %v2523, %v2662
  %v2664 = vpop.f32.mrf.mxu0
  %2665 = vmatprep.mubr.bf16.mxu0 0
  %2666 = vmatmul.mubr.bf16.gmra.mxu0 %v2547
  %v2667 = vpop.f32.mrf.mxu0
  %v2668 = vadd.f32 %v2523, %v2667
  %v2669 = vpop.f32.mrf.mxu0
  %v2670 = vpop.f32.mrf.mxu0
  %v2671 = vadd.f32 %v2523, %v2670
  %v2672 = vpop.f32.mrf.mxu0
  %2673 = vmatprep.mubr.bf16.mxu0 0
  %2674 = vmatmul.mubr.bf16.gmra.mxu0 %v2549
  %v2675 = vpop.f32.mrf.mxu0
  %v2676 = vadd.f32 %v2523, %v2675
  %v2677 = vpop.f32.mrf.mxu0
  %v2678 = vpop.f32.mrf.mxu0
  %v2679 = vadd.f32 %v2523, %v2678
  %v2680 = vpop.f32.mrf.mxu0
  %2681 = vmatprep.mubr.bf16.mxu0 0
  %2682 = vmatmul.mubr.bf16.gmra.mxu0 %v2551
  %v2683 = vpop.f32.mrf.mxu0
  %v2684 = vadd.f32 %v2523, %v2683
  %v2685 = vpop.f32.mrf.mxu0
  %v2686 = vpop.f32.mrf.mxu0
  %v2687 = vadd.f32 %v2523, %v2686
  %v2688 = vpop.f32.mrf.mxu0
  %2689 = vmatprep.mubr.bf16.mxu0 0
  %2690 = vmatmul.mubr.bf16.gmra.mxu0 %v2553
  %v2691 = vpop.f32.mrf.mxu0
  %v2692 = vadd.f32 %v2523, %v2691
  %v2693 = vpop.f32.mrf.mxu0
  %v2694 = vpop.f32.mrf.mxu0
  %v2695 = vadd.f32 %v2523, %v2694
  %v2696 = vpop.f32.mrf.mxu0
  %2697 = vmatprep.mubr.bf16.mxu0 0
  %2698 = vmatmul.mubr.bf16.gmra.mxu0 %v2555
  %v2699 = vpop.f32.mrf.mxu0
  %v2700 = vadd.f32 %v2523, %v2699
  %v2701 = vpop.f32.mrf.mxu0
  %v2702 = vpop.f32.mrf.mxu0
  %v2703 = vadd.f32 %v2523, %v2702
  %v2704 = vpop.f32.mrf.mxu0
  %2705 = vmatprep.mubr.bf16.mxu0 0
  %2706 = vmatmul.mubr.bf16.gmra.mxu0 %v2557
  %v2707 = vpop.f32.mrf.mxu0
  %v2708 = vadd.f32 %v2523, %v2707
  %v2709 = vpop.f32.mrf.mxu0
  %v2710 = vpop.f32.mrf.mxu0
  %v2711 = vadd.f32 %v2523, %v2710
  %v2712 = vpop.f32.mrf.mxu0
  %2713 = vmatprep.mubr.bf16.mxu0 0
  %2714 = vmatmul.mubr.bf16.gmra.mxu0 %v2559
  %v2715 = vpop.f32.mrf.mxu0
  %v2716 = vadd.f32 %v2523, %v2715
  %v2717 = vpop.f32.mrf.mxu0
  %v2718 = vpop.f32.mrf.mxu0
  %v2719 = vadd.f32 %v2523, %v2718
  %v2720 = vpop.f32.mrf.mxu0
  %2721 = vmatprep.mubr.bf16.mxu0 0
  %2722 = vmatmul.mubr.bf16.gmra.mxu0 %v2561
  %v2723 = vpop.f32.mrf.mxu0
  %v2724 = vadd.f32 %v2523, %v2723
  %v2725 = vpop.f32.mrf.mxu0
  %v2726 = vpop.f32.mrf.mxu0
  %v2727 = vadd.f32 %v2523, %v2726
  %v2728 = vpop.f32.mrf.mxu0
  %2729 = vmatprep.mubr.bf16.mxu0 0
  %2730 = vmatmul.mubr.bf16.gmra.mxu0 %v2563
  %v2731 = vpop.f32.mrf.mxu0
  %v2732 = vadd.f32 %v2523, %v2731
  %v2733 = vpop.f32.mrf.mxu0
  %v2734 = vpop.f32.mrf.mxu0
  %v2735 = vadd.f32 %v2523, %v2734
  %v2736 = vpop.f32.mrf.mxu0
  %2737 = vmatprep.mubr.bf16.mxu0 0
  %2738 = vmatmul.mubr.bf16.gmra.mxu0 %v2565
  %v2739 = vpop.f32.mrf.mxu0
  %v2740 = vadd.f32 %v2523, %v2739
  %v2741 = vpop.f32.mrf.mxu0
  %v2742 = vpop.f32.mrf.mxu0
  %v2743 = vadd.f32 %v2523, %v2742
  %v2744 = vpop.f32.mrf.mxu0
  %2745 = vmatprep.mubr.bf16.mxu0 0
  %2746 = vmatmul.mubr.bf16.gmra.mxu0 %v2567
  %v2747 = vpop.f32.mrf.mxu0
  %v2748 = vadd.f32 %v2523, %v2747
  %v2749 = vpop.f32.mrf.mxu0
  %v2750 = vpop.f32.mrf.mxu0
  %v2751 = vadd.f32 %v2523, %v2750
  %v2752 = vpop.f32.mrf.mxu0
  %2753 = vmatprep.mubr.bf16.mxu0 0
  %2754 = vmatmul.mubr.bf16.gmra.mxu0 %v2569
  %v2755 = vpop.f32.mrf.mxu0
  %v2756 = vadd.f32 %v2523, %v2755
  %v2757 = vpop.f32.mrf.mxu0
  %v2758 = vpop.f32.mrf.mxu0
  %v2759 = vadd.f32 %v2523, %v2758
  %v2760 = vpop.f32.mrf.mxu0
  %2761 = vmatprep.mubr.bf16.mxu0 0
  %2762 = vmatmul.mubr.bf16.gmra.mxu0 %v2571
  %v2763 = vpop.f32.mrf.mxu0
  %v2764 = vadd.f32 %v2523, %v2763
  %v2765 = vpop.f32.mrf.mxu0
  %v2766 = vpop.f32.mrf.mxu0
  %v2767 = vadd.f32 %v2523, %v2766
  %v2768 = vpop.f32.mrf.mxu0
  %2769 = vmatprep.mubr.bf16.mxu0 0
  %2770 = vmatmul.mubr.bf16.gmra.mxu0 %v2573
  %v2771 = vpop.f32.mrf.mxu0
  %v2772 = vadd.f32 %v2523, %v2771
  %v2773 = vpop.f32.mrf.mxu0
  %v2774 = vpop.f32.mrf.mxu0
  %v2775 = vadd.f32 %v2523, %v2774
  %v2776 = vpop.f32.mrf.mxu0
  %2777 = vmatprep.mubr.bf16.mxu0 0
  %2778 = vmatmul.mubr.bf16.gmra.mxu0 %v2575
  %v2779 = vpop.f32.mrf.mxu0
  %v2780 = vadd.f32 %v2523, %v2779
  %v2781 = vpop.f32.mrf.mxu0
  %v2782 = vpop.f32.mrf.mxu0
  %v2783 = vadd.f32 %v2523, %v2782
  %v2784 = vpop.f32.mrf.mxu0
  %2785 = vmatprep.mubr.bf16.mxu0 0
  %2786 = vmatmul.mubr.bf16.gmra.mxu0 %v2577
  %v2787 = vpop.f32.mrf.mxu0
  %v2788 = vadd.f32 %v2523, %v2787
  %v2789 = vpop.f32.mrf.mxu0
  %v2790 = vpop.f32.mrf.mxu0
  %v2791 = vadd.f32 %v2523, %v2790
  %v2792 = vpop.f32.mrf.mxu0
  %2793 = vmatprep.mubr.bf16.mxu0 0
  %2794 = vmatmul.mubr.bf16.gmra.mxu0 %v2579
  %v2795 = vpop.f32.mrf.mxu0
  %v2796 = vadd.f32 %v2523, %v2795
  %v2797 = vpop.f32.mrf.mxu0
  %v2798 = vpop.f32.mrf.mxu0
  %v2799 = vadd.f32 %v2523, %v2798
  %v2800 = vpop.f32.mrf.mxu0
  %2801 = vmatprep.mubr.bf16.mxu0 0
  %2802 = vmatmul.mubr.bf16.gmra.mxu0 %v2581
  %v2803 = vpop.f32.mrf.mxu0
  %v2804 = vadd.f32 %v2523, %v2803
  %v2805 = vpop.f32.mrf.mxu0
  %v2806 = vpop.f32.mrf.mxu0
  %v2807 = vadd.f32 %v2523, %v2806
  %v2808 = vpop.f32.mrf.mxu0
  %2809 = vmatprep.mubr.bf16.mxu0 0
  %2810 = vmatmul.mubr.bf16.gmra.mxu0 %v2583
  %v2811 = vpop.f32.mrf.mxu0
  %v2812 = vadd.f32 %v2523, %v2811
  %v2813 = vpop.f32.mrf.mxu0
  %v2814 = vpop.f32.mrf.mxu0
  %v2815 = vadd.f32 %v2523, %v2814
  %v2816 = vpop.f32.mrf.mxu0
  %2817 = vmatprep.mubr.bf16.mxu0 0
  %2818 = vmatmul.mubr.bf16.gmra.mxu0 %v2585
  %v2819 = vpop.f32.mrf.mxu0
  %v2820 = vadd.f32 %v2523, %v2819
  %v2821 = vpop.f32.mrf.mxu0
  %v2822 = vpop.f32.mrf.mxu0
  %v2823 = vadd.f32 %v2523, %v2822
  %v2824 = vpop.f32.mrf.mxu0
  %2825 = vmatprep.mubr.bf16.mxu0 0
  %2826 = vmatmul.mubr.bf16.gmra.mxu0 %v2587
  %v2827 = vpop.f32.mrf.mxu0
  %v2828 = vadd.f32 %v2523, %v2827
  %v2829 = vpop.f32.mrf.mxu0
  %v2830 = vpop.f32.mrf.mxu0
  %v2831 = vadd.f32 %v2523, %v2830
  %v2832 = vpop.f32.mrf.mxu0
  %2833 = vmatprep.mubr.bf16.mxu0 0
  %2834 = vmatmul.mubr.bf16.gmra.mxu0 %v2589
  %v2835 = vpop.f32.mrf.mxu0
  %v2836 = vadd.f32 %v2523, %v2835
  %v2837 = vpop.f32.mrf.mxu0
  %v2838 = vpop.f32.mrf.mxu0
  %v2839 = vadd.f32 %v2523, %v2838
  %v2840 = vpop.f32.mrf.mxu0
  %2841 = vmatprep.mubr.bf16.mxu0 0
  %2842 = vmatmul.mubr.bf16.gmra.mxu0 %v2591
  %v2843 = vpop.f32.mrf.mxu0
  %v2844 = vadd.f32 %v2523, %v2843
  %v2845 = vpop.f32.mrf.mxu0
  %v2846 = vpop.f32.mrf.mxu0
  %v2847 = vadd.f32 %v2523, %v2846
  %v2848 = vpop.f32.mrf.mxu0
  %2849 = vmatprep.mubr.bf16.mxu0 0
  %2850 = vmatmul.mubr.bf16.gmra.mxu0 %v2593
  %v2851 = vpop.f32.mrf.mxu0
  %v2852 = vadd.f32 %v2523, %v2851
  %v2853 = vpop.f32.mrf.mxu0
  %v2854 = vpop.f32.mrf.mxu0
  %v2855 = vadd.f32 %v2523, %v2854
  %v2856 = vpop.f32.mrf.mxu0
  %2857 = vmatprep.mubr.bf16.mxu0 0
  %2858 = vmatmul.mubr.bf16.gmra.mxu0 %v2595
  %v2859 = vpop.f32.mrf.mxu0
  %v2860 = vadd.f32 %v2523, %v2859
  %v2861 = vpop.f32.mrf.mxu0
  %v2862 = vpop.f32.mrf.mxu0
  %v2863 = vadd.f32 %v2523, %v2862
  %v2864 = vpop.f32.mrf.mxu0
  %2865 = vmatprep.mubr.bf16.mxu0 0
  %2866 = vmatmul.mubr.bf16.gmra.mxu0 %v2597
  %v2867 = vpop.f32.mrf.mxu0
  %v2868 = vadd.f32 %v2523, %v2867
  %v2869 = vpop.f32.mrf.mxu0
  %v2870 = vpop.f32.mrf.mxu0
  %v2871 = vadd.f32 %v2523, %v2870
  %v2872 = vpop.f32.mrf.mxu0
  %2873 = vmatprep.mubr.bf16.mxu0 0
  %2874 = vmatmul.mubr.bf16.gmra.mxu0 %v2599
  %v2875 = vpop.f32.mrf.mxu0
  %v2876 = vadd.f32 %v2523, %v2875
  %v2877 = vpop.f32.mrf.mxu0
  %v2878 = vpop.f32.mrf.mxu0
  %v2879 = vadd.f32 %v2523, %v2878
  %v2880 = vpop.f32.mrf.mxu0
  %2881 = vmatprep.mubr.bf16.mxu0 0
  %2882 = vmatmul.mubr.bf16.gmra.mxu0 %v2601
  %v2883 = vpop.f32.mrf.mxu0
  %v2884 = vadd.f32 %v2523, %v2883
  %v2885 = vpop.f32.mrf.mxu0
  %v2886 = vpop.f32.mrf.mxu0
  %v2887 = vadd.f32 %v2523, %v2886
  %v2888 = vpop.f32.mrf.mxu0
  %2889 = vmatprep.mubr.bf16.mxu0 0
  %2890 = vmatmul.mubr.bf16.gmra.mxu0 %v2603
  %v2891 = vpop.f32.mrf.mxu0
  %v2892 = vadd.f32 %v2523, %v2891
  %v2893 = vpop.f32.mrf.mxu0
  %v2894 = vpop.f32.mrf.mxu0
  %v2895 = vadd.f32 %v2523, %v2894
  %v2896 = vpop.f32.mrf.mxu0
  %2897 = vdwg.mxu0
  %v2898 = vmax.f32 %v2644, 0.0
  %v2899 = vmax.f32 %v2647, 0.0
  %v2900 = vmax.f32 %v2652, 0.0
  %v2901 = vmax.f32 %v2655, 0.0
  %v2902 = vmax.f32 %v2660, 0.0
  %v2903 = vmax.f32 %v2663, 0.0
  %v2904 = vmax.f32 %v2668, 0.0
  %v2905 = vmax.f32 %v2671, 0.0
  %v2906 = vmax.f32 %v2676, 0.0
  %v2907 = vmax.f32 %v2679, 0.0
  %v2908 = vmax.f32 %v2684, 0.0
  %v2909 = vmax.f32 %v2687, 0.0
  %v2910 = vmax.f32 %v2692, 0.0
  %v2911 = vmax.f32 %v2695, 0.0
  %v2912 = vmax.f32 %v2700, 0.0
  %v2913 = vmax.f32 %v2703, 0.0
  %v2914 = vmax.f32 %v2708, 0.0
  %v2915 = vmax.f32 %v2711, 0.0
  %v2916 = vmax.f32 %v2716, 0.0
  %v2917 = vmax.f32 %v2719, 0.0
  %v2918 = vmax.f32 %v2724, 0.0
  %v2919 = vmax.f32 %v2727, 0.0
  %v2920 = vmax.f32 %v2732, 0.0
  %v2921 = vmax.f32 %v2735, 0.0
  %v2922 = vmax.f32 %v2740, 0.0
  %v2923 = vmax.f32 %v2743, 0.0
  %v2924 = vmax.f32 %v2748, 0.0
  %v2925 = vmax.f32 %v2751, 0.0
  %v2926 = vmax.f32 %v2756, 0.0
  %v2927 = vmax.f32 %v2759, 0.0
  %v2928 = vmax.f32 %v2764, 0.0
  %v2929 = vmax.f32 %v2767, 0.0
  %v2930 = vmax.f32 %v2772, 0.0
  %v2931 = vmax.f32 %v2775, 0.0
  %v2932 = vmax.f32 %v2780, 0.0
  %v2933 = vmax.f32 %v2783, 0.0
  %v2934 = vmax.f32 %v2788, 0.0
  %v2935 = vmax.f32 %v2791, 0.0
  %v2936 = vmax.f32 %v2796, 0.0
  %v2937 = vmax.f32 %v2799, 0.0
  %v2938 = vmax.f32 %v2804, 0.0
  %v2939 = vmax.f32 %v2807, 0.0
  %v2940 = vmax.f32 %v2812, 0.0
  %v2941 = vmax.f32 %v2815, 0.0
  %v2942 = vmax.f32 %v2820, 0.0
  %v2943 = vmax.f32 %v2823, 0.0
  %v2944 = vmax.f32 %v2828, 0.0
  %v2945 = vmax.f32 %v2831, 0.0
  %v2946 = vmax.f32 %v2836, 0.0
  %v2947 = vmax.f32 %v2839, 0.0
  %v2948 = vmax.f32 %v2844, 0.0
  %v2949 = vmax.f32 %v2847, 0.0
  %v2950 = vmax.f32 %v2852, 0.0
  %v2951 = vmax.f32 %v2855, 0.0
  %v2952 = vmax.f32 %v2860, 0.0
  %v2953 = vmax.f32 %v2863, 0.0
  %v2954 = vmax.f32 %v2868, 0.0
  %v2955 = vmax.f32 %v2871, 0.0
  %v2956 = vmax.f32 %v2876, 0.0
  %v2957 = vmax.f32 %v2879, 0.0
  %v2958 = vmax.f32 %v2884, 0.0
  %v2959 = vmax.f32 %v2887, 0.0
  %v2960 = vmax.f32 %v2892, 0.0
  %v2961 = vmax.f32 %v2895, 0.0
  %s2962 = scalar_lea.vmem [#allocation3], 24
  %2963 = vst [vmem:[%s2962 + $0x1] sm:$0xff] %v2898
  %2964 = vst [vmem:[%s2962 + $0x9] sm:$0xff] %v2899
  %2965 = vst [vmem:[%s2962 + $0x19] sm:$0xff] %v2900
  %2966 = vst [vmem:[%s2962 + $0x21] sm:$0xff] %v2901
  %2967 = vst [vmem:[%s2962 + $0x31] sm:$0xff] %v2902
  %2968 = vst [vmem:[%s2962 + $0x39] sm:$0xff] %v2903
  %2969 = vst [vmem:[%s2962 + $0x49] sm:$0xff] %v2904
  %2970 = vst [vmem:[%s2962 + $0x51] sm:$0xff] %v2905
  %2971 = vst [vmem:[%s2962 + $0x61] sm:$0xff] %v2906
  %2972 = vst [vmem:[%s2962 + $0x69] sm:$0xff] %v2907
  %2973 = vst [vmem:[%s2962 + $0x79] sm:$0xff] %v2908
  %2974 = vst [vmem:[%s2962 + $0x81] sm:$0xff] %v2909
  %2975 = vst [vmem:[%s2962 + $0x91] sm:$0xff] %v2910
  %2976 = vst [vmem:[%s2962 + $0x99] sm:$0xff] %v2911
  %2977 = vst [vmem:[%s2962 + $0xa9] sm:$0xff] %v2912
  %2978 = vst [vmem:[%s2962 + $0xb1] sm:$0xff] %v2913
  %2979 = vst [vmem:[%s2962 + $0xc1] sm:$0xff] %v2914
  %2980 = vst [vmem:[%s2962 + $0xc9] sm:$0xff] %v2915
  %2981 = vst [vmem:[%s2962 + $0xd9] sm:$0xff] %v2916
  %2982 = vst [vmem:[%s2962 + $0xe1] sm:$0xff] %v2917
  %2983 = vst [vmem:[%s2962 + $0xf1] sm:$0xff] %v2918
  %2984 = vst [vmem:[%s2962 + $0xf9] sm:$0xff] %v2919
  %2985 = vst [vmem:[%s2962 + $0x109] sm:$0xff] %v2920
  %2986 = vst [vmem:[%s2962 + $0x111] sm:$0xff] %v2921
  %2987 = vst [vmem:[%s2962 + $0x121] sm:$0xff] %v2922
  %2988 = vst [vmem:[%s2962 + $0x129] sm:$0xff] %v2923
  %2989 = vst [vmem:[%s2962 + $0x139] sm:$0xff] %v2924
  %2990 = vst [vmem:[%s2962 + $0x141] sm:$0xff] %v2925
  %2991 = vst [vmem:[%s2962 + $0x151] sm:$0xff] %v2926
  %2992 = vst [vmem:[%s2962 + $0x159] sm:$0xff] %v2927
  %2993 = vst [vmem:[%s2962 + $0x169] sm:$0xff] %v2928
  %2994 = vst [vmem:[%s2962 + $0x171] sm:$0xff] %v2929
  %2995 = vst [vmem:[%s2962 + $0x1b1] sm:$0xff] %v2930
  %2996 = vst [vmem:[%s2962 + $0x1b9] sm:$0xff] %v2931
  %2997 = vst [vmem:[%s2962 + $0x1c9] sm:$0xff] %v2932
  %2998 = vst [vmem:[%s2962 + $0x1d1] sm:$0xff] %v2933
  %2999 = vst [vmem:[%s2962 + $0x1e1] sm:$0xff] %v2934
  %3000 = vst [vmem:[%s2962 + $0x1e9] sm:$0xff] %v2935
  %3001 = vst [vmem:[%s2962 + $0x1f9] sm:$0xff] %v2936
  %3002 = vst [vmem:[%s2962 + $0x201] sm:$0xff] %v2937
  %3003 = vst [vmem:[%s2962 + $0x211] sm:$0xff] %v2938
  %3004 = vst [vmem:[%s2962 + $0x219] sm:$0xff] %v2939
  %3005 = vst [vmem:[%s2962 + $0x229] sm:$0xff] %v2940
  %3006 = vst [vmem:[%s2962 + $0x231] sm:$0xff] %v2941
  %3007 = vst [vmem:[%s2962 + $0x241] sm:$0xff] %v2942
  %3008 = vst [vmem:[%s2962 + $0x249] sm:$0xff] %v2943
  %3009 = vst [vmem:[%s2962 + $0x259] sm:$0xff] %v2944
  %3010 = vst [vmem:[%s2962 + $0x261] sm:$0xff] %v2945
  %3011 = vst [vmem:[%s2962 + $0x271] sm:$0xff] %v2946
  %3012 = vst [vmem:[%s2962 + $0x279] sm:$0xff] %v2947
  %3013 = vst [vmem:[%s2962 + $0x289] sm:$0xff] %v2948
  %3014 = vst [vmem:[%s2962 + $0x291] sm:$0xff] %v2949
  %3015 = vst [vmem:[%s2962 + $0x2a1] sm:$0xff] %v2950
  %3016 = vst [vmem:[%s2962 + $0x2a9] sm:$0xff] %v2951
  %3017 = vst [vmem:[%s2962 + $0x2b9] sm:$0xff] %v2952
  %3018 = vst [vmem:[%s2962 + $0x2c1] sm:$0xff] %v2953
  %3019 = vst [vmem:[%s2962 + $0x2d1] sm:$0xff] %v2954
  %3020 = vst [vmem:[%s2962 + $0x2d9] sm:$0xff] %v2955
  %3021 = vst [vmem:[%s2962 + $0x2e9] sm:$0xff] %v2956
  %3022 = vst [vmem:[%s2962 + $0x2f1] sm:$0xff] %v2957
  %3023 = vst [vmem:[%s2962 + $0x301] sm:$0xff] %v2958
  %3024 = vst [vmem:[%s2962 + $0x309] sm:$0xff] %v2959
  %3025 = vst [vmem:[%s2962 + $0x319] sm:$0xff] %v2960
  %3026 = vst [vmem:[%s2962 + $0x321] sm:$0xff] %v2961
  %v3027 = vld [vmem:[#allocation3] sm:$0xff]
  %v3028 = vld [vmem:[#allocation3 + $0x8] sm:$0xff]
  %v3029 = vld [vmem:[#allocation3 + $0x18] sm:$0xff]
  %v3030 = vld [vmem:[#allocation3 + $0x20] sm:$0xff]
  %v3031 = vld [vmem:[#allocation3 + $0x30] sm:$0xff]
  %v3032 = vld [vmem:[#allocation3 + $0x38] sm:$0xff]
  %v3033 = vld [vmem:[#allocation3 + $0x48] sm:$0xff]
  %v3034 = vld [vmem:[#allocation3 + $0x50] sm:$0xff]
  %v3035 = vld [vmem:[#allocation3 + $0x60] sm:$0xff]
  %v3036 = vld [vmem:[#allocation3 + $0x68] sm:$0xff]
  %v3037 = vld [vmem:[#allocation3 + $0x78] sm:$0xff]
  %v3038 = vld [vmem:[#allocation3 + $0x80] sm:$0xff]
  %v3039 = vld [vmem:[#allocation3 + $0x90] sm:$0xff]
  %v3040 = vld [vmem:[#allocation3 + $0x98] sm:$0xff]
  %v3041 = vld [vmem:[#allocation3 + $0xa8] sm:$0xff]
  %v3042 = vld [vmem:[#allocation3 + $0xb0] sm:$0xff]
  %v3043 = vld [vmem:[#allocation3 + $0xc0] sm:$0xff]
  %v3044 = vld [vmem:[#allocation3 + $0xc8] sm:$0xff]
  %v3045 = vld [vmem:[#allocation3 + $0xd8] sm:$0xff]
  %v3046 = vld [vmem:[#allocation3 + $0xe0] sm:$0xff]
  %v3047 = vld [vmem:[#allocation3 + $0xf0] sm:$0xff]
  %v3048 = vld [vmem:[#allocation3 + $0xf8] sm:$0xff]
  %v3049 = vld [vmem:[#allocation3 + $0x108] sm:$0xff]
  %v3050 = vld [vmem:[#allocation3 + $0x110] sm:$0xff]
  %v3051 = vld [vmem:[#allocation3 + $0x120] sm:$0xff]
  %v3052 = vld [vmem:[#allocation3 + $0x128] sm:$0xff]
  %v3053 = vld [vmem:[#allocation3 + $0x138] sm:$0xff]
  %v3054 = vld [vmem:[#allocation3 + $0x140] sm:$0xff]
  %v3055 = vld [vmem:[#allocation3 + $0x150] sm:$0xff]
  %v3056 = vld [vmem:[#allocation3 + $0x158] sm:$0xff]
  %v3057 = vld [vmem:[#allocation3 + $0x168] sm:$0xff]
  %v3058 = vld [vmem:[#allocation3 + $0x170] sm:$0xff]
  %v3059 = vld [vmem:[#allocation3 + $0x1b0] sm:$0xff]
  %v3060 = vld [vmem:[#allocation3 + $0x1b8] sm:$0xff]
  %v3061 = vld [vmem:[#allocation3 + $0x1c8] sm:$0xff]
  %v3062 = vld [vmem:[#allocation3 + $0x1d0] sm:$0xff]
  %v3063 = vld [vmem:[#allocation3 + $0x1e0] sm:$0xff]
  %v3064 = vld [vmem:[#allocation3 + $0x1e8] sm:$0xff]
  %v3065 = vld [vmem:[#allocation3 + $0x1f8] sm:$0xff]
  %v3066 = vld [vmem:[#allocation3 + $0x200] sm:$0xff]
  %v3067 = vld [vmem:[#allocation3 + $0x210] sm:$0xff]
  %v3068 = vld [vmem:[#allocation3 + $0x218] sm:$0xff]
  %v3069 = vld [vmem:[#allocation3 + $0x228] sm:$0xff]
  %v3070 = vld [vmem:[#allocation3 + $0x230] sm:$0xff]
  %v3071 = vld [vmem:[#allocation3 + $0x240] sm:$0xff]
  %v3072 = vld [vmem:[#allocation3 + $0x248] sm:$0xff]
  %v3073 = vld [vmem:[#allocation3 + $0x258] sm:$0xff]
  %v3074 = vld [vmem:[#allocation3 + $0x260] sm:$0xff]
  %v3075 = vld [vmem:[#allocation3 + $0x270] sm:$0xff]
  %v3076 = vld [vmem:[#allocation3 + $0x278] sm:$0xff]
  %v3077 = vld [vmem:[#allocation3 + $0x288] sm:$0xff]
  %v3078 = vld [vmem:[#allocation3 + $0x290] sm:$0xff]
  %v3079 = vld [vmem:[#allocation3 + $0x2a0] sm:$0xff]
  %v3080 = vld [vmem:[#allocation3 + $0x2a8] sm:$0xff]
  %v3081 = vld [vmem:[#allocation3 + $0x2b8] sm:$0xff]
  %v3082 = vld [vmem:[#allocation3 + $0x2c0] sm:$0xff]
  %v3083 = vld [vmem:[#allocation3 + $0x2d0] sm:$0xff]
  %v3084 = vld [vmem:[#allocation3 + $0x2d8] sm:$0xff]
  %v3085 = vld [vmem:[#allocation3 + $0x2e8] sm:$0xff]
  %v3086 = vld [vmem:[#allocation3 + $0x2f0] sm:$0xff]
  %v3087 = vld [vmem:[#allocation3 + $0x300] sm:$0xff]
  %v3088 = vld [vmem:[#allocation3 + $0x308] sm:$0xff]
  %v3089 = vld [vmem:[#allocation3 + $0x318] sm:$0xff]
  %v3090 = vld [vmem:[#allocation3 + $0x320] sm:$0xff]
  %v3091 = vpack.c.bf16 %v3028, %v3027
  %v3092 = vpack.c.bf16 %v3030, %v3029
  %v3093 = vpack.c.bf16 %v3032, %v3031
  %v3094 = vpack.c.bf16 %v3034, %v3033
  %v3095 = vpack.c.bf16 %v3036, %v3035
  %v3096 = vpack.c.bf16 %v3038, %v3037
  %v3097 = vpack.c.bf16 %v3040, %v3039
  %v3098 = vpack.c.bf16 %v3042, %v3041
  %v3099 = vpack.c.bf16 %v3044, %v3043
  %v3100 = vpack.c.bf16 %v3046, %v3045
  %v3101 = vpack.c.bf16 %v3048, %v3047
  %v3102 = vpack.c.bf16 %v3050, %v3049
  %v3103 = vpack.c.bf16 %v3052, %v3051
  %v3104 = vpack.c.bf16 %v3054, %v3053
  %v3105 = vpack.c.bf16 %v3056, %v3055
  %v3106 = vpack.c.bf16 %v3058, %v3057
  %v3107 = vpack.c.bf16 %v3060, %v3059
  %v3108 = vpack.c.bf16 %v3062, %v3061
  %v3109 = vpack.c.bf16 %v3064, %v3063
  %v3110 = vpack.c.bf16 %v3066, %v3065
  %v3111 = vpack.c.bf16 %v3068, %v3067
  %v3112 = vpack.c.bf16 %v3070, %v3069
  %v3113 = vpack.c.bf16 %v3072, %v3071
  %v3114 = vpack.c.bf16 %v3074, %v3073
  %v3115 = vpack.c.bf16 %v3076, %v3075
  %v3116 = vpack.c.bf16 %v3078, %v3077
  %v3117 = vpack.c.bf16 %v3080, %v3079
  %v3118 = vpack.c.bf16 %v3082, %v3081
  %v3119 = vpack.c.bf16 %v3084, %v3083
  %v3120 = vpack.c.bf16 %v3086, %v3085
  %v3121 = vpack.c.bf16 %v3088, %v3087
  %v3122 = vpack.c.bf16 %v3090, %v3089
  %v3123 = vld [vmem:[#allocation3 + $0x1] sm:$0xff]
  %v3124 = vld [vmem:[#allocation3 + $0x9] sm:$0xff]
  %v3125 = vld [vmem:[#allocation3 + $0x19] sm:$0xff]
  %v3126 = vld [vmem:[#allocation3 + $0x21] sm:$0xff]
  %v3127 = vld [vmem:[#allocation3 + $0x31] sm:$0xff]
  %v3128 = vld [vmem:[#allocation3 + $0x39] sm:$0xff]
  %v3129 = vld [vmem:[#allocation3 + $0x49] sm:$0xff]
  %v3130 = vld [vmem:[#allocation3 + $0x51] sm:$0xff]
  %v3131 = vld [vmem:[#allocation3 + $0x61] sm:$0xff]
  %v3132 = vld [vmem:[#allocation3 + $0x69] sm:$0xff]
  %v3133 = vld [vmem:[#allocation3 + $0x79] sm:$0xff]
  %v3134 = vld [vmem:[#allocation3 + $0x81] sm:$0xff]
  %v3135 = vld [vmem:[#allocation3 + $0x91] sm:$0xff]
  %v3136 = vld [vmem:[#allocation3 + $0x99] sm:$0xff]
  %v3137 = vld [vmem:[#allocation3 + $0xa9] sm:$0xff]
  %v3138 = vld [vmem:[#allocation3 + $0xb1] sm:$0xff]
  %v3139 = vld [vmem:[#allocation3 + $0xc1] sm:$0xff]
  %v3140 = vld [vmem:[#allocation3 + $0xc9] sm:$0xff]
  %v3141 = vld [vmem:[#allocation3 + $0xd9] sm:$0xff]
  %v3142 = vld [vmem:[#allocation3 + $0xe1] sm:$0xff]
  %v3143 = vld [vmem:[#allocation3 + $0xf1] sm:$0xff]
  %v3144 = vld [vmem:[#allocation3 + $0xf9] sm:$0xff]
  %v3145 = vld [vmem:[#allocation3 + $0x109] sm:$0xff]
  %v3146 = vld [vmem:[#allocation3 + $0x111] sm:$0xff]
  %v3147 = vld [vmem:[#allocation3 + $0x121] sm:$0xff]
  %v3148 = vld [vmem:[#allocation3 + $0x129] sm:$0xff]
  %v3149 = vld [vmem:[#allocation3 + $0x139] sm:$0xff]
  %v3150 = vld [vmem:[#allocation3 + $0x141] sm:$0xff]
  %v3151 = vld [vmem:[#allocation3 + $0x151] sm:$0xff]
  %v3152 = vld [vmem:[#allocation3 + $0x159] sm:$0xff]
  %v3153 = vld [vmem:[#allocation3 + $0x169] sm:$0xff]
  %v3154 = vld [vmem:[#allocation3 + $0x171] sm:$0xff]
  %v3155 = vld [vmem:[#allocation3 + $0x1b1] sm:$0xff]
  %v3156 = vld [vmem:[#allocation3 + $0x1b9] sm:$0xff]
  %v3157 = vld [vmem:[#allocation3 + $0x1c9] sm:$0xff]
  %v3158 = vld [vmem:[#allocation3 + $0x1d1] sm:$0xff]
  %v3159 = vld [vmem:[#allocation3 + $0x1e1] sm:$0xff]
  %v3160 = vld [vmem:[#allocation3 + $0x1e9] sm:$0xff]
  %v3161 = vld [vmem:[#allocation3 + $0x1f9] sm:$0xff]
  %v3162 = vld [vmem:[#allocation3 + $0x201] sm:$0xff]
  %v3163 = vld [vmem:[#allocation3 + $0x211] sm:$0xff]
  %v3164 = vld [vmem:[#allocation3 + $0x219] sm:$0xff]
  %v3165 = vld [vmem:[#allocation3 + $0x229] sm:$0xff]
  %v3166 = vld [vmem:[#allocation3 + $0x231] sm:$0xff]
  %v3167 = vld [vmem:[#allocation3 + $0x241] sm:$0xff]
  %v3168 = vld [vmem:[#allocation3 + $0x249] sm:$0xff]
  %v3169 = vld [vmem:[#allocation3 + $0x259] sm:$0xff]
  %v3170 = vld [vmem:[#allocation3 + $0x261] sm:$0xff]
  %v3171 = vld [vmem:[#allocation3 + $0x271] sm:$0xff]
  %v3172 = vld [vmem:[#allocation3 + $0x279] sm:$0xff]
  %v3173 = vld [vmem:[#allocation3 + $0x289] sm:$0xff]
  %v3174 = vld [vmem:[#allocation3 + $0x291] sm:$0xff]
  %v3175 = vld [vmem:[#allocation3 + $0x2a1] sm:$0xff]
  %v3176 = vld [vmem:[#allocation3 + $0x2a9] sm:$0xff]
  %v3177 = vld [vmem:[#allocation3 + $0x2b9] sm:$0xff]
  %v3178 = vld [vmem:[#allocation3 + $0x2c1] sm:$0xff]
  %v3179 = vld [vmem:[#allocation3 + $0x2d1] sm:$0xff]
  %v3180 = vld [vmem:[#allocation3 + $0x2d9] sm:$0xff]
  %v3181 = vld [vmem:[#allocation3 + $0x2e9] sm:$0xff]
  %v3182 = vld [vmem:[#allocation3 + $0x2f1] sm:$0xff]
  %v3183 = vld [vmem:[#allocation3 + $0x301] sm:$0xff]
  %v3184 = vld [vmem:[#allocation3 + $0x309] sm:$0xff]
  %v3185 = vld [vmem:[#allocation3 + $0x319] sm:$0xff]
  %v3186 = vld [vmem:[#allocation3 + $0x321] sm:$0xff]
  %v3187 = vpack.c.bf16 %v3124, %v3123
  %v3188 = vpack.c.bf16 %v3126, %v3125
  %v3189 = vpack.c.bf16 %v3128, %v3127
  %v3190 = vpack.c.bf16 %v3130, %v3129
  %v3191 = vpack.c.bf16 %v3132, %v3131
  %v3192 = vpack.c.bf16 %v3134, %v3133
  %v3193 = vpack.c.bf16 %v3136, %v3135
  %v3194 = vpack.c.bf16 %v3138, %v3137
  %v3195 = vpack.c.bf16 %v3140, %v3139
  %v3196 = vpack.c.bf16 %v3142, %v3141
  %v3197 = vpack.c.bf16 %v3144, %v3143
  %v3198 = vpack.c.bf16 %v3146, %v3145
  %v3199 = vpack.c.bf16 %v3148, %v3147
  %v3200 = vpack.c.bf16 %v3150, %v3149
  %v3201 = vpack.c.bf16 %v3152, %v3151
  %v3202 = vpack.c.bf16 %v3154, %v3153
  %v3203 = vpack.c.bf16 %v3156, %v3155
  %v3204 = vpack.c.bf16 %v3158, %v3157
  %v3205 = vpack.c.bf16 %v3160, %v3159
  %v3206 = vpack.c.bf16 %v3162, %v3161
  %v3207 = vpack.c.bf16 %v3164, %v3163
  %v3208 = vpack.c.bf16 %v3166, %v3165
  %v3209 = vpack.c.bf16 %v3168, %v3167
  %v3210 = vpack.c.bf16 %v3170, %v3169
  %v3211 = vpack.c.bf16 %v3172, %v3171
  %v3212 = vpack.c.bf16 %v3174, %v3173
  %v3213 = vpack.c.bf16 %v3176, %v3175
  %v3214 = vpack.c.bf16 %v3178, %v3177
  %v3215 = vpack.c.bf16 %v3180, %v3179
  %v3216 = vpack.c.bf16 %v3182, %v3181
  %v3217 = vpack.c.bf16 %v3184, %v3183
  %v3218 = vpack.c.bf16 %v3186, %v3185
  %v3219 = vld [vmem:[#allocation3 + $0x2] sm:$0xff]
  %v3220 = vld [vmem:[#allocation3 + $0xa] sm:$0xff]
  %v3221 = vld [vmem:[#allocation3 + $0x1a] sm:$0xff]
  %v3222 = vld [vmem:[#allocation3 + $0x22] sm:$0xff]
  %v3223 = vld [vmem:[#allocation3 + $0x32] sm:$0xff]
  %v3224 = vld [vmem:[#allocation3 + $0x3a] sm:$0xff]
  %v3225 = vld [vmem:[#allocation3 + $0x4a] sm:$0xff]
  %v3226 = vld [vmem:[#allocation3 + $0x52] sm:$0xff]
  %v3227 = vld [vmem:[#allocation3 + $0x62] sm:$0xff]
  %v3228 = vld [vmem:[#allocation3 + $0x6a] sm:$0xff]
  %v3229 = vld [vmem:[#allocation3 + $0x7a] sm:$0xff]
  %v3230 = vld [vmem:[#allocation3 + $0x82] sm:$0xff]
  %v3231 = vld [vmem:[#allocation3 + $0x92] sm:$0xff]
  %v3232 = vld [vmem:[#allocation3 + $0x9a] sm:$0xff]
  %v3233 = vld [vmem:[#allocation3 + $0xaa] sm:$0xff]
  %v3234 = vld [vmem:[#allocation3 + $0xb2] sm:$0xff]
  %v3235 = vld [vmem:[#allocation3 + $0xc2] sm:$0xff]
  %v3236 = vld [vmem:[#allocation3 + $0xca] sm:$0xff]
  %v3237 = vld [vmem:[#allocation3 + $0xda] sm:$0xff]
  %v3238 = vld [vmem:[#allocation3 + $0xe2] sm:$0xff]
  %v3239 = vld [vmem:[#allocation3 + $0xf2] sm:$0xff]
  %v3240 = vld [vmem:[#allocation3 + $0xfa] sm:$0xff]
  %v3241 = vld [vmem:[#allocation3 + $0x10a] sm:$0xff]
  %v3242 = vld [vmem:[#allocation3 + $0x112] sm:$0xff]
  %v3243 = vld [vmem:[#allocation3 + $0x122] sm:$0xff]
  %v3244 = vld [vmem:[#allocation3 + $0x12a] sm:$0xff]
  %v3245 = vld [vmem:[#allocation3 + $0x13a] sm:$0xff]
  %v3246 = vld [vmem:[#allocation3 + $0x142] sm:$0xff]
  %v3247 = vld [vmem:[#allocation3 + $0x152] sm:$0xff]
  %v3248 = vld [vmem:[#allocation3 + $0x15a] sm:$0xff]
  %v3249 = vld [vmem:[#allocation3 + $0x16a] sm:$0xff]
  %v3250 = vld [vmem:[#allocation3 + $0x172] sm:$0xff]
  %v3251 = vld [vmem:[#allocation3 + $0x1b2] sm:$0xff]
  %v3252 = vld [vmem:[#allocation3 + $0x1ba] sm:$0xff]
  %v3253 = vld [vmem:[#allocation3 + $0x1ca] sm:$0xff]
  %v3254 = vld [vmem:[#allocation3 + $0x1d2] sm:$0xff]
  %v3255 = vld [vmem:[#allocation3 + $0x1e2] sm:$0xff]
  %v3256 = vld [vmem:[#allocation3 + $0x1ea] sm:$0xff]
  %v3257 = vld [vmem:[#allocation3 + $0x1fa] sm:$0xff]
  %v3258 = vld [vmem:[#allocation3 + $0x202] sm:$0xff]
  %v3259 = vld [vmem:[#allocation3 + $0x212] sm:$0xff]
  %v3260 = vld [vmem:[#allocation3 + $0x21a] sm:$0xff]
  %v3261 = vld [vmem:[#allocation3 + $0x22a] sm:$0xff]
  %v3262 = vld [vmem:[#allocation3 + $0x232] sm:$0xff]
  %v3263 = vld [vmem:[#allocation3 + $0x242] sm:$0xff]
  %v3264 = vld [vmem:[#allocation3 + $0x24a] sm:$0xff]
  %v3265 = vld [vmem:[#allocation3 + $0x25a] sm:$0xff]
  %v3266 = vld [vmem:[#allocation3 + $0x262] sm:$0xff]
  %v3267 = vld [vmem:[#allocation3 + $0x272] sm:$0xff]
  %v3268 = vld [vmem:[#allocation3 + $0x27a] sm:$0xff]
  %v3269 = vld [vmem:[#allocation3 + $0x28a] sm:$0xff]
  %v3270 = vld [vmem:[#allocation3 + $0x292] sm:$0xff]
  %v3271 = vld [vmem:[#allocation3 + $0x2a2] sm:$0xff]
  %v3272 = vld [vmem:[#allocation3 + $0x2aa] sm:$0xff]
  %v3273 = vld [vmem:[#allocation3 + $0x2ba] sm:$0xff]
  %v3274 = vld [vmem:[#allocation3 + $0x2c2] sm:$0xff]
  %v3275 = vld [vmem:[#allocation3 + $0x2d2] sm:$0xff]
  %v3276 = vld [vmem:[#allocation3 + $0x2da] sm:$0xff]
  %v3277 = vld [vmem:[#allocation3 + $0x2ea] sm:$0xff]
  %v3278 = vld [vmem:[#allocation3 + $0x2f2] sm:$0xff]
  %v3279 = vld [vmem:[#allocation3 + $0x302] sm:$0xff]
  %v3280 = vld [vmem:[#allocation3 + $0x30a] sm:$0xff]
  %v3281 = vld [vmem:[#allocation3 + $0x31a] sm:$0xff]
  %v3282 = vld [vmem:[#allocation3 + $0x322] sm:$0xff]
  %v3283 = vpack.c.bf16 %v3220, %v3219
  %v3284 = vpack.c.bf16 %v3222, %v3221
  %v3285 = vpack.c.bf16 %v3224, %v3223
  %v3286 = vpack.c.bf16 %v3226, %v3225
  %v3287 = vpack.c.bf16 %v3228, %v3227
  %v3288 = vpack.c.bf16 %v3230, %v3229
  %v3289 = vpack.c.bf16 %v3232, %v3231
  %v3290 = vpack.c.bf16 %v3234, %v3233
  %v3291 = vpack.c.bf16 %v3236, %v3235
  %v3292 = vpack.c.bf16 %v3238, %v3237
  %v3293 = vpack.c.bf16 %v3240, %v3239
  %v3294 = vpack.c.bf16 %v3242, %v3241
  %v3295 = vpack.c.bf16 %v3244, %v3243
  %v3296 = vpack.c.bf16 %v3246, %v3245
  %v3297 = vpack.c.bf16 %v3248, %v3247
  %v3298 = vpack.c.bf16 %v3250, %v3249
  %v3299 = vpack.c.bf16 %v3252, %v3251
  %v3300 = vpack.c.bf16 %v3254, %v3253
  %v3301 = vpack.c.bf16 %v3256, %v3255
  %v3302 = vpack.c.bf16 %v3258, %v3257
  %v3303 = vpack.c.bf16 %v3260, %v3259
  %v3304 = vpack.c.bf16 %v3262, %v3261
  %v3305 = vpack.c.bf16 %v3264, %v3263
  %v3306 = vpack.c.bf16 %v3266, %v3265
  %v3307 = vpack.c.bf16 %v3268, %v3267
  %v3308 = vpack.c.bf16 %v3270, %v3269
  %v3309 = vpack.c.bf16 %v3272, %v3271
  %v3310 = vpack.c.bf16 %v3274, %v3273
  %v3311 = vpack.c.bf16 %v3276, %v3275
  %v3312 = vpack.c.bf16 %v3278, %v3277
  %v3313 = vpack.c.bf16 %v3280, %v3279
  %v3314 = vpack.c.bf16 %v3282, %v3281
  %v3315 = vld [vmem:[%s2962] sm:$0xff]
  %v3316 = vld [vmem:[%s2962 + $0x8] sm:$0xff]
  %v3317 = vld [vmem:[%s2962 + $0x18] sm:$0xff]
  %v3318 = vld [vmem:[%s2962 + $0x20] sm:$0xff]
  %v3319 = vld [vmem:[%s2962 + $0x30] sm:$0xff]
  %v3320 = vld [vmem:[%s2962 + $0x38] sm:$0xff]
  %v3321 = vld [vmem:[%s2962 + $0x48] sm:$0xff]
  %v3322 = vld [vmem:[%s2962 + $0x50] sm:$0xff]
  %v3323 = vld [vmem:[%s2962 + $0x60] sm:$0xff]
  %v3324 = vld [vmem:[%s2962 + $0x68] sm:$0xff]
  %v3325 = vld [vmem:[%s2962 + $0x78] sm:$0xff]
  %v3326 = vld [vmem:[%s2962 + $0x80] sm:$0xff]
  %v3327 = vld [vmem:[%s2962 + $0x90] sm:$0xff]
  %v3328 = vld [vmem:[%s2962 + $0x98] sm:$0xff]
  %v3329 = vld [vmem:[%s2962 + $0xa8] sm:$0xff]
  %v3330 = vld [vmem:[%s2962 + $0xb0] sm:$0xff]
  %v3331 = vld [vmem:[%s2962 + $0xc0] sm:$0xff]
  %v3332 = vld [vmem:[%s2962 + $0xc8] sm:$0xff]
  %v3333 = vld [vmem:[%s2962 + $0xd8] sm:$0xff]
  %v3334 = vld [vmem:[%s2962 + $0xe0] sm:$0xff]
  %v3335 = vld [vmem:[%s2962 + $0xf0] sm:$0xff]
  %v3336 = vld [vmem:[%s2962 + $0xf8] sm:$0xff]
  %v3337 = vld [vmem:[%s2962 + $0x108] sm:$0xff]
  %v3338 = vld [vmem:[%s2962 + $0x110] sm:$0xff]
  %v3339 = vld [vmem:[%s2962 + $0x120] sm:$0xff]
  %v3340 = vld [vmem:[%s2962 + $0x128] sm:$0xff]
  %v3341 = vld [vmem:[%s2962 + $0x138] sm:$0xff]
  %v3342 = vld [vmem:[%s2962 + $0x140] sm:$0xff]
  %v3343 = vld [vmem:[%s2962 + $0x150] sm:$0xff]
  %v3344 = vld [vmem:[%s2962 + $0x158] sm:$0xff]
  %v3345 = vld [vmem:[%s2962 + $0x168] sm:$0xff]
  %v3346 = vld [vmem:[%s2962 + $0x170] sm:$0xff]
  %v3347 = vld [vmem:[%s2962 + $0x1b0] sm:$0xff]
  %v3348 = vld [vmem:[%s2962 + $0x1b8] sm:$0xff]
  %v3349 = vld [vmem:[%s2962 + $0x1c8] sm:$0xff]
  %v3350 = vld [vmem:[%s2962 + $0x1d0] sm:$0xff]
  %v3351 = vld [vmem:[%s2962 + $0x1e0] sm:$0xff]
  %v3352 = vld [vmem:[%s2962 + $0x1e8] sm:$0xff]
  %v3353 = vld [vmem:[%s2962 + $0x1f8] sm:$0xff]
  %v3354 = vld [vmem:[%s2962 + $0x200] sm:$0xff]
  %v3355 = vld [vmem:[%s2962 + $0x210] sm:$0xff]
  %v3356 = vld [vmem:[%s2962 + $0x218] sm:$0xff]
  %v3357 = vld [vmem:[%s2962 + $0x228] sm:$0xff]
  %v3358 = vld [vmem:[%s2962 + $0x230] sm:$0xff]
  %v3359 = vld [vmem:[%s2962 + $0x240] sm:$0xff]
  %v3360 = vld [vmem:[%s2962 + $0x248] sm:$0xff]
  %v3361 = vld [vmem:[%s2962 + $0x258] sm:$0xff]
  %v3362 = vld [vmem:[%s2962 + $0x260] sm:$0xff]
  %v3363 = vld [vmem:[%s2962 + $0x270] sm:$0xff]
  %v3364 = vld [vmem:[%s2962 + $0x278] sm:$0xff]
  %v3365 = vld [vmem:[%s2962 + $0x288] sm:$0xff]
  %v3366 = vld [vmem:[%s2962 + $0x290] sm:$0xff]
  %v3367 = vld [vmem:[%s2962 + $0x2a0] sm:$0xff]
  %v3368 = vld [vmem:[%s2962 + $0x2a8] sm:$0xff]
  %v3369 = vld [vmem:[%s2962 + $0x2b8] sm:$0xff]
  %v3370 = vld [vmem:[%s2962 + $0x2c0] sm:$0xff]
  %v3371 = vld [vmem:[%s2962 + $0x2d0] sm:$0xff]
  %v3372 = vld [vmem:[%s2962 + $0x2d8] sm:$0xff]
  %v3373 = vld [vmem:[%s2962 + $0x2e8] sm:$0xff]
  %v3374 = vld [vmem:[%s2962 + $0x2f0] sm:$0xff]
  %v3375 = vld [vmem:[%s2962 + $0x300] sm:$0xff]
  %v3376 = vld [vmem:[%s2962 + $0x308] sm:$0xff]
  %v3377 = vld [vmem:[%s2962 + $0x318] sm:$0xff]
  %v3378 = vld [vmem:[%s2962 + $0x320] sm:$0xff]
  %v3379 = vpack.c.bf16 %v3316, %v3315
  %v3380 = vpack.c.bf16 %v3318, %v3317
  %v3381 = vpack.c.bf16 %v3320, %v3319
  %v3382 = vpack.c.bf16 %v3322, %v3321
  %v3383 = vpack.c.bf16 %v3324, %v3323
  %v3384 = vpack.c.bf16 %v3326, %v3325
  %v3385 = vpack.c.bf16 %v3328, %v3327
  %v3386 = vpack.c.bf16 %v3330, %v3329
  %v3387 = vpack.c.bf16 %v3332, %v3331
  %v3388 = vpack.c.bf16 %v3334, %v3333
  %v3389 = vpack.c.bf16 %v3336, %v3335
  %v3390 = vpack.c.bf16 %v3338, %v3337
  %v3391 = vpack.c.bf16 %v3340, %v3339
  %v3392 = vpack.c.bf16 %v3342, %v3341
  %v3393 = vpack.c.bf16 %v3344, %v3343
  %v3394 = vpack.c.bf16 %v3346, %v3345
  %v3395 = vpack.c.bf16 %v3348, %v3347
  %v3396 = vpack.c.bf16 %v3350, %v3349
  %v3397 = vpack.c.bf16 %v3352, %v3351
  %v3398 = vpack.c.bf16 %v3354, %v3353
  %v3399 = vpack.c.bf16 %v3356, %v3355
  %v3400 = vpack.c.bf16 %v3358, %v3357
  %v3401 = vpack.c.bf16 %v3360, %v3359
  %v3402 = vpack.c.bf16 %v3362, %v3361
  %v3403 = vpack.c.bf16 %v3364, %v3363
  %v3404 = vpack.c.bf16 %v3366, %v3365
  %v3405 = vpack.c.bf16 %v3368, %v3367
  %v3406 = vpack.c.bf16 %v3370, %v3369
  %v3407 = vpack.c.bf16 %v3372, %v3371
  %v3408 = vpack.c.bf16 %v3374, %v3373
  %v3409 = vpack.c.bf16 %v3376, %v3375
  %v3410 = vpack.c.bf16 %v3378, %v3377
  %v3411 = vld [vmem:[%s2962 + $0x1] sm:$0xff]
  %v3412 = vld [vmem:[%s2962 + $0x9] sm:$0xff]
  %v3413 = vld [vmem:[%s2962 + $0x19] sm:$0xff]
  %v3414 = vld [vmem:[%s2962 + $0x21] sm:$0xff]
  %v3415 = vld [vmem:[%s2962 + $0x31] sm:$0xff]
  %v3416 = vld [vmem:[%s2962 + $0x39] sm:$0xff]
  %v3417 = vld [vmem:[%s2962 + $0x49] sm:$0xff]
  %v3418 = vld [vmem:[%s2962 + $0x51] sm:$0xff]
  %v3419 = vld [vmem:[%s2962 + $0x61] sm:$0xff]
  %v3420 = vld [vmem:[%s2962 + $0x69] sm:$0xff]
  %v3421 = vld [vmem:[%s2962 + $0x79] sm:$0xff]
  %v3422 = vld [vmem:[%s2962 + $0x81] sm:$0xff]
  %v3423 = vld [vmem:[%s2962 + $0x91] sm:$0xff]
  %v3424 = vld [vmem:[%s2962 + $0x99] sm:$0xff]
  %v3425 = vld [vmem:[%s2962 + $0xa9] sm:$0xff]
  %v3426 = vld [vmem:[%s2962 + $0xb1] sm:$0xff]
  %v3427 = vld [vmem:[%s2962 + $0xc1] sm:$0xff]
  %v3428 = vld [vmem:[%s2962 + $0xc9] sm:$0xff]
  %v3429 = vld [vmem:[%s2962 + $0xd9] sm:$0xff]
  %v3430 = vld [vmem:[%s2962 + $0xe1] sm:$0xff]
  %v3431 = vld [vmem:[%s2962 + $0xf1] sm:$0xff]
  %v3432 = vld [vmem:[%s2962 + $0xf9] sm:$0xff]
  %v3433 = vld [vmem:[%s2962 + $0x109] sm:$0xff]
  %v3434 = vld [vmem:[%s2962 + $0x111] sm:$0xff]
  %v3435 = vld [vmem:[%s2962 + $0x121] sm:$0xff]
  %v3436 = vld [vmem:[%s2962 + $0x129] sm:$0xff]
  %v3437 = vld [vmem:[%s2962 + $0x139] sm:$0xff]
  %v3438 = vld [vmem:[%s2962 + $0x141] sm:$0xff]
  %v3439 = vld [vmem:[%s2962 + $0x151] sm:$0xff]
  %v3440 = vld [vmem:[%s2962 + $0x159] sm:$0xff]
  %v3441 = vld [vmem:[%s2962 + $0x169] sm:$0xff]
  %v3442 = vld [vmem:[%s2962 + $0x171] sm:$0xff]
  %v3443 = vld [vmem:[%s2962 + $0x1b1] sm:$0xff]
  %v3444 = vld [vmem:[%s2962 + $0x1b9] sm:$0xff]
  %v3445 = vld [vmem:[%s2962 + $0x1c9] sm:$0xff]
  %v3446 = vld [vmem:[%s2962 + $0x1d1] sm:$0xff]
  %v3447 = vld [vmem:[%s2962 + $0x1e1] sm:$0xff]
  %v3448 = vld [vmem:[%s2962 + $0x1e9] sm:$0xff]
  %v3449 = vld [vmem:[%s2962 + $0x1f9] sm:$0xff]
  %v3450 = vld [vmem:[%s2962 + $0x201] sm:$0xff]
  %v3451 = vld [vmem:[%s2962 + $0x211] sm:$0xff]
  %v3452 = vld [vmem:[%s2962 + $0x219] sm:$0xff]
  %v3453 = vld [vmem:[%s2962 + $0x229] sm:$0xff]
  %v3454 = vld [vmem:[%s2962 + $0x231] sm:$0xff]
  %v3455 = vld [vmem:[%s2962 + $0x241] sm:$0xff]
  %v3456 = vld [vmem:[%s2962 + $0x249] sm:$0xff]
  %v3457 = vld [vmem:[%s2962 + $0x259] sm:$0xff]
  %v3458 = vld [vmem:[%s2962 + $0x261] sm:$0xff]
  %v3459 = vld [vmem:[%s2962 + $0x271] sm:$0xff]
  %v3460 = vld [vmem:[%s2962 + $0x279] sm:$0xff]
  %v3461 = vld [vmem:[%s2962 + $0x289] sm:$0xff]
  %v3462 = vld [vmem:[%s2962 + $0x291] sm:$0xff]
  %v3463 = vld [vmem:[%s2962 + $0x2a1] sm:$0xff]
  %v3464 = vld [vmem:[%s2962 + $0x2a9] sm:$0xff]
  %v3465 = vld [vmem:[%s2962 + $0x2b9] sm:$0xff]
  %v3466 = vld [vmem:[%s2962 + $0x2c1] sm:$0xff]
  %v3467 = vld [vmem:[%s2962 + $0x2d1] sm:$0xff]
  %v3468 = vld [vmem:[%s2962 + $0x2d9] sm:$0xff]
  %v3469 = vld [vmem:[%s2962 + $0x2e9] sm:$0xff]
  %v3470 = vld [vmem:[%s2962 + $0x2f1] sm:$0xff]
  %v3471 = vld [vmem:[%s2962 + $0x301] sm:$0xff]
  %v3472 = vld [vmem:[%s2962 + $0x309] sm:$0xff]
  %v3473 = vld [vmem:[%s2962 + $0x319] sm:$0xff]
  %v3474 = vld [vmem:[%s2962 + $0x321] sm:$0xff]
  %v3475 = vpack.c.bf16 %v3412, %v3411
  %v3476 = vpack.c.bf16 %v3414, %v3413
  %v3477 = vpack.c.bf16 %v3416, %v3415
  %v3478 = vpack.c.bf16 %v3418, %v3417
  %v3479 = vpack.c.bf16 %v3420, %v3419
  %v3480 = vpack.c.bf16 %v3422, %v3421
  %v3481 = vpack.c.bf16 %v3424, %v3423
  %v3482 = vpack.c.bf16 %v3426, %v3425
  %v3483 = vpack.c.bf16 %v3428, %v3427
  %v3484 = vpack.c.bf16 %v3430, %v3429
  %v3485 = vpack.c.bf16 %v3432, %v3431
  %v3486 = vpack.c.bf16 %v3434, %v3433
  %v3487 = vpack.c.bf16 %v3436, %v3435
  %v3488 = vpack.c.bf16 %v3438, %v3437
  %v3489 = vpack.c.bf16 %v3440, %v3439
  %v3490 = vpack.c.bf16 %v3442, %v3441
  %v3491 = vpack.c.bf16 %v3444, %v3443
  %v3492 = vpack.c.bf16 %v3446, %v3445
  %v3493 = vpack.c.bf16 %v3448, %v3447
  %v3494 = vpack.c.bf16 %v3450, %v3449
  %v3495 = vpack.c.bf16 %v3452, %v3451
  %v3496 = vpack.c.bf16 %v3454, %v3453
  %v3497 = vpack.c.bf16 %v3456, %v3455
  %v3498 = vpack.c.bf16 %v3458, %v3457
  %v3499 = vpack.c.bf16 %v3460, %v3459
  %v3500 = vpack.c.bf16 %v3462, %v3461
  %v3501 = vpack.c.bf16 %v3464, %v3463
  %v3502 = vpack.c.bf16 %v3466, %v3465
  %v3503 = vpack.c.bf16 %v3468, %v3467
  %v3504 = vpack.c.bf16 %v3470, %v3469
  %v3505 = vpack.c.bf16 %v3472, %v3471
  %v3506 = vpack.c.bf16 %v3474, %v3473
  %v3507 = vld [vmem:[%s2962 + $0x2] sm:$0xff]
  %v3508 = vld [vmem:[%s2962 + $0xa] sm:$0xff]
  %v3509 = vld [vmem:[%s2962 + $0x1a] sm:$0xff]
  %v3510 = vld [vmem:[%s2962 + $0x22] sm:$0xff]
  %v3511 = vld [vmem:[%s2962 + $0x32] sm:$0xff]
  %v3512 = vld [vmem:[%s2962 + $0x3a] sm:$0xff]
  %v3513 = vld [vmem:[%s2962 + $0x4a] sm:$0xff]
  %v3514 = vld [vmem:[%s2962 + $0x52] sm:$0xff]
  %v3515 = vld [vmem:[%s2962 + $0x62] sm:$0xff]
  %v3516 = vld [vmem:[%s2962 + $0x6a] sm:$0xff]
  %v3517 = vld [vmem:[%s2962 + $0x7a] sm:$0xff]
  %v3518 = vld [vmem:[%s2962 + $0x82] sm:$0xff]
  %v3519 = vld [vmem:[%s2962 + $0x92] sm:$0xff]
  %v3520 = vld [vmem:[%s2962 + $0x9a] sm:$0xff]
  %v3521 = vld [vmem:[%s2962 + $0xaa] sm:$0xff]
  %v3522 = vld [vmem:[%s2962 + $0xb2] sm:$0xff]
  %v3523 = vld [vmem:[%s2962 + $0xc2] sm:$0xff]
  %v3524 = vld [vmem:[%s2962 + $0xca] sm:$0xff]
  %v3525 = vld [vmem:[%s2962 + $0xda] sm:$0xff]
  %v3526 = vld [vmem:[%s2962 + $0xe2] sm:$0xff]
  %v3527 = vld [vmem:[%s2962 + $0xf2] sm:$0xff]
  %v3528 = vld [vmem:[%s2962 + $0xfa] sm:$0xff]
  %v3529 = vld [vmem:[%s2962 + $0x10a] sm:$0xff]
  %v3530 = vld [vmem:[%s2962 + $0x112] sm:$0xff]
  %v3531 = vld [vmem:[%s2962 + $0x122] sm:$0xff]
  %v3532 = vld [vmem:[%s2962 + $0x12a] sm:$0xff]
  %v3533 = vld [vmem:[%s2962 + $0x13a] sm:$0xff]
  %v3534 = vld [vmem:[%s2962 + $0x142] sm:$0xff]
  %v3535 = vld [vmem:[%s2962 + $0x152] sm:$0xff]
  %v3536 = vld [vmem:[%s2962 + $0x15a] sm:$0xff]
  %v3537 = vld [vmem:[%s2962 + $0x16a] sm:$0xff]
  %v3538 = vld [vmem:[%s2962 + $0x172] sm:$0xff]
  %v3539 = vld [vmem:[%s2962 + $0x1b2] sm:$0xff]
  %v3540 = vld [vmem:[%s2962 + $0x1ba] sm:$0xff]
  %v3541 = vld [vmem:[%s2962 + $0x1ca] sm:$0xff]
  %v3542 = vld [vmem:[%s2962 + $0x1d2] sm:$0xff]
  %v3543 = vld [vmem:[%s2962 + $0x1e2] sm:$0xff]
  %v3544 = vld [vmem:[%s2962 + $0x1ea] sm:$0xff]
  %v3545 = vld [vmem:[%s2962 + $0x1fa] sm:$0xff]
  %v3546 = vld [vmem:[%s2962 + $0x202] sm:$0xff]
  %v3547 = vld [vmem:[%s2962 + $0x212] sm:$0xff]
  %v3548 = vld [vmem:[%s2962 + $0x21a] sm:$0xff]
  %v3549 = vld [vmem:[%s2962 + $0x22a] sm:$0xff]
  %v3550 = vld [vmem:[%s2962 + $0x232] sm:$0xff]
  %v3551 = vld [vmem:[%s2962 + $0x242] sm:$0xff]
  %v3552 = vld [vmem:[%s2962 + $0x24a] sm:$0xff]
  %v3553 = vld [vmem:[%s2962 + $0x25a] sm:$0xff]
  %v3554 = vld [vmem:[%s2962 + $0x262] sm:$0xff]
  %v3555 = vld [vmem:[%s2962 + $0x272] sm:$0xff]
  %v3556 = vld [vmem:[%s2962 + $0x27a] sm:$0xff]
  %v3557 = vld [vmem:[%s2962 + $0x28a] sm:$0xff]
  %v3558 = vld [vmem:[%s2962 + $0x292] sm:$0xff]
  %v3559 = vld [vmem:[%s2962 + $0x2a2] sm:$0xff]
  %v3560 = vld [vmem:[%s2962 + $0x2aa] sm:$0xff]
  %v3561 = vld [vmem:[%s2962 + $0x2ba] sm:$0xff]
  %v3562 = vld [vmem:[%s2962 + $0x2c2] sm:$0xff]
  %v3563 = vld [vmem:[%s2962 + $0x2d2] sm:$0xff]
  %v3564 = vld [vmem:[%s2962 + $0x2da] sm:$0xff]
  %v3565 = vld [vmem:[%s2962 + $0x2ea] sm:$0xff]
  %v3566 = vld [vmem:[%s2962 + $0x2f2] sm:$0xff]
  %v3567 = vld [vmem:[%s2962 + $0x302] sm:$0xff]
  %v3568 = vld [vmem:[%s2962 + $0x30a] sm:$0xff]
  %v3569 = vld [vmem:[%s2962 + $0x31a] sm:$0xff]
  %v3570 = vld [vmem:[%s2962 + $0x322] sm:$0xff]
  %v3571 = vpack.c.bf16 %v3508, %v3507
  %v3572 = vpack.c.bf16 %v3510, %v3509
  %v3573 = vpack.c.bf16 %v3512, %v3511
  %v3574 = vpack.c.bf16 %v3514, %v3513
  %v3575 = vpack.c.bf16 %v3516, %v3515
  %v3576 = vpack.c.bf16 %v3518, %v3517
  %v3577 = vpack.c.bf16 %v3520, %v3519
  %v3578 = vpack.c.bf16 %v3522, %v3521
  %v3579 = vpack.c.bf16 %v3524, %v3523
  %v3580 = vpack.c.bf16 %v3526, %v3525
  %v3581 = vpack.c.bf16 %v3528, %v3527
  %v3582 = vpack.c.bf16 %v3530, %v3529
  %v3583 = vpack.c.bf16 %v3532, %v3531
  %v3584 = vpack.c.bf16 %v3534, %v3533
  %v3585 = vpack.c.bf16 %v3536, %v3535
  %v3586 = vpack.c.bf16 %v3538, %v3537
  %v3587 = vpack.c.bf16 %v3540, %v3539
  %v3588 = vpack.c.bf16 %v3542, %v3541
  %v3589 = vpack.c.bf16 %v3544, %v3543
  %v3590 = vpack.c.bf16 %v3546, %v3545
  %v3591 = vpack.c.bf16 %v3548, %v3547
  %v3592 = vpack.c.bf16 %v3550, %v3549
  %v3593 = vpack.c.bf16 %v3552, %v3551
  %v3594 = vpack.c.bf16 %v3554, %v3553
  %v3595 = vpack.c.bf16 %v3556, %v3555
  %v3596 = vpack.c.bf16 %v3558, %v3557
  %v3597 = vpack.c.bf16 %v3560, %v3559
  %v3598 = vpack.c.bf16 %v3562, %v3561
  %v3599 = vpack.c.bf16 %v3564, %v3563
  %v3600 = vpack.c.bf16 %v3566, %v3565
  %v3601 = vpack.c.bf16 %v3568, %v3567
  %v3602 = vpack.c.bf16 %v3570, %v3569
  %s3603 = scalar_lea.vmem [#allocation3], 48
  %v3604 = vld [vmem:[%s3603] sm:$0xff]
  %v3605 = vld [vmem:[%s3603 + $0x8] sm:$0xff]
  %v3606 = vld [vmem:[%s3603 + $0x18] sm:$0xff]
  %v3607 = vld [vmem:[%s3603 + $0x20] sm:$0xff]
  %v3608 = vld [vmem:[%s3603 + $0x30] sm:$0xff]
  %v3609 = vld [vmem:[%s3603 + $0x38] sm:$0xff]
  %v3610 = vld [vmem:[%s3603 + $0x48] sm:$0xff]
  %v3611 = vld [vmem:[%s3603 + $0x50] sm:$0xff]
  %v3612 = vld [vmem:[%s3603 + $0x60] sm:$0xff]
  %v3613 = vld [vmem:[%s3603 + $0x68] sm:$0xff]
  %v3614 = vld [vmem:[%s3603 + $0x78] sm:$0xff]
  %v3615 = vld [vmem:[%s3603 + $0x80] sm:$0xff]
  %v3616 = vld [vmem:[%s3603 + $0x90] sm:$0xff]
  %v3617 = vld [vmem:[%s3603 + $0x98] sm:$0xff]
  %v3618 = vld [vmem:[%s3603 + $0xa8] sm:$0xff]
  %v3619 = vld [vmem:[%s3603 + $0xb0] sm:$0xff]
  %v3620 = vld [vmem:[%s3603 + $0xc0] sm:$0xff]
  %v3621 = vld [vmem:[%s3603 + $0xc8] sm:$0xff]
  %v3622 = vld [vmem:[%s3603 + $0xd8] sm:$0xff]
  %v3623 = vld [vmem:[%s3603 + $0xe0] sm:$0xff]
  %v3624 = vld [vmem:[%s3603 + $0xf0] sm:$0xff]
  %v3625 = vld [vmem:[%s3603 + $0xf8] sm:$0xff]
  %v3626 = vld [vmem:[%s3603 + $0x108] sm:$0xff]
  %v3627 = vld [vmem:[%s3603 + $0x110] sm:$0xff]
  %v3628 = vld [vmem:[%s3603 + $0x120] sm:$0xff]
  %v3629 = vld [vmem:[%s3603 + $0x128] sm:$0xff]
  %v3630 = vld [vmem:[%s3603 + $0x138] sm:$0xff]
  %v3631 = vld [vmem:[%s3603 + $0x140] sm:$0xff]
  %v3632 = vld [vmem:[%s3603 + $0x150] sm:$0xff]
  %v3633 = vld [vmem:[%s3603 + $0x158] sm:$0xff]
  %v3634 = vld [vmem:[%s3603 + $0x168] sm:$0xff]
  %v3635 = vld [vmem:[%s3603 + $0x170] sm:$0xff]
  %v3636 = vld [vmem:[%s3603 + $0x1b0] sm:$0xff]
  %v3637 = vld [vmem:[%s3603 + $0x1b8] sm:$0xff]
  %v3638 = vld [vmem:[%s3603 + $0x1c8] sm:$0xff]
  %v3639 = vld [vmem:[%s3603 + $0x1d0] sm:$0xff]
  %v3640 = vld [vmem:[%s3603 + $0x1e0] sm:$0xff]
  %v3641 = vld [vmem:[%s3603 + $0x1e8] sm:$0xff]
  %v3642 = vld [vmem:[%s3603 + $0x1f8] sm:$0xff]
  %v3643 = vld [vmem:[%s3603 + $0x200] sm:$0xff]
  %v3644 = vld [vmem:[%s3603 + $0x210] sm:$0xff]
  %v3645 = vld [vmem:[%s3603 + $0x218] sm:$0xff]
  %v3646 = vld [vmem:[%s3603 + $0x228] sm:$0xff]
  %v3647 = vld [vmem:[%s3603 + $0x230] sm:$0xff]
  %v3648 = vld [vmem:[%s3603 + $0x240] sm:$0xff]
  %v3649 = vld [vmem:[%s3603 + $0x248] sm:$0xff]
  %v3650 = vld [vmem:[%s3603 + $0x258] sm:$0xff]
  %v3651 = vld [vmem:[%s3603 + $0x260] sm:$0xff]
  %v3652 = vld [vmem:[%s3603 + $0x270] sm:$0xff]
  %v3653 = vld [vmem:[%s3603 + $0x278] sm:$0xff]
  %v3654 = vld [vmem:[%s3603 + $0x288] sm:$0xff]
  %v3655 = vld [vmem:[%s3603 + $0x290] sm:$0xff]
  %v3656 = vld [vmem:[%s3603 + $0x2a0] sm:$0xff]
  %v3657 = vld [vmem:[%s3603 + $0x2a8] sm:$0xff]
  %v3658 = vld [vmem:[%s3603 + $0x2b8] sm:$0xff]
  %v3659 = vld [vmem:[%s3603 + $0x2c0] sm:$0xff]
  %v3660 = vld [vmem:[%s3603 + $0x2d0] sm:$0xff]
  %v3661 = vld [vmem:[%s3603 + $0x2d8] sm:$0xff]
  %v3662 = vld [vmem:[%s3603 + $0x2e8] sm:$0xff]
  %v3663 = vld [vmem:[%s3603 + $0x2f0] sm:$0xff]
  %v3664 = vld [vmem:[%s3603 + $0x300] sm:$0xff]
  %v3665 = vld [vmem:[%s3603 + $0x308] sm:$0xff]
  %v3666 = vld [vmem:[%s3603 + $0x318] sm:$0xff]
  %v3667 = vld [vmem:[%s3603 + $0x320] sm:$0xff]
  %v3668 = vpack.c.bf16 %v3605, %v3604
  %v3669 = vpack.c.bf16 %v3607, %v3606
  %v3670 = vpack.c.bf16 %v3609, %v3608
  %v3671 = vpack.c.bf16 %v3611, %v3610
  %v3672 = vpack.c.bf16 %v3613, %v3612
  %v3673 = vpack.c.bf16 %v3615, %v3614
  %v3674 = vpack.c.bf16 %v3617, %v3616
  %v3675 = vpack.c.bf16 %v3619, %v3618
  %v3676 = vpack.c.bf16 %v3621, %v3620
  %v3677 = vpack.c.bf16 %v3623, %v3622
  %v3678 = vpack.c.bf16 %v3625, %v3624
  %v3679 = vpack.c.bf16 %v3627, %v3626
  %v3680 = vpack.c.bf16 %v3629, %v3628
  %v3681 = vpack.c.bf16 %v3631, %v3630
  %v3682 = vpack.c.bf16 %v3633, %v3632
  %v3683 = vpack.c.bf16 %v3635, %v3634
  %v3684 = vpack.c.bf16 %v3637, %v3636
  %v3685 = vpack.c.bf16 %v3639, %v3638
  %v3686 = vpack.c.bf16 %v3641, %v3640
  %v3687 = vpack.c.bf16 %v3643, %v3642
  %v3688 = vpack.c.bf16 %v3645, %v3644
  %v3689 = vpack.c.bf16 %v3647, %v3646
  %v3690 = vpack.c.bf16 %v3649, %v3648
  %v3691 = vpack.c.bf16 %v3651, %v3650
  %v3692 = vpack.c.bf16 %v3653, %v3652
  %v3693 = vpack.c.bf16 %v3655, %v3654
  %v3694 = vpack.c.bf16 %v3657, %v3656
  %v3695 = vpack.c.bf16 %v3659, %v3658
  %v3696 = vpack.c.bf16 %v3661, %v3660
  %v3697 = vpack.c.bf16 %v3663, %v3662
  %v3698 = vpack.c.bf16 %v3665, %v3664
  %v3699 = vpack.c.bf16 %v3667, %v3666
  %v3700 = vld [vmem:[%s3603 + $0x1] sm:$0xff]
  %v3701 = vld [vmem:[%s3603 + $0x9] sm:$0xff]
  %v3702 = vld [vmem:[%s3603 + $0x19] sm:$0xff]
  %v3703 = vld [vmem:[%s3603 + $0x21] sm:$0xff]
  %v3704 = vld [vmem:[%s3603 + $0x31] sm:$0xff]
  %v3705 = vld [vmem:[%s3603 + $0x39] sm:$0xff]
  %v3706 = vld [vmem:[%s3603 + $0x49] sm:$0xff]
  %v3707 = vld [vmem:[%s3603 + $0x51] sm:$0xff]
  %v3708 = vld [vmem:[%s3603 + $0x61] sm:$0xff]
  %v3709 = vld [vmem:[%s3603 + $0x69] sm:$0xff]
  %v3710 = vld [vmem:[%s3603 + $0x79] sm:$0xff]
  %v3711 = vld [vmem:[%s3603 + $0x81] sm:$0xff]
  %v3712 = vld [vmem:[%s3603 + $0x91] sm:$0xff]
  %v3713 = vld [vmem:[%s3603 + $0x99] sm:$0xff]
  %v3714 = vld [vmem:[%s3603 + $0xa9] sm:$0xff]
  %v3715 = vld [vmem:[%s3603 + $0xb1] sm:$0xff]
  %v3716 = vld [vmem:[%s3603 + $0xc1] sm:$0xff]
  %v3717 = vld [vmem:[%s3603 + $0xc9] sm:$0xff]
  %v3718 = vld [vmem:[%s3603 + $0xd9] sm:$0xff]
  %v3719 = vld [vmem:[%s3603 + $0xe1] sm:$0xff]
  %v3720 = vld [vmem:[%s3603 + $0xf1] sm:$0xff]
  %v3721 = vld [vmem:[%s3603 + $0xf9] sm:$0xff]
  %v3722 = vld [vmem:[%s3603 + $0x109] sm:$0xff]
  %v3723 = vld [vmem:[%s3603 + $0x111] sm:$0xff]
  %v3724 = vld [vmem:[%s3603 + $0x121] sm:$0xff]
  %v3725 = vld [vmem:[%s3603 + $0x129] sm:$0xff]
  %v3726 = vld [vmem:[%s3603 + $0x139] sm:$0xff]
  %v3727 = vld [vmem:[%s3603 + $0x141] sm:$0xff]
  %v3728 = vld [vmem:[%s3603 + $0x151] sm:$0xff]
  %v3729 = vld [vmem:[%s3603 + $0x159] sm:$0xff]
  %v3730 = vld [vmem:[%s3603 + $0x169] sm:$0xff]
  %v3731 = vld [vmem:[%s3603 + $0x171] sm:$0xff]
  %v3732 = vld [vmem:[%s3603 + $0x1b1] sm:$0xff]
  %v3733 = vld [vmem:[%s3603 + $0x1b9] sm:$0xff]
  %v3734 = vld [vmem:[%s3603 + $0x1c9] sm:$0xff]
  %v3735 = vld [vmem:[%s3603 + $0x1d1] sm:$0xff]
  %v3736 = vld [vmem:[%s3603 + $0x1e1] sm:$0xff]
  %v3737 = vld [vmem:[%s3603 + $0x1e9] sm:$0xff]
  %v3738 = vld [vmem:[%s3603 + $0x1f9] sm:$0xff]
  %v3739 = vld [vmem:[%s3603 + $0x201] sm:$0xff]
  %v3740 = vld [vmem:[%s3603 + $0x211] sm:$0xff]
  %v3741 = vld [vmem:[%s3603 + $0x219] sm:$0xff]
  %v3742 = vld [vmem:[%s3603 + $0x229] sm:$0xff]
  %v3743 = vld [vmem:[%s3603 + $0x231] sm:$0xff]
  %v3744 = vld [vmem:[%s3603 + $0x241] sm:$0xff]
  %v3745 = vld [vmem:[%s3603 + $0x249] sm:$0xff]
  %v3746 = vld [vmem:[%s3603 + $0x259] sm:$0xff]
  %v3747 = vld [vmem:[%s3603 + $0x261] sm:$0xff]
  %v3748 = vld [vmem:[%s3603 + $0x271] sm:$0xff]
  %v3749 = vld [vmem:[%s3603 + $0x279] sm:$0xff]
  %v3750 = vld [vmem:[%s3603 + $0x289] sm:$0xff]
  %v3751 = vld [vmem:[%s3603 + $0x291] sm:$0xff]
  %v3752 = vld [vmem:[%s3603 + $0x2a1] sm:$0xff]
  %v3753 = vld [vmem:[%s3603 + $0x2a9] sm:$0xff]
  %v3754 = vld [vmem:[%s3603 + $0x2b9] sm:$0xff]
  %v3755 = vld [vmem:[%s3603 + $0x2c1] sm:$0xff]
  %v3756 = vld [vmem:[%s3603 + $0x2d1] sm:$0xff]
  %v3757 = vld [vmem:[%s3603 + $0x2d9] sm:$0xff]
  %v3758 = vld [vmem:[%s3603 + $0x2e9] sm:$0xff]
  %v3759 = vld [vmem:[%s3603 + $0x2f1] sm:$0xff]
  %v3760 = vld [vmem:[%s3603 + $0x301] sm:$0xff]
  %v3761 = vld [vmem:[%s3603 + $0x309] sm:$0xff]
  %v3762 = vld [vmem:[%s3603 + $0x319] sm:$0xff]
  %v3763 = vld [vmem:[%s3603 + $0x321] sm:$0xff]
  %v3764 = vpack.c.bf16 %v3701, %v3700
  %v3765 = vpack.c.bf16 %v3703, %v3702
  %v3766 = vpack.c.bf16 %v3705, %v3704
  %v3767 = vpack.c.bf16 %v3707, %v3706
  %v3768 = vpack.c.bf16 %v3709, %v3708
  %v3769 = vpack.c.bf16 %v3711, %v3710
  %v3770 = vpack.c.bf16 %v3713, %v3712
  %v3771 = vpack.c.bf16 %v3715, %v3714
  %v3772 = vpack.c.bf16 %v3717, %v3716
  %v3773 = vpack.c.bf16 %v3719, %v3718
  %v3774 = vpack.c.bf16 %v3721, %v3720
  %v3775 = vpack.c.bf16 %v3723, %v3722
  %v3776 = vpack.c.bf16 %v3725, %v3724
  %v3777 = vpack.c.bf16 %v3727, %v3726
  %v3778 = vpack.c.bf16 %v3729, %v3728
  %v3779 = vpack.c.bf16 %v3731, %v3730
  %v3780 = vpack.c.bf16 %v3733, %v3732
  %v3781 = vpack.c.bf16 %v3735, %v3734
  %v3782 = vpack.c.bf16 %v3737, %v3736
  %v3783 = vpack.c.bf16 %v3739, %v3738
  %v3784 = vpack.c.bf16 %v3741, %v3740
  %v3785 = vpack.c.bf16 %v3743, %v3742
  %v3786 = vpack.c.bf16 %v3745, %v3744
  %v3787 = vpack.c.bf16 %v3747, %v3746
  %v3788 = vpack.c.bf16 %v3749, %v3748
  %v3789 = vpack.c.bf16 %v3751, %v3750
  %v3790 = vpack.c.bf16 %v3753, %v3752
  %v3791 = vpack.c.bf16 %v3755, %v3754
  %v3792 = vpack.c.bf16 %v3757, %v3756
  %v3793 = vpack.c.bf16 %v3759, %v3758
  %v3794 = vpack.c.bf16 %v3761, %v3760
  %v3795 = vpack.c.bf16 %v3763, %v3762
  %v3796 = vld [vmem:[%s3603 + $0x2] sm:$0xff]
  %v3797 = vld [vmem:[%s3603 + $0xa] sm:$0xff]
  %v3798 = vld [vmem:[%s3603 + $0x1a] sm:$0xff]
  %v3799 = vld [vmem:[%s3603 + $0x22] sm:$0xff]
  %v3800 = vld [vmem:[%s3603 + $0x32] sm:$0xff]
  %v3801 = vld [vmem:[%s3603 + $0x3a] sm:$0xff]
  %v3802 = vld [vmem:[%s3603 + $0x4a] sm:$0xff]
  %v3803 = vld [vmem:[%s3603 + $0x52] sm:$0xff]
  %v3804 = vld [vmem:[%s3603 + $0x62] sm:$0xff]
  %v3805 = vld [vmem:[%s3603 + $0x6a] sm:$0xff]
  %v3806 = vld [vmem:[%s3603 + $0x7a] sm:$0xff]
  %v3807 = vld [vmem:[%s3603 + $0x82] sm:$0xff]
  %v3808 = vld [vmem:[%s3603 + $0x92] sm:$0xff]
  %v3809 = vld [vmem:[%s3603 + $0x9a] sm:$0xff]
  %v3810 = vld [vmem:[%s3603 + $0xaa] sm:$0xff]
  %v3811 = vld [vmem:[%s3603 + $0xb2] sm:$0xff]
  %v3812 = vld [vmem:[%s3603 + $0xc2] sm:$0xff]
  %v3813 = vld [vmem:[%s3603 + $0xca] sm:$0xff]
  %v3814 = vld [vmem:[%s3603 + $0xda] sm:$0xff]
  %v3815 = vld [vmem:[%s3603 + $0xe2] sm:$0xff]
  %v3816 = vld [vmem:[%s3603 + $0xf2] sm:$0xff]
  %v3817 = vld [vmem:[%s3603 + $0xfa] sm:$0xff]
  %v3818 = vld [vmem:[%s3603 + $0x10a] sm:$0xff]
  %v3819 = vld [vmem:[%s3603 + $0x112] sm:$0xff]
  %v3820 = vld [vmem:[%s3603 + $0x122] sm:$0xff]
  %v3821 = vld [vmem:[%s3603 + $0x12a] sm:$0xff]
  %v3822 = vld [vmem:[%s3603 + $0x13a] sm:$0xff]
  %v3823 = vld [vmem:[%s3603 + $0x142] sm:$0xff]
  %v3824 = vld [vmem:[%s3603 + $0x152] sm:$0xff]
  %v3825 = vld [vmem:[%s3603 + $0x15a] sm:$0xff]
  %v3826 = vld [vmem:[%s3603 + $0x16a] sm:$0xff]
  %v3827 = vld [vmem:[%s3603 + $0x172] sm:$0xff]
  %v3828 = vld [vmem:[%s3603 + $0x1b2] sm:$0xff]
  %v3829 = vld [vmem:[%s3603 + $0x1ba] sm:$0xff]
  %v3830 = vld [vmem:[%s3603 + $0x1ca] sm:$0xff]
  %v3831 = vld [vmem:[%s3603 + $0x1d2] sm:$0xff]
  %v3832 = vld [vmem:[%s3603 + $0x1e2] sm:$0xff]
  %v3833 = vld [vmem:[%s3603 + $0x1ea] sm:$0xff]
  %v3834 = vld [vmem:[%s3603 + $0x1fa] sm:$0xff]
  %v3835 = vld [vmem:[%s3603 + $0x202] sm:$0xff]
  %v3836 = vld [vmem:[%s3603 + $0x212] sm:$0xff]
  %v3837 = vld [vmem:[%s3603 + $0x21a] sm:$0xff]
  %v3838 = vld [vmem:[%s3603 + $0x22a] sm:$0xff]
  %v3839 = vld [vmem:[%s3603 + $0x232] sm:$0xff]
  %v3840 = vld [vmem:[%s3603 + $0x242] sm:$0xff]
  %v3841 = vld [vmem:[%s3603 + $0x24a] sm:$0xff]
  %v3842 = vld [vmem:[%s3603 + $0x25a] sm:$0xff]
  %v3843 = vld [vmem:[%s3603 + $0x262] sm:$0xff]
  %v3844 = vld [vmem:[%s3603 + $0x272] sm:$0xff]
  %v3845 = vld [vmem:[%s3603 + $0x27a] sm:$0xff]
  %v3846 = vld [vmem:[%s3603 + $0x28a] sm:$0xff]
  %v3847 = vld [vmem:[%s3603 + $0x292] sm:$0xff]
  %v3848 = vld [vmem:[%s3603 + $0x2a2] sm:$0xff]
  %v3849 = vld [vmem:[%s3603 + $0x2aa] sm:$0xff]
  %v3850 = vld [vmem:[%s3603 + $0x2ba] sm:$0xff]
  %v3851 = vld [vmem:[%s3603 + $0x2c2] sm:$0xff]
  %v3852 = vld [vmem:[%s3603 + $0x2d2] sm:$0xff]
  %v3853 = vld [vmem:[%s3603 + $0x2da] sm:$0xff]
  %v3854 = vld [vmem:[%s3603 + $0x2ea] sm:$0xff]
  %v3855 = vld [vmem:[%s3603 + $0x2f2] sm:$0xff]
  %v3856 = vld [vmem:[%s3603 + $0x302] sm:$0xff]
  %v3857 = vld [vmem:[%s3603 + $0x30a] sm:$0xff]
  %v3858 = vld [vmem:[%s3603 + $0x31a] sm:$0xff]
  %v3859 = vld [vmem:[%s3603 + $0x322] sm:$0xff]
  %v3860 = vpack.c.bf16 %v3797, %v3796
  %v3861 = vpack.c.bf16 %v3799, %v3798
  %v3862 = vpack.c.bf16 %v3801, %v3800
  %v3863 = vpack.c.bf16 %v3803, %v3802
  %v3864 = vpack.c.bf16 %v3805, %v3804
  %v3865 = vpack.c.bf16 %v3807, %v3806
  %v3866 = vpack.c.bf16 %v3809, %v3808
  %v3867 = vpack.c.bf16 %v3811, %v3810
  %v3868 = vpack.c.bf16 %v3813, %v3812
  %v3869 = vpack.c.bf16 %v3815, %v3814
  %v3870 = vpack.c.bf16 %v3817, %v3816
  %v3871 = vpack.c.bf16 %v3819, %v3818
  %v3872 = vpack.c.bf16 %v3821, %v3820
  %v3873 = vpack.c.bf16 %v3823, %v3822
  %v3874 = vpack.c.bf16 %v3825, %v3824
  %v3875 = vpack.c.bf16 %v3827, %v3826
  %v3876 = vpack.c.bf16 %v3829, %v3828
  %v3877 = vpack.c.bf16 %v3831, %v3830
  %v3878 = vpack.c.bf16 %v3833, %v3832
  %v3879 = vpack.c.bf16 %v3835, %v3834
  %v3880 = vpack.c.bf16 %v3837, %v3836
  %v3881 = vpack.c.bf16 %v3839, %v3838
  %v3882 = vpack.c.bf16 %v3841, %v3840
  %v3883 = vpack.c.bf16 %v3843, %v3842
  %v3884 = vpack.c.bf16 %v3845, %v3844
  %v3885 = vpack.c.bf16 %v3847, %v3846
  %v3886 = vpack.c.bf16 %v3849, %v3848
  %v3887 = vpack.c.bf16 %v3851, %v3850
  %v3888 = vpack.c.bf16 %v3853, %v3852
  %v3889 = vpack.c.bf16 %v3855, %v3854
  %v3890 = vpack.c.bf16 %v3857, %v3856
  %v3891 = vpack.c.bf16 %v3859, %v3858
  %v3892 = vld [vmem:[%s3] sm:$0xf]
  %v3893 = vld [vmem:[%s3 + $0x4] sm:$0xf]
  %v3894 = vld [vmem:[%s3 + $0x8] sm:$0xf]
  %v3895 = vld [vmem:[%s3 + $0xc] sm:$0xf]
  %v3896 = vld [vmem:[%s3 + $0x10] sm:$0xf]
  %v3897 = vld [vmem:[%s3 + $0x14] sm:$0xf]
  %v3898 = vld [vmem:[%s3 + $0x18] sm:$0xf]
  %v3899 = vld [vmem:[%s3 + $0x1c] sm:$0xf]
  %v3900 = vld [vmem:[%s3 + $0x20] sm:$0xf]
  %v3901 = vld [vmem:[%s3 + $0x24] sm:$0xf]
  %v3902 = vld [vmem:[%s3 + $0x28] sm:$0xf]
  %v3903 = vld [vmem:[%s3 + $0x2c] sm:$0xf]
  %v3904 = vld [vmem:[%s3 + $0x30] sm:$0xf]
  %v3905 = vld [vmem:[%s3 + $0x34] sm:$0xf]
  %v3906 = vld [vmem:[%s3 + $0x38] sm:$0xf]
  %v3907 = vld [vmem:[%s3 + $0x3c] sm:$0xf]
  %v3908 = vld [vmem:[%s3 + $0x40] sm:$0xf]
  %v3909 = vld [vmem:[%s3 + $0x44] sm:$0xf]
  %v3910 = vld [vmem:[%s3 + $0x48] sm:$0xf]
  %v3911 = vld [vmem:[%s3 + $0x4c] sm:$0xf]
  %v3912 = vld [vmem:[%s3 + $0x50] sm:$0xf]
  %v3913 = vld [vmem:[%s3 + $0x54] sm:$0xf]
  %v3914 = vld [vmem:[%s3 + $0x58] sm:$0xf]
  %v3915 = vld [vmem:[%s3 + $0x5c] sm:$0xf]
  %v3916 = vld [vmem:[%s3 + $0x60] sm:$0xf]
  %v3917 = vld [vmem:[%s3 + $0x64] sm:$0xf]
  %v3918 = vld [vmem:[%s3 + $0x68] sm:$0xf]
  %v3919 = vld [vmem:[%s3 + $0x6c] sm:$0xf]
  %v3920 = vld [vmem:[%s3 + $0x70] sm:$0xf]
  %v3921 = vld [vmem:[%s3 + $0x74] sm:$0xf]
  %v3922 = vld [vmem:[%s3 + $0x78] sm:$0xf]
  %v3923 = vld [vmem:[%s3 + $0x7c] sm:$0xf]
  %v3924 = vld [vmem:[%s3 + $0x80] sm:$0xf]
  %v3925 = vld [vmem:[%s3 + $0x84] sm:$0xf]
  %v3926 = vld [vmem:[%s3 + $0x88] sm:$0xf]
  %v3927 = vld [vmem:[%s3 + $0x8c] sm:$0xf]
  %v3928 = vld [vmem:[%s3 + $0x90] sm:$0xf]
  %v3929 = vld [vmem:[%s3 + $0x94] sm:$0xf]
  %v3930 = vld [vmem:[%s3 + $0x98] sm:$0xf]
  %v3931 = vld [vmem:[%s3 + $0x9c] sm:$0xf]
  %v3932 = vld [vmem:[%s3 + $0xa0] sm:$0xf]
  %v3933 = vld [vmem:[%s3 + $0xa4] sm:$0xf]
  %v3934 = vld [vmem:[%s3 + $0xa8] sm:$0xf]
  %v3935 = vld [vmem:[%s3 + $0xac] sm:$0xf]
  %v3936 = vld [vmem:[%s3 + $0xb0] sm:$0xf]
  %v3937 = vld [vmem:[%s3 + $0xb4] sm:$0xf]
  %v3938 = vld [vmem:[%s3 + $0xb8] sm:$0xf]
  %v3939 = vld [vmem:[%s3 + $0xbc] sm:$0xf]
  %v3940 = vld [vmem:[%s3 + $0xc0] sm:$0xf]
  %v3941 = vld [vmem:[%s3 + $0xc4] sm:$0xf]
  %v3942 = vld [vmem:[%s3 + $0xc8] sm:$0xf]
  %v3943 = vld [vmem:[%s3 + $0xcc] sm:$0xf]
  %v3944 = vld [vmem:[%s3 + $0xd0] sm:$0xf]
  %v3945 = vld [vmem:[%s3 + $0xd4] sm:$0xf]
  %v3946 = vld [vmem:[%s3 + $0xd8] sm:$0xf]
  %v3947 = vld [vmem:[%s3 + $0xdc] sm:$0xf]
  %v3948 = vld [vmem:[%s3 + $0xe0] sm:$0xf]
  %v3949 = vld [vmem:[%s3 + $0xe4] sm:$0xf]
  %v3950 = vld [vmem:[%s3 + $0xe8] sm:$0xf]
  %v3951 = vld [vmem:[%s3 + $0xec] sm:$0xf]
  %v3952 = vld [vmem:[%s3 + $0xf0] sm:$0xf]
  %v3953 = vld [vmem:[%s3 + $0xf4] sm:$0xf]
  %v3954 = vld [vmem:[%s3 + $0xf8] sm:$0xf]
  %v3955 = vld [vmem:[%s3 + $0xfc] sm:$0xf]
  %v3956 = vld [vmem:[%s3 + $0x100] sm:$0xf]
  %v3957 = vld [vmem:[%s3 + $0x104] sm:$0xf]
  %v3958 = vld [vmem:[%s3 + $0x108] sm:$0xf]
  %v3959 = vld [vmem:[%s3 + $0x10c] sm:$0xf]
  %v3960 = vld [vmem:[%s3 + $0x110] sm:$0xf]
  %v3961 = vld [vmem:[%s3 + $0x114] sm:$0xf]
  %v3962 = vld [vmem:[%s3 + $0x118] sm:$0xf]
  %v3963 = vld [vmem:[%s3 + $0x11c] sm:$0xf]
  %v3964 = vld [vmem:[%s3 + $0x120] sm:$0xf]
  %v3965 = vld [vmem:[%s3 + $0x124] sm:$0xf]
  %v3966 = vld [vmem:[%s3 + $0x128] sm:$0xf]
  %v3967 = vld [vmem:[%s3 + $0x12c] sm:$0xf]
  %v3968 = vld [vmem:[%s3 + $0x130] sm:$0xf]
  %v3969 = vld [vmem:[%s3 + $0x134] sm:$0xf]
  %v3970 = vld [vmem:[%s3 + $0x138] sm:$0xf]
  %v3971 = vld [vmem:[%s3 + $0x13c] sm:$0xf]
  %v3972 = vld [vmem:[%s3 + $0x140] sm:$0xf]
  %v3973 = vld [vmem:[%s3 + $0x144] sm:$0xf]
  %v3974 = vld [vmem:[%s3 + $0x148] sm:$0xf]
  %v3975 = vld [vmem:[%s3 + $0x14c] sm:$0xf]
  %v3976 = vld [vmem:[%s3 + $0x150] sm:$0xf]
  %v3977 = vld [vmem:[%s3 + $0x154] sm:$0xf]
  %v3978 = vld [vmem:[%s3 + $0x158] sm:$0xf]
  %v3979 = vld [vmem:[%s3 + $0x15c] sm:$0xf]
  %v3980 = vld [vmem:[%s3 + $0x160] sm:$0xf]
  %v3981 = vld [vmem:[%s3 + $0x164] sm:$0xf]
  %v3982 = vld [vmem:[%s3 + $0x168] sm:$0xf]
  %v3983 = vld [vmem:[%s3 + $0x16c] sm:$0xf]
  %v3984 = vld [vmem:[%s3 + $0x170] sm:$0xf]
  %v3985 = vld [vmem:[%s3 + $0x174] sm:$0xf]
  %v3986 = vld [vmem:[%s3 + $0x178] sm:$0xf]
  %v3987 = vld [vmem:[%s3 + $0x17c] sm:$0xf]
  %v3988 = vld [vmem:[%s3 + $0x180] sm:$0xf]
  %v3989 = vld [vmem:[%s3 + $0x184] sm:$0xf]
  %v3990 = vld [vmem:[%s3 + $0x188] sm:$0xf]
  %v3991 = vld [vmem:[%s3 + $0x18c] sm:$0xf]
  %v3992 = vld [vmem:[%s3 + $0x190] sm:$0xf]
  %v3993 = vld [vmem:[%s3 + $0x194] sm:$0xf]
  %v3994 = vld [vmem:[%s3 + $0x198] sm:$0xf]
  %v3995 = vld [vmem:[%s3 + $0x19c] sm:$0xf]
  %v3996 = vld [vmem:[%s3 + $0x1a0] sm:$0xf]
  %v3997 = vld [vmem:[%s3 + $0x1a4] sm:$0xf]
  %v3998 = vld [vmem:[%s3 + $0x1a8] sm:$0xf]
  %v3999 = vld [vmem:[%s3 + $0x1ac] sm:$0xf]
  %v4000 = vld [vmem:[%s3 + $0x1b0] sm:$0xf]
  %v4001 = vld [vmem:[%s3 + $0x1b4] sm:$0xf]
  %v4002 = vld [vmem:[%s3 + $0x1b8] sm:$0xf]
  %v4003 = vld [vmem:[%s3 + $0x1bc] sm:$0xf]
  %v4004 = vld [vmem:[%s3 + $0x1c0] sm:$0xf]
  %v4005 = vld [vmem:[%s3 + $0x1c4] sm:$0xf]
  %v4006 = vld [vmem:[%s3 + $0x1c8] sm:$0xf]
  %v4007 = vld [vmem:[%s3 + $0x1cc] sm:$0xf]
  %v4008 = vld [vmem:[%s3 + $0x1d0] sm:$0xf]
  %v4009 = vld [vmem:[%s3 + $0x1d4] sm:$0xf]
  %v4010 = vld [vmem:[%s3 + $0x1d8] sm:$0xf]
  %v4011 = vld [vmem:[%s3 + $0x1dc] sm:$0xf]
  %v4012 = vld [vmem:[%s3 + $0x1e0] sm:$0xf]
  %v4013 = vld [vmem:[%s3 + $0x1e4] sm:$0xf]
  %v4014 = vld [vmem:[%s3 + $0x1e8] sm:$0xf]
  %v4015 = vld [vmem:[%s3 + $0x1ec] sm:$0xf]
  %v4016 = vld [vmem:[%s3 + $0x1f0] sm:$0xf]
  %v4017 = vld [vmem:[%s3 + $0x1f4] sm:$0xf]
  %v4018 = vld [vmem:[%s3 + $0x1f8] sm:$0xf]
  %v4019 = vld [vmem:[%s3 + $0x1fc] sm:$0xf]
  %v4020 = vld [vmem:[%s3 + $0x200] sm:$0xf]
  %v4021 = vld [vmem:[%s3 + $0x204] sm:$0xf]
  %v4022 = vld [vmem:[%s3 + $0x208] sm:$0xf]
  %v4023 = vld [vmem:[%s3 + $0x20c] sm:$0xf]
  %v4024 = vld [vmem:[%s3 + $0x210] sm:$0xf]
  %v4025 = vld [vmem:[%s3 + $0x214] sm:$0xf]
  %v4026 = vld [vmem:[%s3 + $0x218] sm:$0xf]
  %v4027 = vld [vmem:[%s3 + $0x21c] sm:$0xf]
  %v4028 = vld [vmem:[%s3 + $0x220] sm:$0xf]
  %v4029 = vld [vmem:[%s3 + $0x224] sm:$0xf]
  %v4030 = vld [vmem:[%s3 + $0x228] sm:$0xf]
  %v4031 = vld [vmem:[%s3 + $0x22c] sm:$0xf]
  %v4032 = vld [vmem:[%s3 + $0x230] sm:$0xf]
  %v4033 = vld [vmem:[%s3 + $0x234] sm:$0xf]
  %v4034 = vld [vmem:[%s3 + $0x238] sm:$0xf]
  %v4035 = vld [vmem:[%s3 + $0x23c] sm:$0xf]
  %v4036 = vld [vmem:[%s4] sm:$0x1]
  %v4038 = vlaneseq
  %v4039 = vshrl.u32 %v4038, 7
  %v4040 = vsub.s32 0, %v4039
  %v4041 = vrot.slane %v4036, %v4040
  %v4187 = vunpack.c.l.b16 %v3892
  %v4188 = vunpack.c.l.b16 %v3893
  %v4189 = vunpack.c.l.b16 %v3894
  %v4190 = vunpack.c.l.b16 %v3895
  %v4191 = vunpack.c.l.b16 %v3896
  %v4192 = vunpack.c.l.b16 %v3897
  %v4193 = vunpack.c.l.b16 %v3898
  %v4194 = vunpack.c.l.b16 %v3899
  %v4195 = vunpack.c.l.b16 %v3900
  %v4196 = vunpack.c.l.b16 %v3901
  %v4197 = vunpack.c.l.b16 %v3902
  %v4198 = vunpack.c.l.b16 %v3903
  %v4199 = vunpack.c.l.b16 %v3904
  %v4200 = vunpack.c.l.b16 %v3905
  %v4201 = vunpack.c.l.b16 %v3906
  %v4202 = vunpack.c.l.b16 %v3907
  %v4203 = vunpack.c.l.b16 %v3908
  %v4204 = vunpack.c.l.b16 %v3909
  %v4205 = vunpack.c.l.b16 %v3910
  %v4206 = vunpack.c.l.b16 %v3911
  %v4207 = vunpack.c.l.b16 %v3912
  %v4208 = vunpack.c.l.b16 %v3913
  %v4209 = vunpack.c.l.b16 %v3914
  %v4210 = vunpack.c.l.b16 %v3915
  %v4211 = vunpack.c.l.b16 %v3916
  %v4212 = vunpack.c.l.b16 %v3917
  %v4213 = vunpack.c.l.b16 %v3918
  %v4214 = vunpack.c.l.b16 %v3919
  %v4215 = vunpack.c.l.b16 %v3920
  %v4216 = vunpack.c.l.b16 %v3921
  %v4217 = vunpack.c.l.b16 %v3922
  %v4218 = vunpack.c.l.b16 %v3923
  %v4219 = vunpack.c.l.b16 %v3924
  %v4220 = vunpack.c.l.b16 %v3925
  %v4221 = vunpack.c.l.b16 %v3926
  %v4222 = vunpack.c.l.b16 %v3927
  %v4223 = vunpack.c.l.b16 %v3928
  %v4224 = vunpack.c.l.b16 %v3929
  %v4225 = vunpack.c.l.b16 %v3930
  %v4226 = vunpack.c.l.b16 %v3931
  %v4227 = vunpack.c.l.b16 %v3932
  %v4228 = vunpack.c.l.b16 %v3933
  %v4229 = vunpack.c.l.b16 %v3934
  %v4230 = vunpack.c.l.b16 %v3935
  %v4231 = vunpack.c.l.b16 %v3936
  %v4232 = vunpack.c.l.b16 %v3937
  %v4233 = vunpack.c.l.b16 %v3938
  %v4234 = vunpack.c.l.b16 %v3939
  %v4235 = vunpack.c.l.b16 %v3940
  %v4236 = vunpack.c.l.b16 %v3941
  %v4237 = vunpack.c.l.b16 %v3942
  %v4238 = vunpack.c.l.b16 %v3943
  %v4239 = vunpack.c.l.b16 %v3944
  %v4240 = vunpack.c.l.b16 %v3945
  %v4241 = vunpack.c.l.b16 %v3946
  %v4242 = vunpack.c.l.b16 %v3947
  %v4243 = vunpack.c.l.b16 %v3948
  %v4244 = vunpack.c.l.b16 %v3949
  %v4245 = vunpack.c.l.b16 %v3950
  %v4246 = vunpack.c.l.b16 %v3951
  %v4247 = vunpack.c.l.b16 %v3952
  %v4248 = vunpack.c.l.b16 %v3953
  %v4249 = vunpack.c.l.b16 %v3954
  %v4250 = vunpack.c.l.b16 %v3955
  %v4251 = vunpack.c.l.b16 %v3956
  %v4252 = vunpack.c.l.b16 %v3957
  %v4253 = vunpack.c.l.b16 %v3958
  %v4254 = vunpack.c.l.b16 %v3959
  %v4255 = vunpack.c.l.b16 %v3960
  %v4256 = vunpack.c.l.b16 %v3961
  %v4257 = vunpack.c.l.b16 %v3962
  %v4258 = vunpack.c.l.b16 %v3963
  %v4259 = vunpack.c.l.b16 %v3964
  %v4260 = vunpack.c.l.b16 %v3965
  %v4261 = vunpack.c.l.b16 %v3966
  %v4262 = vunpack.c.l.b16 %v3967
  %v4263 = vunpack.c.l.b16 %v3968
  %v4264 = vunpack.c.l.b16 %v3969
  %v4265 = vunpack.c.l.b16 %v3970
  %v4266 = vunpack.c.l.b16 %v3971
  %v4267 = vunpack.c.l.b16 %v3972
  %v4268 = vunpack.c.l.b16 %v3973
  %v4269 = vunpack.c.l.b16 %v3974
  %v4270 = vunpack.c.l.b16 %v3975
  %v4271 = vunpack.c.l.b16 %v3976
  %v4272 = vunpack.c.l.b16 %v3977
  %v4273 = vunpack.c.l.b16 %v3978
  %v4274 = vunpack.c.l.b16 %v3979
  %v4275 = vunpack.c.l.b16 %v3980
  %v4276 = vunpack.c.l.b16 %v3981
  %v4277 = vunpack.c.l.b16 %v3982
  %v4278 = vunpack.c.l.b16 %v3983
  %v4279 = vunpack.c.l.b16 %v3984
  %v4280 = vunpack.c.l.b16 %v3985
  %v4281 = vunpack.c.l.b16 %v3986
  %v4282 = vunpack.c.l.b16 %v3987
  %v4283 = vunpack.c.l.b16 %v3988
  %v4284 = vunpack.c.l.b16 %v3989
  %v4285 = vunpack.c.l.b16 %v3990
  %v4286 = vunpack.c.l.b16 %v3991
  %v4287 = vunpack.c.l.b16 %v3992
  %v4288 = vunpack.c.l.b16 %v3993
  %v4289 = vunpack.c.l.b16 %v3994
  %v4290 = vunpack.c.l.b16 %v3995
  %v4291 = vunpack.c.l.b16 %v3996
  %v4292 = vunpack.c.l.b16 %v3997
  %v4293 = vunpack.c.l.b16 %v3998
  %v4294 = vunpack.c.l.b16 %v3999
  %v4295 = vunpack.c.l.b16 %v4000
  %v4296 = vunpack.c.l.b16 %v4001
  %v4297 = vunpack.c.l.b16 %v4002
  %v4298 = vunpack.c.l.b16 %v4003
  %v4299 = vunpack.c.l.b16 %v4004
  %v4300 = vunpack.c.l.b16 %v4005
  %v4301 = vunpack.c.l.b16 %v4006
  %v4302 = vunpack.c.l.b16 %v4007
  %v4303 = vunpack.c.l.b16 %v4008
  %v4304 = vunpack.c.l.b16 %v4009
  %v4305 = vunpack.c.l.b16 %v4010
  %v4306 = vunpack.c.l.b16 %v4011
  %v4307 = vunpack.c.l.b16 %v4012
  %v4308 = vunpack.c.l.b16 %v4013
  %v4309 = vunpack.c.l.b16 %v4014
  %v4310 = vunpack.c.l.b16 %v4015
  %v4311 = vunpack.c.l.b16 %v4016
  %v4312 = vunpack.c.l.b16 %v4017
  %v4313 = vunpack.c.l.b16 %v4018
  %v4314 = vunpack.c.l.b16 %v4019
  %v4315 = vunpack.c.l.b16 %v4020
  %v4316 = vunpack.c.l.b16 %v4021
  %v4317 = vunpack.c.l.b16 %v4022
  %v4318 = vunpack.c.l.b16 %v4023
  %v4319 = vunpack.c.l.b16 %v4024
  %v4320 = vunpack.c.l.b16 %v4025
  %v4321 = vunpack.c.l.b16 %v4026
  %v4322 = vunpack.c.l.b16 %v4027
  %v4323 = vunpack.c.l.b16 %v4028
  %v4324 = vunpack.c.l.b16 %v4029
  %v4325 = vunpack.c.l.b16 %v4030
  %v4326 = vunpack.c.l.b16 %v4031
  %v4327 = vunpack.c.l.b16 %v4032
  %v4328 = vunpack.c.l.b16 %v4033
  %v4329 = vunpack.c.l.b16 %v4034
  %v4330 = vunpack.c.l.b16 %v4035
  %v4331 = vpack.c.b16 %v4188, %v4187
  %v4332 = vpack.c.b16 %v4190, %v4189
  %v4333 = vpack.c.b16 %v4192, %v4191
  %v4334 = vpack.c.b16 %v4194, %v4193
  %v4335 = vpack.c.b16 %v4196, %v4195
  %v4336 = vpack.c.b16 %v4198, %v4197
  %v4337 = vpack.c.b16 %v4200, %v4199
  %v4338 = vpack.c.b16 %v4202, %v4201
  %v4339 = vpack.c.b16 %v4204, %v4203
  %v4340 = vpack.c.b16 %v4206, %v4205
  %v4341 = vpack.c.b16 %v4208, %v4207
  %v4342 = vpack.c.b16 %v4210, %v4209
  %v4343 = vpack.c.b16 %v4212, %v4211
  %v4344 = vpack.c.b16 %v4214, %v4213
  %v4345 = vpack.c.b16 %v4216, %v4215
  %v4346 = vpack.c.b16 %v4218, %v4217
  %v4347 = vpack.c.b16 %v4220, %v4219
  %v4348 = vpack.c.b16 %v4222, %v4221
  %v4349 = vpack.c.b16 %v4224, %v4223
  %v4350 = vpack.c.b16 %v4226, %v4225
  %v4351 = vpack.c.b16 %v4228, %v4227
  %v4352 = vpack.c.b16 %v4230, %v4229
  %v4353 = vpack.c.b16 %v4232, %v4231
  %v4354 = vpack.c.b16 %v4234, %v4233
  %v4355 = vpack.c.b16 %v4236, %v4235
  %v4356 = vpack.c.b16 %v4238, %v4237
  %v4357 = vpack.c.b16 %v4240, %v4239
  %v4358 = vpack.c.b16 %v4242, %v4241
  %v4359 = vpack.c.b16 %v4244, %v4243
  %v4360 = vpack.c.b16 %v4246, %v4245
  %v4361 = vpack.c.b16 %v4248, %v4247
  %v4362 = vpack.c.b16 %v4250, %v4249
  %v4363 = vpack.c.b16 %v4252, %v4251
  %v4364 = vpack.c.b16 %v4254, %v4253
  %v4365 = vpack.c.b16 %v4256, %v4255
  %v4366 = vpack.c.b16 %v4258, %v4257
  %v4367 = vpack.c.b16 %v4260, %v4259
  %v4368 = vpack.c.b16 %v4262, %v4261
  %v4369 = vpack.c.b16 %v4264, %v4263
  %v4370 = vpack.c.b16 %v4266, %v4265
  %v4371 = vpack.c.b16 %v4268, %v4267
  %v4372 = vpack.c.b16 %v4270, %v4269
  %v4373 = vpack.c.b16 %v4272, %v4271
  %v4374 = vpack.c.b16 %v4274, %v4273
  %v4375 = vpack.c.b16 %v4276, %v4275
  %v4376 = vpack.c.b16 %v4278, %v4277
  %v4377 = vpack.c.b16 %v4280, %v4279
  %v4378 = vpack.c.b16 %v4282, %v4281
  %v4379 = vpack.c.b16 %v4284, %v4283
  %v4380 = vpack.c.b16 %v4286, %v4285
  %v4381 = vpack.c.b16 %v4288, %v4287
  %v4382 = vpack.c.b16 %v4290, %v4289
  %v4383 = vpack.c.b16 %v4292, %v4291
  %v4384 = vpack.c.b16 %v4294, %v4293
  %v4385 = vpack.c.b16 %v4296, %v4295
  %v4386 = vpack.c.b16 %v4298, %v4297
  %v4387 = vpack.c.b16 %v4300, %v4299
  %v4388 = vpack.c.b16 %v4302, %v4301
  %v4389 = vpack.c.b16 %v4304, %v4303
  %v4390 = vpack.c.b16 %v4306, %v4305
  %v4391 = vpack.c.b16 %v4308, %v4307
  %v4392 = vpack.c.b16 %v4310, %v4309
  %v4393 = vpack.c.b16 %v4312, %v4311
  %v4394 = vpack.c.b16 %v4314, %v4313
  %v4395 = vpack.c.b16 %v4316, %v4315
  %v4396 = vpack.c.b16 %v4318, %v4317
  %v4397 = vpack.c.b16 %v4320, %v4319
  %v4398 = vpack.c.b16 %v4322, %v4321
  %v4399 = vpack.c.b16 %v4324, %v4323
  %v4400 = vpack.c.b16 %v4326, %v4325
  %v4401 = vpack.c.b16 %v4328, %v4327
  %v4402 = vpack.c.b16 %v4330, %v4329
  %4475 = vmatprep.subr.bf16.mxu0 0
  %4476 = vmatpush1.bf16.msra.mxu0 %v4338
  %4477 = vmatprep.subr.bf16.mxu0 0
  %4478 = vmatpush1.bf16.msra.mxu0 %v4337
  %4479 = vmatprep.subr.bf16.mxu0 0
  %4480 = vmatpush1.bf16.msra.mxu0 %v4336
  %4481 = vmatprep.subr.bf16.mxu0 0
  %4482 = vmatpush1.bf16.msra.mxu0 %v4335
  %4483 = vmatprep.subr.bf16.mxu0 0
  %4484 = vmatpush1.bf16.msra.mxu0 %v4334
  %4485 = vmatprep.subr.bf16.mxu0 0
  %4486 = vmatpush1.bf16.msra.mxu0 %v4333
  %4487 = vmatprep.subr.bf16.mxu0 0
  %4488 = vmatpush1.bf16.msra.mxu0 %v4332
  %4489 = vmatprep.subr.bf16.mxu0 0
  %4490 = vmatpush1.bf16.msra.mxu0 %v4331
  %4491 = vmatprep.subr.bf16.mxu0 0
  %4492 = vmatpush2.bf16.msra.mxu0 %v4346
  %4493 = vmatprep.subr.bf16.mxu0 0
  %4494 = vmatpush2.bf16.msra.mxu0 %v4345
  %4495 = vmatprep.subr.bf16.mxu0 0
  %4496 = vmatpush2.bf16.msra.mxu0 %v4344
  %4497 = vmatprep.subr.bf16.mxu0 0
  %4498 = vmatpush2.bf16.msra.mxu0 %v4343
  %4499 = vmatprep.subr.bf16.mxu0 0
  %4500 = vmatpush2.bf16.msra.mxu0 %v4342
  %4501 = vmatprep.subr.bf16.mxu0 0
  %4502 = vmatpush2.bf16.msra.mxu0 %v4341
  %4503 = vmatprep.subr.bf16.mxu0 0
  %4504 = vmatpush2.bf16.msra.mxu0 %v4340
  %4505 = vmatprep.subr.bf16.mxu0 0
  %4506 = vmatpush2.bf16.msra.mxu0 %v4339
  %4507 = vmatprep.mubr.bf16.mxu0 %v3187
  %4508 = vmatmul.mubr.bf16.gmra.mxu0 %v3091
  %v4509 = vpop.f32.mrf.mxu0
  %v4510 = vadd.f32 %v4041, %v4509
  %v4511 = vpop.f32.mrf.mxu0
  %v4512 = vpop.f32.mrf.mxu0
  %v4513 = vadd.f32 %v4041, %v4512
  %v4514 = vpop.f32.mrf.mxu0
  %4515 = vmatprep.mubr.bf16.mxu0 %v3188
  %4516 = vmatmul.mubr.bf16.gmra.mxu0 %v3092
  %v4517 = vpop.f32.mrf.mxu0
  %v4518 = vadd.f32 %v4041, %v4517
  %v4519 = vpop.f32.mrf.mxu0
  %v4520 = vpop.f32.mrf.mxu0
  %v4521 = vadd.f32 %v4041, %v4520
  %v4522 = vpop.f32.mrf.mxu0
  %4523 = vmatprep.mubr.bf16.mxu0 %v3189
  %4524 = vmatmul.mubr.bf16.gmra.mxu0 %v3093
  %v4525 = vpop.f32.mrf.mxu0
  %v4526 = vadd.f32 %v4041, %v4525
  %v4527 = vpop.f32.mrf.mxu0
  %v4528 = vpop.f32.mrf.mxu0
  %v4529 = vadd.f32 %v4041, %v4528
  %v4530 = vpop.f32.mrf.mxu0
  %4531 = vmatprep.mubr.bf16.mxu0 %v3190
  %4532 = vmatmul.mubr.bf16.gmra.mxu0 %v3094
  %v4533 = vpop.f32.mrf.mxu0
  %v4534 = vadd.f32 %v4041, %v4533
  %v4535 = vpop.f32.mrf.mxu0
  %v4536 = vpop.f32.mrf.mxu0
  %v4537 = vadd.f32 %v4041, %v4536
  %v4538 = vpop.f32.mrf.mxu0
  %4539 = vmatprep.mubr.bf16.mxu0 %v3191
  %4540 = vmatmul.mubr.bf16.gmra.mxu0 %v3095
  %v4541 = vpop.f32.mrf.mxu0
  %v4542 = vadd.f32 %v4041, %v4541
  %v4543 = vpop.f32.mrf.mxu0
  %v4544 = vpop.f32.mrf.mxu0
  %v4545 = vadd.f32 %v4041, %v4544
  %v4546 = vpop.f32.mrf.mxu0
  %4547 = vmatprep.mubr.bf16.mxu0 %v3192
  %4548 = vmatmul.mubr.bf16.gmra.mxu0 %v3096
  %v4549 = vpop.f32.mrf.mxu0
  %v4550 = vadd.f32 %v4041, %v4549
  %v4551 = vpop.f32.mrf.mxu0
  %v4552 = vpop.f32.mrf.mxu0
  %v4553 = vadd.f32 %v4041, %v4552
  %v4554 = vpop.f32.mrf.mxu0
  %4555 = vmatprep.mubr.bf16.mxu0 %v3193
  %4556 = vmatmul.mubr.bf16.gmra.mxu0 %v3097
  %v4557 = vpop.f32.mrf.mxu0
  %v4558 = vadd.f32 %v4041, %v4557
  %v4559 = vpop.f32.mrf.mxu0
  %v4560 = vpop.f32.mrf.mxu0
  %v4561 = vadd.f32 %v4041, %v4560
  %v4562 = vpop.f32.mrf.mxu0
  %4563 = vmatprep.mubr.bf16.mxu0 %v3194
  %4564 = vmatmul.mubr.bf16.gmra.mxu0 %v3098
  %v4565 = vpop.f32.mrf.mxu0
  %v4566 = vadd.f32 %v4041, %v4565
  %v4567 = vpop.f32.mrf.mxu0
  %v4568 = vpop.f32.mrf.mxu0
  %v4569 = vadd.f32 %v4041, %v4568
  %v4570 = vpop.f32.mrf.mxu0
  %4571 = vmatprep.mubr.bf16.mxu0 %v3195
  %4572 = vmatmul.mubr.bf16.gmra.mxu0 %v3099
  %v4573 = vpop.f32.mrf.mxu0
  %v4574 = vadd.f32 %v4041, %v4573
  %v4575 = vpop.f32.mrf.mxu0
  %v4576 = vpop.f32.mrf.mxu0
  %v4577 = vadd.f32 %v4041, %v4576
  %v4578 = vpop.f32.mrf.mxu0
  %4579 = vmatprep.mubr.bf16.mxu0 %v3196
  %4580 = vmatmul.mubr.bf16.gmra.mxu0 %v3100
  %v4581 = vpop.f32.mrf.mxu0
  %v4582 = vadd.f32 %v4041, %v4581
  %v4583 = vpop.f32.mrf.mxu0
  %v4584 = vpop.f32.mrf.mxu0
  %v4585 = vadd.f32 %v4041, %v4584
  %v4586 = vpop.f32.mrf.mxu0
  %4587 = vmatprep.mubr.bf16.mxu0 %v3197
  %4588 = vmatmul.mubr.bf16.gmra.mxu0 %v3101
  %v4589 = vpop.f32.mrf.mxu0
  %v4590 = vadd.f32 %v4041, %v4589
  %v4591 = vpop.f32.mrf.mxu0
  %v4592 = vpop.f32.mrf.mxu0
  %v4593 = vadd.f32 %v4041, %v4592
  %v4594 = vpop.f32.mrf.mxu0
  %4595 = vmatprep.mubr.bf16.mxu0 %v3198
  %4596 = vmatmul.mubr.bf16.gmra.mxu0 %v3102
  %v4597 = vpop.f32.mrf.mxu0
  %v4598 = vadd.f32 %v4041, %v4597
  %v4599 = vpop.f32.mrf.mxu0
  %v4600 = vpop.f32.mrf.mxu0
  %v4601 = vadd.f32 %v4041, %v4600
  %v4602 = vpop.f32.mrf.mxu0
  %4603 = vmatprep.mubr.bf16.mxu0 %v3199
  %4604 = vmatmul.mubr.bf16.gmra.mxu0 %v3103
  %v4605 = vpop.f32.mrf.mxu0
  %v4606 = vadd.f32 %v4041, %v4605
  %v4607 = vpop.f32.mrf.mxu0
  %v4608 = vpop.f32.mrf.mxu0
  %v4609 = vadd.f32 %v4041, %v4608
  %v4610 = vpop.f32.mrf.mxu0
  %4611 = vmatprep.mubr.bf16.mxu0 %v3200
  %4612 = vmatmul.mubr.bf16.gmra.mxu0 %v3104
  %v4613 = vpop.f32.mrf.mxu0
  %v4614 = vadd.f32 %v4041, %v4613
  %v4615 = vpop.f32.mrf.mxu0
  %v4616 = vpop.f32.mrf.mxu0
  %v4617 = vadd.f32 %v4041, %v4616
  %v4618 = vpop.f32.mrf.mxu0
  %4619 = vmatprep.mubr.bf16.mxu0 %v3201
  %4620 = vmatmul.mubr.bf16.gmra.mxu0 %v3105
  %v4621 = vpop.f32.mrf.mxu0
  %v4622 = vadd.f32 %v4041, %v4621
  %v4623 = vpop.f32.mrf.mxu0
  %v4624 = vpop.f32.mrf.mxu0
  %v4625 = vadd.f32 %v4041, %v4624
  %v4626 = vpop.f32.mrf.mxu0
  %4627 = vmatprep.mubr.bf16.mxu0 %v3202
  %4628 = vmatmul.mubr.bf16.gmra.mxu0 %v3106
  %v4629 = vpop.f32.mrf.mxu0
  %v4630 = vadd.f32 %v4041, %v4629
  %v4631 = vpop.f32.mrf.mxu0
  %v4632 = vpop.f32.mrf.mxu0
  %v4633 = vadd.f32 %v4041, %v4632
  %v4634 = vpop.f32.mrf.mxu0
  %4635 = vmatprep.mubr.bf16.mxu0 %v3203
  %4636 = vmatmul.mubr.bf16.gmra.mxu0 %v3107
  %v4637 = vpop.f32.mrf.mxu0
  %v4638 = vadd.f32 %v4041, %v4637
  %v4639 = vpop.f32.mrf.mxu0
  %v4640 = vpop.f32.mrf.mxu0
  %v4641 = vadd.f32 %v4041, %v4640
  %v4642 = vpop.f32.mrf.mxu0
  %4643 = vmatprep.mubr.bf16.mxu0 %v3204
  %4644 = vmatmul.mubr.bf16.gmra.mxu0 %v3108
  %v4645 = vpop.f32.mrf.mxu0
  %v4646 = vadd.f32 %v4041, %v4645
  %v4647 = vpop.f32.mrf.mxu0
  %v4648 = vpop.f32.mrf.mxu0
  %v4649 = vadd.f32 %v4041, %v4648
  %v4650 = vpop.f32.mrf.mxu0
  %4651 = vmatprep.mubr.bf16.mxu0 %v3205
  %4652 = vmatmul.mubr.bf16.gmra.mxu0 %v3109
  %v4653 = vpop.f32.mrf.mxu0
  %v4654 = vadd.f32 %v4041, %v4653
  %v4655 = vpop.f32.mrf.mxu0
  %v4656 = vpop.f32.mrf.mxu0
  %v4657 = vadd.f32 %v4041, %v4656
  %v4658 = vpop.f32.mrf.mxu0
  %4659 = vmatprep.mubr.bf16.mxu0 %v3206
  %4660 = vmatmul.mubr.bf16.gmra.mxu0 %v3110
  %v4661 = vpop.f32.mrf.mxu0
  %v4662 = vadd.f32 %v4041, %v4661
  %v4663 = vpop.f32.mrf.mxu0
  %v4664 = vpop.f32.mrf.mxu0
  %v4665 = vadd.f32 %v4041, %v4664
  %v4666 = vpop.f32.mrf.mxu0
  %4667 = vmatprep.mubr.bf16.mxu0 %v3207
  %4668 = vmatmul.mubr.bf16.gmra.mxu0 %v3111
  %v4669 = vpop.f32.mrf.mxu0
  %v4670 = vadd.f32 %v4041, %v4669
  %v4671 = vpop.f32.mrf.mxu0
  %v4672 = vpop.f32.mrf.mxu0
  %v4673 = vadd.f32 %v4041, %v4672
  %v4674 = vpop.f32.mrf.mxu0
  %4675 = vmatprep.mubr.bf16.mxu0 %v3208
  %4676 = vmatmul.mubr.bf16.gmra.mxu0 %v3112
  %v4677 = vpop.f32.mrf.mxu0
  %v4678 = vadd.f32 %v4041, %v4677
  %v4679 = vpop.f32.mrf.mxu0
  %v4680 = vpop.f32.mrf.mxu0
  %v4681 = vadd.f32 %v4041, %v4680
  %v4682 = vpop.f32.mrf.mxu0
  %4683 = vmatprep.mubr.bf16.mxu0 %v3209
  %4684 = vmatmul.mubr.bf16.gmra.mxu0 %v3113
  %v4685 = vpop.f32.mrf.mxu0
  %v4686 = vadd.f32 %v4041, %v4685
  %v4687 = vpop.f32.mrf.mxu0
  %v4688 = vpop.f32.mrf.mxu0
  %v4689 = vadd.f32 %v4041, %v4688
  %v4690 = vpop.f32.mrf.mxu0
  %4691 = vmatprep.mubr.bf16.mxu0 %v3210
  %4692 = vmatmul.mubr.bf16.gmra.mxu0 %v3114
  %v4693 = vpop.f32.mrf.mxu0
  %v4694 = vadd.f32 %v4041, %v4693
  %v4695 = vpop.f32.mrf.mxu0
  %v4696 = vpop.f32.mrf.mxu0
  %v4697 = vadd.f32 %v4041, %v4696
  %v4698 = vpop.f32.mrf.mxu0
  %4699 = vmatprep.mubr.bf16.mxu0 %v3211
  %4700 = vmatmul.mubr.bf16.gmra.mxu0 %v3115
  %v4701 = vpop.f32.mrf.mxu0
  %v4702 = vadd.f32 %v4041, %v4701
  %v4703 = vpop.f32.mrf.mxu0
  %v4704 = vpop.f32.mrf.mxu0
  %v4705 = vadd.f32 %v4041, %v4704
  %v4706 = vpop.f32.mrf.mxu0
  %4707 = vmatprep.mubr.bf16.mxu0 %v3212
  %4708 = vmatmul.mubr.bf16.gmra.mxu0 %v3116
  %v4709 = vpop.f32.mrf.mxu0
  %v4710 = vadd.f32 %v4041, %v4709
  %v4711 = vpop.f32.mrf.mxu0
  %v4712 = vpop.f32.mrf.mxu0
  %v4713 = vadd.f32 %v4041, %v4712
  %v4714 = vpop.f32.mrf.mxu0
  %4715 = vmatprep.mubr.bf16.mxu0 %v3213
  %4716 = vmatmul.mubr.bf16.gmra.mxu0 %v3117
  %v4717 = vpop.f32.mrf.mxu0
  %v4718 = vadd.f32 %v4041, %v4717
  %v4719 = vpop.f32.mrf.mxu0
  %v4720 = vpop.f32.mrf.mxu0
  %v4721 = vadd.f32 %v4041, %v4720
  %v4722 = vpop.f32.mrf.mxu0
  %4723 = vmatprep.mubr.bf16.mxu0 %v3214
  %4724 = vmatmul.mubr.bf16.gmra.mxu0 %v3118
  %v4725 = vpop.f32.mrf.mxu0
  %v4726 = vadd.f32 %v4041, %v4725
  %v4727 = vpop.f32.mrf.mxu0
  %v4728 = vpop.f32.mrf.mxu0
  %v4729 = vadd.f32 %v4041, %v4728
  %v4730 = vpop.f32.mrf.mxu0
  %4731 = vmatprep.mubr.bf16.mxu0 %v3215
  %4732 = vmatmul.mubr.bf16.gmra.mxu0 %v3119
  %v4733 = vpop.f32.mrf.mxu0
  %v4734 = vadd.f32 %v4041, %v4733
  %v4735 = vpop.f32.mrf.mxu0
  %v4736 = vpop.f32.mrf.mxu0
  %v4737 = vadd.f32 %v4041, %v4736
  %v4738 = vpop.f32.mrf.mxu0
  %4739 = vmatprep.mubr.bf16.mxu0 %v3216
  %4740 = vmatmul.mubr.bf16.gmra.mxu0 %v3120
  %v4741 = vpop.f32.mrf.mxu0
  %v4742 = vadd.f32 %v4041, %v4741
  %v4743 = vpop.f32.mrf.mxu0
  %v4744 = vpop.f32.mrf.mxu0
  %v4745 = vadd.f32 %v4041, %v4744
  %v4746 = vpop.f32.mrf.mxu0
  %4747 = vmatprep.mubr.bf16.mxu0 %v3217
  %4748 = vmatmul.mubr.bf16.gmra.mxu0 %v3121
  %v4749 = vpop.f32.mrf.mxu0
  %v4750 = vadd.f32 %v4041, %v4749
  %v4751 = vpop.f32.mrf.mxu0
  %v4752 = vpop.f32.mrf.mxu0
  %v4753 = vadd.f32 %v4041, %v4752
  %v4754 = vpop.f32.mrf.mxu0
  %4755 = vmatprep.mubr.bf16.mxu0 %v3218
  %4756 = vmatmul.mubr.bf16.gmra.mxu0 %v3122
  %v4757 = vpop.f32.mrf.mxu0
  %v4758 = vadd.f32 %v4041, %v4757
  %v4759 = vpop.f32.mrf.mxu0
  %v4760 = vpop.f32.mrf.mxu0
  %v4761 = vadd.f32 %v4041, %v4760
  %v4762 = vpop.f32.mrf.mxu0
  %4763 = vdwg.mxu0
  %4764 = vmatprep.subr.bf16.mxu0 0
  %4765 = vmatpush1.bf16.msra.mxu0 %v4354
  %4766 = vmatprep.subr.bf16.mxu0 0
  %4767 = vmatpush1.bf16.msra.mxu0 %v4353
  %4768 = vmatprep.subr.bf16.mxu0 0
  %4769 = vmatpush1.bf16.msra.mxu0 %v4352
  %4770 = vmatprep.subr.bf16.mxu0 0
  %4771 = vmatpush1.bf16.msra.mxu0 %v4351
  %4772 = vmatprep.subr.bf16.mxu0 0
  %4773 = vmatpush1.bf16.msra.mxu0 %v4350
  %4774 = vmatprep.subr.bf16.mxu0 0
  %4775 = vmatpush1.bf16.msra.mxu0 %v4349
  %4776 = vmatprep.subr.bf16.mxu0 0
  %4777 = vmatpush1.bf16.msra.mxu0 %v4348
  %4778 = vmatprep.subr.bf16.mxu0 0
  %4779 = vmatpush1.bf16.msra.mxu0 %v4347
  %4780 = vmatprep.subr.bf16.mxu0 0
  %4781 = vmatpush2.bf16.msra.mxu0 %v4362
  %4782 = vmatprep.subr.bf16.mxu0 0
  %4783 = vmatpush2.bf16.msra.mxu0 %v4361
  %4784 = vmatprep.subr.bf16.mxu0 0
  %4785 = vmatpush2.bf16.msra.mxu0 %v4360
  %4786 = vmatprep.subr.bf16.mxu0 0
  %4787 = vmatpush2.bf16.msra.mxu0 %v4359
  %4788 = vmatprep.subr.bf16.mxu0 0
  %4789 = vmatpush2.bf16.msra.mxu0 %v4358
  %4790 = vmatprep.subr.bf16.mxu0 0
  %4791 = vmatpush2.bf16.msra.mxu0 %v4357
  %4792 = vmatprep.subr.bf16.mxu0 0
  %4793 = vmatpush2.bf16.msra.mxu0 %v4356
  %4794 = vmatprep.subr.bf16.mxu0 0
  %4795 = vmatpush2.bf16.msra.mxu0 %v4355
  %4796 = vmatprep.mubr.bf16.mxu0 %v3379
  %4797 = vmatmul.mubr.bf16.gmra.mxu0 %v3283
  %v4798 = vpop.f32.mrf.mxu0
  %v4799 = vadd.f32 %v4510, %v4798
  %v4800 = vpop.f32.mrf.mxu0
  %v4801 = vpop.f32.mrf.mxu0
  %v4802 = vadd.f32 %v4513, %v4801
  %v4803 = vpop.f32.mrf.mxu0
  %4804 = vmatprep.mubr.bf16.mxu0 %v3380
  %4805 = vmatmul.mubr.bf16.gmra.mxu0 %v3284
  %v4806 = vpop.f32.mrf.mxu0
  %v4807 = vadd.f32 %v4518, %v4806
  %v4808 = vpop.f32.mrf.mxu0
  %v4809 = vpop.f32.mrf.mxu0
  %v4810 = vadd.f32 %v4521, %v4809
  %v4811 = vpop.f32.mrf.mxu0
  %4812 = vmatprep.mubr.bf16.mxu0 %v3381
  %4813 = vmatmul.mubr.bf16.gmra.mxu0 %v3285
  %v4814 = vpop.f32.mrf.mxu0
  %v4815 = vadd.f32 %v4526, %v4814
  %v4816 = vpop.f32.mrf.mxu0
  %v4817 = vpop.f32.mrf.mxu0
  %v4818 = vadd.f32 %v4529, %v4817
  %v4819 = vpop.f32.mrf.mxu0
  %4820 = vmatprep.mubr.bf16.mxu0 %v3382
  %4821 = vmatmul.mubr.bf16.gmra.mxu0 %v3286
  %v4822 = vpop.f32.mrf.mxu0
  %v4823 = vadd.f32 %v4534, %v4822
  %v4824 = vpop.f32.mrf.mxu0
  %v4825 = vpop.f32.mrf.mxu0
  %v4826 = vadd.f32 %v4537, %v4825
  %v4827 = vpop.f32.mrf.mxu0
  %4828 = vmatprep.mubr.bf16.mxu0 %v3383
  %4829 = vmatmul.mubr.bf16.gmra.mxu0 %v3287
  %v4830 = vpop.f32.mrf.mxu0
  %v4831 = vadd.f32 %v4542, %v4830
  %v4832 = vpop.f32.mrf.mxu0
  %v4833 = vpop.f32.mrf.mxu0
  %v4834 = vadd.f32 %v4545, %v4833
  %v4835 = vpop.f32.mrf.mxu0
  %4836 = vmatprep.mubr.bf16.mxu0 %v3384
  %4837 = vmatmul.mubr.bf16.gmra.mxu0 %v3288
  %v4838 = vpop.f32.mrf.mxu0
  %v4839 = vadd.f32 %v4550, %v4838
  %v4840 = vpop.f32.mrf.mxu0
  %v4841 = vpop.f32.mrf.mxu0
  %v4842 = vadd.f32 %v4553, %v4841
  %v4843 = vpop.f32.mrf.mxu0
  %4844 = vmatprep.mubr.bf16.mxu0 %v3385
  %4845 = vmatmul.mubr.bf16.gmra.mxu0 %v3289
  %v4846 = vpop.f32.mrf.mxu0
  %v4847 = vadd.f32 %v4558, %v4846
  %v4848 = vpop.f32.mrf.mxu0
  %v4849 = vpop.f32.mrf.mxu0
  %v4850 = vadd.f32 %v4561, %v4849
  %v4851 = vpop.f32.mrf.mxu0
  %4852 = vmatprep.mubr.bf16.mxu0 %v3386
  %4853 = vmatmul.mubr.bf16.gmra.mxu0 %v3290
  %v4854 = vpop.f32.mrf.mxu0
  %v4855 = vadd.f32 %v4566, %v4854
  %v4856 = vpop.f32.mrf.mxu0
  %v4857 = vpop.f32.mrf.mxu0
  %v4858 = vadd.f32 %v4569, %v4857
  %v4859 = vpop.f32.mrf.mxu0
  %4860 = vmatprep.mubr.bf16.mxu0 %v3387
  %4861 = vmatmul.mubr.bf16.gmra.mxu0 %v3291
  %v4862 = vpop.f32.mrf.mxu0
  %v4863 = vadd.f32 %v4574, %v4862
  %v4864 = vpop.f32.mrf.mxu0
  %v4865 = vpop.f32.mrf.mxu0
  %v4866 = vadd.f32 %v4577, %v4865
  %v4867 = vpop.f32.mrf.mxu0
  %4868 = vmatprep.mubr.bf16.mxu0 %v3388
  %4869 = vmatmul.mubr.bf16.gmra.mxu0 %v3292
  %v4870 = vpop.f32.mrf.mxu0
  %v4871 = vadd.f32 %v4582, %v4870
  %v4872 = vpop.f32.mrf.mxu0
  %v4873 = vpop.f32.mrf.mxu0
  %v4874 = vadd.f32 %v4585, %v4873
  %v4875 = vpop.f32.mrf.mxu0
  %4876 = vmatprep.mubr.bf16.mxu0 %v3389
  %4877 = vmatmul.mubr.bf16.gmra.mxu0 %v3293
  %v4878 = vpop.f32.mrf.mxu0
  %v4879 = vadd.f32 %v4590, %v4878
  %v4880 = vpop.f32.mrf.mxu0
  %v4881 = vpop.f32.mrf.mxu0
  %v4882 = vadd.f32 %v4593, %v4881
  %v4883 = vpop.f32.mrf.mxu0
  %4884 = vmatprep.mubr.bf16.mxu0 %v3390
  %4885 = vmatmul.mubr.bf16.gmra.mxu0 %v3294
  %v4886 = vpop.f32.mrf.mxu0
  %v4887 = vadd.f32 %v4598, %v4886
  %v4888 = vpop.f32.mrf.mxu0
  %v4889 = vpop.f32.mrf.mxu0
  %v4890 = vadd.f32 %v4601, %v4889
  %v4891 = vpop.f32.mrf.mxu0
  %4892 = vmatprep.mubr.bf16.mxu0 %v3391
  %4893 = vmatmul.mubr.bf16.gmra.mxu0 %v3295
  %v4894 = vpop.f32.mrf.mxu0
  %v4895 = vadd.f32 %v4606, %v4894
  %v4896 = vpop.f32.mrf.mxu0
  %v4897 = vpop.f32.mrf.mxu0
  %v4898 = vadd.f32 %v4609, %v4897
  %v4899 = vpop.f32.mrf.mxu0
  %4900 = vmatprep.mubr.bf16.mxu0 %v3392
  %4901 = vmatmul.mubr.bf16.gmra.mxu0 %v3296
  %v4902 = vpop.f32.mrf.mxu0
  %v4903 = vadd.f32 %v4614, %v4902
  %v4904 = vpop.f32.mrf.mxu0
  %v4905 = vpop.f32.mrf.mxu0
  %v4906 = vadd.f32 %v4617, %v4905
  %v4907 = vpop.f32.mrf.mxu0
  %4908 = vmatprep.mubr.bf16.mxu0 %v3393
  %4909 = vmatmul.mubr.bf16.gmra.mxu0 %v3297
  %v4910 = vpop.f32.mrf.mxu0
  %v4911 = vadd.f32 %v4622, %v4910
  %v4912 = vpop.f32.mrf.mxu0
  %v4913 = vpop.f32.mrf.mxu0
  %v4914 = vadd.f32 %v4625, %v4913
  %v4915 = vpop.f32.mrf.mxu0
  %4916 = vmatprep.mubr.bf16.mxu0 %v3394
  %4917 = vmatmul.mubr.bf16.gmra.mxu0 %v3298
  %v4918 = vpop.f32.mrf.mxu0
  %v4919 = vadd.f32 %v4630, %v4918
  %v4920 = vpop.f32.mrf.mxu0
  %v4921 = vpop.f32.mrf.mxu0
  %v4922 = vadd.f32 %v4633, %v4921
  %v4923 = vpop.f32.mrf.mxu0
  %4924 = vmatprep.mubr.bf16.mxu0 %v3395
  %4925 = vmatmul.mubr.bf16.gmra.mxu0 %v3299
  %v4926 = vpop.f32.mrf.mxu0
  %v4927 = vadd.f32 %v4638, %v4926
  %v4928 = vpop.f32.mrf.mxu0
  %v4929 = vpop.f32.mrf.mxu0
  %v4930 = vadd.f32 %v4641, %v4929
  %v4931 = vpop.f32.mrf.mxu0
  %4932 = vmatprep.mubr.bf16.mxu0 %v3396
  %4933 = vmatmul.mubr.bf16.gmra.mxu0 %v3300
  %v4934 = vpop.f32.mrf.mxu0
  %v4935 = vadd.f32 %v4646, %v4934
  %v4936 = vpop.f32.mrf.mxu0
  %v4937 = vpop.f32.mrf.mxu0
  %v4938 = vadd.f32 %v4649, %v4937
  %v4939 = vpop.f32.mrf.mxu0
  %4940 = vmatprep.mubr.bf16.mxu0 %v3397
  %4941 = vmatmul.mubr.bf16.gmra.mxu0 %v3301
  %v4942 = vpop.f32.mrf.mxu0
  %v4943 = vadd.f32 %v4654, %v4942
  %v4944 = vpop.f32.mrf.mxu0
  %v4945 = vpop.f32.mrf.mxu0
  %v4946 = vadd.f32 %v4657, %v4945
  %v4947 = vpop.f32.mrf.mxu0
  %4948 = vmatprep.mubr.bf16.mxu0 %v3398
  %4949 = vmatmul.mubr.bf16.gmra.mxu0 %v3302
  %v4950 = vpop.f32.mrf.mxu0
  %v4951 = vadd.f32 %v4662, %v4950
  %v4952 = vpop.f32.mrf.mxu0
  %v4953 = vpop.f32.mrf.mxu0
  %v4954 = vadd.f32 %v4665, %v4953
  %v4955 = vpop.f32.mrf.mxu0
  %4956 = vmatprep.mubr.bf16.mxu0 %v3399
  %4957 = vmatmul.mubr.bf16.gmra.mxu0 %v3303
  %v4958 = vpop.f32.mrf.mxu0
  %v4959 = vadd.f32 %v4670, %v4958
  %v4960 = vpop.f32.mrf.mxu0
  %v4961 = vpop.f32.mrf.mxu0
  %v4962 = vadd.f32 %v4673, %v4961
  %v4963 = vpop.f32.mrf.mxu0
  %4964 = vmatprep.mubr.bf16.mxu0 %v3400
  %4965 = vmatmul.mubr.bf16.gmra.mxu0 %v3304
  %v4966 = vpop.f32.mrf.mxu0
  %v4967 = vadd.f32 %v4678, %v4966
  %v4968 = vpop.f32.mrf.mxu0
  %v4969 = vpop.f32.mrf.mxu0
  %v4970 = vadd.f32 %v4681, %v4969
  %v4971 = vpop.f32.mrf.mxu0
  %4972 = vmatprep.mubr.bf16.mxu0 %v3401
  %4973 = vmatmul.mubr.bf16.gmra.mxu0 %v3305
  %v4974 = vpop.f32.mrf.mxu0
  %v4975 = vadd.f32 %v4686, %v4974
  %v4976 = vpop.f32.mrf.mxu0
  %v4977 = vpop.f32.mrf.mxu0
  %v4978 = vadd.f32 %v4689, %v4977
  %v4979 = vpop.f32.mrf.mxu0
  %4980 = vmatprep.mubr.bf16.mxu0 %v3402
  %4981 = vmatmul.mubr.bf16.gmra.mxu0 %v3306
  %v4982 = vpop.f32.mrf.mxu0
  %v4983 = vadd.f32 %v4694, %v4982
  %v4984 = vpop.f32.mrf.mxu0
  %v4985 = vpop.f32.mrf.mxu0
  %v4986 = vadd.f32 %v4697, %v4985
  %v4987 = vpop.f32.mrf.mxu0
  %4988 = vmatprep.mubr.bf16.mxu0 %v3403
  %4989 = vmatmul.mubr.bf16.gmra.mxu0 %v3307
  %v4990 = vpop.f32.mrf.mxu0
  %v4991 = vadd.f32 %v4702, %v4990
  %v4992 = vpop.f32.mrf.mxu0
  %v4993 = vpop.f32.mrf.mxu0
  %v4994 = vadd.f32 %v4705, %v4993
  %v4995 = vpop.f32.mrf.mxu0
  %4996 = vmatprep.mubr.bf16.mxu0 %v3404
  %4997 = vmatmul.mubr.bf16.gmra.mxu0 %v3308
  %v4998 = vpop.f32.mrf.mxu0
  %v4999 = vadd.f32 %v4710, %v4998
  %v5000 = vpop.f32.mrf.mxu0
  %v5001 = vpop.f32.mrf.mxu0
  %v5002 = vadd.f32 %v4713, %v5001
  %v5003 = vpop.f32.mrf.mxu0
  %5004 = vmatprep.mubr.bf16.mxu0 %v3405
  %5005 = vmatmul.mubr.bf16.gmra.mxu0 %v3309
  %v5006 = vpop.f32.mrf.mxu0
  %v5007 = vadd.f32 %v4718, %v5006
  %v5008 = vpop.f32.mrf.mxu0
  %v5009 = vpop.f32.mrf.mxu0
  %v5010 = vadd.f32 %v4721, %v5009
  %v5011 = vpop.f32.mrf.mxu0
  %5012 = vmatprep.mubr.bf16.mxu0 %v3406
  %5013 = vmatmul.mubr.bf16.gmra.mxu0 %v3310
  %v5014 = vpop.f32.mrf.mxu0
  %v5015 = vadd.f32 %v4726, %v5014
  %v5016 = vpop.f32.mrf.mxu0
  %v5017 = vpop.f32.mrf.mxu0
  %v5018 = vadd.f32 %v4729, %v5017
  %v5019 = vpop.f32.mrf.mxu0
  %5020 = vmatprep.mubr.bf16.mxu0 %v3407
  %5021 = vmatmul.mubr.bf16.gmra.mxu0 %v3311
  %v5022 = vpop.f32.mrf.mxu0
  %v5023 = vadd.f32 %v4734, %v5022
  %v5024 = vpop.f32.mrf.mxu0
  %v5025 = vpop.f32.mrf.mxu0
  %v5026 = vadd.f32 %v4737, %v5025
  %v5027 = vpop.f32.mrf.mxu0
  %5028 = vmatprep.mubr.bf16.mxu0 %v3408
  %5029 = vmatmul.mubr.bf16.gmra.mxu0 %v3312
  %v5030 = vpop.f32.mrf.mxu0
  %v5031 = vadd.f32 %v4742, %v5030
  %v5032 = vpop.f32.mrf.mxu0
  %v5033 = vpop.f32.mrf.mxu0
  %v5034 = vadd.f32 %v4745, %v5033
  %v5035 = vpop.f32.mrf.mxu0
  %5036 = vmatprep.mubr.bf16.mxu0 %v3409
  %5037 = vmatmul.mubr.bf16.gmra.mxu0 %v3313
  %v5038 = vpop.f32.mrf.mxu0
  %v5039 = vadd.f32 %v4750, %v5038
  %v5040 = vpop.f32.mrf.mxu0
  %v5041 = vpop.f32.mrf.mxu0
  %v5042 = vadd.f32 %v4753, %v5041
  %v5043 = vpop.f32.mrf.mxu0
  %5044 = vmatprep.mubr.bf16.mxu0 %v3410
  %5045 = vmatmul.mubr.bf16.gmra.mxu0 %v3314
  %v5046 = vpop.f32.mrf.mxu0
  %v5047 = vadd.f32 %v4758, %v5046
  %v5048 = vpop.f32.mrf.mxu0
  %v5049 = vpop.f32.mrf.mxu0
  %v5050 = vadd.f32 %v4761, %v5049
  %v5051 = vpop.f32.mrf.mxu0
  %5052 = vdwg.mxu0
  %5053 = vmatprep.subr.bf16.mxu0 0
  %5054 = vmatpush1.bf16.msra.mxu0 %v4370
  %5055 = vmatprep.subr.bf16.mxu0 0
  %5056 = vmatpush1.bf16.msra.mxu0 %v4369
  %5057 = vmatprep.subr.bf16.mxu0 0
  %5058 = vmatpush1.bf16.msra.mxu0 %v4368
  %5059 = vmatprep.subr.bf16.mxu0 0
  %5060 = vmatpush1.bf16.msra.mxu0 %v4367
  %5061 = vmatprep.subr.bf16.mxu0 0
  %5062 = vmatpush1.bf16.msra.mxu0 %v4366
  %5063 = vmatprep.subr.bf16.mxu0 0
  %5064 = vmatpush1.bf16.msra.mxu0 %v4365
  %5065 = vmatprep.subr.bf16.mxu0 0
  %5066 = vmatpush1.bf16.msra.mxu0 %v4364
  %5067 = vmatprep.subr.bf16.mxu0 0
  %5068 = vmatpush1.bf16.msra.mxu0 %v4363
  %5069 = vmatprep.subr.bf16.mxu0 0
  %5070 = vmatpush2.bf16.msra.mxu0 %v4378
  %5071 = vmatprep.subr.bf16.mxu0 0
  %5072 = vmatpush2.bf16.msra.mxu0 %v4377
  %5073 = vmatprep.subr.bf16.mxu0 0
  %5074 = vmatpush2.bf16.msra.mxu0 %v4376
  %5075 = vmatprep.subr.bf16.mxu0 0
  %5076 = vmatpush2.bf16.msra.mxu0 %v4375
  %5077 = vmatprep.subr.bf16.mxu0 0
  %5078 = vmatpush2.bf16.msra.mxu0 %v4374
  %5079 = vmatprep.subr.bf16.mxu0 0
  %5080 = vmatpush2.bf16.msra.mxu0 %v4373
  %5081 = vmatprep.subr.bf16.mxu0 0
  %5082 = vmatpush2.bf16.msra.mxu0 %v4372
  %5083 = vmatprep.subr.bf16.mxu0 0
  %5084 = vmatpush2.bf16.msra.mxu0 %v4371
  %5085 = vmatprep.mubr.bf16.mxu0 %v3571
  %5086 = vmatmul.mubr.bf16.gmra.mxu0 %v3475
  %v5087 = vpop.f32.mrf.mxu0
  %v5088 = vadd.f32 %v4799, %v5087
  %v5089 = vpop.f32.mrf.mxu0
  %v5090 = vpop.f32.mrf.mxu0
  %v5091 = vadd.f32 %v4802, %v5090
  %v5092 = vpop.f32.mrf.mxu0
  %5093 = vmatprep.mubr.bf16.mxu0 %v3572
  %5094 = vmatmul.mubr.bf16.gmra.mxu0 %v3476
  %v5095 = vpop.f32.mrf.mxu0
  %v5096 = vadd.f32 %v4807, %v5095
  %v5097 = vpop.f32.mrf.mxu0
  %v5098 = vpop.f32.mrf.mxu0
  %v5099 = vadd.f32 %v4810, %v5098
  %v5100 = vpop.f32.mrf.mxu0
  %5101 = vmatprep.mubr.bf16.mxu0 %v3573
  %5102 = vmatmul.mubr.bf16.gmra.mxu0 %v3477
  %v5103 = vpop.f32.mrf.mxu0
  %v5104 = vadd.f32 %v4815, %v5103
  %v5105 = vpop.f32.mrf.mxu0
  %v5106 = vpop.f32.mrf.mxu0
  %v5107 = vadd.f32 %v4818, %v5106
  %v5108 = vpop.f32.mrf.mxu0
  %5109 = vmatprep.mubr.bf16.mxu0 %v3574
  %5110 = vmatmul.mubr.bf16.gmra.mxu0 %v3478
  %v5111 = vpop.f32.mrf.mxu0
  %v5112 = vadd.f32 %v4823, %v5111
  %v5113 = vpop.f32.mrf.mxu0
  %v5114 = vpop.f32.mrf.mxu0
  %v5115 = vadd.f32 %v4826, %v5114
  %v5116 = vpop.f32.mrf.mxu0
  %5117 = vmatprep.mubr.bf16.mxu0 %v3575
  %5118 = vmatmul.mubr.bf16.gmra.mxu0 %v3479
  %v5119 = vpop.f32.mrf.mxu0
  %v5120 = vadd.f32 %v4831, %v5119
  %v5121 = vpop.f32.mrf.mxu0
  %v5122 = vpop.f32.mrf.mxu0
  %v5123 = vadd.f32 %v4834, %v5122
  %v5124 = vpop.f32.mrf.mxu0
  %5125 = vmatprep.mubr.bf16.mxu0 %v3576
  %5126 = vmatmul.mubr.bf16.gmra.mxu0 %v3480
  %v5127 = vpop.f32.mrf.mxu0
  %v5128 = vadd.f32 %v4839, %v5127
  %v5129 = vpop.f32.mrf.mxu0
  %v5130 = vpop.f32.mrf.mxu0
  %v5131 = vadd.f32 %v4842, %v5130
  %v5132 = vpop.f32.mrf.mxu0
  %5133 = vmatprep.mubr.bf16.mxu0 %v3577
  %5134 = vmatmul.mubr.bf16.gmra.mxu0 %v3481
  %v5135 = vpop.f32.mrf.mxu0
  %v5136 = vadd.f32 %v4847, %v5135
  %v5137 = vpop.f32.mrf.mxu0
  %v5138 = vpop.f32.mrf.mxu0
  %v5139 = vadd.f32 %v4850, %v5138
  %v5140 = vpop.f32.mrf.mxu0
  %5141 = vmatprep.mubr.bf16.mxu0 %v3578
  %5142 = vmatmul.mubr.bf16.gmra.mxu0 %v3482
  %v5143 = vpop.f32.mrf.mxu0
  %v5144 = vadd.f32 %v4855, %v5143
  %v5145 = vpop.f32.mrf.mxu0
  %v5146 = vpop.f32.mrf.mxu0
  %v5147 = vadd.f32 %v4858, %v5146
  %v5148 = vpop.f32.mrf.mxu0
  %5149 = vmatprep.mubr.bf16.mxu0 %v3579
  %5150 = vmatmul.mubr.bf16.gmra.mxu0 %v3483
  %v5151 = vpop.f32.mrf.mxu0
  %v5152 = vadd.f32 %v4863, %v5151
  %v5153 = vpop.f32.mrf.mxu0
  %v5154 = vpop.f32.mrf.mxu0
  %v5155 = vadd.f32 %v4866, %v5154
  %v5156 = vpop.f32.mrf.mxu0
  %5157 = vmatprep.mubr.bf16.mxu0 %v3580
  %5158 = vmatmul.mubr.bf16.gmra.mxu0 %v3484
  %v5159 = vpop.f32.mrf.mxu0
  %v5160 = vadd.f32 %v4871, %v5159
  %v5161 = vpop.f32.mrf.mxu0
  %v5162 = vpop.f32.mrf.mxu0
  %v5163 = vadd.f32 %v4874, %v5162
  %v5164 = vpop.f32.mrf.mxu0
  %5165 = vmatprep.mubr.bf16.mxu0 %v3581
  %5166 = vmatmul.mubr.bf16.gmra.mxu0 %v3485
  %v5167 = vpop.f32.mrf.mxu0
  %v5168 = vadd.f32 %v4879, %v5167
  %v5169 = vpop.f32.mrf.mxu0
  %v5170 = vpop.f32.mrf.mxu0
  %v5171 = vadd.f32 %v4882, %v5170
  %v5172 = vpop.f32.mrf.mxu0
  %5173 = vmatprep.mubr.bf16.mxu0 %v3582
  %5174 = vmatmul.mubr.bf16.gmra.mxu0 %v3486
  %v5175 = vpop.f32.mrf.mxu0
  %v5176 = vadd.f32 %v4887, %v5175
  %v5177 = vpop.f32.mrf.mxu0
  %v5178 = vpop.f32.mrf.mxu0
  %v5179 = vadd.f32 %v4890, %v5178
  %v5180 = vpop.f32.mrf.mxu0
  %5181 = vmatprep.mubr.bf16.mxu0 %v3583
  %5182 = vmatmul.mubr.bf16.gmra.mxu0 %v3487
  %v5183 = vpop.f32.mrf.mxu0
  %v5184 = vadd.f32 %v4895, %v5183
  %v5185 = vpop.f32.mrf.mxu0
  %v5186 = vpop.f32.mrf.mxu0
  %v5187 = vadd.f32 %v4898, %v5186
  %v5188 = vpop.f32.mrf.mxu0
  %5189 = vmatprep.mubr.bf16.mxu0 %v3584
  %5190 = vmatmul.mubr.bf16.gmra.mxu0 %v3488
  %v5191 = vpop.f32.mrf.mxu0
  %v5192 = vadd.f32 %v4903, %v5191
  %v5193 = vpop.f32.mrf.mxu0
  %v5194 = vpop.f32.mrf.mxu0
  %v5195 = vadd.f32 %v4906, %v5194
  %v5196 = vpop.f32.mrf.mxu0
  %5197 = vmatprep.mubr.bf16.mxu0 %v3585
  %5198 = vmatmul.mubr.bf16.gmra.mxu0 %v3489
  %v5199 = vpop.f32.mrf.mxu0
  %v5200 = vadd.f32 %v4911, %v5199
  %v5201 = vpop.f32.mrf.mxu0
  %v5202 = vpop.f32.mrf.mxu0
  %v5203 = vadd.f32 %v4914, %v5202
  %v5204 = vpop.f32.mrf.mxu0
  %5205 = vmatprep.mubr.bf16.mxu0 %v3586
  %5206 = vmatmul.mubr.bf16.gmra.mxu0 %v3490
  %v5207 = vpop.f32.mrf.mxu0
  %v5208 = vadd.f32 %v4919, %v5207
  %v5209 = vpop.f32.mrf.mxu0
  %v5210 = vpop.f32.mrf.mxu0
  %v5211 = vadd.f32 %v4922, %v5210
  %v5212 = vpop.f32.mrf.mxu0
  %5213 = vmatprep.mubr.bf16.mxu0 %v3587
  %5214 = vmatmul.mubr.bf16.gmra.mxu0 %v3491
  %v5215 = vpop.f32.mrf.mxu0
  %v5216 = vadd.f32 %v4927, %v5215
  %v5217 = vpop.f32.mrf.mxu0
  %v5218 = vpop.f32.mrf.mxu0
  %v5219 = vadd.f32 %v4930, %v5218
  %v5220 = vpop.f32.mrf.mxu0
  %5221 = vmatprep.mubr.bf16.mxu0 %v3588
  %5222 = vmatmul.mubr.bf16.gmra.mxu0 %v3492
  %v5223 = vpop.f32.mrf.mxu0
  %v5224 = vadd.f32 %v4935, %v5223
  %v5225 = vpop.f32.mrf.mxu0
  %v5226 = vpop.f32.mrf.mxu0
  %v5227 = vadd.f32 %v4938, %v5226
  %v5228 = vpop.f32.mrf.mxu0
  %5229 = vmatprep.mubr.bf16.mxu0 %v3589
  %5230 = vmatmul.mubr.bf16.gmra.mxu0 %v3493
  %v5231 = vpop.f32.mrf.mxu0
  %v5232 = vadd.f32 %v4943, %v5231
  %v5233 = vpop.f32.mrf.mxu0
  %v5234 = vpop.f32.mrf.mxu0
  %v5235 = vadd.f32 %v4946, %v5234
  %v5236 = vpop.f32.mrf.mxu0
  %5237 = vmatprep.mubr.bf16.mxu0 %v3590
  %5238 = vmatmul.mubr.bf16.gmra.mxu0 %v3494
  %v5239 = vpop.f32.mrf.mxu0
  %v5240 = vadd.f32 %v4951, %v5239
  %v5241 = vpop.f32.mrf.mxu0
  %v5242 = vpop.f32.mrf.mxu0
  %v5243 = vadd.f32 %v4954, %v5242
  %v5244 = vpop.f32.mrf.mxu0
  %5245 = vmatprep.mubr.bf16.mxu0 %v3591
  %5246 = vmatmul.mubr.bf16.gmra.mxu0 %v3495
  %v5247 = vpop.f32.mrf.mxu0
  %v5248 = vadd.f32 %v4959, %v5247
  %v5249 = vpop.f32.mrf.mxu0
  %v5250 = vpop.f32.mrf.mxu0
  %v5251 = vadd.f32 %v4962, %v5250
  %v5252 = vpop.f32.mrf.mxu0
  %5253 = vmatprep.mubr.bf16.mxu0 %v3592
  %5254 = vmatmul.mubr.bf16.gmra.mxu0 %v3496
  %v5255 = vpop.f32.mrf.mxu0
  %v5256 = vadd.f32 %v4967, %v5255
  %v5257 = vpop.f32.mrf.mxu0
  %v5258 = vpop.f32.mrf.mxu0
  %v5259 = vadd.f32 %v4970, %v5258
  %v5260 = vpop.f32.mrf.mxu0
  %5261 = vmatprep.mubr.bf16.mxu0 %v3593
  %5262 = vmatmul.mubr.bf16.gmra.mxu0 %v3497
  %v5263 = vpop.f32.mrf.mxu0
  %v5264 = vadd.f32 %v4975, %v5263
  %v5265 = vpop.f32.mrf.mxu0
  %v5266 = vpop.f32.mrf.mxu0
  %v5267 = vadd.f32 %v4978, %v5266
  %v5268 = vpop.f32.mrf.mxu0
  %5269 = vmatprep.mubr.bf16.mxu0 %v3594
  %5270 = vmatmul.mubr.bf16.gmra.mxu0 %v3498
  %v5271 = vpop.f32.mrf.mxu0
  %v5272 = vadd.f32 %v4983, %v5271
  %v5273 = vpop.f32.mrf.mxu0
  %v5274 = vpop.f32.mrf.mxu0
  %v5275 = vadd.f32 %v4986, %v5274
  %v5276 = vpop.f32.mrf.mxu0
  %5277 = vmatprep.mubr.bf16.mxu0 %v3595
  %5278 = vmatmul.mubr.bf16.gmra.mxu0 %v3499
  %v5279 = vpop.f32.mrf.mxu0
  %v5280 = vadd.f32 %v4991, %v5279
  %v5281 = vpop.f32.mrf.mxu0
  %v5282 = vpop.f32.mrf.mxu0
  %v5283 = vadd.f32 %v4994, %v5282
  %v5284 = vpop.f32.mrf.mxu0
  %5285 = vmatprep.mubr.bf16.mxu0 %v3596
  %5286 = vmatmul.mubr.bf16.gmra.mxu0 %v3500
  %v5287 = vpop.f32.mrf.mxu0
  %v5288 = vadd.f32 %v4999, %v5287
  %v5289 = vpop.f32.mrf.mxu0
  %v5290 = vpop.f32.mrf.mxu0
  %v5291 = vadd.f32 %v5002, %v5290
  %v5292 = vpop.f32.mrf.mxu0
  %5293 = vmatprep.mubr.bf16.mxu0 %v3597
  %5294 = vmatmul.mubr.bf16.gmra.mxu0 %v3501
  %v5295 = vpop.f32.mrf.mxu0
  %v5296 = vadd.f32 %v5007, %v5295
  %v5297 = vpop.f32.mrf.mxu0
  %v5298 = vpop.f32.mrf.mxu0
  %v5299 = vadd.f32 %v5010, %v5298
  %v5300 = vpop.f32.mrf.mxu0
  %5301 = vmatprep.mubr.bf16.mxu0 %v3598
  %5302 = vmatmul.mubr.bf16.gmra.mxu0 %v3502
  %v5303 = vpop.f32.mrf.mxu0
  %v5304 = vadd.f32 %v5015, %v5303
  %v5305 = vpop.f32.mrf.mxu0
  %v5306 = vpop.f32.mrf.mxu0
  %v5307 = vadd.f32 %v5018, %v5306
  %v5308 = vpop.f32.mrf.mxu0
  %5309 = vmatprep.mubr.bf16.mxu0 %v3599
  %5310 = vmatmul.mubr.bf16.gmra.mxu0 %v3503
  %v5311 = vpop.f32.mrf.mxu0
  %v5312 = vadd.f32 %v5023, %v5311
  %v5313 = vpop.f32.mrf.mxu0
  %v5314 = vpop.f32.mrf.mxu0
  %v5315 = vadd.f32 %v5026, %v5314
  %v5316 = vpop.f32.mrf.mxu0
  %5317 = vmatprep.mubr.bf16.mxu0 %v3600
  %5318 = vmatmul.mubr.bf16.gmra.mxu0 %v3504
  %v5319 = vpop.f32.mrf.mxu0
  %v5320 = vadd.f32 %v5031, %v5319
  %v5321 = vpop.f32.mrf.mxu0
  %v5322 = vpop.f32.mrf.mxu0
  %v5323 = vadd.f32 %v5034, %v5322
  %v5324 = vpop.f32.mrf.mxu0
  %5325 = vmatprep.mubr.bf16.mxu0 %v3601
  %5326 = vmatmul.mubr.bf16.gmra.mxu0 %v3505
  %v5327 = vpop.f32.mrf.mxu0
  %v5328 = vadd.f32 %v5039, %v5327
  %v5329 = vpop.f32.mrf.mxu0
  %v5330 = vpop.f32.mrf.mxu0
  %v5331 = vadd.f32 %v5042, %v5330
  %v5332 = vpop.f32.mrf.mxu0
  %5333 = vmatprep.mubr.bf16.mxu0 %v3602
  %5334 = vmatmul.mubr.bf16.gmra.mxu0 %v3506
  %v5335 = vpop.f32.mrf.mxu0
  %v5336 = vadd.f32 %v5047, %v5335
  %v5337 = vpop.f32.mrf.mxu0
  %v5338 = vpop.f32.mrf.mxu0
  %v5339 = vadd.f32 %v5050, %v5338
  %v5340 = vpop.f32.mrf.mxu0
  %5341 = vdwg.mxu0
  %5342 = vmatprep.subr.bf16.mxu0 0
  %5343 = vmatpush1.bf16.msra.mxu0 %v4386
  %5344 = vmatprep.subr.bf16.mxu0 0
  %5345 = vmatpush1.bf16.msra.mxu0 %v4385
  %5346 = vmatprep.subr.bf16.mxu0 0
  %5347 = vmatpush1.bf16.msra.mxu0 %v4384
  %5348 = vmatprep.subr.bf16.mxu0 0
  %5349 = vmatpush1.bf16.msra.mxu0 %v4383
  %5350 = vmatprep.subr.bf16.mxu0 0
  %5351 = vmatpush1.bf16.msra.mxu0 %v4382
  %5352 = vmatprep.subr.bf16.mxu0 0
  %5353 = vmatpush1.bf16.msra.mxu0 %v4381
  %5354 = vmatprep.subr.bf16.mxu0 0
  %5355 = vmatpush1.bf16.msra.mxu0 %v4380
  %5356 = vmatprep.subr.bf16.mxu0 0
  %5357 = vmatpush1.bf16.msra.mxu0 %v4379
  %5358 = vmatprep.subr.bf16.mxu0 0
  %5359 = vmatpush2.bf16.msra.mxu0 %v4394
  %5360 = vmatprep.subr.bf16.mxu0 0
  %5361 = vmatpush2.bf16.msra.mxu0 %v4393
  %5362 = vmatprep.subr.bf16.mxu0 0
  %5363 = vmatpush2.bf16.msra.mxu0 %v4392
  %5364 = vmatprep.subr.bf16.mxu0 0
  %5365 = vmatpush2.bf16.msra.mxu0 %v4391
  %5366 = vmatprep.subr.bf16.mxu0 0
  %5367 = vmatpush2.bf16.msra.mxu0 %v4390
  %5368 = vmatprep.subr.bf16.mxu0 0
  %5369 = vmatpush2.bf16.msra.mxu0 %v4389
  %5370 = vmatprep.subr.bf16.mxu0 0
  %5371 = vmatpush2.bf16.msra.mxu0 %v4388
  %5372 = vmatprep.subr.bf16.mxu0 0
  %5373 = vmatpush2.bf16.msra.mxu0 %v4387
  %5374 = vmatprep.mubr.bf16.mxu0 %v3764
  %5375 = vmatmul.mubr.bf16.gmra.mxu0 %v3668
  %v5376 = vpop.f32.mrf.mxu0
  %v5377 = vadd.f32 %v5088, %v5376
  %v5378 = vpop.f32.mrf.mxu0
  %v5379 = vpop.f32.mrf.mxu0
  %v5380 = vadd.f32 %v5091, %v5379
  %v5381 = vpop.f32.mrf.mxu0
  %5382 = vmatprep.mubr.bf16.mxu0 %v3765
  %5383 = vmatmul.mubr.bf16.gmra.mxu0 %v3669
  %v5384 = vpop.f32.mrf.mxu0
  %v5385 = vadd.f32 %v5096, %v5384
  %v5386 = vpop.f32.mrf.mxu0
  %v5387 = vpop.f32.mrf.mxu0
  %v5388 = vadd.f32 %v5099, %v5387
  %v5389 = vpop.f32.mrf.mxu0
  %5390 = vmatprep.mubr.bf16.mxu0 %v3766
  %5391 = vmatmul.mubr.bf16.gmra.mxu0 %v3670
  %v5392 = vpop.f32.mrf.mxu0
  %v5393 = vadd.f32 %v5104, %v5392
  %v5394 = vpop.f32.mrf.mxu0
  %v5395 = vpop.f32.mrf.mxu0
  %v5396 = vadd.f32 %v5107, %v5395
  %v5397 = vpop.f32.mrf.mxu0
  %5398 = vmatprep.mubr.bf16.mxu0 %v3767
  %5399 = vmatmul.mubr.bf16.gmra.mxu0 %v3671
  %v5400 = vpop.f32.mrf.mxu0
  %v5401 = vadd.f32 %v5112, %v5400
  %v5402 = vpop.f32.mrf.mxu0
  %v5403 = vpop.f32.mrf.mxu0
  %v5404 = vadd.f32 %v5115, %v5403
  %v5405 = vpop.f32.mrf.mxu0
  %5406 = vmatprep.mubr.bf16.mxu0 %v3768
  %5407 = vmatmul.mubr.bf16.gmra.mxu0 %v3672
  %v5408 = vpop.f32.mrf.mxu0
  %v5409 = vadd.f32 %v5120, %v5408
  %v5410 = vpop.f32.mrf.mxu0
  %v5411 = vpop.f32.mrf.mxu0
  %v5412 = vadd.f32 %v5123, %v5411
  %v5413 = vpop.f32.mrf.mxu0
  %5414 = vmatprep.mubr.bf16.mxu0 %v3769
  %5415 = vmatmul.mubr.bf16.gmra.mxu0 %v3673
  %v5416 = vpop.f32.mrf.mxu0
  %v5417 = vadd.f32 %v5128, %v5416
  %v5418 = vpop.f32.mrf.mxu0
  %v5419 = vpop.f32.mrf.mxu0
  %v5420 = vadd.f32 %v5131, %v5419
  %v5421 = vpop.f32.mrf.mxu0
  %5422 = vmatprep.mubr.bf16.mxu0 %v3770
  %5423 = vmatmul.mubr.bf16.gmra.mxu0 %v3674
  %v5424 = vpop.f32.mrf.mxu0
  %v5425 = vadd.f32 %v5136, %v5424
  %v5426 = vpop.f32.mrf.mxu0
  %v5427 = vpop.f32.mrf.mxu0
  %v5428 = vadd.f32 %v5139, %v5427
  %v5429 = vpop.f32.mrf.mxu0
  %5430 = vmatprep.mubr.bf16.mxu0 %v3771
  %5431 = vmatmul.mubr.bf16.gmra.mxu0 %v3675
  %v5432 = vpop.f32.mrf.mxu0
  %v5433 = vadd.f32 %v5144, %v5432
  %v5434 = vpop.f32.mrf.mxu0
  %v5435 = vpop.f32.mrf.mxu0
  %v5436 = vadd.f32 %v5147, %v5435
  %v5437 = vpop.f32.mrf.mxu0
  %5438 = vmatprep.mubr.bf16.mxu0 %v3772
  %5439 = vmatmul.mubr.bf16.gmra.mxu0 %v3676
  %v5440 = vpop.f32.mrf.mxu0
  %v5441 = vadd.f32 %v5152, %v5440
  %v5442 = vpop.f32.mrf.mxu0
  %v5443 = vpop.f32.mrf.mxu0
  %v5444 = vadd.f32 %v5155, %v5443
  %v5445 = vpop.f32.mrf.mxu0
  %5446 = vmatprep.mubr.bf16.mxu0 %v3773
  %5447 = vmatmul.mubr.bf16.gmra.mxu0 %v3677
  %v5448 = vpop.f32.mrf.mxu0
  %v5449 = vadd.f32 %v5160, %v5448
  %v5450 = vpop.f32.mrf.mxu0
  %v5451 = vpop.f32.mrf.mxu0
  %v5452 = vadd.f32 %v5163, %v5451
  %v5453 = vpop.f32.mrf.mxu0
  %5454 = vmatprep.mubr.bf16.mxu0 %v3774
  %5455 = vmatmul.mubr.bf16.gmra.mxu0 %v3678
  %v5456 = vpop.f32.mrf.mxu0
  %v5457 = vadd.f32 %v5168, %v5456
  %v5458 = vpop.f32.mrf.mxu0
  %v5459 = vpop.f32.mrf.mxu0
  %v5460 = vadd.f32 %v5171, %v5459
  %v5461 = vpop.f32.mrf.mxu0
  %5462 = vmatprep.mubr.bf16.mxu0 %v3775
  %5463 = vmatmul.mubr.bf16.gmra.mxu0 %v3679
  %v5464 = vpop.f32.mrf.mxu0
  %v5465 = vadd.f32 %v5176, %v5464
  %v5466 = vpop.f32.mrf.mxu0
  %v5467 = vpop.f32.mrf.mxu0
  %v5468 = vadd.f32 %v5179, %v5467
  %v5469 = vpop.f32.mrf.mxu0
  %5470 = vmatprep.mubr.bf16.mxu0 %v3776
  %5471 = vmatmul.mubr.bf16.gmra.mxu0 %v3680
  %v5472 = vpop.f32.mrf.mxu0
  %v5473 = vadd.f32 %v5184, %v5472
  %v5474 = vpop.f32.mrf.mxu0
  %v5475 = vpop.f32.mrf.mxu0
  %v5476 = vadd.f32 %v5187, %v5475
  %v5477 = vpop.f32.mrf.mxu0
  %5478 = vmatprep.mubr.bf16.mxu0 %v3777
  %5479 = vmatmul.mubr.bf16.gmra.mxu0 %v3681
  %v5480 = vpop.f32.mrf.mxu0
  %v5481 = vadd.f32 %v5192, %v5480
  %v5482 = vpop.f32.mrf.mxu0
  %v5483 = vpop.f32.mrf.mxu0
  %v5484 = vadd.f32 %v5195, %v5483
  %v5485 = vpop.f32.mrf.mxu0
  %5486 = vmatprep.mubr.bf16.mxu0 %v3778
  %5487 = vmatmul.mubr.bf16.gmra.mxu0 %v3682
  %v5488 = vpop.f32.mrf.mxu0
  %v5489 = vadd.f32 %v5200, %v5488
  %v5490 = vpop.f32.mrf.mxu0
  %v5491 = vpop.f32.mrf.mxu0
  %v5492 = vadd.f32 %v5203, %v5491
  %v5493 = vpop.f32.mrf.mxu0
  %5494 = vmatprep.mubr.bf16.mxu0 %v3779
  %5495 = vmatmul.mubr.bf16.gmra.mxu0 %v3683
  %v5496 = vpop.f32.mrf.mxu0
  %v5497 = vadd.f32 %v5208, %v5496
  %v5498 = vpop.f32.mrf.mxu0
  %v5499 = vpop.f32.mrf.mxu0
  %v5500 = vadd.f32 %v5211, %v5499
  %v5501 = vpop.f32.mrf.mxu0
  %5502 = vmatprep.mubr.bf16.mxu0 %v3780
  %5503 = vmatmul.mubr.bf16.gmra.mxu0 %v3684
  %v5504 = vpop.f32.mrf.mxu0
  %v5505 = vadd.f32 %v5216, %v5504
  %v5506 = vpop.f32.mrf.mxu0
  %v5507 = vpop.f32.mrf.mxu0
  %v5508 = vadd.f32 %v5219, %v5507
  %v5509 = vpop.f32.mrf.mxu0
  %5510 = vmatprep.mubr.bf16.mxu0 %v3781
  %5511 = vmatmul.mubr.bf16.gmra.mxu0 %v3685
  %v5512 = vpop.f32.mrf.mxu0
  %v5513 = vadd.f32 %v5224, %v5512
  %v5514 = vpop.f32.mrf.mxu0
  %v5515 = vpop.f32.mrf.mxu0
  %v5516 = vadd.f32 %v5227, %v5515
  %v5517 = vpop.f32.mrf.mxu0
  %5518 = vmatprep.mubr.bf16.mxu0 %v3782
  %5519 = vmatmul.mubr.bf16.gmra.mxu0 %v3686
  %v5520 = vpop.f32.mrf.mxu0
  %v5521 = vadd.f32 %v5232, %v5520
  %v5522 = vpop.f32.mrf.mxu0
  %v5523 = vpop.f32.mrf.mxu0
  %v5524 = vadd.f32 %v5235, %v5523
  %v5525 = vpop.f32.mrf.mxu0
  %5526 = vmatprep.mubr.bf16.mxu0 %v3783
  %5527 = vmatmul.mubr.bf16.gmra.mxu0 %v3687
  %v5528 = vpop.f32.mrf.mxu0
  %v5529 = vadd.f32 %v5240, %v5528
  %v5530 = vpop.f32.mrf.mxu0
  %v5531 = vpop.f32.mrf.mxu0
  %v5532 = vadd.f32 %v5243, %v5531
  %v5533 = vpop.f32.mrf.mxu0
  %5534 = vmatprep.mubr.bf16.mxu0 %v3784
  %5535 = vmatmul.mubr.bf16.gmra.mxu0 %v3688
  %v5536 = vpop.f32.mrf.mxu0
  %v5537 = vadd.f32 %v5248, %v5536
  %v5538 = vpop.f32.mrf.mxu0
  %v5539 = vpop.f32.mrf.mxu0
  %v5540 = vadd.f32 %v5251, %v5539
  %v5541 = vpop.f32.mrf.mxu0
  %5542 = vmatprep.mubr.bf16.mxu0 %v3785
  %5543 = vmatmul.mubr.bf16.gmra.mxu0 %v3689
  %v5544 = vpop.f32.mrf.mxu0
  %v5545 = vadd.f32 %v5256, %v5544
  %v5546 = vpop.f32.mrf.mxu0
  %v5547 = vpop.f32.mrf.mxu0
  %v5548 = vadd.f32 %v5259, %v5547
  %v5549 = vpop.f32.mrf.mxu0
  %5550 = vmatprep.mubr.bf16.mxu0 %v3786
  %5551 = vmatmul.mubr.bf16.gmra.mxu0 %v3690
  %v5552 = vpop.f32.mrf.mxu0
  %v5553 = vadd.f32 %v5264, %v5552
  %v5554 = vpop.f32.mrf.mxu0
  %v5555 = vpop.f32.mrf.mxu0
  %v5556 = vadd.f32 %v5267, %v5555
  %v5557 = vpop.f32.mrf.mxu0
  %5558 = vmatprep.mubr.bf16.mxu0 %v3787
  %5559 = vmatmul.mubr.bf16.gmra.mxu0 %v3691
  %v5560 = vpop.f32.mrf.mxu0
  %v5561 = vadd.f32 %v5272, %v5560
  %v5562 = vpop.f32.mrf.mxu0
  %v5563 = vpop.f32.mrf.mxu0
  %v5564 = vadd.f32 %v5275, %v5563
  %v5565 = vpop.f32.mrf.mxu0
  %5566 = vmatprep.mubr.bf16.mxu0 %v3788
  %5567 = vmatmul.mubr.bf16.gmra.mxu0 %v3692
  %v5568 = vpop.f32.mrf.mxu0
  %v5569 = vadd.f32 %v5280, %v5568
  %v5570 = vpop.f32.mrf.mxu0
  %v5571 = vpop.f32.mrf.mxu0
  %v5572 = vadd.f32 %v5283, %v5571
  %v5573 = vpop.f32.mrf.mxu0
  %5574 = vmatprep.mubr.bf16.mxu0 %v3789
  %5575 = vmatmul.mubr.bf16.gmra.mxu0 %v3693
  %v5576 = vpop.f32.mrf.mxu0
  %v5577 = vadd.f32 %v5288, %v5576
  %v5578 = vpop.f32.mrf.mxu0
  %v5579 = vpop.f32.mrf.mxu0
  %v5580 = vadd.f32 %v5291, %v5579
  %v5581 = vpop.f32.mrf.mxu0
  %5582 = vmatprep.mubr.bf16.mxu0 %v3790
  %5583 = vmatmul.mubr.bf16.gmra.mxu0 %v3694
  %v5584 = vpop.f32.mrf.mxu0
  %v5585 = vadd.f32 %v5296, %v5584
  %v5586 = vpop.f32.mrf.mxu0
  %v5587 = vpop.f32.mrf.mxu0
  %v5588 = vadd.f32 %v5299, %v5587
  %v5589 = vpop.f32.mrf.mxu0
  %5590 = vmatprep.mubr.bf16.mxu0 %v3791
  %5591 = vmatmul.mubr.bf16.gmra.mxu0 %v3695
  %v5592 = vpop.f32.mrf.mxu0
  %v5593 = vadd.f32 %v5304, %v5592
  %v5594 = vpop.f32.mrf.mxu0
  %v5595 = vpop.f32.mrf.mxu0
  %v5596 = vadd.f32 %v5307, %v5595
  %v5597 = vpop.f32.mrf.mxu0
  %5598 = vmatprep.mubr.bf16.mxu0 %v3792
  %5599 = vmatmul.mubr.bf16.gmra.mxu0 %v3696
  %v5600 = vpop.f32.mrf.mxu0
  %v5601 = vadd.f32 %v5312, %v5600
  %v5602 = vpop.f32.mrf.mxu0
  %v5603 = vpop.f32.mrf.mxu0
  %v5604 = vadd.f32 %v5315, %v5603
  %v5605 = vpop.f32.mrf.mxu0
  %5606 = vmatprep.mubr.bf16.mxu0 %v3793
  %5607 = vmatmul.mubr.bf16.gmra.mxu0 %v3697
  %v5608 = vpop.f32.mrf.mxu0
  %v5609 = vadd.f32 %v5320, %v5608
  %v5610 = vpop.f32.mrf.mxu0
  %v5611 = vpop.f32.mrf.mxu0
  %v5612 = vadd.f32 %v5323, %v5611
  %v5613 = vpop.f32.mrf.mxu0
  %5614 = vmatprep.mubr.bf16.mxu0 %v3794
  %5615 = vmatmul.mubr.bf16.gmra.mxu0 %v3698
  %v5616 = vpop.f32.mrf.mxu0
  %v5617 = vadd.f32 %v5328, %v5616
  %v5618 = vpop.f32.mrf.mxu0
  %v5619 = vpop.f32.mrf.mxu0
  %v5620 = vadd.f32 %v5331, %v5619
  %v5621 = vpop.f32.mrf.mxu0
  %5622 = vmatprep.mubr.bf16.mxu0 %v3795
  %5623 = vmatmul.mubr.bf16.gmra.mxu0 %v3699
  %v5624 = vpop.f32.mrf.mxu0
  %v5625 = vadd.f32 %v5336, %v5624
  %v5626 = vpop.f32.mrf.mxu0
  %v5627 = vpop.f32.mrf.mxu0
  %v5628 = vadd.f32 %v5339, %v5627
  %v5629 = vpop.f32.mrf.mxu0
  %5630 = vdwg.mxu0
  %5631 = vmatprep.subr.bf16.mxu0 0
  %5632 = vmatpush1.bf16.msra.mxu0 %v4402
  %5633 = vmatprep.subr.bf16.mxu0 0
  %5634 = vmatpush1.bf16.msra.mxu0 %v4401
  %5635 = vmatprep.subr.bf16.mxu0 0
  %5636 = vmatpush1.bf16.msra.mxu0 %v4400
  %5637 = vmatprep.subr.bf16.mxu0 0
  %5638 = vmatpush1.bf16.msra.mxu0 %v4399
  %5639 = vmatprep.subr.bf16.mxu0 0
  %5640 = vmatpush1.bf16.msra.mxu0 %v4398
  %5641 = vmatprep.subr.bf16.mxu0 0
  %5642 = vmatpush1.bf16.msra.mxu0 %v4397
  %5643 = vmatprep.subr.bf16.mxu0 0
  %5644 = vmatpush1.bf16.msra.mxu0 %v4396
  %5645 = vmatprep.subr.bf16.mxu0 0
  %5646 = vmatpush1.bf16.msra.mxu0 %v4395
  %5647 = vmatprep.subr.bf16.mxu0 0
  %5648 = vmatpush2.bf16.msra.mxu0 0
  %5649 = vmatprep.subr.bf16.mxu0 0
  %5650 = vmatpush2.bf16.msra.mxu0 0
  %5651 = vmatprep.subr.bf16.mxu0 0
  %5652 = vmatpush2.bf16.msra.mxu0 0
  %5653 = vmatprep.subr.bf16.mxu0 0
  %5654 = vmatpush2.bf16.msra.mxu0 0
  %5655 = vmatprep.subr.bf16.mxu0 0
  %5656 = vmatpush2.bf16.msra.mxu0 0
  %5657 = vmatprep.subr.bf16.mxu0 0
  %5658 = vmatpush2.bf16.msra.mxu0 0
  %5659 = vmatprep.subr.bf16.mxu0 0
  %5660 = vmatpush2.bf16.msra.mxu0 0
  %5661 = vmatprep.subr.bf16.mxu0 0
  %5662 = vmatpush2.bf16.msra.mxu0 0
  %5663 = vmatprep.mubr.bf16.mxu0 0
  %5664 = vmatmul.mubr.bf16.gmra.mxu0 %v3860
  %v5665 = vpop.f32.mrf.mxu0
  %v5666 = vadd.f32 %v5377, %v5665
  %v5667 = vpop.f32.mrf.mxu0
  %v5668 = vpop.f32.mrf.mxu0
  %v5669 = vadd.f32 %v5380, %v5668
  %v5670 = vpop.f32.mrf.mxu0
  %5671 = vmatprep.mubr.bf16.mxu0 0
  %5672 = vmatmul.mubr.bf16.gmra.mxu0 %v3861
  %v5673 = vpop.f32.mrf.mxu0
  %v5674 = vadd.f32 %v5385, %v5673
  %v5675 = vpop.f32.mrf.mxu0
  %v5676 = vpop.f32.mrf.mxu0
  %v5677 = vadd.f32 %v5388, %v5676
  %v5678 = vpop.f32.mrf.mxu0
  %5679 = vmatprep.mubr.bf16.mxu0 0
  %5680 = vmatmul.mubr.bf16.gmra.mxu0 %v3862
  %v5681 = vpop.f32.mrf.mxu0
  %v5682 = vadd.f32 %v5393, %v5681
  %v5683 = vpop.f32.mrf.mxu0
  %v5684 = vpop.f32.mrf.mxu0
  %v5685 = vadd.f32 %v5396, %v5684
  %v5686 = vpop.f32.mrf.mxu0
  %5687 = vmatprep.mubr.bf16.mxu0 0
  %5688 = vmatmul.mubr.bf16.gmra.mxu0 %v3863
  %v5689 = vpop.f32.mrf.mxu0
  %v5690 = vadd.f32 %v5401, %v5689
  %v5691 = vpop.f32.mrf.mxu0
  %v5692 = vpop.f32.mrf.mxu0
  %v5693 = vadd.f32 %v5404, %v5692
  %v5694 = vpop.f32.mrf.mxu0
  %5695 = vmatprep.mubr.bf16.mxu0 0
  %5696 = vmatmul.mubr.bf16.gmra.mxu0 %v3864
  %v5697 = vpop.f32.mrf.mxu0
  %v5698 = vadd.f32 %v5409, %v5697
  %v5699 = vpop.f32.mrf.mxu0
  %v5700 = vpop.f32.mrf.mxu0
  %v5701 = vadd.f32 %v5412, %v5700
  %v5702 = vpop.f32.mrf.mxu0
  %5703 = vmatprep.mubr.bf16.mxu0 0
  %5704 = vmatmul.mubr.bf16.gmra.mxu0 %v3865
  %v5705 = vpop.f32.mrf.mxu0
  %v5706 = vadd.f32 %v5417, %v5705
  %v5707 = vpop.f32.mrf.mxu0
  %v5708 = vpop.f32.mrf.mxu0
  %v5709 = vadd.f32 %v5420, %v5708
  %v5710 = vpop.f32.mrf.mxu0
  %5711 = vmatprep.mubr.bf16.mxu0 0
  %5712 = vmatmul.mubr.bf16.gmra.mxu0 %v3866
  %v5713 = vpop.f32.mrf.mxu0
  %v5714 = vadd.f32 %v5425, %v5713
  %v5715 = vpop.f32.mrf.mxu0
  %v5716 = vpop.f32.mrf.mxu0
  %v5717 = vadd.f32 %v5428, %v5716
  %v5718 = vpop.f32.mrf.mxu0
  %5719 = vmatprep.mubr.bf16.mxu0 0
  %5720 = vmatmul.mubr.bf16.gmra.mxu0 %v3867
  %v5721 = vpop.f32.mrf.mxu0
  %v5722 = vadd.f32 %v5433, %v5721
  %v5723 = vpop.f32.mrf.mxu0
  %v5724 = vpop.f32.mrf.mxu0
  %v5725 = vadd.f32 %v5436, %v5724
  %v5726 = vpop.f32.mrf.mxu0
  %5727 = vmatprep.mubr.bf16.mxu0 0
  %5728 = vmatmul.mubr.bf16.gmra.mxu0 %v3868
  %v5729 = vpop.f32.mrf.mxu0
  %v5730 = vadd.f32 %v5441, %v5729
  %v5731 = vpop.f32.mrf.mxu0
  %v5732 = vpop.f32.mrf.mxu0
  %v5733 = vadd.f32 %v5444, %v5732
  %v5734 = vpop.f32.mrf.mxu0
  %5735 = vmatprep.mubr.bf16.mxu0 0
  %5736 = vmatmul.mubr.bf16.gmra.mxu0 %v3869
  %v5737 = vpop.f32.mrf.mxu0
  %v5738 = vadd.f32 %v5449, %v5737
  %v5739 = vpop.f32.mrf.mxu0
  %v5740 = vpop.f32.mrf.mxu0
  %v5741 = vadd.f32 %v5452, %v5740
  %v5742 = vpop.f32.mrf.mxu0
  %5743 = vmatprep.mubr.bf16.mxu0 0
  %5744 = vmatmul.mubr.bf16.gmra.mxu0 %v3870
  %v5745 = vpop.f32.mrf.mxu0
  %v5746 = vadd.f32 %v5457, %v5745
  %v5747 = vpop.f32.mrf.mxu0
  %v5748 = vpop.f32.mrf.mxu0
  %v5749 = vadd.f32 %v5460, %v5748
  %v5750 = vpop.f32.mrf.mxu0
  %5751 = vmatprep.mubr.bf16.mxu0 0
  %5752 = vmatmul.mubr.bf16.gmra.mxu0 %v3871
  %v5753 = vpop.f32.mrf.mxu0
  %v5754 = vadd.f32 %v5465, %v5753
  %v5755 = vpop.f32.mrf.mxu0
  %v5756 = vpop.f32.mrf.mxu0
  %v5757 = vadd.f32 %v5468, %v5756
  %v5758 = vpop.f32.mrf.mxu0
  %5759 = vmatprep.mubr.bf16.mxu0 0
  %5760 = vmatmul.mubr.bf16.gmra.mxu0 %v3872
  %v5761 = vpop.f32.mrf.mxu0
  %v5762 = vadd.f32 %v5473, %v5761
  %v5763 = vpop.f32.mrf.mxu0
  %v5764 = vpop.f32.mrf.mxu0
  %v5765 = vadd.f32 %v5476, %v5764
  %v5766 = vpop.f32.mrf.mxu0
  %5767 = vmatprep.mubr.bf16.mxu0 0
  %5768 = vmatmul.mubr.bf16.gmra.mxu0 %v3873
  %v5769 = vpop.f32.mrf.mxu0
  %v5770 = vadd.f32 %v5481, %v5769
  %v5771 = vpop.f32.mrf.mxu0
  %v5772 = vpop.f32.mrf.mxu0
  %v5773 = vadd.f32 %v5484, %v5772
  %v5774 = vpop.f32.mrf.mxu0
  %5775 = vmatprep.mubr.bf16.mxu0 0
  %5776 = vmatmul.mubr.bf16.gmra.mxu0 %v3874
  %v5777 = vpop.f32.mrf.mxu0
  %v5778 = vadd.f32 %v5489, %v5777
  %v5779 = vpop.f32.mrf.mxu0
  %v5780 = vpop.f32.mrf.mxu0
  %v5781 = vadd.f32 %v5492, %v5780
  %v5782 = vpop.f32.mrf.mxu0
  %5783 = vmatprep.mubr.bf16.mxu0 0
  %5784 = vmatmul.mubr.bf16.gmra.mxu0 %v3875
  %v5785 = vpop.f32.mrf.mxu0
  %v5786 = vadd.f32 %v5497, %v5785
  %v5787 = vpop.f32.mrf.mxu0
  %v5788 = vpop.f32.mrf.mxu0
  %v5789 = vadd.f32 %v5500, %v5788
  %v5790 = vpop.f32.mrf.mxu0
  %5791 = vmatprep.mubr.bf16.mxu0 0
  %5792 = vmatmul.mubr.bf16.gmra.mxu0 %v3876
  %v5793 = vpop.f32.mrf.mxu0
  %v5794 = vadd.f32 %v5505, %v5793
  %v5795 = vpop.f32.mrf.mxu0
  %v5796 = vpop.f32.mrf.mxu0
  %v5797 = vadd.f32 %v5508, %v5796
  %v5798 = vpop.f32.mrf.mxu0
  %5799 = vmatprep.mubr.bf16.mxu0 0
  %5800 = vmatmul.mubr.bf16.gmra.mxu0 %v3877
  %v5801 = vpop.f32.mrf.mxu0
  %v5802 = vadd.f32 %v5513, %v5801
  %v5803 = vpop.f32.mrf.mxu0
  %v5804 = vpop.f32.mrf.mxu0
  %v5805 = vadd.f32 %v5516, %v5804
  %v5806 = vpop.f32.mrf.mxu0
  %5807 = vmatprep.mubr.bf16.mxu0 0
  %5808 = vmatmul.mubr.bf16.gmra.mxu0 %v3878
  %v5809 = vpop.f32.mrf.mxu0
  %v5810 = vadd.f32 %v5521, %v5809
  %v5811 = vpop.f32.mrf.mxu0
  %v5812 = vpop.f32.mrf.mxu0
  %v5813 = vadd.f32 %v5524, %v5812
  %v5814 = vpop.f32.mrf.mxu0
  %5815 = vmatprep.mubr.bf16.mxu0 0
  %5816 = vmatmul.mubr.bf16.gmra.mxu0 %v3879
  %v5817 = vpop.f32.mrf.mxu0
  %v5818 = vadd.f32 %v5529, %v5817
  %v5819 = vpop.f32.mrf.mxu0
  %v5820 = vpop.f32.mrf.mxu0
  %v5821 = vadd.f32 %v5532, %v5820
  %v5822 = vpop.f32.mrf.mxu0
  %5823 = vmatprep.mubr.bf16.mxu0 0
  %5824 = vmatmul.mubr.bf16.gmra.mxu0 %v3880
  %v5825 = vpop.f32.mrf.mxu0
  %v5826 = vadd.f32 %v5537, %v5825
  %v5827 = vpop.f32.mrf.mxu0
  %v5828 = vpop.f32.mrf.mxu0
  %v5829 = vadd.f32 %v5540, %v5828
  %v5830 = vpop.f32.mrf.mxu0
  %5831 = vmatprep.mubr.bf16.mxu0 0
  %5832 = vmatmul.mubr.bf16.gmra.mxu0 %v3881
  %v5833 = vpop.f32.mrf.mxu0
  %v5834 = vadd.f32 %v5545, %v5833
  %v5835 = vpop.f32.mrf.mxu0
  %v5836 = vpop.f32.mrf.mxu0
  %v5837 = vadd.f32 %v5548, %v5836
  %v5838 = vpop.f32.mrf.mxu0
  %5839 = vmatprep.mubr.bf16.mxu0 0
  %5840 = vmatmul.mubr.bf16.gmra.mxu0 %v3882
  %v5841 = vpop.f32.mrf.mxu0
  %v5842 = vadd.f32 %v5553, %v5841
  %v5843 = vpop.f32.mrf.mxu0
  %v5844 = vpop.f32.mrf.mxu0
  %v5845 = vadd.f32 %v5556, %v5844
  %v5846 = vpop.f32.mrf.mxu0
  %5847 = vmatprep.mubr.bf16.mxu0 0
  %5848 = vmatmul.mubr.bf16.gmra.mxu0 %v3883
  %v5849 = vpop.f32.mrf.mxu0
  %v5850 = vadd.f32 %v5561, %v5849
  %v5851 = vpop.f32.mrf.mxu0
  %v5852 = vpop.f32.mrf.mxu0
  %v5853 = vadd.f32 %v5564, %v5852
  %v5854 = vpop.f32.mrf.mxu0
  %5855 = vmatprep.mubr.bf16.mxu0 0
  %5856 = vmatmul.mubr.bf16.gmra.mxu0 %v3884
  %v5857 = vpop.f32.mrf.mxu0
  %v5858 = vadd.f32 %v5569, %v5857
  %v5859 = vpop.f32.mrf.mxu0
  %v5860 = vpop.f32.mrf.mxu0
  %v5861 = vadd.f32 %v5572, %v5860
  %v5862 = vpop.f32.mrf.mxu0
  %5863 = vmatprep.mubr.bf16.mxu0 0
  %5864 = vmatmul.mubr.bf16.gmra.mxu0 %v3885
  %v5865 = vpop.f32.mrf.mxu0
  %v5866 = vadd.f32 %v5577, %v5865
  %v5867 = vpop.f32.mrf.mxu0
  %v5868 = vpop.f32.mrf.mxu0
  %v5869 = vadd.f32 %v5580, %v5868
  %v5870 = vpop.f32.mrf.mxu0
  %5871 = vmatprep.mubr.bf16.mxu0 0
  %5872 = vmatmul.mubr.bf16.gmra.mxu0 %v3886
  %v5873 = vpop.f32.mrf.mxu0
  %v5874 = vadd.f32 %v5585, %v5873
  %v5875 = vpop.f32.mrf.mxu0
  %v5876 = vpop.f32.mrf.mxu0
  %v5877 = vadd.f32 %v5588, %v5876
  %v5878 = vpop.f32.mrf.mxu0
  %5879 = vmatprep.mubr.bf16.mxu0 0
  %5880 = vmatmul.mubr.bf16.gmra.mxu0 %v3887
  %v5881 = vpop.f32.mrf.mxu0
  %v5882 = vadd.f32 %v5593, %v5881
  %v5883 = vpop.f32.mrf.mxu0
  %v5884 = vpop.f32.mrf.mxu0
  %v5885 = vadd.f32 %v5596, %v5884
  %v5886 = vpop.f32.mrf.mxu0
  %5887 = vmatprep.mubr.bf16.mxu0 0
  %5888 = vmatmul.mubr.bf16.gmra.mxu0 %v3888
  %v5889 = vpop.f32.mrf.mxu0
  %v5890 = vadd.f32 %v5601, %v5889
  %v5891 = vpop.f32.mrf.mxu0
  %v5892 = vpop.f32.mrf.mxu0
  %v5893 = vadd.f32 %v5604, %v5892
  %v5894 = vpop.f32.mrf.mxu0
  %5895 = vmatprep.mubr.bf16.mxu0 0
  %5896 = vmatmul.mubr.bf16.gmra.mxu0 %v3889
  %v5897 = vpop.f32.mrf.mxu0
  %v5898 = vadd.f32 %v5609, %v5897
  %v5899 = vpop.f32.mrf.mxu0
  %v5900 = vpop.f32.mrf.mxu0
  %v5901 = vadd.f32 %v5612, %v5900
  %v5902 = vpop.f32.mrf.mxu0
  %5903 = vmatprep.mubr.bf16.mxu0 0
  %5904 = vmatmul.mubr.bf16.gmra.mxu0 %v3890
  %v5905 = vpop.f32.mrf.mxu0
  %v5906 = vadd.f32 %v5617, %v5905
  %v5907 = vpop.f32.mrf.mxu0
  %v5908 = vpop.f32.mrf.mxu0
  %v5909 = vadd.f32 %v5620, %v5908
  %v5910 = vpop.f32.mrf.mxu0
  %5911 = vmatprep.mubr.bf16.mxu0 0
  %5912 = vmatmul.mubr.bf16.gmra.mxu0 %v3891
  %v5913 = vpop.f32.mrf.mxu0
  %v5914 = vadd.f32 %v5625, %v5913
  %v5915 = vpop.f32.mrf.mxu0
  %v5916 = vpop.f32.mrf.mxu0
  %v5917 = vadd.f32 %v5628, %v5916
  %v5918 = vpop.f32.mrf.mxu0
  %5919 = vdwg.mxu0
  %v5920 = vmax.f32 %v5666, 0.0
  %v5921 = vmax.f32 %v5669, 0.0
  %v5922 = vmax.f32 %v5674, 0.0
  %v5923 = vmax.f32 %v5677, 0.0
  %v5924 = vmax.f32 %v5682, 0.0
  %v5925 = vmax.f32 %v5685, 0.0
  %v5926 = vmax.f32 %v5690, 0.0
  %v5927 = vmax.f32 %v5693, 0.0
  %v5928 = vmax.f32 %v5698, 0.0
  %v5929 = vmax.f32 %v5701, 0.0
  %v5930 = vmax.f32 %v5706, 0.0
  %v5931 = vmax.f32 %v5709, 0.0
  %v5932 = vmax.f32 %v5714, 0.0
  %v5933 = vmax.f32 %v5717, 0.0
  %v5934 = vmax.f32 %v5722, 0.0
  %v5935 = vmax.f32 %v5725, 0.0
  %v5936 = vmax.f32 %v5730, 0.0
  %v5937 = vmax.f32 %v5733, 0.0
  %v5938 = vmax.f32 %v5738, 0.0
  %v5939 = vmax.f32 %v5741, 0.0
  %v5940 = vmax.f32 %v5746, 0.0
  %v5941 = vmax.f32 %v5749, 0.0
  %v5942 = vmax.f32 %v5754, 0.0
  %v5943 = vmax.f32 %v5757, 0.0
  %v5944 = vmax.f32 %v5762, 0.0
  %v5945 = vmax.f32 %v5765, 0.0
  %v5946 = vmax.f32 %v5770, 0.0
  %v5947 = vmax.f32 %v5773, 0.0
  %v5948 = vmax.f32 %v5778, 0.0
  %v5949 = vmax.f32 %v5781, 0.0
  %v5950 = vmax.f32 %v5786, 0.0
  %v5951 = vmax.f32 %v5789, 0.0
  %v5952 = vmax.f32 %v5794, 0.0
  %v5953 = vmax.f32 %v5797, 0.0
  %v5954 = vmax.f32 %v5802, 0.0
  %v5955 = vmax.f32 %v5805, 0.0
  %v5956 = vmax.f32 %v5810, 0.0
  %v5957 = vmax.f32 %v5813, 0.0
  %v5958 = vmax.f32 %v5818, 0.0
  %v5959 = vmax.f32 %v5821, 0.0
  %v5960 = vmax.f32 %v5826, 0.0
  %v5961 = vmax.f32 %v5829, 0.0
  %v5962 = vmax.f32 %v5834, 0.0
  %v5963 = vmax.f32 %v5837, 0.0
  %v5964 = vmax.f32 %v5842, 0.0
  %v5965 = vmax.f32 %v5845, 0.0
  %v5966 = vmax.f32 %v5850, 0.0
  %v5967 = vmax.f32 %v5853, 0.0
  %v5968 = vmax.f32 %v5858, 0.0
  %v5969 = vmax.f32 %v5861, 0.0
  %v5970 = vmax.f32 %v5866, 0.0
  %v5971 = vmax.f32 %v5869, 0.0
  %v5972 = vmax.f32 %v5874, 0.0
  %v5973 = vmax.f32 %v5877, 0.0
  %v5974 = vmax.f32 %v5882, 0.0
  %v5975 = vmax.f32 %v5885, 0.0
  %v5976 = vmax.f32 %v5890, 0.0
  %v5977 = vmax.f32 %v5893, 0.0
  %v5978 = vmax.f32 %v5898, 0.0
  %v5979 = vmax.f32 %v5901, 0.0
  %v5980 = vmax.f32 %v5906, 0.0
  %v5981 = vmax.f32 %v5909, 0.0
  %v5982 = vmax.f32 %v5914, 0.0
  %v5983 = vmax.f32 %v5917, 0.0
  %v5984 = vld [vmem:[%s5] sm:$0xf]
  %v5985 = vld [vmem:[%s5 + $0x4] sm:$0xf]
  %v5986 = vld [vmem:[%s5 + $0x8] sm:$0xf]
  %v5987 = vld [vmem:[%s5 + $0xc] sm:$0xf]
  %v5988 = vld [vmem:[%s5 + $0x10] sm:$0x3]
  %v5989 = vld [vmem:[%s6] sm:$0x1]
  %v5991 = vlaneseq
  %v5992 = vshrl.u32 %v5991, 7
  %v5993 = vsub.s32 0, %v5992
  %v5994 = vrot.slane %v5989, %v5993
  %v6001 = vunpack.c.l.b16 %v5984
  %v6002 = vunpack.c.l.b16 %v5985
  %v6003 = vunpack.c.l.b16 %v5986
  %v6004 = vunpack.c.l.b16 %v5987
  %v6005 = vunpack.c.l.b16 %v5988
  %v6006 = vpack.c.b16 %v6002, %v6001
  %v6007 = vpack.c.b16 %v6004, %v6003
  %v6008 = vpack.c.b16 %v6005, %v6005
  %v6012 = vsel %vm2605, %v6008, 0
  %6014 = vmatprep.subr.bf16.mxu0 0
  %6015 = vmatpush1.bf16.msra.mxu0 0
  %6016 = vmatprep.subr.bf16.mxu0 0
  %6017 = vmatpush1.bf16.msra.mxu0 0
  %6018 = vmatprep.subr.bf16.mxu0 0
  %6019 = vmatpush1.bf16.msra.mxu0 0
  %6020 = vmatprep.subr.bf16.mxu0 0
  %6021 = vmatpush1.bf16.msra.mxu0 0
  %6022 = vmatprep.subr.bf16.mxu0 0
  %6023 = vmatpush1.bf16.msra.mxu0 0
  %6024 = vmatprep.subr.bf16.mxu0 0
  %6025 = vmatpush1.bf16.msra.mxu0 %v6012
  %6026 = vmatprep.subr.bf16.mxu0 0
  %6027 = vmatpush1.bf16.msra.mxu0 %v6007
  %6028 = vmatprep.subr.bf16.mxu0 0
  %6029 = vmatpush1.bf16.msra.mxu0 %v6006
  %6030 = vmatprep.subr.bf16.mxu0 0
  %6031 = vmatpush2.bf16.msra.mxu0 0
  %6032 = vmatprep.subr.bf16.mxu0 0
  %6033 = vmatpush2.bf16.msra.mxu0 0
  %6034 = vmatprep.subr.bf16.mxu0 0
  %6035 = vmatpush2.bf16.msra.mxu0 0
  %6036 = vmatprep.subr.bf16.mxu0 0
  %6037 = vmatpush2.bf16.msra.mxu0 0
  %6038 = vmatprep.subr.bf16.mxu0 0
  %6039 = vmatpush2.bf16.msra.mxu0 0
  %6040 = vmatprep.subr.bf16.mxu0 0
  %6041 = vmatpush2.bf16.msra.mxu0 0
  %6042 = vmatprep.subr.bf16.mxu0 0
  %6043 = vmatpush2.bf16.msra.mxu0 0
  %6044 = vmatprep.subr.bf16.mxu0 0
  %6045 = vmatpush2.bf16.msra.mxu0 0
  %6046 = vmatprep.mubr.bf16.mxu0 0
  %6047 = vmatmul.mubr.bf16.gmra.mxu0 %v2541
  %v6048 = vpop.f32.mrf.mxu0
  %v6049 = vadd.f32 %v5994, %v6048
  %v6050 = vpop.f32.mrf.mxu0
  %v6051 = vpop.f32.mrf.mxu0
  %v6052 = vadd.f32 %v5994, %v6051
  %v6053 = vpop.f32.mrf.mxu0
  %6054 = vmatprep.mubr.bf16.mxu0 0
  %6055 = vmatmul.mubr.bf16.gmra.mxu0 %v2543
  %v6056 = vpop.f32.mrf.mxu0
  %v6057 = vadd.f32 %v5994, %v6056
  %v6058 = vpop.f32.mrf.mxu0
  %v6059 = vpop.f32.mrf.mxu0
  %v6060 = vadd.f32 %v5994, %v6059
  %v6061 = vpop.f32.mrf.mxu0
  %6062 = vmatprep.mubr.bf16.mxu0 0
  %6063 = vmatmul.mubr.bf16.gmra.mxu0 %v2545
  %v6064 = vpop.f32.mrf.mxu0
  %v6065 = vadd.f32 %v5994, %v6064
  %v6066 = vpop.f32.mrf.mxu0
  %v6067 = vpop.f32.mrf.mxu0
  %v6068 = vadd.f32 %v5994, %v6067
  %v6069 = vpop.f32.mrf.mxu0
  %6070 = vmatprep.mubr.bf16.mxu0 0
  %6071 = vmatmul.mubr.bf16.gmra.mxu0 %v2547
  %v6072 = vpop.f32.mrf.mxu0
  %v6073 = vadd.f32 %v5994, %v6072
  %v6074 = vpop.f32.mrf.mxu0
  %v6075 = vpop.f32.mrf.mxu0
  %v6076 = vadd.f32 %v5994, %v6075
  %v6077 = vpop.f32.mrf.mxu0
  %6078 = vmatprep.mubr.bf16.mxu0 0
  %6079 = vmatmul.mubr.bf16.gmra.mxu0 %v2549
  %v6080 = vpop.f32.mrf.mxu0
  %v6081 = vadd.f32 %v5994, %v6080
  %v6082 = vpop.f32.mrf.mxu0
  %v6083 = vpop.f32.mrf.mxu0
  %v6084 = vadd.f32 %v5994, %v6083
  %v6085 = vpop.f32.mrf.mxu0
  %6086 = vmatprep.mubr.bf16.mxu0 0
  %6087 = vmatmul.mubr.bf16.gmra.mxu0 %v2551
  %v6088 = vpop.f32.mrf.mxu0
  %v6089 = vadd.f32 %v5994, %v6088
  %v6090 = vpop.f32.mrf.mxu0
  %v6091 = vpop.f32.mrf.mxu0
  %v6092 = vadd.f32 %v5994, %v6091
  %v6093 = vpop.f32.mrf.mxu0
  %6094 = vmatprep.mubr.bf16.mxu0 0
  %6095 = vmatmul.mubr.bf16.gmra.mxu0 %v2553
  %v6096 = vpop.f32.mrf.mxu0
  %v6097 = vadd.f32 %v5994, %v6096
  %v6098 = vpop.f32.mrf.mxu0
  %v6099 = vpop.f32.mrf.mxu0
  %v6100 = vadd.f32 %v5994, %v6099
  %v6101 = vpop.f32.mrf.mxu0
  %6102 = vmatprep.mubr.bf16.mxu0 0
  %6103 = vmatmul.mubr.bf16.gmra.mxu0 %v2555
  %v6104 = vpop.f32.mrf.mxu0
  %v6105 = vadd.f32 %v5994, %v6104
  %v6106 = vpop.f32.mrf.mxu0
  %v6107 = vpop.f32.mrf.mxu0
  %v6108 = vadd.f32 %v5994, %v6107
  %v6109 = vpop.f32.mrf.mxu0
  %6110 = vmatprep.mubr.bf16.mxu0 0
  %6111 = vmatmul.mubr.bf16.gmra.mxu0 %v2557
  %v6112 = vpop.f32.mrf.mxu0
  %v6113 = vadd.f32 %v5994, %v6112
  %v6114 = vpop.f32.mrf.mxu0
  %v6115 = vpop.f32.mrf.mxu0
  %v6116 = vadd.f32 %v5994, %v6115
  %v6117 = vpop.f32.mrf.mxu0
  %6118 = vmatprep.mubr.bf16.mxu0 0
  %6119 = vmatmul.mubr.bf16.gmra.mxu0 %v2559
  %v6120 = vpop.f32.mrf.mxu0
  %v6121 = vadd.f32 %v5994, %v6120
  %v6122 = vpop.f32.mrf.mxu0
  %v6123 = vpop.f32.mrf.mxu0
  %v6124 = vadd.f32 %v5994, %v6123
  %v6125 = vpop.f32.mrf.mxu0
  %6126 = vmatprep.mubr.bf16.mxu0 0
  %6127 = vmatmul.mubr.bf16.gmra.mxu0 %v2561
  %v6128 = vpop.f32.mrf.mxu0
  %v6129 = vadd.f32 %v5994, %v6128
  %v6130 = vpop.f32.mrf.mxu0
  %v6131 = vpop.f32.mrf.mxu0
  %v6132 = vadd.f32 %v5994, %v6131
  %v6133 = vpop.f32.mrf.mxu0
  %6134 = vmatprep.mubr.bf16.mxu0 0
  %6135 = vmatmul.mubr.bf16.gmra.mxu0 %v2563
  %v6136 = vpop.f32.mrf.mxu0
  %v6137 = vadd.f32 %v5994, %v6136
  %v6138 = vpop.f32.mrf.mxu0
  %v6139 = vpop.f32.mrf.mxu0
  %v6140 = vadd.f32 %v5994, %v6139
  %v6141 = vpop.f32.mrf.mxu0
  %6142 = vmatprep.mubr.bf16.mxu0 0
  %6143 = vmatmul.mubr.bf16.gmra.mxu0 %v2565
  %v6144 = vpop.f32.mrf.mxu0
  %v6145 = vadd.f32 %v5994, %v6144
  %v6146 = vpop.f32.mrf.mxu0
  %v6147 = vpop.f32.mrf.mxu0
  %v6148 = vadd.f32 %v5994, %v6147
  %v6149 = vpop.f32.mrf.mxu0
  %6150 = vmatprep.mubr.bf16.mxu0 0
  %6151 = vmatmul.mubr.bf16.gmra.mxu0 %v2567
  %v6152 = vpop.f32.mrf.mxu0
  %v6153 = vadd.f32 %v5994, %v6152
  %v6154 = vpop.f32.mrf.mxu0
  %v6155 = vpop.f32.mrf.mxu0
  %v6156 = vadd.f32 %v5994, %v6155
  %v6157 = vpop.f32.mrf.mxu0
  %6158 = vmatprep.mubr.bf16.mxu0 0
  %6159 = vmatmul.mubr.bf16.gmra.mxu0 %v2569
  %v6160 = vpop.f32.mrf.mxu0
  %v6161 = vadd.f32 %v5994, %v6160
  %v6162 = vpop.f32.mrf.mxu0
  %v6163 = vpop.f32.mrf.mxu0
  %v6164 = vadd.f32 %v5994, %v6163
  %v6165 = vpop.f32.mrf.mxu0
  %6166 = vmatprep.mubr.bf16.mxu0 0
  %6167 = vmatmul.mubr.bf16.gmra.mxu0 %v2571
  %v6168 = vpop.f32.mrf.mxu0
  %v6169 = vadd.f32 %v5994, %v6168
  %v6170 = vpop.f32.mrf.mxu0
  %v6171 = vpop.f32.mrf.mxu0
  %v6172 = vadd.f32 %v5994, %v6171
  %v6173 = vpop.f32.mrf.mxu0
  %6174 = vmatprep.mubr.bf16.mxu0 0
  %6175 = vmatmul.mubr.bf16.gmra.mxu0 %v2573
  %v6176 = vpop.f32.mrf.mxu0
  %v6177 = vadd.f32 %v5994, %v6176
  %v6178 = vpop.f32.mrf.mxu0
  %v6179 = vpop.f32.mrf.mxu0
  %v6180 = vadd.f32 %v5994, %v6179
  %v6181 = vpop.f32.mrf.mxu0
  %6182 = vmatprep.mubr.bf16.mxu0 0
  %6183 = vmatmul.mubr.bf16.gmra.mxu0 %v2575
  %v6184 = vpop.f32.mrf.mxu0
  %v6185 = vadd.f32 %v5994, %v6184
  %v6186 = vpop.f32.mrf.mxu0
  %v6187 = vpop.f32.mrf.mxu0
  %v6188 = vadd.f32 %v5994, %v6187
  %v6189 = vpop.f32.mrf.mxu0
  %6190 = vmatprep.mubr.bf16.mxu0 0
  %6191 = vmatmul.mubr.bf16.gmra.mxu0 %v2577
  %v6192 = vpop.f32.mrf.mxu0
  %v6193 = vadd.f32 %v5994, %v6192
  %v6194 = vpop.f32.mrf.mxu0
  %v6195 = vpop.f32.mrf.mxu0
  %v6196 = vadd.f32 %v5994, %v6195
  %v6197 = vpop.f32.mrf.mxu0
  %6198 = vmatprep.mubr.bf16.mxu0 0
  %6199 = vmatmul.mubr.bf16.gmra.mxu0 %v2579
  %v6200 = vpop.f32.mrf.mxu0
  %v6201 = vadd.f32 %v5994, %v6200
  %v6202 = vpop.f32.mrf.mxu0
  %v6203 = vpop.f32.mrf.mxu0
  %v6204 = vadd.f32 %v5994, %v6203
  %v6205 = vpop.f32.mrf.mxu0
  %6206 = vmatprep.mubr.bf16.mxu0 0
  %6207 = vmatmul.mubr.bf16.gmra.mxu0 %v2581
  %v6208 = vpop.f32.mrf.mxu0
  %v6209 = vadd.f32 %v5994, %v6208
  %v6210 = vpop.f32.mrf.mxu0
  %v6211 = vpop.f32.mrf.mxu0
  %v6212 = vadd.f32 %v5994, %v6211
  %v6213 = vpop.f32.mrf.mxu0
  %6214 = vmatprep.mubr.bf16.mxu0 0
  %6215 = vmatmul.mubr.bf16.gmra.mxu0 %v2583
  %v6216 = vpop.f32.mrf.mxu0
  %v6217 = vadd.f32 %v5994, %v6216
  %v6218 = vpop.f32.mrf.mxu0
  %v6219 = vpop.f32.mrf.mxu0
  %v6220 = vadd.f32 %v5994, %v6219
  %v6221 = vpop.f32.mrf.mxu0
  %6222 = vmatprep.mubr.bf16.mxu0 0
  %6223 = vmatmul.mubr.bf16.gmra.mxu0 %v2585
  %v6224 = vpop.f32.mrf.mxu0
  %v6225 = vadd.f32 %v5994, %v6224
  %v6226 = vpop.f32.mrf.mxu0
  %v6227 = vpop.f32.mrf.mxu0
  %v6228 = vadd.f32 %v5994, %v6227
  %v6229 = vpop.f32.mrf.mxu0
  %6230 = vmatprep.mubr.bf16.mxu0 0
  %6231 = vmatmul.mubr.bf16.gmra.mxu0 %v2587
  %v6232 = vpop.f32.mrf.mxu0
  %v6233 = vadd.f32 %v5994, %v6232
  %v6234 = vpop.f32.mrf.mxu0
  %v6235 = vpop.f32.mrf.mxu0
  %v6236 = vadd.f32 %v5994, %v6235
  %v6237 = vpop.f32.mrf.mxu0
  %6238 = vmatprep.mubr.bf16.mxu0 0
  %6239 = vmatmul.mubr.bf16.gmra.mxu0 %v2589
  %v6240 = vpop.f32.mrf.mxu0
  %v6241 = vadd.f32 %v5994, %v6240
  %v6242 = vpop.f32.mrf.mxu0
  %v6243 = vpop.f32.mrf.mxu0
  %v6244 = vadd.f32 %v5994, %v6243
  %v6245 = vpop.f32.mrf.mxu0
  %6246 = vmatprep.mubr.bf16.mxu0 0
  %6247 = vmatmul.mubr.bf16.gmra.mxu0 %v2591
  %v6248 = vpop.f32.mrf.mxu0
  %v6249 = vadd.f32 %v5994, %v6248
  %v6250 = vpop.f32.mrf.mxu0
  %v6251 = vpop.f32.mrf.mxu0
  %v6252 = vadd.f32 %v5994, %v6251
  %v6253 = vpop.f32.mrf.mxu0
  %6254 = vmatprep.mubr.bf16.mxu0 0
  %6255 = vmatmul.mubr.bf16.gmra.mxu0 %v2593
  %v6256 = vpop.f32.mrf.mxu0
  %v6257 = vadd.f32 %v5994, %v6256
  %v6258 = vpop.f32.mrf.mxu0
  %v6259 = vpop.f32.mrf.mxu0
  %v6260 = vadd.f32 %v5994, %v6259
  %v6261 = vpop.f32.mrf.mxu0
  %6262 = vmatprep.mubr.bf16.mxu0 0
  %6263 = vmatmul.mubr.bf16.gmra.mxu0 %v2595
  %v6264 = vpop.f32.mrf.mxu0
  %v6265 = vadd.f32 %v5994, %v6264
  %v6266 = vpop.f32.mrf.mxu0
  %v6267 = vpop.f32.mrf.mxu0
  %v6268 = vadd.f32 %v5994, %v6267
  %v6269 = vpop.f32.mrf.mxu0
  %6270 = vmatprep.mubr.bf16.mxu0 0
  %6271 = vmatmul.mubr.bf16.gmra.mxu0 %v2597
  %v6272 = vpop.f32.mrf.mxu0
  %v6273 = vadd.f32 %v5994, %v6272
  %v6274 = vpop.f32.mrf.mxu0
  %v6275 = vpop.f32.mrf.mxu0
  %v6276 = vadd.f32 %v5994, %v6275
  %v6277 = vpop.f32.mrf.mxu0
  %6278 = vmatprep.mubr.bf16.mxu0 0
  %6279 = vmatmul.mubr.bf16.gmra.mxu0 %v2599
  %v6280 = vpop.f32.mrf.mxu0
  %v6281 = vadd.f32 %v5994, %v6280
  %v6282 = vpop.f32.mrf.mxu0
  %v6283 = vpop.f32.mrf.mxu0
  %v6284 = vadd.f32 %v5994, %v6283
  %v6285 = vpop.f32.mrf.mxu0
  %6286 = vmatprep.mubr.bf16.mxu0 0
  %6287 = vmatmul.mubr.bf16.gmra.mxu0 %v2601
  %v6288 = vpop.f32.mrf.mxu0
  %v6289 = vadd.f32 %v5994, %v6288
  %v6290 = vpop.f32.mrf.mxu0
  %v6291 = vpop.f32.mrf.mxu0
  %v6292 = vadd.f32 %v5994, %v6291
  %v6293 = vpop.f32.mrf.mxu0
  %6294 = vmatprep.mubr.bf16.mxu0 0
  %6295 = vmatmul.mubr.bf16.gmra.mxu0 %v2603
  %v6296 = vpop.f32.mrf.mxu0
  %v6297 = vadd.f32 %v5994, %v6296
  %v6298 = vpop.f32.mrf.mxu0
  %v6299 = vpop.f32.mrf.mxu0
  %v6300 = vadd.f32 %v5994, %v6299
  %v6301 = vpop.f32.mrf.mxu0
  %6302 = vdwg.mxu0
  %v6303 = vadd.f32 %v5920, %v6049
  %v6304 = vadd.f32 %v5921, %v6052
  %v6305 = vadd.f32 %v5922, %v6057
  %v6306 = vadd.f32 %v5923, %v6060
  %v6307 = vadd.f32 %v5924, %v6065
  %v6308 = vadd.f32 %v5925, %v6068
  %v6309 = vadd.f32 %v5926, %v6073
  %v6310 = vadd.f32 %v5927, %v6076
  %v6311 = vadd.f32 %v5928, %v6081
  %v6312 = vadd.f32 %v5929, %v6084
  %v6313 = vadd.f32 %v5930, %v6089
  %v6314 = vadd.f32 %v5931, %v6092
  %v6315 = vadd.f32 %v5932, %v6097
  %v6316 = vadd.f32 %v5933, %v6100
  %v6317 = vadd.f32 %v5934, %v6105
  %v6318 = vadd.f32 %v5935, %v6108
  %v6319 = vadd.f32 %v5936, %v6113
  %v6320 = vadd.f32 %v5937, %v6116
  %v6321 = vadd.f32 %v5938, %v6121
  %v6322 = vadd.f32 %v5939, %v6124
  %v6323 = vadd.f32 %v5940, %v6129
  %v6324 = vadd.f32 %v5941, %v6132
  %v6325 = vadd.f32 %v5942, %v6137
  %v6326 = vadd.f32 %v5943, %v6140
  %v6327 = vadd.f32 %v5944, %v6145
  %v6328 = vadd.f32 %v5945, %v6148
  %v6329 = vadd.f32 %v5946, %v6153
  %v6330 = vadd.f32 %v5947, %v6156
  %v6331 = vadd.f32 %v5948, %v6161
  %v6332 = vadd.f32 %v5949, %v6164
  %v6333 = vadd.f32 %v5950, %v6169
  %v6334 = vadd.f32 %v5951, %v6172
  %v6335 = vadd.f32 %v5952, %v6177
  %v6336 = vadd.f32 %v5953, %v6180
  %v6337 = vadd.f32 %v5954, %v6185
  %v6338 = vadd.f32 %v5955, %v6188
  %v6339 = vadd.f32 %v5956, %v6193
  %v6340 = vadd.f32 %v5957, %v6196
  %v6341 = vadd.f32 %v5958, %v6201
  %v6342 = vadd.f32 %v5959, %v6204
  %v6343 = vadd.f32 %v5960, %v6209
  %v6344 = vadd.f32 %v5961, %v6212
  %v6345 = vadd.f32 %v5962, %v6217
  %v6346 = vadd.f32 %v5963, %v6220
  %v6347 = vadd.f32 %v5964, %v6225
  %v6348 = vadd.f32 %v5965, %v6228
  %v6349 = vadd.f32 %v5966, %v6233
  %v6350 = vadd.f32 %v5967, %v6236
  %v6351 = vadd.f32 %v5968, %v6241
  %v6352 = vadd.f32 %v5969, %v6244
  %v6353 = vadd.f32 %v5970, %v6249
  %v6354 = vadd.f32 %v5971, %v6252
  %v6355 = vadd.f32 %v5972, %v6257
  %v6356 = vadd.f32 %v5973, %v6260
  %v6357 = vadd.f32 %v5974, %v6265
  %v6358 = vadd.f32 %v5975, %v6268
  %v6359 = vadd.f32 %v5976, %v6273
  %v6360 = vadd.f32 %v5977, %v6276
  %v6361 = vadd.f32 %v5978, %v6281
  %v6362 = vadd.f32 %v5979, %v6284
  %v6363 = vadd.f32 %v5980, %v6289
  %v6364 = vadd.f32 %v5981, %v6292
  %v6365 = vadd.f32 %v5982, %v6297
  %v6366 = vadd.f32 %v5983, %v6300
  %6367 = vxpose.xlu0.b32.start [1/16] %v6303, 128
  %6368 = vxpose.xlu0.b32.cont [2/16] %v6304, 128
  %6369 = vxpose.xlu0.b32.cont [3/16] %v6305, 128
  %6370 = vxpose.xlu0.b32.cont [4/16] %v6306, 128
  %6371 = vxpose.xlu0.b32.cont [5/16] %v6307, 128
  %6372 = vxpose.xlu0.b32.cont [6/16] %v6308, 128
  %6373 = vxpose.xlu0.b32.cont [7/16] %v6309, 128
  %6374 = vxpose.xlu0.b32.cont [8/16] %v6310, 128
  %6375 = vxpose.xlu0.b32.cont [9/16] %v6311, 128
  %6376 = vxpose.xlu0.b32.cont [10/16] %v6312, 128
  %6377 = vxpose.xlu0.b32.cont [11/16] %v6313, 128
  %6378 = vxpose.xlu0.b32.cont [12/16] %v6314, 128
  %6379 = vxpose.xlu0.b32.cont [13/16] %v6315, 128
  %6380 = vxpose.xlu0.b32.cont [14/16] %v6316, 128
  %6381 = vxpose.xlu0.b32.cont [15/16] %v6317, 128
  %6382 = vxpose.xlu0.b32.end [16/16] %v6318, 128
  %v6383 = vpop.trf.xlu0
  %v6384 = vpop.trf.xlu0
  %v6385 = vpop.trf.xlu0
  %v6386 = vpop.trf.xlu0
  %v6387 = vpop.trf.xlu0
  %v6388 = vpop.trf.xlu0
  %v6389 = vpop.trf.xlu0
  %v6390 = vpop.trf.xlu0
  %v6391 = vpop.trf.xlu0
  %v6392 = vpop.trf.xlu0
  %v6393 = vpop.trf.xlu0
  %v6394 = vpop.trf.xlu0
  %v6395 = vpop.trf.xlu0
  %v6396 = vpop.trf.xlu0
  %v6397 = vpop.trf.xlu0
  %v6398 = vpop.trf.xlu0
  %6399 = vxpose.xlu0.b32.start [1/16] %v6319, 128
  %6400 = vxpose.xlu0.b32.cont [2/16] %v6320, 128
  %6401 = vxpose.xlu0.b32.cont [3/16] %v6321, 128
  %6402 = vxpose.xlu0.b32.cont [4/16] %v6322, 128
  %6403 = vxpose.xlu0.b32.cont [5/16] %v6323, 128
  %6404 = vxpose.xlu0.b32.cont [6/16] %v6324, 128
  %6405 = vxpose.xlu0.b32.cont [7/16] %v6325, 128
  %6406 = vxpose.xlu0.b32.cont [8/16] %v6326, 128
  %6407 = vxpose.xlu0.b32.cont [9/16] %v6327, 128
  %6408 = vxpose.xlu0.b32.cont [10/16] %v6328, 128
  %6409 = vxpose.xlu0.b32.cont [11/16] %v6329, 128
  %6410 = vxpose.xlu0.b32.cont [12/16] %v6330, 128
  %6411 = vxpose.xlu0.b32.cont [13/16] %v6331, 128
  %6412 = vxpose.xlu0.b32.cont [14/16] %v6332, 128
  %6413 = vxpose.xlu0.b32.cont [15/16] %v6333, 128
  %6414 = vxpose.xlu0.b32.end [16/16] %v6334, 128
  %v6415 = vpop.trf.xlu0
  %v6416 = vpop.trf.xlu0
  %v6417 = vpop.trf.xlu0
  %v6418 = vpop.trf.xlu0
  %v6419 = vpop.trf.xlu0
  %v6420 = vpop.trf.xlu0
  %v6421 = vpop.trf.xlu0
  %v6422 = vpop.trf.xlu0
  %v6423 = vpop.trf.xlu0
  %v6424 = vpop.trf.xlu0
  %v6425 = vpop.trf.xlu0
  %v6426 = vpop.trf.xlu0
  %v6427 = vpop.trf.xlu0
  %v6428 = vpop.trf.xlu0
  %v6429 = vpop.trf.xlu0
  %v6430 = vpop.trf.xlu0
  %6431 = vst [vmem:[%s7] sm:$0xff] %v6383
  %6432 = vst [vmem:[%s7 + $0x8] sm:$0xff] %v6415
  %6433 = vxpose.xlu0.b32.start [1/16] %v6335, 128
  %6434 = vxpose.xlu0.b32.cont [2/16] %v6336, 128
  %6435 = vxpose.xlu0.b32.cont [3/16] %v6337, 128
  %6436 = vxpose.xlu0.b32.cont [4/16] %v6338, 128
  %6437 = vxpose.xlu0.b32.cont [5/16] %v6339, 128
  %6438 = vxpose.xlu0.b32.cont [6/16] %v6340, 128
  %6439 = vxpose.xlu0.b32.cont [7/16] %v6341, 128
  %6440 = vxpose.xlu0.b32.cont [8/16] %v6342, 128
  %6441 = vxpose.xlu0.b32.cont [9/16] %v6343, 128
  %6442 = vxpose.xlu0.b32.cont [10/16] %v6344, 128
  %6443 = vxpose.xlu0.b32.cont [11/16] %v6345, 128
  %6444 = vxpose.xlu0.b32.cont [12/16] %v6346, 128
  %6445 = vxpose.xlu0.b32.cont [13/16] %v6347, 128
  %6446 = vxpose.xlu0.b32.cont [14/16] %v6348, 128
  %6447 = vxpose.xlu0.b32.cont [15/16] %v6349, 128
  %6448 = vxpose.xlu0.b32.end [16/16] %v6350, 128
  %v6449 = vpop.trf.xlu0
  %v6450 = vpop.trf.xlu0
  %v6451 = vpop.trf.xlu0
  %v6452 = vpop.trf.xlu0
  %v6453 = vpop.trf.xlu0
  %v6454 = vpop.trf.xlu0
  %v6455 = vpop.trf.xlu0
  %v6456 = vpop.trf.xlu0
  %v6457 = vpop.trf.xlu0
  %v6458 = vpop.trf.xlu0
  %v6459 = vpop.trf.xlu0
  %v6460 = vpop.trf.xlu0
  %v6461 = vpop.trf.xlu0
  %v6462 = vpop.trf.xlu0
  %v6463 = vpop.trf.xlu0
  %v6464 = vpop.trf.xlu0
  %6465 = vxpose.xlu0.b32.start [1/16] %v6351, 128
  %6466 = vxpose.xlu0.b32.cont [2/16] %v6352, 128
  %6467 = vxpose.xlu0.b32.cont [3/16] %v6353, 128
  %6468 = vxpose.xlu0.b32.cont [4/16] %v6354, 128
  %6469 = vxpose.xlu0.b32.cont [5/16] %v6355, 128
  %6470 = vxpose.xlu0.b32.cont [6/16] %v6356, 128
  %6471 = vxpose.xlu0.b32.cont [7/16] %v6357, 128
  %6472 = vxpose.xlu0.b32.cont [8/16] %v6358, 128
  %6473 = vxpose.xlu0.b32.cont [9/16] %v6359, 128
  %6474 = vxpose.xlu0.b32.cont [10/16] %v6360, 128
  %6475 = vxpose.xlu0.b32.cont [11/16] %v6361, 128
  %6476 = vxpose.xlu0.b32.cont [12/16] %v6362, 128
  %6477 = vxpose.xlu0.b32.cont [13/16] %v6363, 128
  %6478 = vxpose.xlu0.b32.cont [14/16] %v6364, 128
  %6479 = vxpose.xlu0.b32.cont [15/16] %v6365, 128
  %6480 = vxpose.xlu0.b32.end [16/16] %v6366, 128
  %v6481 = vpop.trf.xlu0
  %v6482 = vpop.trf.xlu0
  %v6483 = vpop.trf.xlu0
  %v6484 = vpop.trf.xlu0
  %v6485 = vpop.trf.xlu0
  %v6486 = vpop.trf.xlu0
  %v6487 = vpop.trf.xlu0
  %v6488 = vpop.trf.xlu0
  %v6489 = vpop.trf.xlu0
  %v6490 = vpop.trf.xlu0
  %v6491 = vpop.trf.xlu0
  %v6492 = vpop.trf.xlu0
  %v6493 = vpop.trf.xlu0
  %v6494 = vpop.trf.xlu0
  %v6495 = vpop.trf.xlu0
  %v6496 = vpop.trf.xlu0
  %s6497 = scalar_lea.vmem %s7, 16
  %6498 = vst [vmem:[%s6497] sm:$0xff] %v6449
  %6499 = vst [vmem:[%s6497 + $0x8] sm:$0xff] %v6481
  // Predicated region
  $region30: #{basic_block_forward.1} parent=0 // pred_check
    _
  $region31: #{basic_block_forward.1} parent=0 // pred_check_branch
    %6501 = sbr.rel (0) target = $region33
  $region32: #{basic_block_forward.1} parent=0 // pred_region
    _
  $region33: #{basic_block_forward.1} parent=0 // pred_fallthru
    _
  // Predicated region
  $region34: #{basic_block_forward.1} parent=0 // pred_check
    _
  $region35: #{basic_block_forward.1} parent=0 // pred_check_branch
    %6503 = sbr.rel (0) target = $region37
  $region36: #{basic_block_forward.1} parent=0 // pred_region
    _
  $region37: #{basic_block_forward.1} parent=0 // pred_fallthru
    _

</llo_original>
